<compile_context>
chip_gen: v5e
topology: v5e:2x2
jax: 0.10.0
libtpu: 0.0.40
codegen_flags: <defaults>
</compile_context>

<pallas_src>
import math

import jax
import jax.numpy as jnp
from jax.experimental import pallas as pl
from jax.experimental.pallas import tpu as pltpu


# ---------------------------------------------------------------------------
# Fused whole-network kernel (one grid step per batch image)
# ---------------------------------------------------------------------------
def _merge_fused_kernel(
    x0_ref, x1_ref, x2_ref, x3_ref,
    u1t_ref, u2t_ref, u3t_ref,
    s2t_ref, s4t_ref, s6t_ref,
    w1u_ref, w1s_ref, b1_ref,
    w2_ref, b2_ref,
    w3u_ref, w3s_ref, b3_ref,
    w4_ref, b4_ref,
    w5u_ref, w5s_ref, b5_ref,
    w6_ref, b6_ref,
    w7_ref, b7_ref,
    o_ref,
):
    bf16 = jnp.bfloat16

    def mm(a, b):
        return jnp.dot(a, b, preferred_element_type=jnp.float32)

    def conv1x1_bn_relu(xa, xb, wa_ref, wb_ref, b_ref):
        # xa:[Ca,M] xb:[Cb,M] bf16 ; wa:[Co,Ca] wb:[Co,Cb] bf16 ; b:[Co,1] f32
        acc = mm(wa_ref[...], xa) + mm(wb_ref[...], xb) + b_ref[...]
        return jnp.maximum(acc, 0.0).astype(bf16)

    def conv3x3_bn_relu(x, s_ref, w_ref, b_ref, keep_f32=False):
        # x:[Ci,M] bf16 ; s_ref:[9,M,M] bf16 (transposed 0/1 shifts)
        # w_ref:[9,Co,Ci] bf16 ; b:[Co,1] f32
        acc = None
        for k in range(9):
            xs = mm(x, s_ref[k]).astype(bf16)   # spatial shift (exact: S is 0/1)
            p = mm(w_ref[k], xs)                # [Co, M] f32 accumulate
            acc = p if acc is None else acc + p
        acc = jnp.maximum(acc + b_ref[...], 0.0)
        return acc if keep_f32 else acc.astype(bf16)

    x0 = x0_ref[...]
    x1 = x1_ref[...]
    x2 = x2_ref[...]
    x3 = x3_ref[...]

    # ---- stage 1 : x3 upsampled to x2's spatial --------------------------
    y = mm(x3, u1t_ref[...]).astype(bf16)                       # [512, M1]
    y = conv1x1_bn_relu(y, x2, w1u_ref, w1s_ref, b1_ref)        # [128, M1]
    y = conv3x3_bn_relu(y, s2t_ref, w2_ref, b2_ref)             # [128, M1]

    # ---- stage 2 : upsampled to x1's spatial ------------------------------
    y = mm(y, u2t_ref[...]).astype(bf16)                        # [128, M2]
    y = conv1x1_bn_relu(y, x1, w3u_ref, w3s_ref, b3_ref)        # [64, M2]
    y = conv3x3_bn_relu(y, s4t_ref, w4_ref, b4_ref)             # [64, M2]

    # ---- stage 3 : upsampled to x0's spatial ------------------------------
    y = mm(y, u3t_ref[...]).astype(bf16)                        # [64, M3]
    y = conv1x1_bn_relu(y, x0, w5u_ref, w5s_ref, b5_ref)        # [32, M3]
    y = conv3x3_bn_relu(y, s6t_ref, w6_ref, b6_ref)             # [32, M3]
    y = conv3x3_bn_relu(y, s6t_ref, w7_ref, b7_ref, keep_f32=True)

    o_ref[...] = y                                              # lane-dense [32, M3]


# ---------------------------------------------------------------------------
# Constant matrices: bilinear-upsample and 3x3 shift operators (channels-major)
# ---------------------------------------------------------------------------
def _upsample_matrix_1d(n_in):
    """[2*n_in, n_in] operator of F.interpolate(scale=2, bilinear, align_corners=True)."""
    n_out = 2 * n_in
    pos = jnp.arange(n_out, dtype=jnp.float32) * (n_in - 1) / max(n_out - 1, 1)
    lo = jnp.floor(pos).astype(jnp.int32)
    hi = jnp.minimum(lo + 1, n_in - 1)
    frac = pos - lo.astype(jnp.float32)
    return ((1.0 - frac)[:, None] * jax.nn.one_hot(lo, n_in, dtype=jnp.float32)
            + frac[:, None] * jax.nn.one_hot(hi, n_in, dtype=jnp.float32))


def _upsample_matrix_t(h, w):
    """Transposed 2-D upsample operator [h*w, 4*h*w]: up^T = x^T @ U^T."""
    u = jnp.kron(_upsample_matrix_1d(h), _upsample_matrix_1d(w))   # [4hw, hw]
    return u.T


def _shift_matrices_t(h, w):
    """Transposed 0/1 shift operators for a 3x3 / padding=1 conv: [9, h*w, h*w]."""
    hh, ww = jnp.meshgrid(jnp.arange(h), jnp.arange(w), indexing="ij")
    mats = []
    for ky in range(3):
        for kx in range(3):
            sh, sw = hh + (ky - 1), ww + (kx - 1)
            valid = ((sh >= 0) & (sh < h) & (sw >= 0) & (sw < w)).astype(jnp.float32)
            src = jnp.clip(sh, 0, h - 1) * w + jnp.clip(sw, 0, w - 1)
            s = jax.nn.one_hot(src.reshape(-1), h * w, dtype=jnp.float32)
            mats.append((s * valid.reshape(-1, 1)).T)   # transposed: acts as x @ S^T
    return jnp.stack(mats)


# ---------------------------------------------------------------------------
# Parameters (deterministic init matching the PyTorch module, BN eval folded)
# ---------------------------------------------------------------------------
_CONV_SPECS = [  # (cin, cout, ksize, cin_from_upsampled_path or None)
    (1024, 128, 1, 512),
    (128, 128, 3, None),
    (384, 64, 1, 128),
    (64, 64, 3, None),
    (192, 32, 1, 64),
    (32, 32, 3, None),
    (32, 32, 3, None),
]


def make_params(key):
    eps = 1e-5
    params = {}
    for idx, (cin, cout, k, csplit) in enumerate(_CONV_SPECS, start=1):
        key, sub = jax.random.split(key)
        std = math.sqrt(2.0 / (cout * k * k))               # kaiming fan_out / relu
        w = jax.random.normal(sub, (cout, cin, k, k), jnp.float32) * std
        bias = jnp.zeros((cout,), jnp.float32)              # nn.init.constant_(bias, 0)
        gamma = jnp.ones((cout,), jnp.float32)               # BN weight = 1
        beta = jnp.zeros((cout,), jnp.float32)               # BN bias = 0
        rmean = jnp.zeros((cout,), jnp.float32)              # BN running stats (eval)
        rvar = jnp.ones((cout,), jnp.float32)
        scale = gamma / jnp.sqrt(rvar + eps)
        shift = beta - rmean * scale
        b_eff = (bias * scale + shift).reshape(cout, 1)       # [Cout, 1] f32 epilogue
        if k == 1:
            wt = (w[:, :, 0, 0] * scale[:, None]).astype(jnp.bfloat16)   # [Cout, Cin]
            params[f"l{idx}"] = (wt[:, :csplit], wt[:, csplit:], b_eff)
        else:
            wt = (jnp.transpose(w, (2, 3, 0, 1)).reshape(9, cout, cin)
                  * scale[None, :, None]).astype(jnp.bfloat16)           # [9,Cout,Cin]
            params[f"l{idx}"] = (wt, b_eff)
    return params


# ---------------------------------------------------------------------------
# Forward pass (matches merge.forward; NCHW in / NCHW out)
# ---------------------------------------------------------------------------
def merge_forward(x0, x1, x2, x3, params):
    N, c0, H0, W0 = x0.shape
    _, c1, H1, W1 = x1.shape
    _, c2, H2, W2 = x2.shape
    _, c3, H3, W3 = x3.shape
    assert (2 * H3, 2 * W3) == (H2, W2)
    assert (2 * H2, 2 * W2) == (H1, W1)
    assert (2 * H1, 2 * W1) == (H0, W0)
    M1, M2, M3 = H2 * W2, H1 * W1, H0 * W0

    bf16 = jnp.bfloat16
    # NCHW -> channels-major [N, C, H*W]; pure reshape + bf16 cast, no transpose.
    f0 = x0.reshape(N, c0, M3).astype(bf16)
    f1 = x1.reshape(N, c1, M2).astype(bf16)
    f2 = x2.reshape(N, c2, M1).astype(bf16)
    f3 = x3.reshape(N, c3, H3 * W3).astype(bf16)

    # Static-shape constant operators (constant-folded under jit).
    u1t = _upsample_matrix_t(H3, W3).astype(bf16)      # [H3W3, M1]
    u2t = _upsample_matrix_t(H2, W2).astype(bf16)      # [M1, M2]
    u3t = _upsample_matrix_t(H1, W1).astype(bf16)      # [M2, M3]
    s2t = _shift_matrices_t(H2, W2).astype(bf16)       # [9, M1, M1]
    s4t = _shift_matrices_t(H1, W1).astype(bf16)       # [9, M2, M2]
    s6t = _shift_matrices_t(H0, W0).astype(bf16)       # [9, M3, M3]

    w1u, w1s, b1 = params["l1"]
    w2, b2 = params["l2"]
    w3u, w3s, b3 = params["l3"]
    w4, b4 = params["l4"]
    w5u, w5s, b5 = params["l5"]
    w6, b6 = params["l6"]
    w7, b7 = params["l7"]

    img = lambda c, m: pl.BlockSpec((None, c, m), lambda n: (n, 0, 0))
    c2d = lambda a: pl.BlockSpec(a.shape, lambda n: (0, 0))
    c3d = lambda a: pl.BlockSpec(a.shape, lambda n: (0, 0, 0))

    out = pl.pallas_call(
        _merge_fused_kernel,
        out_shape=jax.ShapeDtypeStruct((N, 32, M3), jnp.float32),
        grid=(N,),
        in_specs=[
            img(c0, M3), img(c1, M2), img(c2, M1), img(c3, H3 * W3),
            c2d(u1t), c2d(u2t), c2d(u3t),
            c3d(s2t), c3d(s4t), c3d(s6t),
            c2d(w1u), c2d(w1s), c2d(b1),
            c3d(w2), c2d(b2),
            c2d(w3u), c2d(w3s), c2d(b3),
            c3d(w4), c2d(b4),
            c2d(w5u), c2d(w5s), c2d(b5),
            c3d(w6), c2d(b6),
            c3d(w7), c2d(b7),
        ],
        out_specs=pl.BlockSpec((None, 32, M3), lambda n: (n, 0, 0)),
        compiler_params=pltpu.CompilerParams(
            dimension_semantics=("parallel",)),
    )(f0, f1, f2, f3, u1t, u2t, u3t, s2t, s4t, s6t,
      w1u, w1s, b1, w2, b2, w3u, w3s, b3, w4, b4,
      w5u, w5s, b5, w6, b6, w7, b7)

    return out.reshape(N, 32, H0, W0)   # channels-major output is already NCHW


if __name__ == "__main__":
    key = jax.random.PRNGKey(0)
    kp, k0, k1, k2, k3 = jax.random.split(key, 5)
    params = make_params(kp)

    # Small pyramid consistent with the module's channel contract (NCHW):
    # x0: 128ch @16x16, x1: 256ch @8x8, x2: 512ch @4x4, x3: 512ch @2x2
    N = 2
    x0 = jax.random.normal(k0, (N, 128, 16, 16), jnp.float32)
    x1 = jax.random.normal(k1, (N, 256, 8, 8), jnp.float32)
    x2 = jax.random.normal(k2, (N, 512, 4, 4), jnp.float32)
    x3 = jax.random.normal(k3, (N, 512, 2, 2), jnp.float32)

    fwd = jax.jit(lambda a, b, c, d: merge_forward(a, b, c, d, params))
    out = fwd(x0, x1, x2, x3)
    jax.block_until_ready(out)

    assert out.shape == (N, 32, 16, 16), out.shape
    assert bool(jnp.all(out >= 0.0))   # final ReLU
    print("KERNEL_OK")
</pallas_src>

<mosaic_0001>
module attributes {stable_mosaic.version = 11 : i64} {
  func.func @_merge_fused_kernel(%arg0: i32, %arg1: memref<1x128x256xbf16, #tpu.memory_space<vmem>>, %arg2: memref<1x256x64xbf16, #tpu.memory_space<vmem>>, %arg3: memref<1x512x16xbf16, #tpu.memory_space<vmem>>, %arg4: memref<1x512x4xbf16, #tpu.memory_space<vmem>>, %arg5: memref<4x16xbf16, #tpu.memory_space<vmem>>, %arg6: memref<16x64xbf16, #tpu.memory_space<vmem>>, %arg7: memref<64x256xbf16, #tpu.memory_space<vmem>>, %arg8: memref<9x16x16xbf16, #tpu.memory_space<vmem>>, %arg9: memref<9x64x64xbf16, #tpu.memory_space<vmem>>, %arg10: memref<9x256x256xbf16, #tpu.memory_space<vmem>>, %arg11: memref<128x512xbf16, #tpu.memory_space<vmem>>, %arg12: memref<128x512xbf16, #tpu.memory_space<vmem>>, %arg13: memref<128x1xf32, #tpu.memory_space<vmem>>, %arg14: memref<9x128x128xbf16, #tpu.memory_space<vmem>>, %arg15: memref<128x1xf32, #tpu.memory_space<vmem>>, %arg16: memref<64x128xbf16, #tpu.memory_space<vmem>>, %arg17: memref<64x256xbf16, #tpu.memory_space<vmem>>, %arg18: memref<64x1xf32, #tpu.memory_space<vmem>>, %arg19: memref<9x64x64xbf16, #tpu.memory_space<vmem>>, %arg20: memref<64x1xf32, #tpu.memory_space<vmem>>, %arg21: memref<32x64xbf16, #tpu.memory_space<vmem>>, %arg22: memref<32x128xbf16, #tpu.memory_space<vmem>>, %arg23: memref<32x1xf32, #tpu.memory_space<vmem>>, %arg24: memref<9x32x32xbf16, #tpu.memory_space<vmem>>, %arg25: memref<32x1xf32, #tpu.memory_space<vmem>>, %arg26: memref<9x32x32xbf16, #tpu.memory_space<vmem>>, %arg27: memref<32x1xf32, #tpu.memory_space<vmem>>, %arg28: memref<1x32x256xf32, #tpu.memory_space<vmem>>) attributes {dimension_semantics = [#tpu.dimension_semantics<parallel>], iteration_bounds = array<i64: 2>, scalar_prefetch = 0 : i64, scratch_operands = 0 : i64, tpu.core_type = #tpu.core_type<tc>, window_params = [{transform_indices = @transform_0, window_bounds = array<i64: 1, 128, 256>}, {transform_indices = @transform_1, window_bounds = array<i64: 1, 256, 64>}, {transform_indices = @transform_2, window_bounds = array<i64: 1, 512, 16>}, {transform_indices = @transform_3, window_bounds = array<i64: 1, 512, 4>}, {pipeline_mode = #tpu.pipeline_mode<synchronous>, transform_indices = @transform_4, window_bounds = array<i64: 4, 16>}, {pipeline_mode = #tpu.pipeline_mode<synchronous>, transform_indices = @transform_5, window_bounds = array<i64: 16, 64>}, {pipeline_mode = #tpu.pipeline_mode<synchronous>, transform_indices = @transform_6, window_bounds = array<i64: 64, 256>}, {pipeline_mode = #tpu.pipeline_mode<synchronous>, transform_indices = @transform_7, window_bounds = array<i64: 9, 16, 16>}, {pipeline_mode = #tpu.pipeline_mode<synchronous>, transform_indices = @transform_8, window_bounds = array<i64: 9, 64, 64>}, {pipeline_mode = #tpu.pipeline_mode<synchronous>, transform_indices = @transform_9, window_bounds = array<i64: 9, 256, 256>}, {pipeline_mode = #tpu.pipeline_mode<synchronous>, transform_indices = @transform_10, window_bounds = array<i64: 128, 512>}, {pipeline_mode = #tpu.pipeline_mode<synchronous>, transform_indices = @transform_11, window_bounds = array<i64: 128, 512>}, {pipeline_mode = #tpu.pipeline_mode<synchronous>, transform_indices = @transform_12, window_bounds = array<i64: 128, 1>}, {pipeline_mode = #tpu.pipeline_mode<synchronous>, transform_indices = @transform_13, window_bounds = array<i64: 9, 128, 128>}, {pipeline_mode = #tpu.pipeline_mode<synchronous>, transform_indices = @transform_14, window_bounds = array<i64: 128, 1>}, {pipeline_mode = #tpu.pipeline_mode<synchronous>, transform_indices = @transform_15, window_bounds = array<i64: 64, 128>}, {pipeline_mode = #tpu.pipeline_mode<synchronous>, transform_indices = @transform_16, window_bounds = array<i64: 64, 256>}, {pipeline_mode = #tpu.pipeline_mode<synchronous>, transform_indices = @transform_17, window_bounds = array<i64: 64, 1>}, {pipeline_mode = #tpu.pipeline_mode<synchronous>, transform_indices = @transform_18, window_bounds = array<i64: 9, 64, 64>}, {pipeline_mode = #tpu.pipeline_mode<synchronous>, transform_indices = @transform_19, window_bounds = array<i64: 64, 1>}, {pipeline_mode = #tpu.pipeline_mode<synchronous>, transform_indices = @transform_20, window_bounds = array<i64: 32, 64>}, {pipeline_mode = #tpu.pipeline_mode<synchronous>, transform_indices = @transform_21, window_bounds = array<i64: 32, 128>}, {pipeline_mode = #tpu.pipeline_mode<synchronous>, transform_indices = @transform_22, window_bounds = array<i64: 32, 1>}, {pipeline_mode = #tpu.pipeline_mode<synchronous>, transform_indices = @transform_23, window_bounds = array<i64: 9, 32, 32>}, {pipeline_mode = #tpu.pipeline_mode<synchronous>, transform_indices = @transform_24, window_bounds = array<i64: 32, 1>}, {pipeline_mode = #tpu.pipeline_mode<synchronous>, transform_indices = @transform_25, window_bounds = array<i64: 9, 32, 32>}, {pipeline_mode = #tpu.pipeline_mode<synchronous>, transform_indices = @transform_26, window_bounds = array<i64: 32, 1>}, {transform_indices = @transform_27, window_bounds = array<i64: 1, 32, 256>}]} {
    %c0 = arith.constant 0 : index
    %c0_0 = arith.constant 0 : index
    %c0_1 = arith.constant 0 : index
    %0 = vector.load %arg1[%c0, %c0_0, %c0_1] : memref<1x128x256xbf16, #tpu.memory_space<vmem>>, vector<1x128x256xbf16>
    %1 = vector.shape_cast %0 : vector<1x128x256xbf16> to vector<128x256xbf16>
    %c0_2 = arith.constant 0 : index
    %c0_3 = arith.constant 0 : index
    %c0_4 = arith.constant 0 : index
    %2 = vector.load %arg2[%c0_2, %c0_3, %c0_4] : memref<1x256x64xbf16, #tpu.memory_space<vmem>>, vector<1x256x64xbf16>
    %3 = vector.shape_cast %2 : vector<1x256x64xbf16> to vector<256x64xbf16>
    %c0_5 = arith.constant 0 : index
    %c0_6 = arith.constant 0 : index
    %c0_7 = arith.constant 0 : index
    %4 = vector.load %arg3[%c0_5, %c0_6, %c0_7] : memref<1x512x16xbf16, #tpu.memory_space<vmem>>, vector<1x512x16xbf16>
    %5 = vector.shape_cast %4 : vector<1x512x16xbf16> to vector<512x16xbf16>
    %c0_8 = arith.constant 0 : index
    %c0_9 = arith.constant 0 : index
    %c0_10 = arith.constant 0 : index
    %6 = vector.load %arg4[%c0_8, %c0_9, %c0_10] : memref<1x512x4xbf16, #tpu.memory_space<vmem>>, vector<1x512x4xbf16>
    %7 = vector.shape_cast %6 : vector<1x512x4xbf16> to vector<512x4xbf16>
    %c0_11 = arith.constant 0 : index
    %c0_12 = arith.constant 0 : index
    %8 = vector.load %arg5[%c0_11, %c0_12] : memref<4x16xbf16, #tpu.memory_space<vmem>>, vector<4x16xbf16>
    %cst = arith.constant dense<0.000000e+00> : vector<512x16xf32>
    %9 = tpu.matmul %7, %8, %cst {dimension_numbers = #tpu.dot_dimension_numbers<[1], [0], [0], [1], [0, 0, 1, 1], [], []>} : vector<512x4xbf16>, vector<4x16xbf16>, vector<512x16xf32> -> vector<512x16xf32>
    %10 = arith.truncf %9 : vector<512x16xf32> to vector<512x16xbf16>
    %c0_13 = arith.constant 0 : index
    %c0_14 = arith.constant 0 : index
    %11 = vector.load %arg11[%c0_13, %c0_14] : memref<128x512xbf16, #tpu.memory_space<vmem>>, vector<128x512xbf16>
    %cst_15 = arith.constant dense<0.000000e+00> : vector<128x16xf32>
    %12 = tpu.matmul %11, %10, %cst_15 {dimension_numbers = #tpu.dot_dimension_numbers<[1], [0], [0], [1], [0, 0, 1, 1], [], []>} : vector<128x512xbf16>, vector<512x16xbf16>, vector<128x16xf32> -> vector<128x16xf32>
    %c0_16 = arith.constant 0 : index
    %c0_17 = arith.constant 0 : index
    %13 = vector.load %arg12[%c0_16, %c0_17] : memref<128x512xbf16, #tpu.memory_space<vmem>>, vector<128x512xbf16>
    %cst_18 = arith.constant dense<0.000000e+00> : vector<128x16xf32>
    %14 = tpu.matmul %13, %5, %cst_18 {dimension_numbers = #tpu.dot_dimension_numbers<[1], [0], [0], [1], [0, 0, 1, 1], [], []>} : vector<128x512xbf16>, vector<512x16xbf16>, vector<128x16xf32> -> vector<128x16xf32>
    %15 = arith.addf %12, %14 : vector<128x16xf32>
    %c0_19 = arith.constant 0 : index
    %c0_20 = arith.constant 0 : index
    %16 = vector.load %arg13[%c0_19, %c0_20] : memref<128x1xf32, #tpu.memory_space<vmem>>, vector<128x1xf32>
    %17 = vector.broadcast %16 : vector<128x1xf32> to vector<128x16xf32>
    %18 = arith.addf %15, %17 : vector<128x16xf32>
    %cst_21 = arith.constant 0.000000e+00 : f32
    %19 = vector.broadcast %cst_21 : f32 to vector<128x16xf32>
    %20 = arith.maximumf %18, %19 : vector<128x16xf32>
    %21 = arith.truncf %20 : vector<128x16xf32> to vector<128x16xbf16>
    %c0_22 = arith.constant 0 : index
    %c0_23 = arith.constant 0 : index
    %c0_24 = arith.constant 0 : index
    %22 = vector.load %arg8[%c0_22, %c0_23, %c0_24] : memref<9x16x16xbf16, #tpu.memory_space<vmem>>, vector<1x16x16xbf16>
    %23 = vector.shape_cast %22 : vector<1x16x16xbf16> to vector<16x16xbf16>
    %cst_25 = arith.constant dense<0.000000e+00> : vector<128x16xf32>
    %24 = tpu.matmul %21, %23, %cst_25 {dimension_numbers = #tpu.dot_dimension_numbers<[1], [0], [0], [1], [0, 0, 1, 1], [], []>} : vector<128x16xbf16>, vector<16x16xbf16>, vector<128x16xf32> -> vector<128x16xf32>
    %25 = arith.truncf %24 : vector<128x16xf32> to vector<128x16xbf16>
    %c0_26 = arith.constant 0 : index
    %c0_27 = arith.constant 0 : index
    %c0_28 = arith.constant 0 : index
    %26 = vector.load %arg14[%c0_26, %c0_27, %c0_28] : memref<9x128x128xbf16, #tpu.memory_space<vmem>>, vector<1x128x128xbf16>
    %27 = vector.shape_cast %26 : vector<1x128x128xbf16> to vector<128x128xbf16>
    %cst_29 = arith.constant dense<0.000000e+00> : vector<128x16xf32>
    %28 = tpu.matmul %27, %25, %cst_29 {dimension_numbers = #tpu.dot_dimension_numbers<[1], [0], [0], [1], [0, 0, 1, 1], [], []>} : vector<128x128xbf16>, vector<128x16xbf16>, vector<128x16xf32> -> vector<128x16xf32>
    %c1 = arith.constant 1 : index
    %c0_30 = arith.constant 0 : index
    %c0_31 = arith.constant 0 : index
    %29 = vector.load %arg8[%c1, %c0_30, %c0_31] : memref<9x16x16xbf16, #tpu.memory_space<vmem>>, vector<1x16x16xbf16>
    %30 = vector.shape_cast %29 : vector<1x16x16xbf16> to vector<16x16xbf16>
    %cst_32 = arith.constant dense<0.000000e+00> : vector<128x16xf32>
    %31 = tpu.matmul %21, %30, %cst_32 {dimension_numbers = #tpu.dot_dimension_numbers<[1], [0], [0], [1], [0, 0, 1, 1], [], []>} : vector<128x16xbf16>, vector<16x16xbf16>, vector<128x16xf32> -> vector<128x16xf32>
    %32 = arith.truncf %31 : vector<128x16xf32> to vector<128x16xbf16>
    %c1_33 = arith.constant 1 : index
    %c0_34 = arith.constant 0 : index
    %c0_35 = arith.constant 0 : index
    %33 = vector.load %arg14[%c1_33, %c0_34, %c0_35] : memref<9x128x128xbf16, #tpu.memory_space<vmem>>, vector<1x128x128xbf16>
    %34 = vector.shape_cast %33 : vector<1x128x128xbf16> to vector<128x128xbf16>
    %cst_36 = arith.constant dense<0.000000e+00> : vector<128x16xf32>
    %35 = tpu.matmul %34, %32, %cst_36 {dimension_numbers = #tpu.dot_dimension_numbers<[1], [0], [0], [1], [0, 0, 1, 1], [], []>} : vector<128x128xbf16>, vector<128x16xbf16>, vector<128x16xf32> -> vector<128x16xf32>
    %36 = arith.addf %28, %35 : vector<128x16xf32>
    %c2 = arith.constant 2 : index
    %c0_37 = arith.constant 0 : index
    %c0_38 = arith.constant 0 : index
    %37 = vector.load %arg8[%c2, %c0_37, %c0_38] : memref<9x16x16xbf16, #tpu.memory_space<vmem>>, vector<1x16x16xbf16>
    %38 = vector.shape_cast %37 : vector<1x16x16xbf16> to vector<16x16xbf16>
    %cst_39 = arith.constant dense<0.000000e+00> : vector<128x16xf32>
    %39 = tpu.matmul %21, %38, %cst_39 {dimension_numbers = #tpu.dot_dimension_numbers<[1], [0], [0], [1], [0, 0, 1, 1], [], []>} : vector<128x16xbf16>, vector<16x16xbf16>, vector<128x16xf32> -> vector<128x16xf32>
    %40 = arith.truncf %39 : vector<128x16xf32> to vector<128x16xbf16>
    %c2_40 = arith.constant 2 : index
    %c0_41 = arith.constant 0 : index
    %c0_42 = arith.constant 0 : index
    %41 = vector.load %arg14[%c2_40, %c0_41, %c0_42] : memref<9x128x128xbf16, #tpu.memory_space<vmem>>, vector<1x128x128xbf16>
    %42 = vector.shape_cast %41 : vector<1x128x128xbf16> to vector<128x128xbf16>
    %cst_43 = arith.constant dense<0.000000e+00> : vector<128x16xf32>
    %43 = tpu.matmul %42, %40, %cst_43 {dimension_numbers = #tpu.dot_dimension_numbers<[1], [0], [0], [1], [0, 0, 1, 1], [], []>} : vector<128x128xbf16>, vector<128x16xbf16>, vector<128x16xf32> -> vector<128x16xf32>
    %44 = arith.addf %36, %43 : vector<128x16xf32>
    %c3 = arith.constant 3 : index
    %c0_44 = arith.constant 0 : index
    %c0_45 = arith.constant 0 : index
    %45 = vector.load %arg8[%c3, %c0_44, %c0_45] : memref<9x16x16xbf16, #tpu.memory_space<vmem>>, vector<1x16x16xbf16>
    %46 = vector.shape_cast %45 : vector<1x16x16xbf16> to vector<16x16xbf16>
    %cst_46 = arith.constant dense<0.000000e+00> : vector<128x16xf32>
    %47 = tpu.matmul %21, %46, %cst_46 {dimension_numbers = #tpu.dot_dimension_numbers<[1], [0], [0], [1], [0, 0, 1, 1], [], []>} : vector<128x16xbf16>, vector<16x16xbf16>, vector<128x16xf32> -> vector<128x16xf32>
    %48 = arith.truncf %47 : vector<128x16xf32> to vector<128x16xbf16>
    %c3_47 = arith.constant 3 : index
    %c0_48 = arith.constant 0 : index
    %c0_49 = arith.constant 0 : index
    %49 = vector.load %arg14[%c3_47, %c0_48, %c0_49] : memref<9x128x128xbf16, #tpu.memory_space<vmem>>, vector<1x128x128xbf16>
    %50 = vector.shape_cast %49 : vector<1x128x128xbf16> to vector<128x128xbf16>
    %cst_50 = arith.constant dense<0.000000e+00> : vector<128x16xf32>
    %51 = tpu.matmul %50, %48, %cst_50 {dimension_numbers = #tpu.dot_dimension_numbers<[1], [0], [0], [1], [0, 0, 1, 1], [], []>} : vector<128x128xbf16>, vector<128x16xbf16>, vector<128x16xf32> -> vector<128x16xf32>
    %52 = arith.addf %44, %51 : vector<128x16xf32>
    %c4 = arith.constant 4 : index
    %c0_51 = arith.constant 0 : index
    %c0_52 = arith.constant 0 : index
    %53 = vector.load %arg8[%c4, %c0_51, %c0_52] : memref<9x16x16xbf16, #tpu.memory_space<vmem>>, vector<1x16x16xbf16>
    %54 = vector.shape_cast %53 : vector<1x16x16xbf16> to vector<16x16xbf16>
    %cst_53 = arith.constant dense<0.000000e+00> : vector<128x16xf32>
    %55 = tpu.matmul %21, %54, %cst_53 {dimension_numbers = #tpu.dot_dimension_numbers<[1], [0], [0], [1], [0, 0, 1, 1], [], []>} : vector<128x16xbf16>, vector<16x16xbf16>, vector<128x16xf32> -> vector<128x16xf32>
    %56 = arith.truncf %55 : vector<128x16xf32> to vector<128x16xbf16>
    %c4_54 = arith.constant 4 : index
    %c0_55 = arith.constant 0 : index
    %c0_56 = arith.constant 0 : index
    %57 = vector.load %arg14[%c4_54, %c0_55, %c0_56] : memref<9x128x128xbf16, #tpu.memory_space<vmem>>, vector<1x128x128xbf16>
    %58 = vector.shape_cast %57 : vector<1x128x128xbf16> to vector<128x128xbf16>
    %cst_57 = arith.constant dense<0.000000e+00> : vector<128x16xf32>
    %59 = tpu.matmul %58, %56, %cst_57 {dimension_numbers = #tpu.dot_dimension_numbers<[1], [0], [0], [1], [0, 0, 1, 1], [], []>} : vector<128x128xbf16>, vector<128x16xbf16>, vector<128x16xf32> -> vector<128x16xf32>
    %60 = arith.addf %52, %59 : vector<128x16xf32>
    %c5 = arith.constant 5 : index
    %c0_58 = arith.constant 0 : index
    %c0_59 = arith.constant 0 : index
    %61 = vector.load %arg8[%c5, %c0_58, %c0_59] : memref<9x16x16xbf16, #tpu.memory_space<vmem>>, vector<1x16x16xbf16>
    %62 = vector.shape_cast %61 : vector<1x16x16xbf16> to vector<16x16xbf16>
    %cst_60 = arith.constant dense<0.000000e+00> : vector<128x16xf32>
    %63 = tpu.matmul %21, %62, %cst_60 {dimension_numbers = #tpu.dot_dimension_numbers<[1], [0], [0], [1], [0, 0, 1, 1], [], []>} : vector<128x16xbf16>, vector<16x16xbf16>, vector<128x16xf32> -> vector<128x16xf32>
    %64 = arith.truncf %63 : vector<128x16xf32> to vector<128x16xbf16>
    %c5_61 = arith.constant 5 : index
    %c0_62 = arith.constant 0 : index
    %c0_63 = arith.constant 0 : index
    %65 = vector.load %arg14[%c5_61, %c0_62, %c0_63] : memref<9x128x128xbf16, #tpu.memory_space<vmem>>, vector<1x128x128xbf16>
    %66 = vector.shape_cast %65 : vector<1x128x128xbf16> to vector<128x128xbf16>
    %cst_64 = arith.constant dense<0.000000e+00> : vector<128x16xf32>
    %67 = tpu.matmul %66, %64, %cst_64 {dimension_numbers = #tpu.dot_dimension_numbers<[1], [0], [0], [1], [0, 0, 1, 1], [], []>} : vector<128x128xbf16>, vector<128x16xbf16>, vector<128x16xf32> -> vector<128x16xf32>
    %68 = arith.addf %60, %67 : vector<128x16xf32>
    %c6 = arith.constant 6 : index
    %c0_65 = arith.constant 0 : index
    %c0_66 = arith.constant 0 : index
    %69 = vector.load %arg8[%c6, %c0_65, %c0_66] : memref<9x16x16xbf16, #tpu.memory_space<vmem>>, vector<1x16x16xbf16>
    %70 = vector.shape_cast %69 : vector<1x16x16xbf16> to vector<16x16xbf16>
    %cst_67 = arith.constant dense<0.000000e+00> : vector<128x16xf32>
    %71 = tpu.matmul %21, %70, %cst_67 {dimension_numbers = #tpu.dot_dimension_numbers<[1], [0], [0], [1], [0, 0, 1, 1], [], []>} : vector<128x16xbf16>, vector<16x16xbf16>, vector<128x16xf32> -> vector<128x16xf32>
    %72 = arith.truncf %71 : vector<128x16xf32> to vector<128x16xbf16>
    %c6_68 = arith.constant 6 : index
    %c0_69 = arith.constant 0 : index
    %c0_70 = arith.constant 0 : index
    %73 = vector.load %arg14[%c6_68, %c0_69, %c0_70] : memref<9x128x128xbf16, #tpu.memory_space<vmem>>, vector<1x128x128xbf16>
    %74 = vector.shape_cast %73 : vector<1x128x128xbf16> to vector<128x128xbf16>
    %cst_71 = arith.constant dense<0.000000e+00> : vector<128x16xf32>
    %75 = tpu.matmul %74, %72, %cst_71 {dimension_numbers = #tpu.dot_dimension_numbers<[1], [0], [0], [1], [0, 0, 1, 1], [], []>} : vector<128x128xbf16>, vector<128x16xbf16>, vector<128x16xf32> -> vector<128x16xf32>
    %76 = arith.addf %68, %75 : vector<128x16xf32>
    %c7 = arith.constant 7 : index
    %c0_72 = arith.constant 0 : index
    %c0_73 = arith.constant 0 : index
    %77 = vector.load %arg8[%c7, %c0_72, %c0_73] : memref<9x16x16xbf16, #tpu.memory_space<vmem>>, vector<1x16x16xbf16>
    %78 = vector.shape_cast %77 : vector<1x16x16xbf16> to vector<16x16xbf16>
    %cst_74 = arith.constant dense<0.000000e+00> : vector<128x16xf32>
    %79 = tpu.matmul %21, %78, %cst_74 {dimension_numbers = #tpu.dot_dimension_numbers<[1], [0], [0], [1], [0, 0, 1, 1], [], []>} : vector<128x16xbf16>, vector<16x16xbf16>, vector<128x16xf32> -> vector<128x16xf32>
    %80 = arith.truncf %79 : vector<128x16xf32> to vector<128x16xbf16>
    %c7_75 = arith.constant 7 : index
    %c0_76 = arith.constant 0 : index
    %c0_77 = arith.constant 0 : index
    %81 = vector.load %arg14[%c7_75, %c0_76, %c0_77] : memref<9x128x128xbf16, #tpu.memory_space<vmem>>, vector<1x128x128xbf16>
    %82 = vector.shape_cast %81 : vector<1x128x128xbf16> to vector<128x128xbf16>
    %cst_78 = arith.constant dense<0.000000e+00> : vector<128x16xf32>
    %83 = tpu.matmul %82, %80, %cst_78 {dimension_numbers = #tpu.dot_dimension_numbers<[1], [0], [0], [1], [0, 0, 1, 1], [], []>} : vector<128x128xbf16>, vector<128x16xbf16>, vector<128x16xf32> -> vector<128x16xf32>
    %84 = arith.addf %76, %83 : vector<128x16xf32>
    %c8 = arith.constant 8 : index
    %c0_79 = arith.constant 0 : index
    %c0_80 = arith.constant 0 : index
    %85 = vector.load %arg8[%c8, %c0_79, %c0_80] : memref<9x16x16xbf16, #tpu.memory_space<vmem>>, vector<1x16x16xbf16>
    %86 = vector.shape_cast %85 : vector<1x16x16xbf16> to vector<16x16xbf16>
    %cst_81 = arith.constant dense<0.000000e+00> : vector<128x16xf32>
    %87 = tpu.matmul %21, %86, %cst_81 {dimension_numbers = #tpu.dot_dimension_numbers<[1], [0], [0], [1], [0, 0, 1, 1], [], []>} : vector<128x16xbf16>, vector<16x16xbf16>, vector<128x16xf32> -> vector<128x16xf32>
    %88 = arith.truncf %87 : vector<128x16xf32> to vector<128x16xbf16>
    %c8_82 = arith.constant 8 : index
    %c0_83 = arith.constant 0 : index
    %c0_84 = arith.constant 0 : index
    %89 = vector.load %arg14[%c8_82, %c0_83, %c0_84] : memref<9x128x128xbf16, #tpu.memory_space<vmem>>, vector<1x128x128xbf16>
    %90 = vector.shape_cast %89 : vector<1x128x128xbf16> to vector<128x128xbf16>
    %cst_85 = arith.constant dense<0.000000e+00> : vector<128x16xf32>
    %91 = tpu.matmul %90, %88, %cst_85 {dimension_numbers = #tpu.dot_dimension_numbers<[1], [0], [0], [1], [0, 0, 1, 1], [], []>} : vector<128x128xbf16>, vector<128x16xbf16>, vector<128x16xf32> -> vector<128x16xf32>
    %92 = arith.addf %84, %91 : vector<128x16xf32>
    %c0_86 = arith.constant 0 : index
    %c0_87 = arith.constant 0 : index
    %93 = vector.load %arg15[%c0_86, %c0_87] : memref<128x1xf32, #tpu.memory_space<vmem>>, vector<128x1xf32>
    %94 = vector.broadcast %93 : vector<128x1xf32> to vector<128x16xf32>
    %95 = arith.addf %92, %94 : vector<128x16xf32>
    %cst_88 = arith.constant 0.000000e+00 : f32
    %96 = vector.broadcast %cst_88 : f32 to vector<128x16xf32>
    %97 = arith.maximumf %95, %96 : vector<128x16xf32>
    %98 = arith.truncf %97 : vector<128x16xf32> to vector<128x16xbf16>
    %c0_89 = arith.constant 0 : index
    %c0_90 = arith.constant 0 : index
    %99 = vector.load %arg6[%c0_89, %c0_90] : memref<16x64xbf16, #tpu.memory_space<vmem>>, vector<16x64xbf16>
    %cst_91 = arith.constant dense<0.000000e+00> : vector<128x64xf32>
    %100 = tpu.matmul %98, %99, %cst_91 {dimension_numbers = #tpu.dot_dimension_numbers<[1], [0], [0], [1], [0, 0, 1, 1], [], []>} : vector<128x16xbf16>, vector<16x64xbf16>, vector<128x64xf32> -> vector<128x64xf32>
    %101 = arith.truncf %100 : vector<128x64xf32> to vector<128x64xbf16>
    %c0_92 = arith.constant 0 : index
    %c0_93 = arith.constant 0 : index
    %102 = vector.load %arg16[%c0_92, %c0_93] : memref<64x128xbf16, #tpu.memory_space<vmem>>, vector<64x128xbf16>
    %cst_94 = arith.constant dense<0.000000e+00> : vector<64x64xf32>
    %103 = tpu.matmul %102, %101, %cst_94 {dimension_numbers = #tpu.dot_dimension_numbers<[1], [0], [0], [1], [0, 0, 1, 1], [], []>} : vector<64x128xbf16>, vector<128x64xbf16>, vector<64x64xf32> -> vector<64x64xf32>
    %c0_95 = arith.constant 0 : index
    %c0_96 = arith.constant 0 : index
    %104 = vector.load %arg17[%c0_95, %c0_96] : memref<64x256xbf16, #tpu.memory_space<vmem>>, vector<64x256xbf16>
    %cst_97 = arith.constant dense<0.000000e+00> : vector<64x64xf32>
    %105 = tpu.matmul %104, %3, %cst_97 {dimension_numbers = #tpu.dot_dimension_numbers<[1], [0], [0], [1], [0, 0, 1, 1], [], []>} : vector<64x256xbf16>, vector<256x64xbf16>, vector<64x64xf32> -> vector<64x64xf32>
    %106 = arith.addf %103, %105 : vector<64x64xf32>
    %c0_98 = arith.constant 0 : index
    %c0_99 = arith.constant 0 : index
    %107 = vector.load %arg18[%c0_98, %c0_99] : memref<64x1xf32, #tpu.memory_space<vmem>>, vector<64x1xf32>
    %108 = vector.broadcast %107 : vector<64x1xf32> to vector<64x64xf32>
    %109 = arith.addf %106, %108 : vector<64x64xf32>
    %cst_100 = arith.constant 0.000000e+00 : f32
    %110 = vector.broadcast %cst_100 : f32 to vector<64x64xf32>
    %111 = arith.maximumf %109, %110 : vector<64x64xf32>
    %112 = arith.truncf %111 : vector<64x64xf32> to vector<64x64xbf16>
    %c0_101 = arith.constant 0 : index
    %c0_102 = arith.constant 0 : index
    %c0_103 = arith.constant 0 : index
    %113 = vector.load %arg9[%c0_101, %c0_102, %c0_103] : memref<9x64x64xbf16, #tpu.memory_space<vmem>>, vector<1x64x64xbf16>
    %114 = vector.shape_cast %113 : vector<1x64x64xbf16> to vector<64x64xbf16>
    %cst_104 = arith.constant dense<0.000000e+00> : vector<64x64xf32>
    %115 = tpu.matmul %112, %114, %cst_104 {dimension_numbers = #tpu.dot_dimension_numbers<[1], [0], [0], [1], [0, 0, 1, 1], [], []>} : vector<64x64xbf16>, vector<64x64xbf16>, vector<64x64xf32> -> vector<64x64xf32>
    %116 = arith.truncf %115 : vector<64x64xf32> to vector<64x64xbf16>
    %c0_105 = arith.constant 0 : index
    %c0_106 = arith.constant 0 : index
    %c0_107 = arith.constant 0 : index
    %117 = vector.load %arg19[%c0_105, %c0_106, %c0_107] : memref<9x64x64xbf16, #tpu.memory_space<vmem>>, vector<1x64x64xbf16>
    %118 = vector.shape_cast %117 : vector<1x64x64xbf16> to vector<64x64xbf16>
    %cst_108 = arith.constant dense<0.000000e+00> : vector<64x64xf32>
    %119 = tpu.matmul %118, %116, %cst_108 {dimension_numbers = #tpu.dot_dimension_numbers<[1], [0], [0], [1], [0, 0, 1, 1], [], []>} : vector<64x64xbf16>, vector<64x64xbf16>, vector<64x64xf32> -> vector<64x64xf32>
    %c1_109 = arith.constant 1 : index
    %c0_110 = arith.constant 0 : index
    %c0_111 = arith.constant 0 : index
    %120 = vector.load %arg9[%c1_109, %c0_110, %c0_111] : memref<9x64x64xbf16, #tpu.memory_space<vmem>>, vector<1x64x64xbf16>
    %121 = vector.shape_cast %120 : vector<1x64x64xbf16> to vector<64x64xbf16>
    %cst_112 = arith.constant dense<0.000000e+00> : vector<64x64xf32>
    %122 = tpu.matmul %112, %121, %cst_112 {dimension_numbers = #tpu.dot_dimension_numbers<[1], [0], [0], [1], [0, 0, 1, 1], [], []>} : vector<64x64xbf16>, vector<64x64xbf16>, vector<64x64xf32> -> vector<64x64xf32>
    %123 = arith.truncf %122 : vector<64x64xf32> to vector<64x64xbf16>
    %c1_113 = arith.constant 1 : index
    %c0_114 = arith.constant 0 : index
    %c0_115 = arith.constant 0 : index
    %124 = vector.load %arg19[%c1_113, %c0_114, %c0_115] : memref<9x64x64xbf16, #tpu.memory_space<vmem>>, vector<1x64x64xbf16>
    %125 = vector.shape_cast %124 : vector<1x64x64xbf16> to vector<64x64xbf16>
    %cst_116 = arith.constant dense<0.000000e+00> : vector<64x64xf32>
    %126 = tpu.matmul %125, %123, %cst_116 {dimension_numbers = #tpu.dot_dimension_numbers<[1], [0], [0], [1], [0, 0, 1, 1], [], []>} : vector<64x64xbf16>, vector<64x64xbf16>, vector<64x64xf32> -> vector<64x64xf32>
    %127 = arith.addf %119, %126 : vector<64x64xf32>
    %c2_117 = arith.constant 2 : index
    %c0_118 = arith.constant 0 : index
    %c0_119 = arith.constant 0 : index
    %128 = vector.load %arg9[%c2_117, %c0_118, %c0_119] : memref<9x64x64xbf16, #tpu.memory_space<vmem>>, vector<1x64x64xbf16>
    %129 = vector.shape_cast %128 : vector<1x64x64xbf16> to vector<64x64xbf16>
    %cst_120 = arith.constant dense<0.000000e+00> : vector<64x64xf32>
    %130 = tpu.matmul %112, %129, %cst_120 {dimension_numbers = #tpu.dot_dimension_numbers<[1], [0], [0], [1], [0, 0, 1, 1], [], []>} : vector<64x64xbf16>, vector<64x64xbf16>, vector<64x64xf32> -> vector<64x64xf32>
    %131 = arith.truncf %130 : vector<64x64xf32> to vector<64x64xbf16>
    %c2_121 = arith.constant 2 : index
    %c0_122 = arith.constant 0 : index
    %c0_123 = arith.constant 0 : index
    %132 = vector.load %arg19[%c2_121, %c0_122, %c0_123] : memref<9x64x64xbf16, #tpu.memory_space<vmem>>, vector<1x64x64xbf16>
    %133 = vector.shape_cast %132 : vector<1x64x64xbf16> to vector<64x64xbf16>
    %cst_124 = arith.constant dense<0.000000e+00> : vector<64x64xf32>
    %134 = tpu.matmul %133, %131, %cst_124 {dimension_numbers = #tpu.dot_dimension_numbers<[1], [0], [0], [1], [0, 0, 1, 1], [], []>} : vector<64x64xbf16>, vector<64x64xbf16>, vector<64x64xf32> -> vector<64x64xf32>
    %135 = arith.addf %127, %134 : vector<64x64xf32>
    %c3_125 = arith.constant 3 : index
    %c0_126 = arith.constant 0 : index
    %c0_127 = arith.constant 0 : index
    %136 = vector.load %arg9[%c3_125, %c0_126, %c0_127] : memref<9x64x64xbf16, #tpu.memory_space<vmem>>, vector<1x64x64xbf16>
    %137 = vector.shape_cast %136 : vector<1x64x64xbf16> to vector<64x64xbf16>
    %cst_128 = arith.constant dense<0.000000e+00> : vector<64x64xf32>
    %138 = tpu.matmul %112, %137, %cst_128 {dimension_numbers = #tpu.dot_dimension_numbers<[1], [0], [0], [1], [0, 0, 1, 1], [], []>} : vector<64x64xbf16>, vector<64x64xbf16>, vector<64x64xf32> -> vector<64x64xf32>
    %139 = arith.truncf %138 : vector<64x64xf32> to vector<64x64xbf16>
    %c3_129 = arith.constant 3 : index
    %c0_130 = arith.constant 0 : index
    %c0_131 = arith.constant 0 : index
    %140 = vector.load %arg19[%c3_129, %c0_130, %c0_131] : memref<9x64x64xbf16, #tpu.memory_space<vmem>>, vector<1x64x64xbf16>
    %141 = vector.shape_cast %140 : vector<1x64x64xbf16> to vector<64x64xbf16>
    %cst_132 = arith.constant dense<0.000000e+00> : vector<64x64xf32>
    %142 = tpu.matmul %141, %139, %cst_132 {dimension_numbers = #tpu.dot_dimension_numbers<[1], [0], [0], [1], [0, 0, 1, 1], [], []>} : vector<64x64xbf16>, vector<64x64xbf16>, vector<64x64xf32> -> vector<64x64xf32>
    %143 = arith.addf %135, %142 : vector<64x64xf32>
    %c4_133 = arith.constant 4 : index
    %c0_134 = arith.constant 0 : index
    %c0_135 = arith.constant 0 : index
    %144 = vector.load %arg9[%c4_133, %c0_134, %c0_135] : memref<9x64x64xbf16, #tpu.memory_space<vmem>>, vector<1x64x64xbf16>
    %145 = vector.shape_cast %144 : vector<1x64x64xbf16> to vector<64x64xbf16>
    %cst_136 = arith.constant dense<0.000000e+00> : vector<64x64xf32>
    %146 = tpu.matmul %112, %145, %cst_136 {dimension_numbers = #tpu.dot_dimension_numbers<[1], [0], [0], [1], [0, 0, 1, 1], [], []>} : vector<64x64xbf16>, vector<64x64xbf16>, vector<64x64xf32> -> vector<64x64xf32>
    %147 = arith.truncf %146 : vector<64x64xf32> to vector<64x64xbf16>
    %c4_137 = arith.constant 4 : index
    %c0_138 = arith.constant 0 : index
    %c0_139 = arith.constant 0 : index
    %148 = vector.load %arg19[%c4_137, %c0_138, %c0_139] : memref<9x64x64xbf16, #tpu.memory_space<vmem>>, vector<1x64x64xbf16>
    %149 = vector.shape_cast %148 : vector<1x64x64xbf16> to vector<64x64xbf16>
    %cst_140 = arith.constant dense<0.000000e+00> : vector<64x64xf32>
    %150 = tpu.matmul %149, %147, %cst_140 {dimension_numbers = #tpu.dot_dimension_numbers<[1], [0], [0], [1], [0, 0, 1, 1], [], []>} : vector<64x64xbf16>, vector<64x64xbf16>, vector<64x64xf32> -> vector<64x64xf32>
    %151 = arith.addf %143, %150 : vector<64x64xf32>
    %c5_141 = arith.constant 5 : index
    %c0_142 = arith.constant 0 : index
    %c0_143 = arith.constant 0 : index
    %152 = vector.load %arg9[%c5_141, %c0_142, %c0_143] : memref<9x64x64xbf16, #tpu.memory_space<vmem>>, vector<1x64x64xbf16>
    %153 = vector.shape_cast %152 : vector<1x64x64xbf16> to vector<64x64xbf16>
    %cst_144 = arith.constant dense<0.000000e+00> : vector<64x64xf32>
    %154 = tpu.matmul %112, %153, %cst_144 {dimension_numbers = #tpu.dot_dimension_numbers<[1], [0], [0], [1], [0, 0, 1, 1], [], []>} : vector<64x64xbf16>, vector<64x64xbf16>, vector<64x64xf32> -> vector<64x64xf32>
    %155 = arith.truncf %154 : vector<64x64xf32> to vector<64x64xbf16>
    %c5_145 = arith.constant 5 : index
    %c0_146 = arith.constant 0 : index
    %c0_147 = arith.constant 0 : index
    %156 = vector.load %arg19[%c5_145, %c0_146, %c0_147] : memref<9x64x64xbf16, #tpu.memory_space<vmem>>, vector<1x64x64xbf16>
    %157 = vector.shape_cast %156 : vector<1x64x64xbf16> to vector<64x64xbf16>
    %cst_148 = arith.constant dense<0.000000e+00> : vector<64x64xf32>
    %158 = tpu.matmul %157, %155, %cst_148 {dimension_numbers = #tpu.dot_dimension_numbers<[1], [0], [0], [1], [0, 0, 1, 1], [], []>} : vector<64x64xbf16>, vector<64x64xbf16>, vector<64x64xf32> -> vector<64x64xf32>
    %159 = arith.addf %151, %158 : vector<64x64xf32>
    %c6_149 = arith.constant 6 : index
    %c0_150 = arith.constant 0 : index
    %c0_151 = arith.constant 0 : index
    %160 = vector.load %arg9[%c6_149, %c0_150, %c0_151] : memref<9x64x64xbf16, #tpu.memory_space<vmem>>, vector<1x64x64xbf16>
    %161 = vector.shape_cast %160 : vector<1x64x64xbf16> to vector<64x64xbf16>
    %cst_152 = arith.constant dense<0.000000e+00> : vector<64x64xf32>
    %162 = tpu.matmul %112, %161, %cst_152 {dimension_numbers = #tpu.dot_dimension_numbers<[1], [0], [0], [1], [0, 0, 1, 1], [], []>} : vector<64x64xbf16>, vector<64x64xbf16>, vector<64x64xf32> -> vector<64x64xf32>
    %163 = arith.truncf %162 : vector<64x64xf32> to vector<64x64xbf16>
    %c6_153 = arith.constant 6 : index
    %c0_154 = arith.constant 0 : index
    %c0_155 = arith.constant 0 : index
    %164 = vector.load %arg19[%c6_153, %c0_154, %c0_155] : memref<9x64x64xbf16, #tpu.memory_space<vmem>>, vector<1x64x64xbf16>
    %165 = vector.shape_cast %164 : vector<1x64x64xbf16> to vector<64x64xbf16>
    %cst_156 = arith.constant dense<0.000000e+00> : vector<64x64xf32>
    %166 = tpu.matmul %165, %163, %cst_156 {dimension_numbers = #tpu.dot_dimension_numbers<[1], [0], [0], [1], [0, 0, 1, 1], [], []>} : vector<64x64xbf16>, vector<64x64xbf16>, vector<64x64xf32> -> vector<64x64xf32>
    %167 = arith.addf %159, %166 : vector<64x64xf32>
    %c7_157 = arith.constant 7 : index
    %c0_158 = arith.constant 0 : index
    %c0_159 = arith.constant 0 : index
    %168 = vector.load %arg9[%c7_157, %c0_158, %c0_159] : memref<9x64x64xbf16, #tpu.memory_space<vmem>>, vector<1x64x64xbf16>
    %169 = vector.shape_cast %168 : vector<1x64x64xbf16> to vector<64x64xbf16>
    %cst_160 = arith.constant dense<0.000000e+00> : vector<64x64xf32>
    %170 = tpu.matmul %112, %169, %cst_160 {dimension_numbers = #tpu.dot_dimension_numbers<[1], [0], [0], [1], [0, 0, 1, 1], [], []>} : vector<64x64xbf16>, vector<64x64xbf16>, vector<64x64xf32> -> vector<64x64xf32>
    %171 = arith.truncf %170 : vector<64x64xf32> to vector<64x64xbf16>
    %c7_161 = arith.constant 7 : index
    %c0_162 = arith.constant 0 : index
    %c0_163 = arith.constant 0 : index
    %172 = vector.load %arg19[%c7_161, %c0_162, %c0_163] : memref<9x64x64xbf16, #tpu.memory_space<vmem>>, vector<1x64x64xbf16>
    %173 = vector.shape_cast %172 : vector<1x64x64xbf16> to vector<64x64xbf16>
    %cst_164 = arith.constant dense<0.000000e+00> : vector<64x64xf32>
    %174 = tpu.matmul %173, %171, %cst_164 {dimension_numbers = #tpu.dot_dimension_numbers<[1], [0], [0], [1], [0, 0, 1, 1], [], []>} : vector<64x64xbf16>, vector<64x64xbf16>, vector<64x64xf32> -> vector<64x64xf32>
    %175 = arith.addf %167, %174 : vector<64x64xf32>
    %c8_165 = arith.constant 8 : index
    %c0_166 = arith.constant 0 : index
    %c0_167 = arith.constant 0 : index
    %176 = vector.load %arg9[%c8_165, %c0_166, %c0_167] : memref<9x64x64xbf16, #tpu.memory_space<vmem>>, vector<1x64x64xbf16>
    %177 = vector.shape_cast %176 : vector<1x64x64xbf16> to vector<64x64xbf16>
    %cst_168 = arith.constant dense<0.000000e+00> : vector<64x64xf32>
    %178 = tpu.matmul %112, %177, %cst_168 {dimension_numbers = #tpu.dot_dimension_numbers<[1], [0], [0], [1], [0, 0, 1, 1], [], []>} : vector<64x64xbf16>, vector<64x64xbf16>, vector<64x64xf32> -> vector<64x64xf32>
    %179 = arith.truncf %178 : vector<64x64xf32> to vector<64x64xbf16>
    %c8_169 = arith.constant 8 : index
    %c0_170 = arith.constant 0 : index
    %c0_171 = arith.constant 0 : index
    %180 = vector.load %arg19[%c8_169, %c0_170, %c0_171] : memref<9x64x64xbf16, #tpu.memory_space<vmem>>, vector<1x64x64xbf16>
    %181 = vector.shape_cast %180 : vector<1x64x64xbf16> to vector<64x64xbf16>
    %cst_172 = arith.constant dense<0.000000e+00> : vector<64x64xf32>
    %182 = tpu.matmul %181, %179, %cst_172 {dimension_numbers = #tpu.dot_dimension_numbers<[1], [0], [0], [1], [0, 0, 1, 1], [], []>} : vector<64x64xbf16>, vector<64x64xbf16>, vector<64x64xf32> -> vector<64x64xf32>
    %183 = arith.addf %175, %182 : vector<64x64xf32>
    %c0_173 = arith.constant 0 : index
    %c0_174 = arith.constant 0 : index
    %184 = vector.load %arg20[%c0_173, %c0_174] : memref<64x1xf32, #tpu.memory_space<vmem>>, vector<64x1xf32>
    %185 = vector.broadcast %184 : vector<64x1xf32> to vector<64x64xf32>
    %186 = arith.addf %183, %185 : vector<64x64xf32>
    %cst_175 = arith.constant 0.000000e+00 : f32
    %187 = vector.broadcast %cst_175 : f32 to vector<64x64xf32>
    %188 = arith.maximumf %186, %187 : vector<64x64xf32>
    %189 = arith.truncf %188 : vector<64x64xf32> to vector<64x64xbf16>
    %c0_176 = arith.constant 0 : index
    %c0_177 = arith.constant 0 : index
    %190 = vector.load %arg7[%c0_176, %c0_177] : memref<64x256xbf16, #tpu.memory_space<vmem>>, vector<64x256xbf16>
    %cst_178 = arith.constant dense<0.000000e+00> : vector<64x256xf32>
    %191 = tpu.matmul %189, %190, %cst_178 {dimension_numbers = #tpu.dot_dimension_numbers<[1], [0], [0], [1], [0, 0, 1, 1], [], []>} : vector<64x64xbf16>, vector<64x256xbf16>, vector<64x256xf32> -> vector<64x256xf32>
    %192 = arith.truncf %191 : vector<64x256xf32> to vector<64x256xbf16>
    %c0_179 = arith.constant 0 : index
    %c0_180 = arith.constant 0 : index
    %193 = vector.load %arg21[%c0_179, %c0_180] : memref<32x64xbf16, #tpu.memory_space<vmem>>, vector<32x64xbf16>
    %cst_181 = arith.constant dense<0.000000e+00> : vector<32x256xf32>
    %194 = tpu.matmul %193, %192, %cst_181 {dimension_numbers = #tpu.dot_dimension_numbers<[1], [0], [0], [1], [0, 0, 1, 1], [], []>} : vector<32x64xbf16>, vector<64x256xbf16>, vector<32x256xf32> -> vector<32x256xf32>
    %c0_182 = arith.constant 0 : index
    %c0_183 = arith.constant 0 : index
    %195 = vector.load %arg22[%c0_182, %c0_183] : memref<32x128xbf16, #tpu.memory_space<vmem>>, vector<32x128xbf16>
    %cst_184 = arith.constant dense<0.000000e+00> : vector<32x256xf32>
    %196 = tpu.matmul %195, %1, %cst_184 {dimension_numbers = #tpu.dot_dimension_numbers<[1], [0], [0], [1], [0, 0, 1, 1], [], []>} : vector<32x128xbf16>, vector<128x256xbf16>, vector<32x256xf32> -> vector<32x256xf32>
    %197 = arith.addf %194, %196 : vector<32x256xf32>
    %c0_185 = arith.constant 0 : index
    %c0_186 = arith.constant 0 : index
    %198 = vector.load %arg23[%c0_185, %c0_186] : memref<32x1xf32, #tpu.memory_space<vmem>>, vector<32x1xf32>
    %199 = vector.broadcast %198 : vector<32x1xf32> to vector<32x256xf32>
    %200 = arith.addf %197, %199 : vector<32x256xf32>
    %cst_187 = arith.constant 0.000000e+00 : f32
    %201 = vector.broadcast %cst_187 : f32 to vector<32x256xf32>
    %202 = arith.maximumf %200, %201 : vector<32x256xf32>
    %203 = arith.truncf %202 : vector<32x256xf32> to vector<32x256xbf16>
    %c0_188 = arith.constant 0 : index
    %c0_189 = arith.constant 0 : index
    %c0_190 = arith.constant 0 : index
    %204 = vector.load %arg10[%c0_188, %c0_189, %c0_190] : memref<9x256x256xbf16, #tpu.memory_space<vmem>>, vector<1x256x256xbf16>
    %205 = vector.shape_cast %204 : vector<1x256x256xbf16> to vector<256x256xbf16>
    %cst_191 = arith.constant dense<0.000000e+00> : vector<32x256xf32>
    %206 = tpu.matmul %203, %205, %cst_191 {dimension_numbers = #tpu.dot_dimension_numbers<[1], [0], [0], [1], [0, 0, 1, 1], [], []>} : vector<32x256xbf16>, vector<256x256xbf16>, vector<32x256xf32> -> vector<32x256xf32>
    %207 = arith.truncf %206 : vector<32x256xf32> to vector<32x256xbf16>
    %c0_192 = arith.constant 0 : index
    %c0_193 = arith.constant 0 : index
    %c0_194 = arith.constant 0 : index
    %208 = vector.load %arg24[%c0_192, %c0_193, %c0_194] : memref<9x32x32xbf16, #tpu.memory_space<vmem>>, vector<1x32x32xbf16>
    %209 = vector.shape_cast %208 : vector<1x32x32xbf16> to vector<32x32xbf16>
    %cst_195 = arith.constant dense<0.000000e+00> : vector<32x256xf32>
    %210 = tpu.matmul %209, %207, %cst_195 {dimension_numbers = #tpu.dot_dimension_numbers<[1], [0], [0], [1], [0, 0, 1, 1], [], []>} : vector<32x32xbf16>, vector<32x256xbf16>, vector<32x256xf32> -> vector<32x256xf32>
    %c1_196 = arith.constant 1 : index
    %c0_197 = arith.constant 0 : index
    %c0_198 = arith.constant 0 : index
    %211 = vector.load %arg10[%c1_196, %c0_197, %c0_198] : memref<9x256x256xbf16, #tpu.memory_space<vmem>>, vector<1x256x256xbf16>
    %212 = vector.shape_cast %211 : vector<1x256x256xbf16> to vector<256x256xbf16>
    %cst_199 = arith.constant dense<0.000000e+00> : vector<32x256xf32>
    %213 = tpu.matmul %203, %212, %cst_199 {dimension_numbers = #tpu.dot_dimension_numbers<[1], [0], [0], [1], [0, 0, 1, 1], [], []>} : vector<32x256xbf16>, vector<256x256xbf16>, vector<32x256xf32> -> vector<32x256xf32>
    %214 = arith.truncf %213 : vector<32x256xf32> to vector<32x256xbf16>
    %c1_200 = arith.constant 1 : index
    %c0_201 = arith.constant 0 : index
    %c0_202 = arith.constant 0 : index
    %215 = vector.load %arg24[%c1_200, %c0_201, %c0_202] : memref<9x32x32xbf16, #tpu.memory_space<vmem>>, vector<1x32x32xbf16>
    %216 = vector.shape_cast %215 : vector<1x32x32xbf16> to vector<32x32xbf16>
    %cst_203 = arith.constant dense<0.000000e+00> : vector<32x256xf32>
    %217 = tpu.matmul %216, %214, %cst_203 {dimension_numbers = #tpu.dot_dimension_numbers<[1], [0], [0], [1], [0, 0, 1, 1], [], []>} : vector<32x32xbf16>, vector<32x256xbf16>, vector<32x256xf32> -> vector<32x256xf32>
    %218 = arith.addf %210, %217 : vector<32x256xf32>
    %c2_204 = arith.constant 2 : index
    %c0_205 = arith.constant 0 : index
    %c0_206 = arith.constant 0 : index
    %219 = vector.load %arg10[%c2_204, %c0_205, %c0_206] : memref<9x256x256xbf16, #tpu.memory_space<vmem>>, vector<1x256x256xbf16>
    %220 = vector.shape_cast %219 : vector<1x256x256xbf16> to vector<256x256xbf16>
    %cst_207 = arith.constant dense<0.000000e+00> : vector<32x256xf32>
    %221 = tpu.matmul %203, %220, %cst_207 {dimension_numbers = #tpu.dot_dimension_numbers<[1], [0], [0], [1], [0, 0, 1, 1], [], []>} : vector<32x256xbf16>, vector<256x256xbf16>, vector<32x256xf32> -> vector<32x256xf32>
    %222 = arith.truncf %221 : vector<32x256xf32> to vector<32x256xbf16>
    %c2_208 = arith.constant 2 : index
    %c0_209 = arith.constant 0 : index
    %c0_210 = arith.constant 0 : index
    %223 = vector.load %arg24[%c2_208, %c0_209, %c0_210] : memref<9x32x32xbf16, #tpu.memory_space<vmem>>, vector<1x32x32xbf16>
    %224 = vector.shape_cast %223 : vector<1x32x32xbf16> to vector<32x32xbf16>
    %cst_211 = arith.constant dense<0.000000e+00> : vector<32x256xf32>
    %225 = tpu.matmul %224, %222, %cst_211 {dimension_numbers = #tpu.dot_dimension_numbers<[1], [0], [0], [1], [0, 0, 1, 1], [], []>} : vector<32x32xbf16>, vector<32x256xbf16>, vector<32x256xf32> -> vector<32x256xf32>
    %226 = arith.addf %218, %225 : vector<32x256xf32>
    %c3_212 = arith.constant 3 : index
    %c0_213 = arith.constant 0 : index
    %c0_214 = arith.constant 0 : index
    %227 = vector.load %arg10[%c3_212, %c0_213, %c0_214] : memref<9x256x256xbf16, #tpu.memory_space<vmem>>, vector<1x256x256xbf16>
    %228 = vector.shape_cast %227 : vector<1x256x256xbf16> to vector<256x256xbf16>
    %cst_215 = arith.constant dense<0.000000e+00> : vector<32x256xf32>
    %229 = tpu.matmul %203, %228, %cst_215 {dimension_numbers = #tpu.dot_dimension_numbers<[1], [0], [0], [1], [0, 0, 1, 1], [], []>} : vector<32x256xbf16>, vector<256x256xbf16>, vector<32x256xf32> -> vector<32x256xf32>
    %230 = arith.truncf %229 : vector<32x256xf32> to vector<32x256xbf16>
    %c3_216 = arith.constant 3 : index
    %c0_217 = arith.constant 0 : index
    %c0_218 = arith.constant 0 : index
    %231 = vector.load %arg24[%c3_216, %c0_217, %c0_218] : memref<9x32x32xbf16, #tpu.memory_space<vmem>>, vector<1x32x32xbf16>
    %232 = vector.shape_cast %231 : vector<1x32x32xbf16> to vector<32x32xbf16>
    %cst_219 = arith.constant dense<0.000000e+00> : vector<32x256xf32>
    %233 = tpu.matmul %232, %230, %cst_219 {dimension_numbers = #tpu.dot_dimension_numbers<[1], [0], [0], [1], [0, 0, 1, 1], [], []>} : vector<32x32xbf16>, vector<32x256xbf16>, vector<32x256xf32> -> vector<32x256xf32>
    %234 = arith.addf %226, %233 : vector<32x256xf32>
    %c4_220 = arith.constant 4 : index
    %c0_221 = arith.constant 0 : index
    %c0_222 = arith.constant 0 : index
    %235 = vector.load %arg10[%c4_220, %c0_221, %c0_222] : memref<9x256x256xbf16, #tpu.memory_space<vmem>>, vector<1x256x256xbf16>
    %236 = vector.shape_cast %235 : vector<1x256x256xbf16> to vector<256x256xbf16>
    %cst_223 = arith.constant dense<0.000000e+00> : vector<32x256xf32>
    %237 = tpu.matmul %203, %236, %cst_223 {dimension_numbers = #tpu.dot_dimension_numbers<[1], [0], [0], [1], [0, 0, 1, 1], [], []>} : vector<32x256xbf16>, vector<256x256xbf16>, vector<32x256xf32> -> vector<32x256xf32>
    %238 = arith.truncf %237 : vector<32x256xf32> to vector<32x256xbf16>
    %c4_224 = arith.constant 4 : index
    %c0_225 = arith.constant 0 : index
    %c0_226 = arith.constant 0 : index
    %239 = vector.load %arg24[%c4_224, %c0_225, %c0_226] : memref<9x32x32xbf16, #tpu.memory_space<vmem>>, vector<1x32x32xbf16>
    %240 = vector.shape_cast %239 : vector<1x32x32xbf16> to vector<32x32xbf16>
    %cst_227 = arith.constant dense<0.000000e+00> : vector<32x256xf32>
    %241 = tpu.matmul %240, %238, %cst_227 {dimension_numbers = #tpu.dot_dimension_numbers<[1], [0], [0], [1], [0, 0, 1, 1], [], []>} : vector<32x32xbf16>, vector<32x256xbf16>, vector<32x256xf32> -> vector<32x256xf32>
    %242 = arith.addf %234, %241 : vector<32x256xf32>
    %c5_228 = arith.constant 5 : index
    %c0_229 = arith.constant 0 : index
    %c0_230 = arith.constant 0 : index
    %243 = vector.load %arg10[%c5_228, %c0_229, %c0_230] : memref<9x256x256xbf16, #tpu.memory_space<vmem>>, vector<1x256x256xbf16>
    %244 = vector.shape_cast %243 : vector<1x256x256xbf16> to vector<256x256xbf16>
    %cst_231 = arith.constant dense<0.000000e+00> : vector<32x256xf32>
    %245 = tpu.matmul %203, %244, %cst_231 {dimension_numbers = #tpu.dot_dimension_numbers<[1], [0], [0], [1], [0, 0, 1, 1], [], []>} : vector<32x256xbf16>, vector<256x256xbf16>, vector<32x256xf32> -> vector<32x256xf32>
    %246 = arith.truncf %245 : vector<32x256xf32> to vector<32x256xbf16>
    %c5_232 = arith.constant 5 : index
    %c0_233 = arith.constant 0 : index
    %c0_234 = arith.constant 0 : index
    %247 = vector.load %arg24[%c5_232, %c0_233, %c0_234] : memref<9x32x32xbf16, #tpu.memory_space<vmem>>, vector<1x32x32xbf16>
    %248 = vector.shape_cast %247 : vector<1x32x32xbf16> to vector<32x32xbf16>
    %cst_235 = arith.constant dense<0.000000e+00> : vector<32x256xf32>
    %249 = tpu.matmul %248, %246, %cst_235 {dimension_numbers = #tpu.dot_dimension_numbers<[1], [0], [0], [1], [0, 0, 1, 1], [], []>} : vector<32x32xbf16>, vector<32x256xbf16>, vector<32x256xf32> -> vector<32x256xf32>
    %250 = arith.addf %242, %249 : vector<32x256xf32>
    %c6_236 = arith.constant 6 : index
    %c0_237 = arith.constant 0 : index
    %c0_238 = arith.constant 0 : index
    %251 = vector.load %arg10[%c6_236, %c0_237, %c0_238] : memref<9x256x256xbf16, #tpu.memory_space<vmem>>, vector<1x256x256xbf16>
    %252 = vector.shape_cast %251 : vector<1x256x256xbf16> to vector<256x256xbf16>
    %cst_239 = arith.constant dense<0.000000e+00> : vector<32x256xf32>
    %253 = tpu.matmul %203, %252, %cst_239 {dimension_numbers = #tpu.dot_dimension_numbers<[1], [0], [0], [1], [0, 0, 1, 1], [], []>} : vector<32x256xbf16>, vector<256x256xbf16>, vector<32x256xf32> -> vector<32x256xf32>
    %254 = arith.truncf %253 : vector<32x256xf32> to vector<32x256xbf16>
    %c6_240 = arith.constant 6 : index
    %c0_241 = arith.constant 0 : index
    %c0_242 = arith.constant 0 : index
    %255 = vector.load %arg24[%c6_240, %c0_241, %c0_242] : memref<9x32x32xbf16, #tpu.memory_space<vmem>>, vector<1x32x32xbf16>
    %256 = vector.shape_cast %255 : vector<1x32x32xbf16> to vector<32x32xbf16>
    %cst_243 = arith.constant dense<0.000000e+00> : vector<32x256xf32>
    %257 = tpu.matmul %256, %254, %cst_243 {dimension_numbers = #tpu.dot_dimension_numbers<[1], [0], [0], [1], [0, 0, 1, 1], [], []>} : vector<32x32xbf16>, vector<32x256xbf16>, vector<32x256xf32> -> vector<32x256xf32>
    %258 = arith.addf %250, %257 : vector<32x256xf32>
    %c7_244 = arith.constant 7 : index
    %c0_245 = arith.constant 0 : index
    %c0_246 = arith.constant 0 : index
    %259 = vector.load %arg10[%c7_244, %c0_245, %c0_246] : memref<9x256x256xbf16, #tpu.memory_space<vmem>>, vector<1x256x256xbf16>
    %260 = vector.shape_cast %259 : vector<1x256x256xbf16> to vector<256x256xbf16>
    %cst_247 = arith.constant dense<0.000000e+00> : vector<32x256xf32>
    %261 = tpu.matmul %203, %260, %cst_247 {dimension_numbers = #tpu.dot_dimension_numbers<[1], [0], [0], [1], [0, 0, 1, 1], [], []>} : vector<32x256xbf16>, vector<256x256xbf16>, vector<32x256xf32> -> vector<32x256xf32>
    %262 = arith.truncf %261 : vector<32x256xf32> to vector<32x256xbf16>
    %c7_248 = arith.constant 7 : index
    %c0_249 = arith.constant 0 : index
    %c0_250 = arith.constant 0 : index
    %263 = vector.load %arg24[%c7_248, %c0_249, %c0_250] : memref<9x32x32xbf16, #tpu.memory_space<vmem>>, vector<1x32x32xbf16>
    %264 = vector.shape_cast %263 : vector<1x32x32xbf16> to vector<32x32xbf16>
    %cst_251 = arith.constant dense<0.000000e+00> : vector<32x256xf32>
    %265 = tpu.matmul %264, %262, %cst_251 {dimension_numbers = #tpu.dot_dimension_numbers<[1], [0], [0], [1], [0, 0, 1, 1], [], []>} : vector<32x32xbf16>, vector<32x256xbf16>, vector<32x256xf32> -> vector<32x256xf32>
    %266 = arith.addf %258, %265 : vector<32x256xf32>
    %c8_252 = arith.constant 8 : index
    %c0_253 = arith.constant 0 : index
    %c0_254 = arith.constant 0 : index
    %267 = vector.load %arg10[%c8_252, %c0_253, %c0_254] : memref<9x256x256xbf16, #tpu.memory_space<vmem>>, vector<1x256x256xbf16>
    %268 = vector.shape_cast %267 : vector<1x256x256xbf16> to vector<256x256xbf16>
    %cst_255 = arith.constant dense<0.000000e+00> : vector<32x256xf32>
    %269 = tpu.matmul %203, %268, %cst_255 {dimension_numbers = #tpu.dot_dimension_numbers<[1], [0], [0], [1], [0, 0, 1, 1], [], []>} : vector<32x256xbf16>, vector<256x256xbf16>, vector<32x256xf32> -> vector<32x256xf32>
    %270 = arith.truncf %269 : vector<32x256xf32> to vector<32x256xbf16>
    %c8_256 = arith.constant 8 : index
    %c0_257 = arith.constant 0 : index
    %c0_258 = arith.constant 0 : index
    %271 = vector.load %arg24[%c8_256, %c0_257, %c0_258] : memref<9x32x32xbf16, #tpu.memory_space<vmem>>, vector<1x32x32xbf16>
    %272 = vector.shape_cast %271 : vector<1x32x32xbf16> to vector<32x32xbf16>
    %cst_259 = arith.constant dense<0.000000e+00> : vector<32x256xf32>
    %273 = tpu.matmul %272, %270, %cst_259 {dimension_numbers = #tpu.dot_dimension_numbers<[1], [0], [0], [1], [0, 0, 1, 1], [], []>} : vector<32x32xbf16>, vector<32x256xbf16>, vector<32x256xf32> -> vector<32x256xf32>
    %274 = arith.addf %266, %273 : vector<32x256xf32>
    %c0_260 = arith.constant 0 : index
    %c0_261 = arith.constant 0 : index
    %275 = vector.load %arg25[%c0_260, %c0_261] : memref<32x1xf32, #tpu.memory_space<vmem>>, vector<32x1xf32>
    %276 = vector.broadcast %275 : vector<32x1xf32> to vector<32x256xf32>
    %277 = arith.addf %274, %276 : vector<32x256xf32>
    %cst_262 = arith.constant 0.000000e+00 : f32
    %278 = vector.broadcast %cst_262 : f32 to vector<32x256xf32>
    %279 = arith.maximumf %277, %278 : vector<32x256xf32>
    %280 = arith.truncf %279 : vector<32x256xf32> to vector<32x256xbf16>
    %c0_263 = arith.constant 0 : index
    %c0_264 = arith.constant 0 : index
    %c0_265 = arith.constant 0 : index
    %281 = vector.load %arg10[%c0_263, %c0_264, %c0_265] : memref<9x256x256xbf16, #tpu.memory_space<vmem>>, vector<1x256x256xbf16>
    %282 = vector.shape_cast %281 : vector<1x256x256xbf16> to vector<256x256xbf16>
    %cst_266 = arith.constant dense<0.000000e+00> : vector<32x256xf32>
    %283 = tpu.matmul %280, %282, %cst_266 {dimension_numbers = #tpu.dot_dimension_numbers<[1], [0], [0], [1], [0, 0, 1, 1], [], []>} : vector<32x256xbf16>, vector<256x256xbf16>, vector<32x256xf32> -> vector<32x256xf32>
    %284 = arith.truncf %283 : vector<32x256xf32> to vector<32x256xbf16>
    %c0_267 = arith.constant 0 : index
    %c0_268 = arith.constant 0 : index
    %c0_269 = arith.constant 0 : index
    %285 = vector.load %arg26[%c0_267, %c0_268, %c0_269] : memref<9x32x32xbf16, #tpu.memory_space<vmem>>, vector<1x32x32xbf16>
    %286 = vector.shape_cast %285 : vector<1x32x32xbf16> to vector<32x32xbf16>
    %cst_270 = arith.constant dense<0.000000e+00> : vector<32x256xf32>
    %287 = tpu.matmul %286, %284, %cst_270 {dimension_numbers = #tpu.dot_dimension_numbers<[1], [0], [0], [1], [0, 0, 1, 1], [], []>} : vector<32x32xbf16>, vector<32x256xbf16>, vector<32x256xf32> -> vector<32x256xf32>
    %c1_271 = arith.constant 1 : index
    %c0_272 = arith.constant 0 : index
    %c0_273 = arith.constant 0 : index
    %288 = vector.load %arg10[%c1_271, %c0_272, %c0_273] : memref<9x256x256xbf16, #tpu.memory_space<vmem>>, vector<1x256x256xbf16>
    %289 = vector.shape_cast %288 : vector<1x256x256xbf16> to vector<256x256xbf16>
    %cst_274 = arith.constant dense<0.000000e+00> : vector<32x256xf32>
    %290 = tpu.matmul %280, %289, %cst_274 {dimension_numbers = #tpu.dot_dimension_numbers<[1], [0], [0], [1], [0, 0, 1, 1], [], []>} : vector<32x256xbf16>, vector<256x256xbf16>, vector<32x256xf32> -> vector<32x256xf32>
    %291 = arith.truncf %290 : vector<32x256xf32> to vector<32x256xbf16>
    %c1_275 = arith.constant 1 : index
    %c0_276 = arith.constant 0 : index
    %c0_277 = arith.constant 0 : index
    %292 = vector.load %arg26[%c1_275, %c0_276, %c0_277] : memref<9x32x32xbf16, #tpu.memory_space<vmem>>, vector<1x32x32xbf16>
    %293 = vector.shape_cast %292 : vector<1x32x32xbf16> to vector<32x32xbf16>
    %cst_278 = arith.constant dense<0.000000e+00> : vector<32x256xf32>
    %294 = tpu.matmul %293, %291, %cst_278 {dimension_numbers = #tpu.dot_dimension_numbers<[1], [0], [0], [1], [0, 0, 1, 1], [], []>} : vector<32x32xbf16>, vector<32x256xbf16>, vector<32x256xf32> -> vector<32x256xf32>
    %295 = arith.addf %287, %294 : vector<32x256xf32>
    %c2_279 = arith.constant 2 : index
    %c0_280 = arith.constant 0 : index
    %c0_281 = arith.constant 0 : index
    %296 = vector.load %arg10[%c2_279, %c0_280, %c0_281] : memref<9x256x256xbf16, #tpu.memory_space<vmem>>, vector<1x256x256xbf16>
    %297 = vector.shape_cast %296 : vector<1x256x256xbf16> to vector<256x256xbf16>
    %cst_282 = arith.constant dense<0.000000e+00> : vector<32x256xf32>
    %298 = tpu.matmul %280, %297, %cst_282 {dimension_numbers = #tpu.dot_dimension_numbers<[1], [0], [0], [1], [0, 0, 1, 1], [], []>} : vector<32x256xbf16>, vector<256x256xbf16>, vector<32x256xf32> -> vector<32x256xf32>
    %299 = arith.truncf %298 : vector<32x256xf32> to vector<32x256xbf16>
    %c2_283 = arith.constant 2 : index
    %c0_284 = arith.constant 0 : index
    %c0_285 = arith.constant 0 : index
    %300 = vector.load %arg26[%c2_283, %c0_284, %c0_285] : memref<9x32x32xbf16, #tpu.memory_space<vmem>>, vector<1x32x32xbf16>
    %301 = vector.shape_cast %300 : vector<1x32x32xbf16> to vector<32x32xbf16>
    %cst_286 = arith.constant dense<0.000000e+00> : vector<32x256xf32>
    %302 = tpu.matmul %301, %299, %cst_286 {dimension_numbers = #tpu.dot_dimension_numbers<[1], [0], [0], [1], [0, 0, 1, 1], [], []>} : vector<32x32xbf16>, vector<32x256xbf16>, vector<32x256xf32> -> vector<32x256xf32>
    %303 = arith.addf %295, %302 : vector<32x256xf32>
    %c3_287 = arith.constant 3 : index
    %c0_288 = arith.constant 0 : index
    %c0_289 = arith.constant 0 : index
    %304 = vector.load %arg10[%c3_287, %c0_288, %c0_289] : memref<9x256x256xbf16, #tpu.memory_space<vmem>>, vector<1x256x256xbf16>
    %305 = vector.shape_cast %304 : vector<1x256x256xbf16> to vector<256x256xbf16>
    %cst_290 = arith.constant dense<0.000000e+00> : vector<32x256xf32>
    %306 = tpu.matmul %280, %305, %cst_290 {dimension_numbers = #tpu.dot_dimension_numbers<[1], [0], [0], [1], [0, 0, 1, 1], [], []>} : vector<32x256xbf16>, vector<256x256xbf16>, vector<32x256xf32> -> vector<32x256xf32>
    %307 = arith.truncf %306 : vector<32x256xf32> to vector<32x256xbf16>
    %c3_291 = arith.constant 3 : index
    %c0_292 = arith.constant 0 : index
    %c0_293 = arith.constant 0 : index
    %308 = vector.load %arg26[%c3_291, %c0_292, %c0_293] : memref<9x32x32xbf16, #tpu.memory_space<vmem>>, vector<1x32x32xbf16>
    %309 = vector.shape_cast %308 : vector<1x32x32xbf16> to vector<32x32xbf16>
    %cst_294 = arith.constant dense<0.000000e+00> : vector<32x256xf32>
    %310 = tpu.matmul %309, %307, %cst_294 {dimension_numbers = #tpu.dot_dimension_numbers<[1], [0], [0], [1], [0, 0, 1, 1], [], []>} : vector<32x32xbf16>, vector<32x256xbf16>, vector<32x256xf32> -> vector<32x256xf32>
    %311 = arith.addf %303, %310 : vector<32x256xf32>
    %c4_295 = arith.constant 4 : index
    %c0_296 = arith.constant 0 : index
    %c0_297 = arith.constant 0 : index
    %312 = vector.load %arg10[%c4_295, %c0_296, %c0_297] : memref<9x256x256xbf16, #tpu.memory_space<vmem>>, vector<1x256x256xbf16>
    %313 = vector.shape_cast %312 : vector<1x256x256xbf16> to vector<256x256xbf16>
    %cst_298 = arith.constant dense<0.000000e+00> : vector<32x256xf32>
    %314 = tpu.matmul %280, %313, %cst_298 {dimension_numbers = #tpu.dot_dimension_numbers<[1], [0], [0], [1], [0, 0, 1, 1], [], []>} : vector<32x256xbf16>, vector<256x256xbf16>, vector<32x256xf32> -> vector<32x256xf32>
    %315 = arith.truncf %314 : vector<32x256xf32> to vector<32x256xbf16>
    %c4_299 = arith.constant 4 : index
    %c0_300 = arith.constant 0 : index
    %c0_301 = arith.constant 0 : index
    %316 = vector.load %arg26[%c4_299, %c0_300, %c0_301] : memref<9x32x32xbf16, #tpu.memory_space<vmem>>, vector<1x32x32xbf16>
    %317 = vector.shape_cast %316 : vector<1x32x32xbf16> to vector<32x32xbf16>
    %cst_302 = arith.constant dense<0.000000e+00> : vector<32x256xf32>
    %318 = tpu.matmul %317, %315, %cst_302 {dimension_numbers = #tpu.dot_dimension_numbers<[1], [0], [0], [1], [0, 0, 1, 1], [], []>} : vector<32x32xbf16>, vector<32x256xbf16>, vector<32x256xf32> -> vector<32x256xf32>
    %319 = arith.addf %311, %318 : vector<32x256xf32>
    %c5_303 = arith.constant 5 : index
    %c0_304 = arith.constant 0 : index
    %c0_305 = arith.constant 0 : index
    %320 = vector.load %arg10[%c5_303, %c0_304, %c0_305] : memref<9x256x256xbf16, #tpu.memory_space<vmem>>, vector<1x256x256xbf16>
    %321 = vector.shape_cast %320 : vector<1x256x256xbf16> to vector<256x256xbf16>
    %cst_306 = arith.constant dense<0.000000e+00> : vector<32x256xf32>
    %322 = tpu.matmul %280, %321, %cst_306 {dimension_numbers = #tpu.dot_dimension_numbers<[1], [0], [0], [1], [0, 0, 1, 1], [], []>} : vector<32x256xbf16>, vector<256x256xbf16>, vector<32x256xf32> -> vector<32x256xf32>
    %323 = arith.truncf %322 : vector<32x256xf32> to vector<32x256xbf16>
    %c5_307 = arith.constant 5 : index
    %c0_308 = arith.constant 0 : index
    %c0_309 = arith.constant 0 : index
    %324 = vector.load %arg26[%c5_307, %c0_308, %c0_309] : memref<9x32x32xbf16, #tpu.memory_space<vmem>>, vector<1x32x32xbf16>
    %325 = vector.shape_cast %324 : vector<1x32x32xbf16> to vector<32x32xbf16>
    %cst_310 = arith.constant dense<0.000000e+00> : vector<32x256xf32>
    %326 = tpu.matmul %325, %323, %cst_310 {dimension_numbers = #tpu.dot_dimension_numbers<[1], [0], [0], [1], [0, 0, 1, 1], [], []>} : vector<32x32xbf16>, vector<32x256xbf16>, vector<32x256xf32> -> vector<32x256xf32>
    %327 = arith.addf %319, %326 : vector<32x256xf32>
    %c6_311 = arith.constant 6 : index
    %c0_312 = arith.constant 0 : index
    %c0_313 = arith.constant 0 : index
    %328 = vector.load %arg10[%c6_311, %c0_312, %c0_313] : memref<9x256x256xbf16, #tpu.memory_space<vmem>>, vector<1x256x256xbf16>
    %329 = vector.shape_cast %328 : vector<1x256x256xbf16> to vector<256x256xbf16>
    %cst_314 = arith.constant dense<0.000000e+00> : vector<32x256xf32>
    %330 = tpu.matmul %280, %329, %cst_314 {dimension_numbers = #tpu.dot_dimension_numbers<[1], [0], [0], [1], [0, 0, 1, 1], [], []>} : vector<32x256xbf16>, vector<256x256xbf16>, vector<32x256xf32> -> vector<32x256xf32>
    %331 = arith.truncf %330 : vector<32x256xf32> to vector<32x256xbf16>
    %c6_315 = arith.constant 6 : index
    %c0_316 = arith.constant 0 : index
    %c0_317 = arith.constant 0 : index
    %332 = vector.load %arg26[%c6_315, %c0_316, %c0_317] : memref<9x32x32xbf16, #tpu.memory_space<vmem>>, vector<1x32x32xbf16>
    %333 = vector.shape_cast %332 : vector<1x32x32xbf16> to vector<32x32xbf16>
    %cst_318 = arith.constant dense<0.000000e+00> : vector<32x256xf32>
    %334 = tpu.matmul %333, %331, %cst_318 {dimension_numbers = #tpu.dot_dimension_numbers<[1], [0], [0], [1], [0, 0, 1, 1], [], []>} : vector<32x32xbf16>, vector<32x256xbf16>, vector<32x256xf32> -> vector<32x256xf32>
    %335 = arith.addf %327, %334 : vector<32x256xf32>
    %c7_319 = arith.constant 7 : index
    %c0_320 = arith.constant 0 : index
    %c0_321 = arith.constant 0 : index
    %336 = vector.load %arg10[%c7_319, %c0_320, %c0_321] : memref<9x256x256xbf16, #tpu.memory_space<vmem>>, vector<1x256x256xbf16>
    %337 = vector.shape_cast %336 : vector<1x256x256xbf16> to vector<256x256xbf16>
    %cst_322 = arith.constant dense<0.000000e+00> : vector<32x256xf32>
    %338 = tpu.matmul %280, %337, %cst_322 {dimension_numbers = #tpu.dot_dimension_numbers<[1], [0], [0], [1], [0, 0, 1, 1], [], []>} : vector<32x256xbf16>, vector<256x256xbf16>, vector<32x256xf32> -> vector<32x256xf32>
    %339 = arith.truncf %338 : vector<32x256xf32> to vector<32x256xbf16>
    %c7_323 = arith.constant 7 : index
    %c0_324 = arith.constant 0 : index
    %c0_325 = arith.constant 0 : index
    %340 = vector.load %arg26[%c7_323, %c0_324, %c0_325] : memref<9x32x32xbf16, #tpu.memory_space<vmem>>, vector<1x32x32xbf16>
    %341 = vector.shape_cast %340 : vector<1x32x32xbf16> to vector<32x32xbf16>
    %cst_326 = arith.constant dense<0.000000e+00> : vector<32x256xf32>
    %342 = tpu.matmul %341, %339, %cst_326 {dimension_numbers = #tpu.dot_dimension_numbers<[1], [0], [0], [1], [0, 0, 1, 1], [], []>} : vector<32x32xbf16>, vector<32x256xbf16>, vector<32x256xf32> -> vector<32x256xf32>
    %343 = arith.addf %335, %342 : vector<32x256xf32>
    %c8_327 = arith.constant 8 : index
    %c0_328 = arith.constant 0 : index
    %c0_329 = arith.constant 0 : index
    %344 = vector.load %arg10[%c8_327, %c0_328, %c0_329] : memref<9x256x256xbf16, #tpu.memory_space<vmem>>, vector<1x256x256xbf16>
    %345 = vector.shape_cast %344 : vector<1x256x256xbf16> to vector<256x256xbf16>
    %cst_330 = arith.constant dense<0.000000e+00> : vector<32x256xf32>
    %346 = tpu.matmul %280, %345, %cst_330 {dimension_numbers = #tpu.dot_dimension_numbers<[1], [0], [0], [1], [0, 0, 1, 1], [], []>} : vector<32x256xbf16>, vector<256x256xbf16>, vector<32x256xf32> -> vector<32x256xf32>
    %347 = arith.truncf %346 : vector<32x256xf32> to vector<32x256xbf16>
    %c8_331 = arith.constant 8 : index
    %c0_332 = arith.constant 0 : index
    %c0_333 = arith.constant 0 : index
    %348 = vector.load %arg26[%c8_331, %c0_332, %c0_333] : memref<9x32x32xbf16, #tpu.memory_space<vmem>>, vector<1x32x32xbf16>
    %349 = vector.shape_cast %348 : vector<1x32x32xbf16> to vector<32x32xbf16>
    %cst_334 = arith.constant dense<0.000000e+00> : vector<32x256xf32>
    %350 = tpu.matmul %349, %347, %cst_334 {dimension_numbers = #tpu.dot_dimension_numbers<[1], [0], [0], [1], [0, 0, 1, 1], [], []>} : vector<32x32xbf16>, vector<32x256xbf16>, vector<32x256xf32> -> vector<32x256xf32>
    %351 = arith.addf %343, %350 : vector<32x256xf32>
    %c0_335 = arith.constant 0 : index
    %c0_336 = arith.constant 0 : index
    %352 = vector.load %arg27[%c0_335, %c0_336] : memref<32x1xf32, #tpu.memory_space<vmem>>, vector<32x1xf32>
    %353 = vector.broadcast %352 : vector<32x1xf32> to vector<32x256xf32>
    %354 = arith.addf %351, %353 : vector<32x256xf32>
    %cst_337 = arith.constant 0.000000e+00 : f32
    %355 = vector.broadcast %cst_337 : f32 to vector<32x256xf32>
    %356 = arith.maximumf %354, %355 : vector<32x256xf32>
    %c0_338 = arith.constant 0 : index
    %c0_339 = arith.constant 0 : index
    %c0_340 = arith.constant 0 : index
    %357 = vector.load %arg28[%c0_338, %c0_339, %c0_340] : memref<1x32x256xf32, #tpu.memory_space<vmem>>, vector<1x32x256xf32>
    %358 = vector.shape_cast %357 : vector<1x32x256xf32> to vector<32x256xf32>
    %359 = vector.shape_cast %356 : vector<32x256xf32> to vector<1x32x256xf32>
    tpu.vector_store %arg28[%c0_338, %c0_339, %c0_340], %359 {strides = array<i32>} : memref<1x32x256xf32, #tpu.memory_space<vmem>>, vector<1x32x256xf32>,
    return
  }
  func.func @transform_0(%arg0: i32) -> (i32, i32, i32) {
    %c0_i32 = arith.constant 0 : i32
    %c0_i32_0 = arith.constant 0 : i32
    %c0_i32_1 = arith.constant 0 : i32
    return %arg0, %c0_i32, %c0_i32_0 : i32, i32, i32
  }
  func.func @transform_1(%arg0: i32) -> (i32, i32, i32) {
    %c0_i32 = arith.constant 0 : i32
    %c0_i32_0 = arith.constant 0 : i32
    %c0_i32_1 = arith.constant 0 : i32
    return %arg0, %c0_i32, %c0_i32_0 : i32, i32, i32
  }
  func.func @transform_2(%arg0: i32) -> (i32, i32, i32) {
    %c0_i32 = arith.constant 0 : i32
    %c0_i32_0 = arith.constant 0 : i32
    %c0_i32_1 = arith.constant 0 : i32
    return %arg0, %c0_i32, %c0_i32_0 : i32, i32, i32
  }
  func.func @transform_3(%arg0: i32) -> (i32, i32, i32) {
    %c0_i32 = arith.constant 0 : i32
    %c0_i32_0 = arith.constant 0 : i32
    %c0_i32_1 = arith.constant 0 : i32
    return %arg0, %c0_i32, %c0_i32_0 : i32, i32, i32
  }
  func.func @transform_4(%arg0: i32) -> (i32, i32) {
    %c0_i32 = arith.constant 0 : i32
    %c0_i32_0 = arith.constant 0 : i32
    %c0_i32_1 = arith.constant 0 : i32
    return %c0_i32, %c0_i32_0 : i32, i32
  }
  func.func @transform_5(%arg0: i32) -> (i32, i32) {
    %c0_i32 = arith.constant 0 : i32
    %c0_i32_0 = arith.constant 0 : i32
    %c0_i32_1 = arith.constant 0 : i32
    return %c0_i32, %c0_i32_0 : i32, i32
  }
  func.func @transform_6(%arg0: i32) -> (i32, i32) {
    %c0_i32 = arith.constant 0 : i32
    %c0_i32_0 = arith.constant 0 : i32
    %c0_i32_1 = arith.constant 0 : i32
    return %c0_i32, %c0_i32_0 : i32, i32
  }
  func.func @transform_7(%arg0: i32) -> (i32, i32, i32) {
    %c0_i32 = arith.constant 0 : i32
    %c0_i32_0 = arith.constant 0 : i32
    %c0_i32_1 = arith.constant 0 : i32
    %c0_i32_2 = arith.constant 0 : i32
    return %c0_i32, %c0_i32_0, %c0_i32_1 : i32, i32, i32
  }
  func.func @transform_8(%arg0: i32) -> (i32, i32, i32) {
    %c0_i32 = arith.constant 0 : i32
    %c0_i32_0 = arith.constant 0 : i32
    %c0_i32_1 = arith.constant 0 : i32
    %c0_i32_2 = arith.constant 0 : i32
    return %c0_i32, %c0_i32_0, %c0_i32_1 : i32, i32, i32
  }
  func.func @transform_9(%arg0: i32) -> (i32, i32, i32) {
    %c0_i32 = arith.constant 0 : i32
    %c0_i32_0 = arith.constant 0 : i32
    %c0_i32_1 = arith.constant 0 : i32
    %c0_i32_2 = arith.constant 0 : i32
    return %c0_i32, %c0_i32_0, %c0_i32_1 : i32, i32, i32
  }
  func.func @transform_10(%arg0: i32) -> (i32, i32) {
    %c0_i32 = arith.constant 0 : i32
    %c0_i32_0 = arith.constant 0 : i32
    %c0_i32_1 = arith.constant 0 : i32
    return %c0_i32, %c0_i32_0 : i32, i32
  }
  func.func @transform_11(%arg0: i32) -> (i32, i32) {
    %c0_i32 = arith.constant 0 : i32
    %c0_i32_0 = arith.constant 0 : i32
    %c0_i32_1 = arith.constant 0 : i32
    return %c0_i32, %c0_i32_0 : i32, i32
  }
  func.func @transform_12(%arg0: i32) -> (i32, i32) {
    %c0_i32 = arith.constant 0 : i32
    %c0_i32_0 = arith.constant 0 : i32
    %c0_i32_1 = arith.constant 0 : i32
    return %c0_i32, %c0_i32_0 : i32, i32
  }
  func.func @transform_13(%arg0: i32) -> (i32, i32, i32) {
    %c0_i32 = arith.constant 0 : i32
    %c0_i32_0 = arith.constant 0 : i32
    %c0_i32_1 = arith.constant 0 : i32
    %c0_i32_2 = arith.constant 0 : i32
    return %c0_i32, %c0_i32_0, %c0_i32_1 : i32, i32, i32
  }
  func.func @transform_14(%arg0: i32) -> (i32, i32) {
    %c0_i32 = arith.constant 0 : i32
    %c0_i32_0 = arith.constant 0 : i32
    %c0_i32_1 = arith.constant 0 : i32
    return %c0_i32, %c0_i32_0 : i32, i32
  }
  func.func @transform_15(%arg0: i32) -> (i32, i32) {
    %c0_i32 = arith.constant 0 : i32
    %c0_i32_0 = arith.constant 0 : i32
    %c0_i32_1 = arith.constant 0 : i32
    return %c0_i32, %c0_i32_0 : i32, i32
  }
  func.func @transform_16(%arg0: i32) -> (i32, i32) {
    %c0_i32 = arith.constant 0 : i32
    %c0_i32_0 = arith.constant 0 : i32
    %c0_i32_1 = arith.constant 0 : i32
    return %c0_i32, %c0_i32_0 : i32, i32
  }
  func.func @transform_17(%arg0: i32) -> (i32, i32) {
    %c0_i32 = arith.constant 0 : i32
    %c0_i32_0 = arith.constant 0 : i32
    %c0_i32_1 = arith.constant 0 : i32
    return %c0_i32, %c0_i32_0 : i32, i32
  }
  func.func @transform_18(%arg0: i32) -> (i32, i32, i32) {
    %c0_i32 = arith.constant 0 : i32
    %c0_i32_0 = arith.constant 0 : i32
    %c0_i32_1 = arith.constant 0 : i32
    %c0_i32_2 = arith.constant 0 : i32
    return %c0_i32, %c0_i32_0, %c0_i32_1 : i32, i32, i32
  }
  func.func @transform_19(%arg0: i32) -> (i32, i32) {
    %c0_i32 = arith.constant 0 : i32
    %c0_i32_0 = arith.constant 0 : i32
    %c0_i32_1 = arith.constant 0 : i32
    return %c0_i32, %c0_i32_0 : i32, i32
  }
  func.func @transform_20(%arg0: i32) -> (i32, i32) {
    %c0_i32 = arith.constant 0 : i32
    %c0_i32_0 = arith.constant 0 : i32
    %c0_i32_1 = arith.constant 0 : i32
    return %c0_i32, %c0_i32_0 : i32, i32
  }
  func.func @transform_21(%arg0: i32) -> (i32, i32) {
    %c0_i32 = arith.constant 0 : i32
    %c0_i32_0 = arith.constant 0 : i32
    %c0_i32_1 = arith.constant 0 : i32
    return %c0_i32, %c0_i32_0 : i32, i32
  }
  func.func @transform_22(%arg0: i32) -> (i32, i32) {
    %c0_i32 = arith.constant 0 : i32
    %c0_i32_0 = arith.constant 0 : i32
    %c0_i32_1 = arith.constant 0 : i32
    return %c0_i32, %c0_i32_0 : i32, i32
  }
  func.func @transform_23(%arg0: i32) -> (i32, i32, i32) {
    %c0_i32 = arith.constant 0 : i32
    %c0_i32_0 = arith.constant 0 : i32
    %c0_i32_1 = arith.constant 0 : i32
    %c0_i32_2 = arith.constant 0 : i32
    return %c0_i32, %c0_i32_0, %c0_i32_1 : i32, i32, i32
  }
  func.func @transform_24(%arg0: i32) -> (i32, i32) {
    %c0_i32 = arith.constant 0 : i32
    %c0_i32_0 = arith.constant 0 : i32
    %c0_i32_1 = arith.constant 0 : i32
    return %c0_i32, %c0_i32_0 : i32, i32
  }
  func.func @transform_25(%arg0: i32) -> (i32, i32, i32) {
    %c0_i32 = arith.constant 0 : i32
    %c0_i32_0 = arith.constant 0 : i32
    %c0_i32_1 = arith.constant 0 : i32
    %c0_i32_2 = arith.constant 0 : i32
    return %c0_i32, %c0_i32_0, %c0_i32_1 : i32, i32, i32
  }
  func.func @transform_26(%arg0: i32) -> (i32, i32) {
    %c0_i32 = arith.constant 0 : i32
    %c0_i32_0 = arith.constant 0 : i32
    %c0_i32_1 = arith.constant 0 : i32
    return %c0_i32, %c0_i32_0 : i32, i32
  }
  func.func @transform_27(%arg0: i32) -> (i32, i32, i32) {
    %c0_i32 = arith.constant 0 : i32
    %c0_i32_0 = arith.constant 0 : i32
    %c0_i32_1 = arith.constant 0 : i32
    return %arg0, %c0_i32, %c0_i32_0 : i32, i32, i32
  }
}

</mosaic_0001>

<llo_original>
// kernel: _lambda_.1
$region0: #{_lambda_.1}
  #allocation0 [shape = 'u32[]', space=smem, size = 0x4, offset = 0x4, fixed_abs, tag = 'smem constant byte address 0x4 - core index']
  #allocation1 [shape = 'u32[72,128]{1,0:T(1,128)}', space=vmem, size = 0x9000, scoped, tag = 'internal scratch']
  %s0 = inlined_call_operand.vmem [shape: bf16[2,128,256], index: 0, kind: input, shape index: {}]
  %s1 = inlined_call_operand.vmem [shape: bf16[2,256,64], index: 1, kind: input, shape index: {}]
  %s2 = inlined_call_operand.vmem [shape: bf16[2,512,16], index: 2, kind: input, shape index: {}]
  %s3 = inlined_call_operand.vmem [shape: bf16[2,512,4], index: 3, kind: input, shape index: {}]
  %s4 = inlined_call_operand.vmem [shape: bf16[4,16], index: 4, kind: input, shape index: {}]
  %s5 = inlined_call_operand.vmem [shape: bf16[16,64], index: 5, kind: input, shape index: {}]
  %s6 = inlined_call_operand.vmem [shape: bf16[64,256], index: 6, kind: input, shape index: {}]
  %s7 = inlined_call_operand.vmem [shape: bf16[9,16,16], index: 7, kind: input, shape index: {}]
  %s8 = inlined_call_operand.vmem [shape: bf16[9,64,64], index: 8, kind: input, shape index: {}]
  %s9 = inlined_call_operand.vmem [shape: bf16[9,256,256], index: 9, kind: input, shape index: {}]
  %s10 = inlined_call_operand.vmem [shape: bf16[128,512], index: 10, kind: input, shape index: {}]
  %s11 = inlined_call_operand.vmem [shape: bf16[128,512], index: 11, kind: input, shape index: {}]
  %s12 = inlined_call_operand.vmem [shape: f32[128,1], index: 12, kind: input, shape index: {}, may-alias: {12,14}]
  %s13 = inlined_call_operand.vmem [shape: bf16[9,128,128], index: 13, kind: input, shape index: {}]
  %s14 = inlined_call_operand.vmem [shape: f32[128,1], index: 14, kind: input, shape index: {}, may-alias: {12,14}]
  %s15 = inlined_call_operand.vmem [shape: bf16[64,128], index: 15, kind: input, shape index: {}]
  %s16 = inlined_call_operand.vmem [shape: bf16[64,256], index: 16, kind: input, shape index: {}]
  %s17 = inlined_call_operand.vmem [shape: f32[64,1], index: 17, kind: input, shape index: {}, may-alias: {17,19}]
  %s18 = inlined_call_operand.vmem [shape: bf16[9,64,64], index: 18, kind: input, shape index: {}]
  %s19 = inlined_call_operand.vmem [shape: f32[64,1], index: 19, kind: input, shape index: {}, may-alias: {17,19}]
  %s20 = inlined_call_operand.vmem [shape: bf16[32,64], index: 20, kind: input, shape index: {}]
  %s21 = inlined_call_operand.vmem [shape: bf16[32,128], index: 21, kind: input, shape index: {}]
  %s22 = inlined_call_operand.vmem [shape: f32[32,1], index: 22, kind: input, shape index: {}, may-alias: {22,24,26}]
  %s23 = inlined_call_operand.vmem [shape: bf16[9,32,32], index: 23, kind: input, shape index: {}]
  %s24 = inlined_call_operand.vmem [shape: f32[32,1], index: 24, kind: input, shape index: {}, may-alias: {22,24,26}]
  %s25 = inlined_call_operand.vmem [shape: bf16[9,32,32], index: 25, kind: input, shape index: {}]
  %s26 = inlined_call_operand.vmem [shape: f32[32,1], index: 26, kind: input, shape index: {}, may-alias: {22,24,26}]
  %s27 = inlined_call_operand.vmem [shape: f32[2,32,256], index: 27, kind: output, shape index: {}]
  %s28 = sld [smem:[#allocation0]]
  $region141: #{_lambda_.1} parent=0
    _
  %s30 = ssub.s32 1, %s28
  %s31 = scalar_select 0, %s30, %s28
  loop: start=0, step=1, limit=4
  $region2: #{_lambda_.1} parent=0 // loop_pre_header
    _
  $region3: #{_lambda_.1} parent=0 // loop_header
    %s33 = sphi 0, %s37
    %p34 = scmp.ge.s32.totalorder %s33, 4
    %s43 = sphi 0, %s45
    %s46 = sphi 0, %s43
    %s47 = sphi 0, %s46
    %s63 = sphi 0, %s47
    %s69 = sphi 0, %s71
    %s72 = sphi 0, %s69
    %s73 = sphi 0, %s72
    %s89 = sphi 0, %s73
    %s95 = sphi 0, %s97
    %s98 = sphi 0, %s95
    %s99 = sphi 0, %s98
    %s115 = sphi 0, %s99
    %s121 = sphi 0, %s123
    %s124 = sphi 0, %s121
    %s125 = sphi 0, %s124
    %s141 = sphi 0, %s125
    %s145 = sphi 0, %s145
    %s147 = sphi 0, %s145
    %s148 = sphi 0, %s147
    %s162 = sphi 0, %s148
    %s166 = sphi 0, %s166
    %s168 = sphi 0, %s166
    %s169 = sphi 0, %s168
    %s183 = sphi 0, %s169
    %s187 = sphi 0, %s187
    %s189 = sphi 0, %s187
    %s190 = sphi 0, %s189
    %s204 = sphi 0, %s190
    %s208 = sphi 0, %s208
    %s210 = sphi 0, %s208
    %s211 = sphi 0, %s210
    %s225 = sphi 0, %s211
    %s229 = sphi 0, %s229
    %s231 = sphi 0, %s229
    %s232 = sphi 0, %s231
    %s246 = sphi 0, %s232
    %s250 = sphi 0, %s250
    %s252 = sphi 0, %s250
    %s253 = sphi 0, %s252
    %s267 = sphi 0, %s253
    %s271 = sphi 0, %s271
    %s273 = sphi 0, %s271
    %s274 = sphi 0, %s273
    %s288 = sphi 0, %s274
    %s292 = sphi 0, %s292
    %s294 = sphi 0, %s292
    %s295 = sphi 0, %s294
    %s309 = sphi 0, %s295
    %s313 = sphi 0, %s313
    %s315 = sphi 0, %s313
    %s316 = sphi 0, %s315
    %s330 = sphi 0, %s316
    %s334 = sphi 0, %s334
    %s336 = sphi 0, %s334
    %s337 = sphi 0, %s336
    %s351 = sphi 0, %s337
    %s355 = sphi 0, %s355
    %s357 = sphi 0, %s355
    %s358 = sphi 0, %s357
    %s372 = sphi 0, %s358
    %s376 = sphi 0, %s376
    %s378 = sphi 0, %s376
    %s379 = sphi 0, %s378
    %s393 = sphi 0, %s379
    %s397 = sphi 0, %s397
    %s399 = sphi 0, %s397
    %s400 = sphi 0, %s399
    %s414 = sphi 0, %s400
    %s418 = sphi 0, %s418
    %s420 = sphi 0, %s418
    %s421 = sphi 0, %s420
    %s435 = sphi 0, %s421
    %s439 = sphi 0, %s439
    %s441 = sphi 0, %s439
    %s442 = sphi 0, %s441
    %s456 = sphi 0, %s442
    %s460 = sphi 0, %s460
    %s462 = sphi 0, %s460
    %s463 = sphi 0, %s462
    %s477 = sphi 0, %s463
    %s481 = sphi 0, %s481
    %s483 = sphi 0, %s481
    %s484 = sphi 0, %s483
    %s498 = sphi 0, %s484
    %s502 = sphi 0, %s502
    %s504 = sphi 0, %s502
    %s505 = sphi 0, %s504
    %s519 = sphi 0, %s505
    %s523 = sphi 0, %s523
    %s525 = sphi 0, %s523
    %s526 = sphi 0, %s525
    %s540 = sphi 0, %s526
    %s544 = sphi 0, %s544
    %s546 = sphi 0, %s544
    %s547 = sphi 0, %s546
    %s561 = sphi 0, %s547
    %s565 = sphi 0, %s565
    %s567 = sphi 0, %s565
    %s568 = sphi 0, %s567
    %s582 = sphi 0, %s568
    %s586 = sphi 0, %s586
    %s588 = sphi 0, %s586
    %s589 = sphi 0, %s588
    %s603 = sphi 0, %s589
    %s607 = sphi 0, %s607
    %s609 = sphi 0, %s607
    %s610 = sphi 0, %s609
    %s624 = sphi 0, %s610
    %s630 = sphi 0, %s632
    %s633 = sphi 0, %s630
    %s634 = sphi 0, %s633
    %s650 = sphi 0, %s634
  $region4: #{_lambda_.1} parent=0 // loop_header_branch
    %36 = sbr.rel (%p34) target = $region8
  $region5: #{_lambda_.1} parent=0 // loop_body
    %s38 = ssub.s32 %s33, 1
    %s39 = ssub.s32 %s33, 2
    %s40 = sadd.s32 %s33, 1
    %s41 = ssub.s32 %s33, %s40
    %p42 = scmp.eq.s32.totalorder %s41, 0
    %s44 = sadd.s32 %s43, 1
    %s45 = scalar_select %p42, %s43, %s44
    %p48 = pneg %p42
    %p49 = scmp.eq.s32.totalorder %s33, 1
    %p50 = por %p48, %p49
    %p51 = scmp.ne.s32.totalorder %s43, %s46
    %p52 = scmp.eq.s32.totalorder %s33, 0
    %p53 = por %p51, %p52
    %p54 = scmp.ne.s32.totalorder %s43, %s46
    %p55 = scmp.eq.s32.totalorder %s38, 1
    %p56 = por %p54, %p55
    %p57 = scmp.ne.s32.totalorder %s46, %s47
    %p58 = scmp.eq.s32.totalorder %s38, 0
    %p59 = por %p57, %p58
    %p60 = scmp.ne.s32.totalorder %s46, %s47
    %p61 = scmp.eq.s32.totalorder %s39, 1
    %p62 = por %p60, %p61
    %p64 = scmp.ne.s32.totalorder %s47, %s63
    %p65 = scmp.eq.s32.totalorder %s39, 0
    %p66 = por %p64, %p65
    %s67 = ssub.s32 %s33, %s40
    %p68 = scmp.eq.s32.totalorder %s67, 0
    %s70 = sadd.s32 %s69, 1
    %s71 = scalar_select %p68, %s69, %s70
    %p74 = pneg %p68
    %p75 = scmp.eq.s32.totalorder %s33, 1
    %p76 = por %p74, %p75
    %p77 = scmp.ne.s32.totalorder %s69, %s72
    %p78 = scmp.eq.s32.totalorder %s33, 0
    %p79 = por %p77, %p78
    %p80 = scmp.ne.s32.totalorder %s69, %s72
    %p81 = scmp.eq.s32.totalorder %s38, 1
    %p82 = por %p80, %p81
    %p83 = scmp.ne.s32.totalorder %s72, %s73
    %p84 = scmp.eq.s32.totalorder %s38, 0
    %p85 = por %p83, %p84
    %p86 = scmp.ne.s32.totalorder %s72, %s73
    %p87 = scmp.eq.s32.totalorder %s39, 1
    %p88 = por %p86, %p87
    %p90 = scmp.ne.s32.totalorder %s73, %s89
    %p91 = scmp.eq.s32.totalorder %s39, 0
    %p92 = por %p90, %p91
    %s93 = ssub.s32 %s33, %s40
    %p94 = scmp.eq.s32.totalorder %s93, 0
    %s96 = sadd.s32 %s95, 1
    %s97 = scalar_select %p94, %s95, %s96
    %p100 = pneg %p94
    %p101 = scmp.eq.s32.totalorder %s33, 1
    %p102 = por %p100, %p101
    %p103 = scmp.ne.s32.totalorder %s95, %s98
    %p104 = scmp.eq.s32.totalorder %s33, 0
    %p105 = por %p103, %p104
    %p106 = scmp.ne.s32.totalorder %s95, %s98
    %p107 = scmp.eq.s32.totalorder %s38, 1
    %p108 = por %p106, %p107
    %p109 = scmp.ne.s32.totalorder %s98, %s99
    %p110 = scmp.eq.s32.totalorder %s38, 0
    %p111 = por %p109, %p110
    %p112 = scmp.ne.s32.totalorder %s98, %s99
    %p113 = scmp.eq.s32.totalorder %s39, 1
    %p114 = por %p112, %p113
    %p116 = scmp.ne.s32.totalorder %s99, %s115
    %p117 = scmp.eq.s32.totalorder %s39, 0
    %p118 = por %p116, %p117
    %s119 = ssub.s32 %s33, %s40
    %p120 = scmp.eq.s32.totalorder %s119, 0
    %s122 = sadd.s32 %s121, 1
    %s123 = scalar_select %p120, %s121, %s122
    %p126 = pneg %p120
    %p127 = scmp.eq.s32.totalorder %s33, 1
    %p128 = por %p126, %p127
    %p129 = scmp.ne.s32.totalorder %s121, %s124
    %p130 = scmp.eq.s32.totalorder %s33, 0
    %p131 = por %p129, %p130
    %p132 = scmp.ne.s32.totalorder %s121, %s124
    %p133 = scmp.eq.s32.totalorder %s38, 1
    %p134 = por %p132, %p133
    %p135 = scmp.ne.s32.totalorder %s124, %s125
    %p136 = scmp.eq.s32.totalorder %s38, 0
    %p137 = por %p135, %p136
    %p138 = scmp.ne.s32.totalorder %s124, %s125
    %p139 = scmp.eq.s32.totalorder %s39, 1
    %p140 = por %p138, %p139
    %p142 = scmp.ne.s32.totalorder %s125, %s141
    %p143 = scmp.eq.s32.totalorder %s39, 0
    %p144 = por %p142, %p143
    %s146 = sadd.s32 %s145, 1
    %p149 = scmp.eq.s32.totalorder %s33, 1
    %p150 = scmp.ne.s32.totalorder %s145, %s147
    %p151 = scmp.eq.s32.totalorder %s33, 0
    %p152 = por %p150, %p151
    %p153 = scmp.ne.s32.totalorder %s145, %s147
    %p154 = scmp.eq.s32.totalorder %s38, 1
    %p155 = por %p153, %p154
    %p156 = scmp.ne.s32.totalorder %s147, %s148
    %p157 = scmp.eq.s32.totalorder %s38, 0
    %p158 = por %p156, %p157
    %p159 = scmp.ne.s32.totalorder %s147, %s148
    %p160 = scmp.eq.s32.totalorder %s39, 1
    %p161 = por %p159, %p160
    %p163 = scmp.ne.s32.totalorder %s148, %s162
    %p164 = scmp.eq.s32.totalorder %s39, 0
    %p165 = por %p163, %p164
    %s167 = sadd.s32 %s166, 1
    %p170 = scmp.eq.s32.totalorder %s33, 1
    %p171 = scmp.ne.s32.totalorder %s166, %s168
    %p172 = scmp.eq.s32.totalorder %s33, 0
    %p173 = por %p171, %p172
    %p174 = scmp.ne.s32.totalorder %s166, %s168
    %p175 = scmp.eq.s32.totalorder %s38, 1
    %p176 = por %p174, %p175
    %p177 = scmp.ne.s32.totalorder %s168, %s169
    %p178 = scmp.eq.s32.totalorder %s38, 0
    %p179 = por %p177, %p178
    %p180 = scmp.ne.s32.totalorder %s168, %s169
    %p181 = scmp.eq.s32.totalorder %s39, 1
    %p182 = por %p180, %p181
    %p184 = scmp.ne.s32.totalorder %s169, %s183
    %p185 = scmp.eq.s32.totalorder %s39, 0
    %p186 = por %p184, %p185
    %s188 = sadd.s32 %s187, 1
    %p191 = scmp.eq.s32.totalorder %s33, 1
    %p192 = scmp.ne.s32.totalorder %s187, %s189
    %p193 = scmp.eq.s32.totalorder %s33, 0
    %p194 = por %p192, %p193
    %p195 = scmp.ne.s32.totalorder %s187, %s189
    %p196 = scmp.eq.s32.totalorder %s38, 1
    %p197 = por %p195, %p196
    %p198 = scmp.ne.s32.totalorder %s189, %s190
    %p199 = scmp.eq.s32.totalorder %s38, 0
    %p200 = por %p198, %p199
    %p201 = scmp.ne.s32.totalorder %s189, %s190
    %p202 = scmp.eq.s32.totalorder %s39, 1
    %p203 = por %p201, %p202
    %p205 = scmp.ne.s32.totalorder %s190, %s204
    %p206 = scmp.eq.s32.totalorder %s39, 0
    %p207 = por %p205, %p206
    %s209 = sadd.s32 %s208, 1
    %p212 = scmp.eq.s32.totalorder %s33, 1
    %p213 = scmp.ne.s32.totalorder %s208, %s210
    %p214 = scmp.eq.s32.totalorder %s33, 0
    %p215 = por %p213, %p214
    %p216 = scmp.ne.s32.totalorder %s208, %s210
    %p217 = scmp.eq.s32.totalorder %s38, 1
    %p218 = por %p216, %p217
    %p219 = scmp.ne.s32.totalorder %s210, %s211
    %p220 = scmp.eq.s32.totalorder %s38, 0
    %p221 = por %p219, %p220
    %p222 = scmp.ne.s32.totalorder %s210, %s211
    %p223 = scmp.eq.s32.totalorder %s39, 1
    %p224 = por %p222, %p223
    %p226 = scmp.ne.s32.totalorder %s211, %s225
    %p227 = scmp.eq.s32.totalorder %s39, 0
    %p228 = por %p226, %p227
    %s230 = sadd.s32 %s229, 1
    %p233 = scmp.eq.s32.totalorder %s33, 1
    %p234 = scmp.ne.s32.totalorder %s229, %s231
    %p235 = scmp.eq.s32.totalorder %s33, 0
    %p236 = por %p234, %p235
    %p237 = scmp.ne.s32.totalorder %s229, %s231
    %p238 = scmp.eq.s32.totalorder %s38, 1
    %p239 = por %p237, %p238
    %p240 = scmp.ne.s32.totalorder %s231, %s232
    %p241 = scmp.eq.s32.totalorder %s38, 0
    %p242 = por %p240, %p241
    %p243 = scmp.ne.s32.totalorder %s231, %s232
    %p244 = scmp.eq.s32.totalorder %s39, 1
    %p245 = por %p243, %p244
    %p247 = scmp.ne.s32.totalorder %s232, %s246
    %p248 = scmp.eq.s32.totalorder %s39, 0
    %p249 = por %p247, %p248
    %s251 = sadd.s32 %s250, 1
    %p254 = scmp.eq.s32.totalorder %s33, 1
    %p255 = scmp.ne.s32.totalorder %s250, %s252
    %p256 = scmp.eq.s32.totalorder %s33, 0
    %p257 = por %p255, %p256
    %p258 = scmp.ne.s32.totalorder %s250, %s252
    %p259 = scmp.eq.s32.totalorder %s38, 1
    %p260 = por %p258, %p259
    %p261 = scmp.ne.s32.totalorder %s252, %s253
    %p262 = scmp.eq.s32.totalorder %s38, 0
    %p263 = por %p261, %p262
    %p264 = scmp.ne.s32.totalorder %s252, %s253
    %p265 = scmp.eq.s32.totalorder %s39, 1
    %p266 = por %p264, %p265
    %p268 = scmp.ne.s32.totalorder %s253, %s267
    %p269 = scmp.eq.s32.totalorder %s39, 0
    %p270 = por %p268, %p269
    %s272 = sadd.s32 %s271, 1
    %p275 = scmp.eq.s32.totalorder %s33, 1
    %p276 = scmp.ne.s32.totalorder %s271, %s273
    %p277 = scmp.eq.s32.totalorder %s33, 0
    %p278 = por %p276, %p277
    %p279 = scmp.ne.s32.totalorder %s271, %s273
    %p280 = scmp.eq.s32.totalorder %s38, 1
    %p281 = por %p279, %p280
    %p282 = scmp.ne.s32.totalorder %s273, %s274
    %p283 = scmp.eq.s32.totalorder %s38, 0
    %p284 = por %p282, %p283
    %p285 = scmp.ne.s32.totalorder %s273, %s274
    %p286 = scmp.eq.s32.totalorder %s39, 1
    %p287 = por %p285, %p286
    %p289 = scmp.ne.s32.totalorder %s274, %s288
    %p290 = scmp.eq.s32.totalorder %s39, 0
    %p291 = por %p289, %p290
    %s293 = sadd.s32 %s292, 1
    %p296 = scmp.eq.s32.totalorder %s33, 1
    %p297 = scmp.ne.s32.totalorder %s292, %s294
    %p298 = scmp.eq.s32.totalorder %s33, 0
    %p299 = por %p297, %p298
    %p300 = scmp.ne.s32.totalorder %s292, %s294
    %p301 = scmp.eq.s32.totalorder %s38, 1
    %p302 = por %p300, %p301
    %p303 = scmp.ne.s32.totalorder %s294, %s295
    %p304 = scmp.eq.s32.totalorder %s38, 0
    %p305 = por %p303, %p304
    %p306 = scmp.ne.s32.totalorder %s294, %s295
    %p307 = scmp.eq.s32.totalorder %s39, 1
    %p308 = por %p306, %p307
    %p310 = scmp.ne.s32.totalorder %s295, %s309
    %p311 = scmp.eq.s32.totalorder %s39, 0
    %p312 = por %p310, %p311
    %s314 = sadd.s32 %s313, 1
    %p317 = scmp.eq.s32.totalorder %s33, 1
    %p318 = scmp.ne.s32.totalorder %s313, %s315
    %p319 = scmp.eq.s32.totalorder %s33, 0
    %p320 = por %p318, %p319
    %p321 = scmp.ne.s32.totalorder %s313, %s315
    %p322 = scmp.eq.s32.totalorder %s38, 1
    %p323 = por %p321, %p322
    %p324 = scmp.ne.s32.totalorder %s315, %s316
    %p325 = scmp.eq.s32.totalorder %s38, 0
    %p326 = por %p324, %p325
    %p327 = scmp.ne.s32.totalorder %s315, %s316
    %p328 = scmp.eq.s32.totalorder %s39, 1
    %p329 = por %p327, %p328
    %p331 = scmp.ne.s32.totalorder %s316, %s330
    %p332 = scmp.eq.s32.totalorder %s39, 0
    %p333 = por %p331, %p332
    %s335 = sadd.s32 %s334, 1
    %p338 = scmp.eq.s32.totalorder %s33, 1
    %p339 = scmp.ne.s32.totalorder %s334, %s336
    %p340 = scmp.eq.s32.totalorder %s33, 0
    %p341 = por %p339, %p340
    %p342 = scmp.ne.s32.totalorder %s334, %s336
    %p343 = scmp.eq.s32.totalorder %s38, 1
    %p344 = por %p342, %p343
    %p345 = scmp.ne.s32.totalorder %s336, %s337
    %p346 = scmp.eq.s32.totalorder %s38, 0
    %p347 = por %p345, %p346
    %p348 = scmp.ne.s32.totalorder %s336, %s337
    %p349 = scmp.eq.s32.totalorder %s39, 1
    %p350 = por %p348, %p349
    %p352 = scmp.ne.s32.totalorder %s337, %s351
    %p353 = scmp.eq.s32.totalorder %s39, 0
    %p354 = por %p352, %p353
    %s356 = sadd.s32 %s355, 1
    %p359 = scmp.eq.s32.totalorder %s33, 1
    %p360 = scmp.ne.s32.totalorder %s355, %s357
    %p361 = scmp.eq.s32.totalorder %s33, 0
    %p362 = por %p360, %p361
    %p363 = scmp.ne.s32.totalorder %s355, %s357
    %p364 = scmp.eq.s32.totalorder %s38, 1
    %p365 = por %p363, %p364
    %p366 = scmp.ne.s32.totalorder %s357, %s358
    %p367 = scmp.eq.s32.totalorder %s38, 0
    %p368 = por %p366, %p367
    %p369 = scmp.ne.s32.totalorder %s357, %s358
    %p370 = scmp.eq.s32.totalorder %s39, 1
    %p371 = por %p369, %p370
    %p373 = scmp.ne.s32.totalorder %s358, %s372
    %p374 = scmp.eq.s32.totalorder %s39, 0
    %p375 = por %p373, %p374
    %s377 = sadd.s32 %s376, 1
    %p380 = scmp.eq.s32.totalorder %s33, 1
    %p381 = scmp.ne.s32.totalorder %s376, %s378
    %p382 = scmp.eq.s32.totalorder %s33, 0
    %p383 = por %p381, %p382
    %p384 = scmp.ne.s32.totalorder %s376, %s378
    %p385 = scmp.eq.s32.totalorder %s38, 1
    %p386 = por %p384, %p385
    %p387 = scmp.ne.s32.totalorder %s378, %s379
    %p388 = scmp.eq.s32.totalorder %s38, 0
    %p389 = por %p387, %p388
    %p390 = scmp.ne.s32.totalorder %s378, %s379
    %p391 = scmp.eq.s32.totalorder %s39, 1
    %p392 = por %p390, %p391
    %p394 = scmp.ne.s32.totalorder %s379, %s393
    %p395 = scmp.eq.s32.totalorder %s39, 0
    %p396 = por %p394, %p395
    %s398 = sadd.s32 %s397, 1
    %p401 = scmp.eq.s32.totalorder %s33, 1
    %p402 = scmp.ne.s32.totalorder %s397, %s399
    %p403 = scmp.eq.s32.totalorder %s33, 0
    %p404 = por %p402, %p403
    %p405 = scmp.ne.s32.totalorder %s397, %s399
    %p406 = scmp.eq.s32.totalorder %s38, 1
    %p407 = por %p405, %p406
    %p408 = scmp.ne.s32.totalorder %s399, %s400
    %p409 = scmp.eq.s32.totalorder %s38, 0
    %p410 = por %p408, %p409
    %p411 = scmp.ne.s32.totalorder %s399, %s400
    %p412 = scmp.eq.s32.totalorder %s39, 1
    %p413 = por %p411, %p412
    %p415 = scmp.ne.s32.totalorder %s400, %s414
    %p416 = scmp.eq.s32.totalorder %s39, 0
    %p417 = por %p415, %p416
    %s419 = sadd.s32 %s418, 1
    %p422 = scmp.eq.s32.totalorder %s33, 1
    %p423 = scmp.ne.s32.totalorder %s418, %s420
    %p424 = scmp.eq.s32.totalorder %s33, 0
    %p425 = por %p423, %p424
    %p426 = scmp.ne.s32.totalorder %s418, %s420
    %p427 = scmp.eq.s32.totalorder %s38, 1
    %p428 = por %p426, %p427
    %p429 = scmp.ne.s32.totalorder %s420, %s421
    %p430 = scmp.eq.s32.totalorder %s38, 0
    %p431 = por %p429, %p430
    %p432 = scmp.ne.s32.totalorder %s420, %s421
    %p433 = scmp.eq.s32.totalorder %s39, 1
    %p434 = por %p432, %p433
    %p436 = scmp.ne.s32.totalorder %s421, %s435
    %p437 = scmp.eq.s32.totalorder %s39, 0
    %p438 = por %p436, %p437
    %s440 = sadd.s32 %s439, 1
    %p443 = scmp.eq.s32.totalorder %s33, 1
    %p444 = scmp.ne.s32.totalorder %s439, %s441
    %p445 = scmp.eq.s32.totalorder %s33, 0
    %p446 = por %p444, %p445
    %p447 = scmp.ne.s32.totalorder %s439, %s441
    %p448 = scmp.eq.s32.totalorder %s38, 1
    %p449 = por %p447, %p448
    %p450 = scmp.ne.s32.totalorder %s441, %s442
    %p451 = scmp.eq.s32.totalorder %s38, 0
    %p452 = por %p450, %p451
    %p453 = scmp.ne.s32.totalorder %s441, %s442
    %p454 = scmp.eq.s32.totalorder %s39, 1
    %p455 = por %p453, %p454
    %p457 = scmp.ne.s32.totalorder %s442, %s456
    %p458 = scmp.eq.s32.totalorder %s39, 0
    %p459 = por %p457, %p458
    %s461 = sadd.s32 %s460, 1
    %p464 = scmp.eq.s32.totalorder %s33, 1
    %p465 = scmp.ne.s32.totalorder %s460, %s462
    %p466 = scmp.eq.s32.totalorder %s33, 0
    %p467 = por %p465, %p466
    %p468 = scmp.ne.s32.totalorder %s460, %s462
    %p469 = scmp.eq.s32.totalorder %s38, 1
    %p470 = por %p468, %p469
    %p471 = scmp.ne.s32.totalorder %s462, %s463
    %p472 = scmp.eq.s32.totalorder %s38, 0
    %p473 = por %p471, %p472
    %p474 = scmp.ne.s32.totalorder %s462, %s463
    %p475 = scmp.eq.s32.totalorder %s39, 1
    %p476 = por %p474, %p475
    %p478 = scmp.ne.s32.totalorder %s463, %s477
    %p479 = scmp.eq.s32.totalorder %s39, 0
    %p480 = por %p478, %p479
    %s482 = sadd.s32 %s481, 1
    %p485 = scmp.eq.s32.totalorder %s33, 1
    %p486 = scmp.ne.s32.totalorder %s481, %s483
    %p487 = scmp.eq.s32.totalorder %s33, 0
    %p488 = por %p486, %p487
    %p489 = scmp.ne.s32.totalorder %s481, %s483
    %p490 = scmp.eq.s32.totalorder %s38, 1
    %p491 = por %p489, %p490
    %p492 = scmp.ne.s32.totalorder %s483, %s484
    %p493 = scmp.eq.s32.totalorder %s38, 0
    %p494 = por %p492, %p493
    %p495 = scmp.ne.s32.totalorder %s483, %s484
    %p496 = scmp.eq.s32.totalorder %s39, 1
    %p497 = por %p495, %p496
    %p499 = scmp.ne.s32.totalorder %s484, %s498
    %p500 = scmp.eq.s32.totalorder %s39, 0
    %p501 = por %p499, %p500
    %s503 = sadd.s32 %s502, 1
    %p506 = scmp.eq.s32.totalorder %s33, 1
    %p507 = scmp.ne.s32.totalorder %s502, %s504
    %p508 = scmp.eq.s32.totalorder %s33, 0
    %p509 = por %p507, %p508
    %p510 = scmp.ne.s32.totalorder %s502, %s504
    %p511 = scmp.eq.s32.totalorder %s38, 1
    %p512 = por %p510, %p511
    %p513 = scmp.ne.s32.totalorder %s504, %s505
    %p514 = scmp.eq.s32.totalorder %s38, 0
    %p515 = por %p513, %p514
    %p516 = scmp.ne.s32.totalorder %s504, %s505
    %p517 = scmp.eq.s32.totalorder %s39, 1
    %p518 = por %p516, %p517
    %p520 = scmp.ne.s32.totalorder %s505, %s519
    %p521 = scmp.eq.s32.totalorder %s39, 0
    %p522 = por %p520, %p521
    %s524 = sadd.s32 %s523, 1
    %p527 = scmp.eq.s32.totalorder %s33, 1
    %p528 = scmp.ne.s32.totalorder %s523, %s525
    %p529 = scmp.eq.s32.totalorder %s33, 0
    %p530 = por %p528, %p529
    %p531 = scmp.ne.s32.totalorder %s523, %s525
    %p532 = scmp.eq.s32.totalorder %s38, 1
    %p533 = por %p531, %p532
    %p534 = scmp.ne.s32.totalorder %s525, %s526
    %p535 = scmp.eq.s32.totalorder %s38, 0
    %p536 = por %p534, %p535
    %p537 = scmp.ne.s32.totalorder %s525, %s526
    %p538 = scmp.eq.s32.totalorder %s39, 1
    %p539 = por %p537, %p538
    %p541 = scmp.ne.s32.totalorder %s526, %s540
    %p542 = scmp.eq.s32.totalorder %s39, 0
    %p543 = por %p541, %p542
    %s545 = sadd.s32 %s544, 1
    %p548 = scmp.eq.s32.totalorder %s33, 1
    %p549 = scmp.ne.s32.totalorder %s544, %s546
    %p550 = scmp.eq.s32.totalorder %s33, 0
    %p551 = por %p549, %p550
    %p552 = scmp.ne.s32.totalorder %s544, %s546
    %p553 = scmp.eq.s32.totalorder %s38, 1
    %p554 = por %p552, %p553
    %p555 = scmp.ne.s32.totalorder %s546, %s547
    %p556 = scmp.eq.s32.totalorder %s38, 0
    %p557 = por %p555, %p556
    %p558 = scmp.ne.s32.totalorder %s546, %s547
    %p559 = scmp.eq.s32.totalorder %s39, 1
    %p560 = por %p558, %p559
    %p562 = scmp.ne.s32.totalorder %s547, %s561
    %p563 = scmp.eq.s32.totalorder %s39, 0
    %p564 = por %p562, %p563
    %s566 = sadd.s32 %s565, 1
    %p569 = scmp.eq.s32.totalorder %s33, 1
    %p570 = scmp.ne.s32.totalorder %s565, %s567
    %p571 = scmp.eq.s32.totalorder %s33, 0
    %p572 = por %p570, %p571
    %p573 = scmp.ne.s32.totalorder %s565, %s567
    %p574 = scmp.eq.s32.totalorder %s38, 1
    %p575 = por %p573, %p574
    %p576 = scmp.ne.s32.totalorder %s567, %s568
    %p577 = scmp.eq.s32.totalorder %s38, 0
    %p578 = por %p576, %p577
    %p579 = scmp.ne.s32.totalorder %s567, %s568
    %p580 = scmp.eq.s32.totalorder %s39, 1
    %p581 = por %p579, %p580
    %p583 = scmp.ne.s32.totalorder %s568, %s582
    %p584 = scmp.eq.s32.totalorder %s39, 0
    %p585 = por %p583, %p584
    %s587 = sadd.s32 %s586, 1
    %p590 = scmp.eq.s32.totalorder %s33, 1
    %p591 = scmp.ne.s32.totalorder %s586, %s588
    %p592 = scmp.eq.s32.totalorder %s33, 0
    %p593 = por %p591, %p592
    %p594 = scmp.ne.s32.totalorder %s586, %s588
    %p595 = scmp.eq.s32.totalorder %s38, 1
    %p596 = por %p594, %p595
    %p597 = scmp.ne.s32.totalorder %s588, %s589
    %p598 = scmp.eq.s32.totalorder %s38, 0
    %p599 = por %p597, %p598
    %p600 = scmp.ne.s32.totalorder %s588, %s589
    %p601 = scmp.eq.s32.totalorder %s39, 1
    %p602 = por %p600, %p601
    %p604 = scmp.ne.s32.totalorder %s589, %s603
    %p605 = scmp.eq.s32.totalorder %s39, 0
    %p606 = por %p604, %p605
    %s608 = sadd.s32 %s607, 1
    %p611 = scmp.eq.s32.totalorder %s33, 1
    %p612 = scmp.ne.s32.totalorder %s607, %s609
    %p613 = scmp.eq.s32.totalorder %s33, 0
    %p614 = por %p612, %p613
    %p615 = scmp.ne.s32.totalorder %s607, %s609
    %p616 = scmp.eq.s32.totalorder %s38, 1
    %p617 = por %p615, %p616
    %p618 = scmp.ne.s32.totalorder %s609, %s610
    %p619 = scmp.eq.s32.totalorder %s38, 0
    %p620 = por %p618, %p619
    %p621 = scmp.ne.s32.totalorder %s609, %s610
    %p622 = scmp.eq.s32.totalorder %s39, 1
    %p623 = por %p621, %p622
    %p625 = scmp.ne.s32.totalorder %s610, %s624
    %p626 = scmp.eq.s32.totalorder %s39, 0
    %p627 = por %p625, %p626
    %s628 = ssub.s32 %s33, %s40
    %p629 = scmp.eq.s32.totalorder %s628, 0
    %s631 = sadd.s32 %s630, 1
    %s632 = scalar_select %p629, %s630, %s631
    %p635 = pneg %p629
    %p636 = scmp.eq.s32.totalorder %s33, 1
    %p637 = por %p635, %p636
    %p638 = scmp.ne.s32.totalorder %s630, %s633
    %p639 = scmp.eq.s32.totalorder %s33, 0
    %p640 = por %p638, %p639
    %p641 = scmp.ne.s32.totalorder %s630, %s633
    %p642 = scmp.eq.s32.totalorder %s38, 1
    %p643 = por %p641, %p642
    %p644 = scmp.ne.s32.totalorder %s633, %s634
    %p645 = scmp.eq.s32.totalorder %s38, 0
    %p646 = por %p644, %p645
    %p647 = scmp.ne.s32.totalorder %s633, %s634
    %p648 = scmp.eq.s32.totalorder %s39, 1
    %p649 = por %p647, %p648
    %p651 = scmp.ne.s32.totalorder %s634, %s650
    %p652 = scmp.eq.s32.totalorder %s39, 0
    %p653 = por %p651, %p652
    %p654 = scmp.le.s32.totalorder 1, %s33
    %p655 = scmp.lt.s32.totalorder %s33, 3
    %p656 = pnand %p654, %p655
    %p657 = pneg %p656
    // Predicated region
    $region9: #{_lambda_.1} parent=5 // pred_check
      _
    $region10: #{_lambda_.1} parent=5 // pred_check_branch
      %659 = sbr.rel (%p656) target = $region12
    $region11: #{_lambda_.1} parent=5 // pred_region
      %s660 = ssub.s32 %s33, 1
      // Predicated region
      $region13: #{_lambda_.1} parent=11 // pred_check
        %p661 = pneg %p158
      $region14: #{_lambda_.1} parent=11 // pred_check_branch
        %663 = sbr.rel (%p661) target = $region16
      $region15: #{_lambda_.1} parent=11 // pred_region
        _
      $region16: #{_lambda_.1} parent=11 // pred_fallthru
        _
      // Predicated region
      $region17: #{_lambda_.1} parent=11 // pred_check
        %p664 = pneg %p179
      $region18: #{_lambda_.1} parent=11 // pred_check_branch
        %666 = sbr.rel (%p664) target = $region20
      $region19: #{_lambda_.1} parent=11 // pred_region
        _
      $region20: #{_lambda_.1} parent=11 // pred_fallthru
        _
      // Predicated region
      $region21: #{_lambda_.1} parent=11 // pred_check
        %p667 = pneg %p200
      $region22: #{_lambda_.1} parent=11 // pred_check_branch
        %669 = sbr.rel (%p667) target = $region24
      $region23: #{_lambda_.1} parent=11 // pred_region
        _
      $region24: #{_lambda_.1} parent=11 // pred_fallthru
        _
      // Predicated region
      $region25: #{_lambda_.1} parent=11 // pred_check
        %p670 = pneg %p221
      $region26: #{_lambda_.1} parent=11 // pred_check_branch
        %672 = sbr.rel (%p670) target = $region28
      $region27: #{_lambda_.1} parent=11 // pred_region
        _
      $region28: #{_lambda_.1} parent=11 // pred_fallthru
        _
      // Predicated region
      $region29: #{_lambda_.1} parent=11 // pred_check
        %p673 = pneg %p242
      $region30: #{_lambda_.1} parent=11 // pred_check_branch
        %675 = sbr.rel (%p673) target = $region32
      $region31: #{_lambda_.1} parent=11 // pred_region
        _
      $region32: #{_lambda_.1} parent=11 // pred_fallthru
        _
      // Predicated region
      $region33: #{_lambda_.1} parent=11 // pred_check
        %p676 = pneg %p263
      $region34: #{_lambda_.1} parent=11 // pred_check_branch
        %678 = sbr.rel (%p676) target = $region36
      $region35: #{_lambda_.1} parent=11 // pred_region
        _
      $region36: #{_lambda_.1} parent=11 // pred_fallthru
        _
      // Predicated region
      $region37: #{_lambda_.1} parent=11 // pred_check
        %p679 = pneg %p284
      $region38: #{_lambda_.1} parent=11 // pred_check_branch
        %681 = sbr.rel (%p679) target = $region40
      $region39: #{_lambda_.1} parent=11 // pred_region
        _
      $region40: #{_lambda_.1} parent=11 // pred_fallthru
        _
      // Predicated region
      $region41: #{_lambda_.1} parent=11 // pred_check
        %p682 = pneg %p305
      $region42: #{_lambda_.1} parent=11 // pred_check_branch
        %684 = sbr.rel (%p682) target = $region44
      $region43: #{_lambda_.1} parent=11 // pred_region
        _
      $region44: #{_lambda_.1} parent=11 // pred_fallthru
        _
      // Predicated region
      $region45: #{_lambda_.1} parent=11 // pred_check
        %p685 = pneg %p326
      $region46: #{_lambda_.1} parent=11 // pred_check_branch
        %687 = sbr.rel (%p685) target = $region48
      $region47: #{_lambda_.1} parent=11 // pred_region
        _
      $region48: #{_lambda_.1} parent=11 // pred_fallthru
        _
      // Predicated region
      $region49: #{_lambda_.1} parent=11 // pred_check
        %p688 = pneg %p347
      $region50: #{_lambda_.1} parent=11 // pred_check_branch
        %690 = sbr.rel (%p688) target = $region52
      $region51: #{_lambda_.1} parent=11 // pred_region
        _
      $region52: #{_lambda_.1} parent=11 // pred_fallthru
        _
      // Predicated region
      $region53: #{_lambda_.1} parent=11 // pred_check
        %p691 = pneg %p368
      $region54: #{_lambda_.1} parent=11 // pred_check_branch
        %693 = sbr.rel (%p691) target = $region56
      $region55: #{_lambda_.1} parent=11 // pred_region
        _
      $region56: #{_lambda_.1} parent=11 // pred_fallthru
        _
      // Predicated region
      $region57: #{_lambda_.1} parent=11 // pred_check
        %p694 = pneg %p389
      $region58: #{_lambda_.1} parent=11 // pred_check_branch
        %696 = sbr.rel (%p694) target = $region60
      $region59: #{_lambda_.1} parent=11 // pred_region
        _
      $region60: #{_lambda_.1} parent=11 // pred_fallthru
        _
      // Predicated region
      $region61: #{_lambda_.1} parent=11 // pred_check
        %p697 = pneg %p410
      $region62: #{_lambda_.1} parent=11 // pred_check_branch
        %699 = sbr.rel (%p697) target = $region64
      $region63: #{_lambda_.1} parent=11 // pred_region
        _
      $region64: #{_lambda_.1} parent=11 // pred_fallthru
        _
      // Predicated region
      $region65: #{_lambda_.1} parent=11 // pred_check
        %p700 = pneg %p431
      $region66: #{_lambda_.1} parent=11 // pred_check_branch
        %702 = sbr.rel (%p700) target = $region68
      $region67: #{_lambda_.1} parent=11 // pred_region
        _
      $region68: #{_lambda_.1} parent=11 // pred_fallthru
        _
      // Predicated region
      $region69: #{_lambda_.1} parent=11 // pred_check
        %p703 = pneg %p452
      $region70: #{_lambda_.1} parent=11 // pred_check_branch
        %705 = sbr.rel (%p703) target = $region72
      $region71: #{_lambda_.1} parent=11 // pred_region
        _
      $region72: #{_lambda_.1} parent=11 // pred_fallthru
        _
      // Predicated region
      $region73: #{_lambda_.1} parent=11 // pred_check
        %p706 = pneg %p473
      $region74: #{_lambda_.1} parent=11 // pred_check_branch
        %708 = sbr.rel (%p706) target = $region76
      $region75: #{_lambda_.1} parent=11 // pred_region
        _
      $region76: #{_lambda_.1} parent=11 // pred_fallthru
        _
      // Predicated region
      $region77: #{_lambda_.1} parent=11 // pred_check
        %p709 = pneg %p494
      $region78: #{_lambda_.1} parent=11 // pred_check_branch
        %711 = sbr.rel (%p709) target = $region80
      $region79: #{_lambda_.1} parent=11 // pred_region
        _
      $region80: #{_lambda_.1} parent=11 // pred_fallthru
        _
      // Predicated region
      $region81: #{_lambda_.1} parent=11 // pred_check
        %p712 = pneg %p515
      $region82: #{_lambda_.1} parent=11 // pred_check_branch
        %714 = sbr.rel (%p712) target = $region84
      $region83: #{_lambda_.1} parent=11 // pred_region
        _
      $region84: #{_lambda_.1} parent=11 // pred_fallthru
        _
      // Predicated region
      $region85: #{_lambda_.1} parent=11 // pred_check
        %p715 = pneg %p536
      $region86: #{_lambda_.1} parent=11 // pred_check_branch
        %717 = sbr.rel (%p715) target = $region88
      $region87: #{_lambda_.1} parent=11 // pred_region
        _
      $region88: #{_lambda_.1} parent=11 // pred_fallthru
        _
      // Predicated region
      $region89: #{_lambda_.1} parent=11 // pred_check
        %p718 = pneg %p557
      $region90: #{_lambda_.1} parent=11 // pred_check_branch
        %720 = sbr.rel (%p718) target = $region92
      $region91: #{_lambda_.1} parent=11 // pred_region
        _
      $region92: #{_lambda_.1} parent=11 // pred_fallthru
        _
      // Predicated region
      $region93: #{_lambda_.1} parent=11 // pred_check
        %p721 = pneg %p578
      $region94: #{_lambda_.1} parent=11 // pred_check_branch
        %723 = sbr.rel (%p721) target = $region96
      $region95: #{_lambda_.1} parent=11 // pred_region
        _
      $region96: #{_lambda_.1} parent=11 // pred_fallthru
        _
      // Predicated region
      $region97: #{_lambda_.1} parent=11 // pred_check
        %p724 = pneg %p599
      $region98: #{_lambda_.1} parent=11 // pred_check_branch
        %726 = sbr.rel (%p724) target = $region100
      $region99: #{_lambda_.1} parent=11 // pred_region
        _
      $region100: #{_lambda_.1} parent=11 // pred_fallthru
        _
      // Predicated region
      $region101: #{_lambda_.1} parent=11 // pred_check
        %p727 = pneg %p620
      $region102: #{_lambda_.1} parent=11 // pred_check_branch
        %729 = sbr.rel (%p727) target = $region104
      $region103: #{_lambda_.1} parent=11 // pred_region
        _
      $region104: #{_lambda_.1} parent=11 // pred_fallthru
        _
    $region12: #{_lambda_.1} parent=5 // pred_fallthru
      _
    %p730 = scmp.lt.s32.totalorder %s33, 2
    // Predicated region
    $region105: #{_lambda_.1} parent=5 // pred_check
      %p731 = pneg %p730
    $region106: #{_lambda_.1} parent=5 // pred_check_branch
      %733 = sbr.rel (%p731) target = $region108
    $region107: #{_lambda_.1} parent=5 // pred_region
      // Predicated region
      $region109: #{_lambda_.1} parent=107 // pred_check
        %p734 = pneg %p53
      $region110: #{_lambda_.1} parent=107 // pred_check_branch
        %736 = sbr.rel (%p734) target = $region112
      $region111: #{_lambda_.1} parent=107 // pred_region
        %p737 = scmp.lt.s32.totalorder %s33, 1
        %s738 = scalar_select %p737, %s33, 1
        %s739 = smul.addr %s738, 32
        %s740 = smul.addr %s739, 4
        %s741 = scalar_lea.vmem %s0, %s740
      $region112: #{_lambda_.1} parent=107 // pred_fallthru
        _
      // Predicated region
      $region113: #{_lambda_.1} parent=107 // pred_check
        %p742 = pneg %p79
      $region114: #{_lambda_.1} parent=107 // pred_check_branch
        %744 = sbr.rel (%p742) target = $region116
      $region115: #{_lambda_.1} parent=107 // pred_region
        %p745 = scmp.lt.s32.totalorder %s33, 1
        %s746 = scalar_select %p745, %s33, 1
        %s747 = smul.addr %s746, 32
        %s748 = smul.addr %s747, 4
        %s749 = scalar_lea.vmem %s1, %s748
      $region116: #{_lambda_.1} parent=107 // pred_fallthru
        _
      // Predicated region
      $region117: #{_lambda_.1} parent=107 // pred_check
        %p750 = pneg %p105
      $region118: #{_lambda_.1} parent=107 // pred_check_branch
        %752 = sbr.rel (%p750) target = $region120
      $region119: #{_lambda_.1} parent=107 // pred_region
        %p753 = scmp.lt.s32.totalorder %s33, 1
        %s754 = scalar_select %p753, %s33, 1
        %s755 = smul.addr %s754, 64
        %s756 = smul.addr %s755, 4
        %s757 = scalar_lea.vmem %s2, %s756
      $region120: #{_lambda_.1} parent=107 // pred_fallthru
        _
      // Predicated region
      $region121: #{_lambda_.1} parent=107 // pred_check
        %p758 = pneg %p131
      $region122: #{_lambda_.1} parent=107 // pred_check_branch
        %760 = sbr.rel (%p758) target = $region124
      $region123: #{_lambda_.1} parent=107 // pred_region
        %p761 = scmp.lt.s32.totalorder %s33, 1
        %s762 = scalar_select %p761, %s33, 1
        %s763 = smul.addr %s762, 64
        %s764 = smul.addr %s763, 4
        %s765 = scalar_lea.vmem %s3, %s764
      $region124: #{_lambda_.1} parent=107 // pred_fallthru
        _
    $region108: #{_lambda_.1} parent=5 // pred_fallthru
      _
    %p766 = scmp.le.s32.totalorder 1, %s33
    %p767 = scmp.lt.s32.totalorder %s33, 3
    %p768 = pnand %p766, %p767
    %p769 = pneg %p768
    // Predicated region
    $region125: #{_lambda_.1} parent=5 // pred_check
      _
    $region126: #{_lambda_.1} parent=5 // pred_check_branch
      %771 = sbr.rel (%p768) target = $region128
    $region127: #{_lambda_.1} parent=5 // pred_region
      %s772 = ssub.s32 %s33, 1
      %p773 = scmp.lt.s32.totalorder %s38, 1
      %s774 = scalar_select %p773, %s38, 1
      %s775 = smul.addr %s774, 32
      %s776 = smul.addr %s775, 4
      %s777 = scalar_lea.vmem %s0, %s776
      %p778 = pneg %p59
      %p779 = pneg %p56
      %p780 = scmp.lt.s32.totalorder %s38, 1
      %s781 = scalar_select %p780, %s38, 1
      %s782 = smul.addr %s781, 32
      %s783 = smul.addr %s782, 4
      %s784 = scalar_lea.vmem %s1, %s783
      %p785 = pneg %p85
      %p786 = pneg %p82
      %p787 = scmp.lt.s32.totalorder %s38, 1
      %s788 = scalar_select %p787, %s38, 1
      %s789 = smul.addr %s788, 64
      %s790 = smul.addr %s789, 4
      %s791 = scalar_lea.vmem %s2, %s790
      %p792 = pneg %p111
      %p793 = pneg %p108
      %p794 = scmp.lt.s32.totalorder %s38, 1
      %s795 = scalar_select %p794, %s38, 1
      %s796 = smul.addr %s795, 64
      %s797 = smul.addr %s796, 4
      %s798 = scalar_lea.vmem %s3, %s797
      %p799 = pneg %p137
      %p800 = pneg %p134
      %p801 = pneg %p158
      %p802 = pneg %p155
      %p803 = pneg %p179
      %p804 = pneg %p176
      %p805 = pneg %p200
      %p806 = pneg %p197
      %p807 = pneg %p221
      %p808 = pneg %p218
      %p809 = pneg %p242
      %p810 = pneg %p239
      %p811 = pneg %p263
      %p812 = pneg %p260
      %p813 = pneg %p284
      %p814 = pneg %p281
      %p815 = pneg %p305
      %p816 = pneg %p302
      %p817 = pneg %p326
      %p818 = pneg %p323
      %p819 = pneg %p347
      %p820 = pneg %p344
      %p821 = pneg %p368
      %p822 = pneg %p365
      %p823 = pneg %p389
      %p824 = pneg %p386
      %p825 = pneg %p410
      %p826 = pneg %p407
      %p827 = pneg %p431
      %p828 = pneg %p428
      %p829 = pneg %p452
      %p830 = pneg %p449
      %p831 = pneg %p473
      %p832 = pneg %p470
      %p833 = pneg %p494
      %p834 = pneg %p491
      %p835 = pneg %p515
      %p836 = pneg %p512
      %p837 = pneg %p536
      %p838 = pneg %p533
      %p839 = pneg %p557
      %p840 = pneg %p554
      %p841 = pneg %p578
      %p842 = pneg %p575
      %p843 = pneg %p599
      %p844 = pneg %p596
      %p845 = pneg %p620
      %p846 = pneg %p617
      %p847 = pneg %p646
      %p848 = pneg %p643
      %p849 = scmp.lt.s32.totalorder %s38, 1
      %s850 = scalar_select %p849, %s38, 1
      %s851 = smul.addr %s850, 8
      %s852 = smul.addr %s851, 8
      %s853 = scalar_lea.vmem %s27, %s852
      %p854 = scmp.lt.s32.totalorder %s38, 1
      %s855 = scalar_select %p854, %s38, 1
      %s856 = smul.addr %s855, 32
      %s857 = smul.addr %s856, 4
      %s858 = scalar_lea.vmem %s0, %s857
      %p859 = scmp.lt.s32.totalorder %s38, 1
      %s860 = scalar_select %p859, %s38, 1
      %s861 = smul.addr %s860, 32
      %s862 = smul.addr %s861, 4
      %s863 = scalar_lea.vmem %s1, %s862
      %p864 = scmp.lt.s32.totalorder %s38, 1
      %s865 = scalar_select %p864, %s38, 1
      %s866 = smul.addr %s865, 64
      %s867 = smul.addr %s866, 4
      %s868 = scalar_lea.vmem %s2, %s867
      %p869 = scmp.lt.s32.totalorder %s38, 1
      %s870 = scalar_select %p869, %s38, 1
      %s871 = smul.addr %s870, 64
      %s872 = smul.addr %s871, 4
      %s873 = scalar_lea.vmem %s3, %s872
      %p874 = scmp.lt.s32.totalorder %s38, 1
      %s875 = scalar_select %p874, %s38, 1
      %s876 = smul.addr %s875, 8
      %s877 = smul.addr %s876, 8
      %s878 = scalar_lea.vmem %s27, %s877
      %v880 = vld [vmem:[%s858] sm:$0xff]
      %v881 = vld [vmem:[%s858 + $0x8] sm:$0xff]
      %v882 = vld [vmem:[%s858 + $0x10] sm:$0xff]
      %v883 = vld [vmem:[%s858 + $0x18] sm:$0xff]
      %v884 = vld [vmem:[%s858 + $0x20] sm:$0xff]
      %v885 = vld [vmem:[%s858 + $0x28] sm:$0xff]
      %v886 = vld [vmem:[%s858 + $0x30] sm:$0xff]
      %v887 = vld [vmem:[%s858 + $0x38] sm:$0xff]
      %v888 = vld [vmem:[%s858 + $0x40] sm:$0xff]
      %v889 = vld [vmem:[%s858 + $0x48] sm:$0xff]
      %v890 = vld [vmem:[%s858 + $0x50] sm:$0xff]
      %v891 = vld [vmem:[%s858 + $0x58] sm:$0xff]
      %v892 = vld [vmem:[%s858 + $0x60] sm:$0xff]
      %v893 = vld [vmem:[%s858 + $0x68] sm:$0xff]
      %v894 = vld [vmem:[%s858 + $0x70] sm:$0xff]
      %v895 = vld [vmem:[%s858 + $0x78] sm:$0xff]
      %v896 = vld [vmem:[%s863] sm:$0xf]
      %v897 = vld [vmem:[%s863 + $0x4] sm:$0xf]
      %v898 = vld [vmem:[%s863 + $0x8] sm:$0xf]
      %v899 = vld [vmem:[%s863 + $0xc] sm:$0xf]
      %v900 = vld [vmem:[%s863 + $0x10] sm:$0xf]
      %v901 = vld [vmem:[%s863 + $0x14] sm:$0xf]
      %v902 = vld [vmem:[%s863 + $0x18] sm:$0xf]
      %v903 = vld [vmem:[%s863 + $0x1c] sm:$0xf]
      %v904 = vld [vmem:[%s863 + $0x20] sm:$0xf]
      %v905 = vld [vmem:[%s863 + $0x24] sm:$0xf]
      %v906 = vld [vmem:[%s863 + $0x28] sm:$0xf]
      %v907 = vld [vmem:[%s863 + $0x2c] sm:$0xf]
      %v908 = vld [vmem:[%s863 + $0x30] sm:$0xf]
      %v909 = vld [vmem:[%s863 + $0x34] sm:$0xf]
      %v910 = vld [vmem:[%s863 + $0x38] sm:$0xf]
      %v911 = vld [vmem:[%s863 + $0x3c] sm:$0xf]
      %v912 = vld [vmem:[%s863 + $0x40] sm:$0xf]
      %v913 = vld [vmem:[%s863 + $0x44] sm:$0xf]
      %v914 = vld [vmem:[%s863 + $0x48] sm:$0xf]
      %v915 = vld [vmem:[%s863 + $0x4c] sm:$0xf]
      %v916 = vld [vmem:[%s863 + $0x50] sm:$0xf]
      %v917 = vld [vmem:[%s863 + $0x54] sm:$0xf]
      %v918 = vld [vmem:[%s863 + $0x58] sm:$0xf]
      %v919 = vld [vmem:[%s863 + $0x5c] sm:$0xf]
      %v920 = vld [vmem:[%s863 + $0x60] sm:$0xf]
      %v921 = vld [vmem:[%s863 + $0x64] sm:$0xf]
      %v922 = vld [vmem:[%s863 + $0x68] sm:$0xf]
      %v923 = vld [vmem:[%s863 + $0x6c] sm:$0xf]
      %v924 = vld [vmem:[%s863 + $0x70] sm:$0xf]
      %v925 = vld [vmem:[%s863 + $0x74] sm:$0xf]
      %v926 = vld [vmem:[%s863 + $0x78] sm:$0xf]
      %v927 = vld [vmem:[%s863 + $0x7c] sm:$0xf]
      %v928 = vld [vmem:[%s868] sm:$0xf]
      %v929 = vld [vmem:[%s868 + $0x4] sm:$0xf]
      %v930 = vld [vmem:[%s868 + $0x8] sm:$0xf]
      %v931 = vld [vmem:[%s868 + $0xc] sm:$0xf]
      %v932 = vld [vmem:[%s868 + $0x10] sm:$0xf]
      %v933 = vld [vmem:[%s868 + $0x14] sm:$0xf]
      %v934 = vld [vmem:[%s868 + $0x18] sm:$0xf]
      %v935 = vld [vmem:[%s868 + $0x1c] sm:$0xf]
      %v936 = vld [vmem:[%s868 + $0x20] sm:$0xf]
      %v937 = vld [vmem:[%s868 + $0x24] sm:$0xf]
      %v938 = vld [vmem:[%s868 + $0x28] sm:$0xf]
      %v939 = vld [vmem:[%s868 + $0x2c] sm:$0xf]
      %v940 = vld [vmem:[%s868 + $0x30] sm:$0xf]
      %v941 = vld [vmem:[%s868 + $0x34] sm:$0xf]
      %v942 = vld [vmem:[%s868 + $0x38] sm:$0xf]
      %v943 = vld [vmem:[%s868 + $0x3c] sm:$0xf]
      %v944 = vld [vmem:[%s868 + $0x40] sm:$0xf]
      %v945 = vld [vmem:[%s868 + $0x44] sm:$0xf]
      %v946 = vld [vmem:[%s868 + $0x48] sm:$0xf]
      %v947 = vld [vmem:[%s868 + $0x4c] sm:$0xf]
      %v948 = vld [vmem:[%s868 + $0x50] sm:$0xf]
      %v949 = vld [vmem:[%s868 + $0x54] sm:$0xf]
      %v950 = vld [vmem:[%s868 + $0x58] sm:$0xf]
      %v951 = vld [vmem:[%s868 + $0x5c] sm:$0xf]
      %v952 = vld [vmem:[%s868 + $0x60] sm:$0xf]
      %v953 = vld [vmem:[%s868 + $0x64] sm:$0xf]
      %v954 = vld [vmem:[%s868 + $0x68] sm:$0xf]
      %v955 = vld [vmem:[%s868 + $0x6c] sm:$0xf]
      %v956 = vld [vmem:[%s868 + $0x70] sm:$0xf]
      %v957 = vld [vmem:[%s868 + $0x74] sm:$0xf]
      %v958 = vld [vmem:[%s868 + $0x78] sm:$0xf]
      %v959 = vld [vmem:[%s868 + $0x7c] sm:$0xf]
      %v960 = vld [vmem:[%s868 + $0x80] sm:$0xf]
      %v961 = vld [vmem:[%s868 + $0x84] sm:$0xf]
      %v962 = vld [vmem:[%s868 + $0x88] sm:$0xf]
      %v963 = vld [vmem:[%s868 + $0x8c] sm:$0xf]
      %v964 = vld [vmem:[%s868 + $0x90] sm:$0xf]
      %v965 = vld [vmem:[%s868 + $0x94] sm:$0xf]
      %v966 = vld [vmem:[%s868 + $0x98] sm:$0xf]
      %v967 = vld [vmem:[%s868 + $0x9c] sm:$0xf]
      %v968 = vld [vmem:[%s868 + $0xa0] sm:$0xf]
      %v969 = vld [vmem:[%s868 + $0xa4] sm:$0xf]
      %v970 = vld [vmem:[%s868 + $0xa8] sm:$0xf]
      %v971 = vld [vmem:[%s868 + $0xac] sm:$0xf]
      %v972 = vld [vmem:[%s868 + $0xb0] sm:$0xf]
      %v973 = vld [vmem:[%s868 + $0xb4] sm:$0xf]
      %v974 = vld [vmem:[%s868 + $0xb8] sm:$0xf]
      %v975 = vld [vmem:[%s868 + $0xbc] sm:$0xf]
      %v976 = vld [vmem:[%s868 + $0xc0] sm:$0xf]
      %v977 = vld [vmem:[%s868 + $0xc4] sm:$0xf]
      %v978 = vld [vmem:[%s868 + $0xc8] sm:$0xf]
      %v979 = vld [vmem:[%s868 + $0xcc] sm:$0xf]
      %v980 = vld [vmem:[%s868 + $0xd0] sm:$0xf]
      %v981 = vld [vmem:[%s868 + $0xd4] sm:$0xf]
      %v982 = vld [vmem:[%s868 + $0xd8] sm:$0xf]
      %v983 = vld [vmem:[%s868 + $0xdc] sm:$0xf]
      %v984 = vld [vmem:[%s868 + $0xe0] sm:$0xf]
      %v985 = vld [vmem:[%s868 + $0xe4] sm:$0xf]
      %v986 = vld [vmem:[%s868 + $0xe8] sm:$0xf]
      %v987 = vld [vmem:[%s868 + $0xec] sm:$0xf]
      %v988 = vld [vmem:[%s868 + $0xf0] sm:$0xf]
      %v989 = vld [vmem:[%s868 + $0xf4] sm:$0xf]
      %v990 = vld [vmem:[%s868 + $0xf8] sm:$0xf]
      %v991 = vld [vmem:[%s868 + $0xfc] sm:$0xf]
      %v992 = vld [vmem:[%s873] sm:$0xf]
      %v993 = vld [vmem:[%s873 + $0x4] sm:$0xf]
      %v994 = vld [vmem:[%s873 + $0x8] sm:$0xf]
      %v995 = vld [vmem:[%s873 + $0xc] sm:$0xf]
      %v996 = vld [vmem:[%s873 + $0x10] sm:$0xf]
      %v997 = vld [vmem:[%s873 + $0x14] sm:$0xf]
      %v998 = vld [vmem:[%s873 + $0x18] sm:$0xf]
      %v999 = vld [vmem:[%s873 + $0x1c] sm:$0xf]
      %v1000 = vld [vmem:[%s873 + $0x20] sm:$0xf]
      %v1001 = vld [vmem:[%s873 + $0x24] sm:$0xf]
      %v1002 = vld [vmem:[%s873 + $0x28] sm:$0xf]
      %v1003 = vld [vmem:[%s873 + $0x2c] sm:$0xf]
      %v1004 = vld [vmem:[%s873 + $0x30] sm:$0xf]
      %v1005 = vld [vmem:[%s873 + $0x34] sm:$0xf]
      %v1006 = vld [vmem:[%s873 + $0x38] sm:$0xf]
      %v1007 = vld [vmem:[%s873 + $0x3c] sm:$0xf]
      %v1008 = vld [vmem:[%s873 + $0x40] sm:$0xf]
      %v1009 = vld [vmem:[%s873 + $0x44] sm:$0xf]
      %v1010 = vld [vmem:[%s873 + $0x48] sm:$0xf]
      %v1011 = vld [vmem:[%s873 + $0x4c] sm:$0xf]
      %v1012 = vld [vmem:[%s873 + $0x50] sm:$0xf]
      %v1013 = vld [vmem:[%s873 + $0x54] sm:$0xf]
      %v1014 = vld [vmem:[%s873 + $0x58] sm:$0xf]
      %v1015 = vld [vmem:[%s873 + $0x5c] sm:$0xf]
      %v1016 = vld [vmem:[%s873 + $0x60] sm:$0xf]
      %v1017 = vld [vmem:[%s873 + $0x64] sm:$0xf]
      %v1018 = vld [vmem:[%s873 + $0x68] sm:$0xf]
      %v1019 = vld [vmem:[%s873 + $0x6c] sm:$0xf]
      %v1020 = vld [vmem:[%s873 + $0x70] sm:$0xf]
      %v1021 = vld [vmem:[%s873 + $0x74] sm:$0xf]
      %v1022 = vld [vmem:[%s873 + $0x78] sm:$0xf]
      %v1023 = vld [vmem:[%s873 + $0x7c] sm:$0xf]
      %v1024 = vld [vmem:[%s873 + $0x80] sm:$0xf]
      %v1025 = vld [vmem:[%s873 + $0x84] sm:$0xf]
      %v1026 = vld [vmem:[%s873 + $0x88] sm:$0xf]
      %v1027 = vld [vmem:[%s873 + $0x8c] sm:$0xf]
      %v1028 = vld [vmem:[%s873 + $0x90] sm:$0xf]
      %v1029 = vld [vmem:[%s873 + $0x94] sm:$0xf]
      %v1030 = vld [vmem:[%s873 + $0x98] sm:$0xf]
      %v1031 = vld [vmem:[%s873 + $0x9c] sm:$0xf]
      %v1032 = vld [vmem:[%s873 + $0xa0] sm:$0xf]
      %v1033 = vld [vmem:[%s873 + $0xa4] sm:$0xf]
      %v1034 = vld [vmem:[%s873 + $0xa8] sm:$0xf]
      %v1035 = vld [vmem:[%s873 + $0xac] sm:$0xf]
      %v1036 = vld [vmem:[%s873 + $0xb0] sm:$0xf]
      %v1037 = vld [vmem:[%s873 + $0xb4] sm:$0xf]
      %v1038 = vld [vmem:[%s873 + $0xb8] sm:$0xf]
      %v1039 = vld [vmem:[%s873 + $0xbc] sm:$0xf]
      %v1040 = vld [vmem:[%s873 + $0xc0] sm:$0xf]
      %v1041 = vld [vmem:[%s873 + $0xc4] sm:$0xf]
      %v1042 = vld [vmem:[%s873 + $0xc8] sm:$0xf]
      %v1043 = vld [vmem:[%s873 + $0xcc] sm:$0xf]
      %v1044 = vld [vmem:[%s873 + $0xd0] sm:$0xf]
      %v1045 = vld [vmem:[%s873 + $0xd4] sm:$0xf]
      %v1046 = vld [vmem:[%s873 + $0xd8] sm:$0xf]
      %v1047 = vld [vmem:[%s873 + $0xdc] sm:$0xf]
      %v1048 = vld [vmem:[%s873 + $0xe0] sm:$0xf]
      %v1049 = vld [vmem:[%s873 + $0xe4] sm:$0xf]
      %v1050 = vld [vmem:[%s873 + $0xe8] sm:$0xf]
      %v1051 = vld [vmem:[%s873 + $0xec] sm:$0xf]
      %v1052 = vld [vmem:[%s873 + $0xf0] sm:$0xf]
      %v1053 = vld [vmem:[%s873 + $0xf4] sm:$0xf]
      %v1054 = vld [vmem:[%s873 + $0xf8] sm:$0xf]
      %v1055 = vld [vmem:[%s873 + $0xfc] sm:$0xf]
      %v1056 = vld [vmem:[%s4] sm:$0x3]
      %v1121 = vunpack.c.l.b16 %v992
      %v1122 = vunpack.c.l.b16 %v993
      %v1123 = vunpack.c.l.b16 %v994
      %v1124 = vunpack.c.l.b16 %v995
      %v1125 = vunpack.c.l.b16 %v996
      %v1126 = vunpack.c.l.b16 %v997
      %v1127 = vunpack.c.l.b16 %v998
      %v1128 = vunpack.c.l.b16 %v999
      %v1129 = vunpack.c.l.b16 %v1000
      %v1130 = vunpack.c.l.b16 %v1001
      %v1131 = vunpack.c.l.b16 %v1002
      %v1132 = vunpack.c.l.b16 %v1003
      %v1133 = vunpack.c.l.b16 %v1004
      %v1134 = vunpack.c.l.b16 %v1005
      %v1135 = vunpack.c.l.b16 %v1006
      %v1136 = vunpack.c.l.b16 %v1007
      %v1137 = vunpack.c.l.b16 %v1008
      %v1138 = vunpack.c.l.b16 %v1009
      %v1139 = vunpack.c.l.b16 %v1010
      %v1140 = vunpack.c.l.b16 %v1011
      %v1141 = vunpack.c.l.b16 %v1012
      %v1142 = vunpack.c.l.b16 %v1013
      %v1143 = vunpack.c.l.b16 %v1014
      %v1144 = vunpack.c.l.b16 %v1015
      %v1145 = vunpack.c.l.b16 %v1016
      %v1146 = vunpack.c.l.b16 %v1017
      %v1147 = vunpack.c.l.b16 %v1018
      %v1148 = vunpack.c.l.b16 %v1019
      %v1149 = vunpack.c.l.b16 %v1020
      %v1150 = vunpack.c.l.b16 %v1021
      %v1151 = vunpack.c.l.b16 %v1022
      %v1152 = vunpack.c.l.b16 %v1023
      %v1153 = vunpack.c.l.b16 %v1024
      %v1154 = vunpack.c.l.b16 %v1025
      %v1155 = vunpack.c.l.b16 %v1026
      %v1156 = vunpack.c.l.b16 %v1027
      %v1157 = vunpack.c.l.b16 %v1028
      %v1158 = vunpack.c.l.b16 %v1029
      %v1159 = vunpack.c.l.b16 %v1030
      %v1160 = vunpack.c.l.b16 %v1031
      %v1161 = vunpack.c.l.b16 %v1032
      %v1162 = vunpack.c.l.b16 %v1033
      %v1163 = vunpack.c.l.b16 %v1034
      %v1164 = vunpack.c.l.b16 %v1035
      %v1165 = vunpack.c.l.b16 %v1036
      %v1166 = vunpack.c.l.b16 %v1037
      %v1167 = vunpack.c.l.b16 %v1038
      %v1168 = vunpack.c.l.b16 %v1039
      %v1169 = vunpack.c.l.b16 %v1040
      %v1170 = vunpack.c.l.b16 %v1041
      %v1171 = vunpack.c.l.b16 %v1042
      %v1172 = vunpack.c.l.b16 %v1043
      %v1173 = vunpack.c.l.b16 %v1044
      %v1174 = vunpack.c.l.b16 %v1045
      %v1175 = vunpack.c.l.b16 %v1046
      %v1176 = vunpack.c.l.b16 %v1047
      %v1177 = vunpack.c.l.b16 %v1048
      %v1178 = vunpack.c.l.b16 %v1049
      %v1179 = vunpack.c.l.b16 %v1050
      %v1180 = vunpack.c.l.b16 %v1051
      %v1181 = vunpack.c.l.b16 %v1052
      %v1182 = vunpack.c.l.b16 %v1053
      %v1183 = vunpack.c.l.b16 %v1054
      %v1184 = vunpack.c.l.b16 %v1055
      %v1185 = vpack.c.b16 %v1122, %v1121
      %v1186 = vpack.c.b16 %v1124, %v1123
      %v1187 = vpack.c.b16 %v1126, %v1125
      %v1188 = vpack.c.b16 %v1128, %v1127
      %v1189 = vpack.c.b16 %v1130, %v1129
      %v1190 = vpack.c.b16 %v1132, %v1131
      %v1191 = vpack.c.b16 %v1134, %v1133
      %v1192 = vpack.c.b16 %v1136, %v1135
      %v1193 = vpack.c.b16 %v1138, %v1137
      %v1194 = vpack.c.b16 %v1140, %v1139
      %v1195 = vpack.c.b16 %v1142, %v1141
      %v1196 = vpack.c.b16 %v1144, %v1143
      %v1197 = vpack.c.b16 %v1146, %v1145
      %v1198 = vpack.c.b16 %v1148, %v1147
      %v1199 = vpack.c.b16 %v1150, %v1149
      %v1200 = vpack.c.b16 %v1152, %v1151
      %v1201 = vpack.c.b16 %v1154, %v1153
      %v1202 = vpack.c.b16 %v1156, %v1155
      %v1203 = vpack.c.b16 %v1158, %v1157
      %v1204 = vpack.c.b16 %v1160, %v1159
      %v1205 = vpack.c.b16 %v1162, %v1161
      %v1206 = vpack.c.b16 %v1164, %v1163
      %v1207 = vpack.c.b16 %v1166, %v1165
      %v1208 = vpack.c.b16 %v1168, %v1167
      %v1209 = vpack.c.b16 %v1170, %v1169
      %v1210 = vpack.c.b16 %v1172, %v1171
      %v1211 = vpack.c.b16 %v1174, %v1173
      %v1212 = vpack.c.b16 %v1176, %v1175
      %v1213 = vpack.c.b16 %v1178, %v1177
      %v1214 = vpack.c.b16 %v1180, %v1179
      %v1215 = vpack.c.b16 %v1182, %v1181
      %v1216 = vpack.c.b16 %v1184, %v1183
      %vm1217 = vcmask 31744
      %v1219 = vsel %vm1217, %v1185, 0
      %v1222 = vsel %vm1217, %v1186, 0
      %v1225 = vsel %vm1217, %v1187, 0
      %v1228 = vsel %vm1217, %v1188, 0
      %v1231 = vsel %vm1217, %v1189, 0
      %v1234 = vsel %vm1217, %v1190, 0
      %v1237 = vsel %vm1217, %v1191, 0
      %v1240 = vsel %vm1217, %v1192, 0
      %v1243 = vsel %vm1217, %v1193, 0
      %v1246 = vsel %vm1217, %v1194, 0
      %v1249 = vsel %vm1217, %v1195, 0
      %v1252 = vsel %vm1217, %v1196, 0
      %v1255 = vsel %vm1217, %v1197, 0
      %v1258 = vsel %vm1217, %v1198, 0
      %v1261 = vsel %vm1217, %v1199, 0
      %v1264 = vsel %vm1217, %v1200, 0
      %v1267 = vsel %vm1217, %v1201, 0
      %v1270 = vsel %vm1217, %v1202, 0
      %v1273 = vsel %vm1217, %v1203, 0
      %v1276 = vsel %vm1217, %v1204, 0
      %v1279 = vsel %vm1217, %v1205, 0
      %v1282 = vsel %vm1217, %v1206, 0
      %v1285 = vsel %vm1217, %v1207, 0
      %v1288 = vsel %vm1217, %v1208, 0
      %v1291 = vsel %vm1217, %v1209, 0
      %v1294 = vsel %vm1217, %v1210, 0
      %v1297 = vsel %vm1217, %v1211, 0
      %v1300 = vsel %vm1217, %v1212, 0
      %v1303 = vsel %vm1217, %v1213, 0
      %v1306 = vsel %vm1217, %v1214, 0
      %v1309 = vsel %vm1217, %v1215, 0
      %v1312 = vsel %vm1217, %v1216, 0
      %vm1314 = vcmask 1041408
      %v1316 = vsel %vm1314, %v1056, 0
      %1318 = vmatpush.bf16.msra.mxu0 0
      %1319 = vmatpush.bf16.msra.mxu0 0
      %1320 = vmatpush.bf16.msra.mxu0 0
      %1321 = vmatpush.bf16.msra.mxu0 0
      %1322 = vmatpush.bf16.msra.mxu0 0
      %1323 = vmatpush.bf16.msra.mxu0 0
      %1324 = vmatpush.bf16.msra.mxu0 0
      %1325 = vmatpush.bf16.msra.mxu0 %v1316
      %1326 = vmatmul.bf16.gmra.mxu0 %v1219
      %v1327 = vpop.f32.mrf.mxu0
      %v1328 = vadd.f32 0.0, %v1327
      %v1329 = vpop.f32.mrf.mxu0
      %v1330 = vadd.f32 0.0, %v1329
      %1331 = vmatmul.bf16.gmra.mxu0 %v1222
      %v1332 = vpop.f32.mrf.mxu0
      %v1333 = vadd.f32 0.0, %v1332
      %v1334 = vpop.f32.mrf.mxu0
      %v1335 = vadd.f32 0.0, %v1334
      %1336 = vmatmul.bf16.gmra.mxu0 %v1225
      %v1337 = vpop.f32.mrf.mxu0
      %v1338 = vadd.f32 0.0, %v1337
      %v1339 = vpop.f32.mrf.mxu0
      %v1340 = vadd.f32 0.0, %v1339
      %1341 = vmatmul.bf16.gmra.mxu0 %v1228
      %v1342 = vpop.f32.mrf.mxu0
      %v1343 = vadd.f32 0.0, %v1342
      %v1344 = vpop.f32.mrf.mxu0
      %v1345 = vadd.f32 0.0, %v1344
      %1346 = vmatmul.bf16.gmra.mxu0 %v1231
      %v1347 = vpop.f32.mrf.mxu0
      %v1348 = vadd.f32 0.0, %v1347
      %v1349 = vpop.f32.mrf.mxu0
      %v1350 = vadd.f32 0.0, %v1349
      %1351 = vmatmul.bf16.gmra.mxu0 %v1234
      %v1352 = vpop.f32.mrf.mxu0
      %v1353 = vadd.f32 0.0, %v1352
      %v1354 = vpop.f32.mrf.mxu0
      %v1355 = vadd.f32 0.0, %v1354
      %1356 = vmatmul.bf16.gmra.mxu0 %v1237
      %v1357 = vpop.f32.mrf.mxu0
      %v1358 = vadd.f32 0.0, %v1357
      %v1359 = vpop.f32.mrf.mxu0
      %v1360 = vadd.f32 0.0, %v1359
      %1361 = vmatmul.bf16.gmra.mxu0 %v1240
      %v1362 = vpop.f32.mrf.mxu0
      %v1363 = vadd.f32 0.0, %v1362
      %v1364 = vpop.f32.mrf.mxu0
      %v1365 = vadd.f32 0.0, %v1364
      %1366 = vmatmul.bf16.gmra.mxu0 %v1243
      %v1367 = vpop.f32.mrf.mxu0
      %v1368 = vadd.f32 0.0, %v1367
      %v1369 = vpop.f32.mrf.mxu0
      %v1370 = vadd.f32 0.0, %v1369
      %1371 = vmatmul.bf16.gmra.mxu0 %v1246
      %v1372 = vpop.f32.mrf.mxu0
      %v1373 = vadd.f32 0.0, %v1372
      %v1374 = vpop.f32.mrf.mxu0
      %v1375 = vadd.f32 0.0, %v1374
      %1376 = vmatmul.bf16.gmra.mxu0 %v1249
      %v1377 = vpop.f32.mrf.mxu0
      %v1378 = vadd.f32 0.0, %v1377
      %v1379 = vpop.f32.mrf.mxu0
      %v1380 = vadd.f32 0.0, %v1379
      %1381 = vmatmul.bf16.gmra.mxu0 %v1252
      %v1382 = vpop.f32.mrf.mxu0
      %v1383 = vadd.f32 0.0, %v1382
      %v1384 = vpop.f32.mrf.mxu0
      %v1385 = vadd.f32 0.0, %v1384
      %1386 = vmatmul.bf16.gmra.mxu0 %v1255
      %v1387 = vpop.f32.mrf.mxu0
      %v1388 = vadd.f32 0.0, %v1387
      %v1389 = vpop.f32.mrf.mxu0
      %v1390 = vadd.f32 0.0, %v1389
      %1391 = vmatmul.bf16.gmra.mxu0 %v1258
      %v1392 = vpop.f32.mrf.mxu0
      %v1393 = vadd.f32 0.0, %v1392
      %v1394 = vpop.f32.mrf.mxu0
      %v1395 = vadd.f32 0.0, %v1394
      %1396 = vmatmul.bf16.gmra.mxu0 %v1261
      %v1397 = vpop.f32.mrf.mxu0
      %v1398 = vadd.f32 0.0, %v1397
      %v1399 = vpop.f32.mrf.mxu0
      %v1400 = vadd.f32 0.0, %v1399
      %1401 = vmatmul.bf16.gmra.mxu0 %v1264
      %v1402 = vpop.f32.mrf.mxu0
      %v1403 = vadd.f32 0.0, %v1402
      %v1404 = vpop.f32.mrf.mxu0
      %v1405 = vadd.f32 0.0, %v1404
      %1406 = vmatmul.bf16.gmra.mxu0 %v1267
      %v1407 = vpop.f32.mrf.mxu0
      %v1408 = vadd.f32 0.0, %v1407
      %v1409 = vpop.f32.mrf.mxu0
      %v1410 = vadd.f32 0.0, %v1409
      %1411 = vmatmul.bf16.gmra.mxu0 %v1270
      %v1412 = vpop.f32.mrf.mxu0
      %v1413 = vadd.f32 0.0, %v1412
      %v1414 = vpop.f32.mrf.mxu0
      %v1415 = vadd.f32 0.0, %v1414
      %1416 = vmatmul.bf16.gmra.mxu0 %v1273
      %v1417 = vpop.f32.mrf.mxu0
      %v1418 = vadd.f32 0.0, %v1417
      %v1419 = vpop.f32.mrf.mxu0
      %v1420 = vadd.f32 0.0, %v1419
      %1421 = vmatmul.bf16.gmra.mxu0 %v1276
      %v1422 = vpop.f32.mrf.mxu0
      %v1423 = vadd.f32 0.0, %v1422
      %v1424 = vpop.f32.mrf.mxu0
      %v1425 = vadd.f32 0.0, %v1424
      %1426 = vmatmul.bf16.gmra.mxu0 %v1279
      %v1427 = vpop.f32.mrf.mxu0
      %v1428 = vadd.f32 0.0, %v1427
      %v1429 = vpop.f32.mrf.mxu0
      %v1430 = vadd.f32 0.0, %v1429
      %1431 = vmatmul.bf16.gmra.mxu0 %v1282
      %v1432 = vpop.f32.mrf.mxu0
      %v1433 = vadd.f32 0.0, %v1432
      %v1434 = vpop.f32.mrf.mxu0
      %v1435 = vadd.f32 0.0, %v1434
      %1436 = vmatmul.bf16.gmra.mxu0 %v1285
      %v1437 = vpop.f32.mrf.mxu0
      %v1438 = vadd.f32 0.0, %v1437
      %v1439 = vpop.f32.mrf.mxu0
      %v1440 = vadd.f32 0.0, %v1439
      %1441 = vmatmul.bf16.gmra.mxu0 %v1288
      %v1442 = vpop.f32.mrf.mxu0
      %v1443 = vadd.f32 0.0, %v1442
      %v1444 = vpop.f32.mrf.mxu0
      %v1445 = vadd.f32 0.0, %v1444
      %1446 = vmatmul.bf16.gmra.mxu0 %v1291
      %v1447 = vpop.f32.mrf.mxu0
      %v1448 = vadd.f32 0.0, %v1447
      %v1449 = vpop.f32.mrf.mxu0
      %v1450 = vadd.f32 0.0, %v1449
      %1451 = vmatmul.bf16.gmra.mxu0 %v1294
      %v1452 = vpop.f32.mrf.mxu0
      %v1453 = vadd.f32 0.0, %v1452
      %v1454 = vpop.f32.mrf.mxu0
      %v1455 = vadd.f32 0.0, %v1454
      %1456 = vmatmul.bf16.gmra.mxu0 %v1297
      %v1457 = vpop.f32.mrf.mxu0
      %v1458 = vadd.f32 0.0, %v1457
      %v1459 = vpop.f32.mrf.mxu0
      %v1460 = vadd.f32 0.0, %v1459
      %1461 = vmatmul.bf16.gmra.mxu0 %v1300
      %v1462 = vpop.f32.mrf.mxu0
      %v1463 = vadd.f32 0.0, %v1462
      %v1464 = vpop.f32.mrf.mxu0
      %v1465 = vadd.f32 0.0, %v1464
      %1466 = vmatmul.bf16.gmra.mxu0 %v1303
      %v1467 = vpop.f32.mrf.mxu0
      %v1468 = vadd.f32 0.0, %v1467
      %v1469 = vpop.f32.mrf.mxu0
      %v1470 = vadd.f32 0.0, %v1469
      %1471 = vmatmul.bf16.gmra.mxu0 %v1306
      %v1472 = vpop.f32.mrf.mxu0
      %v1473 = vadd.f32 0.0, %v1472
      %v1474 = vpop.f32.mrf.mxu0
      %v1475 = vadd.f32 0.0, %v1474
      %1476 = vmatmul.bf16.gmra.mxu0 %v1309
      %v1477 = vpop.f32.mrf.mxu0
      %v1478 = vadd.f32 0.0, %v1477
      %v1479 = vpop.f32.mrf.mxu0
      %v1480 = vadd.f32 0.0, %v1479
      %1481 = vmatmul.bf16.gmra.mxu0 %v1312
      %v1482 = vpop.f32.mrf.mxu0
      %v1483 = vadd.f32 0.0, %v1482
      %v1484 = vpop.f32.mrf.mxu0
      %v1485 = vadd.f32 0.0, %v1484
      %1486 = vdwg.mxu0
      %v1487 = vpack.c.bf16 %v1330, %v1328
      %v1488 = vpack.c.bf16 %v1335, %v1333
      %v1489 = vpack.c.bf16 %v1340, %v1338
      %v1490 = vpack.c.bf16 %v1345, %v1343
      %v1491 = vpack.c.bf16 %v1350, %v1348
      %v1492 = vpack.c.bf16 %v1355, %v1353
      %v1493 = vpack.c.bf16 %v1360, %v1358
      %v1494 = vpack.c.bf16 %v1365, %v1363
      %v1495 = vpack.c.bf16 %v1370, %v1368
      %v1496 = vpack.c.bf16 %v1375, %v1373
      %v1497 = vpack.c.bf16 %v1380, %v1378
      %v1498 = vpack.c.bf16 %v1385, %v1383
      %v1499 = vpack.c.bf16 %v1390, %v1388
      %v1500 = vpack.c.bf16 %v1395, %v1393
      %v1501 = vpack.c.bf16 %v1400, %v1398
      %v1502 = vpack.c.bf16 %v1405, %v1403
      %v1503 = vpack.c.bf16 %v1410, %v1408
      %v1504 = vpack.c.bf16 %v1415, %v1413
      %v1505 = vpack.c.bf16 %v1420, %v1418
      %v1506 = vpack.c.bf16 %v1425, %v1423
      %v1507 = vpack.c.bf16 %v1430, %v1428
      %v1508 = vpack.c.bf16 %v1435, %v1433
      %v1509 = vpack.c.bf16 %v1440, %v1438
      %v1510 = vpack.c.bf16 %v1445, %v1443
      %v1511 = vpack.c.bf16 %v1450, %v1448
      %v1512 = vpack.c.bf16 %v1455, %v1453
      %v1513 = vpack.c.bf16 %v1460, %v1458
      %v1514 = vpack.c.bf16 %v1465, %v1463
      %v1515 = vpack.c.bf16 %v1470, %v1468
      %v1516 = vpack.c.bf16 %v1475, %v1473
      %v1517 = vpack.c.bf16 %v1480, %v1478
      %v1518 = vpack.c.bf16 %v1485, %v1483
      %v1519 = vld [vmem:[%s10] sm:$0xff]
      %v1520 = vld [vmem:[%s10 + $0x8] sm:$0xff]
      %v1521 = vld [vmem:[%s10 + $0x10] sm:$0xff]
      %v1522 = vld [vmem:[%s10 + $0x18] sm:$0xff]
      %v1523 = vld [vmem:[%s10 + $0x20] sm:$0xff]
      %v1524 = vld [vmem:[%s10 + $0x28] sm:$0xff]
      %v1525 = vld [vmem:[%s10 + $0x30] sm:$0xff]
      %v1526 = vld [vmem:[%s10 + $0x38] sm:$0xff]
      %v1527 = vld [vmem:[%s10 + $0x40] sm:$0xff]
      %v1528 = vld [vmem:[%s10 + $0x48] sm:$0xff]
      %v1529 = vld [vmem:[%s10 + $0x50] sm:$0xff]
      %v1530 = vld [vmem:[%s10 + $0x58] sm:$0xff]
      %v1531 = vld [vmem:[%s10 + $0x60] sm:$0xff]
      %v1532 = vld [vmem:[%s10 + $0x68] sm:$0xff]
      %v1533 = vld [vmem:[%s10 + $0x70] sm:$0xff]
      %v1534 = vld [vmem:[%s10 + $0x78] sm:$0xff]
      %v1535 = vld [vmem:[%s10 + $0x80] sm:$0xff]
      %v1536 = vld [vmem:[%s10 + $0x88] sm:$0xff]
      %v1537 = vld [vmem:[%s10 + $0x90] sm:$0xff]
      %v1538 = vld [vmem:[%s10 + $0x98] sm:$0xff]
      %v1539 = vld [vmem:[%s10 + $0xa0] sm:$0xff]
      %v1540 = vld [vmem:[%s10 + $0xa8] sm:$0xff]
      %v1541 = vld [vmem:[%s10 + $0xb0] sm:$0xff]
      %v1542 = vld [vmem:[%s10 + $0xb8] sm:$0xff]
      %v1543 = vld [vmem:[%s10 + $0xc0] sm:$0xff]
      %v1544 = vld [vmem:[%s10 + $0xc8] sm:$0xff]
      %v1545 = vld [vmem:[%s10 + $0xd0] sm:$0xff]
      %v1546 = vld [vmem:[%s10 + $0xd8] sm:$0xff]
      %v1547 = vld [vmem:[%s10 + $0xe0] sm:$0xff]
      %v1548 = vld [vmem:[%s10 + $0xe8] sm:$0xff]
      %v1549 = vld [vmem:[%s10 + $0xf0] sm:$0xff]
      %v1550 = vld [vmem:[%s10 + $0xf8] sm:$0xff]
      %v1551 = vld [vmem:[%s11] sm:$0xff]
      %v1552 = vld [vmem:[%s11 + $0x8] sm:$0xff]
      %v1553 = vld [vmem:[%s11 + $0x10] sm:$0xff]
      %v1554 = vld [vmem:[%s11 + $0x18] sm:$0xff]
      %v1555 = vld [vmem:[%s11 + $0x20] sm:$0xff]
      %v1556 = vld [vmem:[%s11 + $0x28] sm:$0xff]
      %v1557 = vld [vmem:[%s11 + $0x30] sm:$0xff]
      %v1558 = vld [vmem:[%s11 + $0x38] sm:$0xff]
      %v1559 = vld [vmem:[%s11 + $0x40] sm:$0xff]
      %v1560 = vld [vmem:[%s11 + $0x48] sm:$0xff]
      %v1561 = vld [vmem:[%s11 + $0x50] sm:$0xff]
      %v1562 = vld [vmem:[%s11 + $0x58] sm:$0xff]
      %v1563 = vld [vmem:[%s11 + $0x60] sm:$0xff]
      %v1564 = vld [vmem:[%s11 + $0x68] sm:$0xff]
      %v1565 = vld [vmem:[%s11 + $0x70] sm:$0xff]
      %v1566 = vld [vmem:[%s11 + $0x78] sm:$0xff]
      %v1567 = vld [vmem:[%s11 + $0x80] sm:$0xff]
      %v1568 = vld [vmem:[%s11 + $0x88] sm:$0xff]
      %v1569 = vld [vmem:[%s11 + $0x90] sm:$0xff]
      %v1570 = vld [vmem:[%s11 + $0x98] sm:$0xff]
      %v1571 = vld [vmem:[%s11 + $0xa0] sm:$0xff]
      %v1572 = vld [vmem:[%s11 + $0xa8] sm:$0xff]
      %v1573 = vld [vmem:[%s11 + $0xb0] sm:$0xff]
      %v1574 = vld [vmem:[%s11 + $0xb8] sm:$0xff]
      %v1575 = vld [vmem:[%s11 + $0xc0] sm:$0xff]
      %v1576 = vld [vmem:[%s11 + $0xc8] sm:$0xff]
      %v1577 = vld [vmem:[%s11 + $0xd0] sm:$0xff]
      %v1578 = vld [vmem:[%s11 + $0xd8] sm:$0xff]
      %v1579 = vld [vmem:[%s11 + $0xe0] sm:$0xff]
      %v1580 = vld [vmem:[%s11 + $0xe8] sm:$0xff]
      %v1581 = vld [vmem:[%s11 + $0xf0] sm:$0xff]
      %v1582 = vld [vmem:[%s11 + $0xf8] sm:$0xff]
      %v1615 = vunpack.c.l.b16 %v1551
      %v1616 = vunpack.c.h.b16 %v1551
      %v1617 = vunpack.c.l.b16 %v1552
      %v1618 = vunpack.c.h.b16 %v1552
      %v1619 = vunpack.c.l.b16 %v1553
      %v1620 = vunpack.c.h.b16 %v1553
      %v1621 = vunpack.c.l.b16 %v1554
      %v1622 = vunpack.c.h.b16 %v1554
      %v1623 = vunpack.c.l.b16 %v1555
      %v1624 = vunpack.c.h.b16 %v1555
      %v1625 = vunpack.c.l.b16 %v1556
      %v1626 = vunpack.c.h.b16 %v1556
      %v1627 = vunpack.c.l.b16 %v1557
      %v1628 = vunpack.c.h.b16 %v1557
      %v1629 = vunpack.c.l.b16 %v1558
      %v1630 = vunpack.c.h.b16 %v1558
      %v1631 = vunpack.c.l.b16 %v1559
      %v1632 = vunpack.c.h.b16 %v1559
      %v1633 = vunpack.c.l.b16 %v1560
      %v1634 = vunpack.c.h.b16 %v1560
      %v1635 = vunpack.c.l.b16 %v1561
      %v1636 = vunpack.c.h.b16 %v1561
      %v1637 = vunpack.c.l.b16 %v1562
      %v1638 = vunpack.c.h.b16 %v1562
      %v1639 = vunpack.c.l.b16 %v1563
      %v1640 = vunpack.c.h.b16 %v1563
      %v1641 = vunpack.c.l.b16 %v1564
      %v1642 = vunpack.c.h.b16 %v1564
      %v1643 = vunpack.c.l.b16 %v1565
      %v1644 = vunpack.c.h.b16 %v1565
      %v1645 = vunpack.c.l.b16 %v1566
      %v1646 = vunpack.c.h.b16 %v1566
      %v1647 = vunpack.c.l.b16 %v1567
      %v1648 = vunpack.c.h.b16 %v1567
      %v1649 = vunpack.c.l.b16 %v1568
      %v1650 = vunpack.c.h.b16 %v1568
      %v1651 = vunpack.c.l.b16 %v1569
      %v1652 = vunpack.c.h.b16 %v1569
      %v1653 = vunpack.c.l.b16 %v1570
      %v1654 = vunpack.c.h.b16 %v1570
      %v1655 = vunpack.c.l.b16 %v1571
      %v1656 = vunpack.c.h.b16 %v1571
      %v1657 = vunpack.c.l.b16 %v1572
      %v1658 = vunpack.c.h.b16 %v1572
      %v1659 = vunpack.c.l.b16 %v1573
      %v1660 = vunpack.c.h.b16 %v1573
      %v1661 = vunpack.c.l.b16 %v1574
      %v1662 = vunpack.c.h.b16 %v1574
      %v1663 = vunpack.c.l.b16 %v1575
      %v1664 = vunpack.c.h.b16 %v1575
      %v1665 = vunpack.c.l.b16 %v1576
      %v1666 = vunpack.c.h.b16 %v1576
      %v1667 = vunpack.c.l.b16 %v1577
      %v1668 = vunpack.c.h.b16 %v1577
      %v1669 = vunpack.c.l.b16 %v1578
      %v1670 = vunpack.c.h.b16 %v1578
      %v1671 = vunpack.c.l.b16 %v1579
      %v1672 = vunpack.c.h.b16 %v1579
      %v1673 = vunpack.c.l.b16 %v1580
      %v1674 = vunpack.c.h.b16 %v1580
      %v1675 = vunpack.c.l.b16 %v1581
      %v1676 = vunpack.c.h.b16 %v1581
      %v1677 = vunpack.c.l.b16 %v1582
      %v1678 = vunpack.c.h.b16 %v1582
      %v1679 = vpack.c.b16 %v1619, %v1615
      %v1680 = vpack.c.b16 %v1620, %v1616
      %v1681 = vpack.c.b16 %v1621, %v1617
      %v1682 = vpack.c.b16 %v1622, %v1618
      %v1683 = vpack.c.b16 %v1627, %v1623
      %v1684 = vpack.c.b16 %v1628, %v1624
      %v1685 = vpack.c.b16 %v1629, %v1625
      %v1686 = vpack.c.b16 %v1630, %v1626
      %v1687 = vpack.c.b16 %v1635, %v1631
      %v1688 = vpack.c.b16 %v1636, %v1632
      %v1689 = vpack.c.b16 %v1637, %v1633
      %v1690 = vpack.c.b16 %v1638, %v1634
      %v1691 = vpack.c.b16 %v1643, %v1639
      %v1692 = vpack.c.b16 %v1644, %v1640
      %v1693 = vpack.c.b16 %v1645, %v1641
      %v1694 = vpack.c.b16 %v1646, %v1642
      %v1695 = vpack.c.b16 %v1651, %v1647
      %v1696 = vpack.c.b16 %v1652, %v1648
      %v1697 = vpack.c.b16 %v1653, %v1649
      %v1698 = vpack.c.b16 %v1654, %v1650
      %v1699 = vpack.c.b16 %v1659, %v1655
      %v1700 = vpack.c.b16 %v1660, %v1656
      %v1701 = vpack.c.b16 %v1661, %v1657
      %v1702 = vpack.c.b16 %v1662, %v1658
      %v1703 = vpack.c.b16 %v1667, %v1663
      %v1704 = vpack.c.b16 %v1668, %v1664
      %v1705 = vpack.c.b16 %v1669, %v1665
      %v1706 = vpack.c.b16 %v1670, %v1666
      %v1707 = vpack.c.b16 %v1675, %v1671
      %v1708 = vpack.c.b16 %v1676, %v1672
      %v1709 = vpack.c.b16 %v1677, %v1673
      %v1710 = vpack.c.b16 %v1678, %v1674
      %v1807 = vunpack.c.l.b16 %v928
      %v1808 = vunpack.c.l.b16 %v929
      %v1809 = vunpack.c.l.b16 %v930
      %v1810 = vunpack.c.l.b16 %v931
      %v1811 = vunpack.c.l.b16 %v932
      %v1812 = vunpack.c.l.b16 %v933
      %v1813 = vunpack.c.l.b16 %v934
      %v1814 = vunpack.c.l.b16 %v935
      %v1815 = vunpack.c.l.b16 %v936
      %v1816 = vunpack.c.l.b16 %v937
      %v1817 = vunpack.c.l.b16 %v938
      %v1818 = vunpack.c.l.b16 %v939
      %v1819 = vunpack.c.l.b16 %v940
      %v1820 = vunpack.c.l.b16 %v941
      %v1821 = vunpack.c.l.b16 %v942
      %v1822 = vunpack.c.l.b16 %v943
      %v1823 = vunpack.c.l.b16 %v944
      %v1824 = vunpack.c.l.b16 %v945
      %v1825 = vunpack.c.l.b16 %v946
      %v1826 = vunpack.c.l.b16 %v947
      %v1827 = vunpack.c.l.b16 %v948
      %v1828 = vunpack.c.l.b16 %v949
      %v1829 = vunpack.c.l.b16 %v950
      %v1830 = vunpack.c.l.b16 %v951
      %v1831 = vunpack.c.l.b16 %v952
      %v1832 = vunpack.c.l.b16 %v953
      %v1833 = vunpack.c.l.b16 %v954
      %v1834 = vunpack.c.l.b16 %v955
      %v1835 = vunpack.c.l.b16 %v956
      %v1836 = vunpack.c.l.b16 %v957
      %v1837 = vunpack.c.l.b16 %v958
      %v1838 = vunpack.c.l.b16 %v959
      %v1839 = vunpack.c.l.b16 %v960
      %v1840 = vunpack.c.l.b16 %v961
      %v1841 = vunpack.c.l.b16 %v962
      %v1842 = vunpack.c.l.b16 %v963
      %v1843 = vunpack.c.l.b16 %v964
      %v1844 = vunpack.c.l.b16 %v965
      %v1845 = vunpack.c.l.b16 %v966
      %v1846 = vunpack.c.l.b16 %v967
      %v1847 = vunpack.c.l.b16 %v968
      %v1848 = vunpack.c.l.b16 %v969
      %v1849 = vunpack.c.l.b16 %v970
      %v1850 = vunpack.c.l.b16 %v971
      %v1851 = vunpack.c.l.b16 %v972
      %v1852 = vunpack.c.l.b16 %v973
      %v1853 = vunpack.c.l.b16 %v974
      %v1854 = vunpack.c.l.b16 %v975
      %v1855 = vunpack.c.l.b16 %v976
      %v1856 = vunpack.c.l.b16 %v977
      %v1857 = vunpack.c.l.b16 %v978
      %v1858 = vunpack.c.l.b16 %v979
      %v1859 = vunpack.c.l.b16 %v980
      %v1860 = vunpack.c.l.b16 %v981
      %v1861 = vunpack.c.l.b16 %v982
      %v1862 = vunpack.c.l.b16 %v983
      %v1863 = vunpack.c.l.b16 %v984
      %v1864 = vunpack.c.l.b16 %v985
      %v1865 = vunpack.c.l.b16 %v986
      %v1866 = vunpack.c.l.b16 %v987
      %v1867 = vunpack.c.l.b16 %v988
      %v1868 = vunpack.c.l.b16 %v989
      %v1869 = vunpack.c.l.b16 %v990
      %v1870 = vunpack.c.l.b16 %v991
      %v1871 = vpack.c.b16 %v1808, %v1807
      %v1872 = vpack.c.b16 %v1810, %v1809
      %v1873 = vpack.c.b16 %v1812, %v1811
      %v1874 = vpack.c.b16 %v1814, %v1813
      %v1875 = vpack.c.b16 %v1816, %v1815
      %v1876 = vpack.c.b16 %v1818, %v1817
      %v1877 = vpack.c.b16 %v1820, %v1819
      %v1878 = vpack.c.b16 %v1822, %v1821
      %v1879 = vpack.c.b16 %v1824, %v1823
      %v1880 = vpack.c.b16 %v1826, %v1825
      %v1881 = vpack.c.b16 %v1828, %v1827
      %v1882 = vpack.c.b16 %v1830, %v1829
      %v1883 = vpack.c.b16 %v1832, %v1831
      %v1884 = vpack.c.b16 %v1834, %v1833
      %v1885 = vpack.c.b16 %v1836, %v1835
      %v1886 = vpack.c.b16 %v1838, %v1837
      %v1887 = vpack.c.b16 %v1840, %v1839
      %v1888 = vpack.c.b16 %v1842, %v1841
      %v1889 = vpack.c.b16 %v1844, %v1843
      %v1890 = vpack.c.b16 %v1846, %v1845
      %v1891 = vpack.c.b16 %v1848, %v1847
      %v1892 = vpack.c.b16 %v1850, %v1849
      %v1893 = vpack.c.b16 %v1852, %v1851
      %v1894 = vpack.c.b16 %v1854, %v1853
      %v1895 = vpack.c.b16 %v1856, %v1855
      %v1896 = vpack.c.b16 %v1858, %v1857
      %v1897 = vpack.c.b16 %v1860, %v1859
      %v1898 = vpack.c.b16 %v1862, %v1861
      %v1899 = vpack.c.b16 %v1864, %v1863
      %v1900 = vpack.c.b16 %v1866, %v1865
      %v1901 = vpack.c.b16 %v1868, %v1867
      %v1902 = vpack.c.b16 %v1870, %v1869
      %1935 = vmatpush.bf16.msra.mxu0 %v1878
      %1936 = vmatpush.bf16.msra.mxu0 %v1877
      %1937 = vmatpush.bf16.msra.mxu0 %v1876
      %1938 = vmatpush.bf16.msra.mxu0 %v1875
      %1939 = vmatpush.bf16.msra.mxu0 %v1874
      %1940 = vmatpush.bf16.msra.mxu0 %v1873
      %1941 = vmatpush.bf16.msra.mxu0 %v1872
      %1942 = vmatpush.bf16.msra.mxu0 %v1871
      %1943 = vmatmul.bf16.gmra.mxu0 %v1679
      %v1944 = vpop.f32.mrf.mxu0
      %v1945 = vadd.f32 0.0, %v1944
      %v1946 = vpop.f32.mrf.mxu0
      %v1947 = vadd.f32 0.0, %v1946
      %1948 = vmatmul.bf16.gmra.mxu0 %v1683
      %v1949 = vpop.f32.mrf.mxu0
      %v1950 = vadd.f32 0.0, %v1949
      %v1951 = vpop.f32.mrf.mxu0
      %v1952 = vadd.f32 0.0, %v1951
      %1953 = vmatmul.bf16.gmra.mxu0 %v1687
      %v1954 = vpop.f32.mrf.mxu0
      %v1955 = vadd.f32 0.0, %v1954
      %v1956 = vpop.f32.mrf.mxu0
      %v1957 = vadd.f32 0.0, %v1956
      %1958 = vmatmul.bf16.gmra.mxu0 %v1691
      %v1959 = vpop.f32.mrf.mxu0
      %v1960 = vadd.f32 0.0, %v1959
      %v1961 = vpop.f32.mrf.mxu0
      %v1962 = vadd.f32 0.0, %v1961
      %1963 = vmatmul.bf16.gmra.mxu0 %v1695
      %v1964 = vpop.f32.mrf.mxu0
      %v1965 = vadd.f32 0.0, %v1964
      %v1966 = vpop.f32.mrf.mxu0
      %v1967 = vadd.f32 0.0, %v1966
      %1968 = vmatmul.bf16.gmra.mxu0 %v1699
      %v1969 = vpop.f32.mrf.mxu0
      %v1970 = vadd.f32 0.0, %v1969
      %v1971 = vpop.f32.mrf.mxu0
      %v1972 = vadd.f32 0.0, %v1971
      %1973 = vmatmul.bf16.gmra.mxu0 %v1703
      %v1974 = vpop.f32.mrf.mxu0
      %v1975 = vadd.f32 0.0, %v1974
      %v1976 = vpop.f32.mrf.mxu0
      %v1977 = vadd.f32 0.0, %v1976
      %1978 = vmatmul.bf16.gmra.mxu0 %v1707
      %v1979 = vpop.f32.mrf.mxu0
      %v1980 = vadd.f32 0.0, %v1979
      %v1981 = vpop.f32.mrf.mxu0
      %v1982 = vadd.f32 0.0, %v1981
      %1983 = vdwg.mxu0
      %1984 = vmatpush.bf16.msra.mxu0 %v1886
      %1985 = vmatpush.bf16.msra.mxu0 %v1885
      %1986 = vmatpush.bf16.msra.mxu0 %v1884
      %1987 = vmatpush.bf16.msra.mxu0 %v1883
      %1988 = vmatpush.bf16.msra.mxu0 %v1882
      %1989 = vmatpush.bf16.msra.mxu0 %v1881
      %1990 = vmatpush.bf16.msra.mxu0 %v1880
      %1991 = vmatpush.bf16.msra.mxu0 %v1879
      %1992 = vmatmul.bf16.gmra.mxu0 %v1680
      %v1993 = vpop.f32.mrf.mxu0
      %v1994 = vadd.f32 %v1945, %v1993
      %v1995 = vpop.f32.mrf.mxu0
      %v1996 = vadd.f32 %v1947, %v1995
      %1997 = vmatmul.bf16.gmra.mxu0 %v1684
      %v1998 = vpop.f32.mrf.mxu0
      %v1999 = vadd.f32 %v1950, %v1998
      %v2000 = vpop.f32.mrf.mxu0
      %v2001 = vadd.f32 %v1952, %v2000
      %2002 = vmatmul.bf16.gmra.mxu0 %v1688
      %v2003 = vpop.f32.mrf.mxu0
      %v2004 = vadd.f32 %v1955, %v2003
      %v2005 = vpop.f32.mrf.mxu0
      %v2006 = vadd.f32 %v1957, %v2005
      %2007 = vmatmul.bf16.gmra.mxu0 %v1692
      %v2008 = vpop.f32.mrf.mxu0
      %v2009 = vadd.f32 %v1960, %v2008
      %v2010 = vpop.f32.mrf.mxu0
      %v2011 = vadd.f32 %v1962, %v2010
      %2012 = vmatmul.bf16.gmra.mxu0 %v1696
      %v2013 = vpop.f32.mrf.mxu0
      %v2014 = vadd.f32 %v1965, %v2013
      %v2015 = vpop.f32.mrf.mxu0
      %v2016 = vadd.f32 %v1967, %v2015
      %2017 = vmatmul.bf16.gmra.mxu0 %v1700
      %v2018 = vpop.f32.mrf.mxu0
      %v2019 = vadd.f32 %v1970, %v2018
      %v2020 = vpop.f32.mrf.mxu0
      %v2021 = vadd.f32 %v1972, %v2020
      %2022 = vmatmul.bf16.gmra.mxu0 %v1704
      %v2023 = vpop.f32.mrf.mxu0
      %v2024 = vadd.f32 %v1975, %v2023
      %v2025 = vpop.f32.mrf.mxu0
      %v2026 = vadd.f32 %v1977, %v2025
      %2027 = vmatmul.bf16.gmra.mxu0 %v1708
      %v2028 = vpop.f32.mrf.mxu0
      %v2029 = vadd.f32 %v1980, %v2028
      %v2030 = vpop.f32.mrf.mxu0
      %v2031 = vadd.f32 %v1982, %v2030
      %2032 = vdwg.mxu0
      %2033 = vmatpush.bf16.msra.mxu0 %v1894
      %2034 = vmatpush.bf16.msra.mxu0 %v1893
      %2035 = vmatpush.bf16.msra.mxu0 %v1892
      %2036 = vmatpush.bf16.msra.mxu0 %v1891
      %2037 = vmatpush.bf16.msra.mxu0 %v1890
      %2038 = vmatpush.bf16.msra.mxu0 %v1889
      %2039 = vmatpush.bf16.msra.mxu0 %v1888
      %2040 = vmatpush.bf16.msra.mxu0 %v1887
      %2041 = vmatmul.bf16.gmra.mxu0 %v1681
      %v2042 = vpop.f32.mrf.mxu0
      %v2043 = vadd.f32 %v1994, %v2042
      %v2044 = vpop.f32.mrf.mxu0
      %v2045 = vadd.f32 %v1996, %v2044
      %2046 = vmatmul.bf16.gmra.mxu0 %v1685
      %v2047 = vpop.f32.mrf.mxu0
      %v2048 = vadd.f32 %v1999, %v2047
      %v2049 = vpop.f32.mrf.mxu0
      %v2050 = vadd.f32 %v2001, %v2049
      %2051 = vmatmul.bf16.gmra.mxu0 %v1689
      %v2052 = vpop.f32.mrf.mxu0
      %v2053 = vadd.f32 %v2004, %v2052
      %v2054 = vpop.f32.mrf.mxu0
      %v2055 = vadd.f32 %v2006, %v2054
      %2056 = vmatmul.bf16.gmra.mxu0 %v1693
      %v2057 = vpop.f32.mrf.mxu0
      %v2058 = vadd.f32 %v2009, %v2057
      %v2059 = vpop.f32.mrf.mxu0
      %v2060 = vadd.f32 %v2011, %v2059
      %2061 = vmatmul.bf16.gmra.mxu0 %v1697
      %v2062 = vpop.f32.mrf.mxu0
      %v2063 = vadd.f32 %v2014, %v2062
      %v2064 = vpop.f32.mrf.mxu0
      %v2065 = vadd.f32 %v2016, %v2064
      %2066 = vmatmul.bf16.gmra.mxu0 %v1701
      %v2067 = vpop.f32.mrf.mxu0
      %v2068 = vadd.f32 %v2019, %v2067
      %v2069 = vpop.f32.mrf.mxu0
      %v2070 = vadd.f32 %v2021, %v2069
      %2071 = vmatmul.bf16.gmra.mxu0 %v1705
      %v2072 = vpop.f32.mrf.mxu0
      %v2073 = vadd.f32 %v2024, %v2072
      %v2074 = vpop.f32.mrf.mxu0
      %v2075 = vadd.f32 %v2026, %v2074
      %2076 = vmatmul.bf16.gmra.mxu0 %v1709
      %v2077 = vpop.f32.mrf.mxu0
      %v2078 = vadd.f32 %v2029, %v2077
      %v2079 = vpop.f32.mrf.mxu0
      %v2080 = vadd.f32 %v2031, %v2079
      %2081 = vdwg.mxu0
      %2082 = vmatpush.bf16.msra.mxu0 %v1902
      %2083 = vmatpush.bf16.msra.mxu0 %v1901
      %2084 = vmatpush.bf16.msra.mxu0 %v1900
      %2085 = vmatpush.bf16.msra.mxu0 %v1899
      %2086 = vmatpush.bf16.msra.mxu0 %v1898
      %2087 = vmatpush.bf16.msra.mxu0 %v1897
      %2088 = vmatpush.bf16.msra.mxu0 %v1896
      %2089 = vmatpush.bf16.msra.mxu0 %v1895
      %2090 = vmatmul.bf16.gmra.mxu0 %v1682
      %v2091 = vpop.f32.mrf.mxu0
      %v2092 = vadd.f32 %v2043, %v2091
      %v2093 = vpop.f32.mrf.mxu0
      %v2094 = vadd.f32 %v2045, %v2093
      %2095 = vmatmul.bf16.gmra.mxu0 %v1686
      %v2096 = vpop.f32.mrf.mxu0
      %v2097 = vadd.f32 %v2048, %v2096
      %v2098 = vpop.f32.mrf.mxu0
      %v2099 = vadd.f32 %v2050, %v2098
      %2100 = vmatmul.bf16.gmra.mxu0 %v1690
      %v2101 = vpop.f32.mrf.mxu0
      %v2102 = vadd.f32 %v2053, %v2101
      %v2103 = vpop.f32.mrf.mxu0
      %v2104 = vadd.f32 %v2055, %v2103
      %2105 = vmatmul.bf16.gmra.mxu0 %v1694
      %v2106 = vpop.f32.mrf.mxu0
      %v2107 = vadd.f32 %v2058, %v2106
      %v2108 = vpop.f32.mrf.mxu0
      %v2109 = vadd.f32 %v2060, %v2108
      %2110 = vmatmul.bf16.gmra.mxu0 %v1698
      %v2111 = vpop.f32.mrf.mxu0
      %v2112 = vadd.f32 %v2063, %v2111
      %v2113 = vpop.f32.mrf.mxu0
      %v2114 = vadd.f32 %v2065, %v2113
      %2115 = vmatmul.bf16.gmra.mxu0 %v1702
      %v2116 = vpop.f32.mrf.mxu0
      %v2117 = vadd.f32 %v2068, %v2116
      %v2118 = vpop.f32.mrf.mxu0
      %v2119 = vadd.f32 %v2070, %v2118
      %2120 = vmatmul.bf16.gmra.mxu0 %v1706
      %v2121 = vpop.f32.mrf.mxu0
      %v2122 = vadd.f32 %v2073, %v2121
      %v2123 = vpop.f32.mrf.mxu0
      %v2124 = vadd.f32 %v2075, %v2123
      %2125 = vmatmul.bf16.gmra.mxu0 %v1710
      %v2126 = vpop.f32.mrf.mxu0
      %v2127 = vadd.f32 %v2078, %v2126
      %v2128 = vpop.f32.mrf.mxu0
      %v2129 = vadd.f32 %v2080, %v2128
      %2130 = vdwg.mxu0
      %v2163 = vunpack.c.l.b16 %v1519
      %v2164 = vunpack.c.h.b16 %v1519
      %v2165 = vunpack.c.l.b16 %v1520
      %v2166 = vunpack.c.h.b16 %v1520
      %v2167 = vunpack.c.l.b16 %v1521
      %v2168 = vunpack.c.h.b16 %v1521
      %v2169 = vunpack.c.l.b16 %v1522
      %v2170 = vunpack.c.h.b16 %v1522
      %v2171 = vunpack.c.l.b16 %v1523
      %v2172 = vunpack.c.h.b16 %v1523
      %v2173 = vunpack.c.l.b16 %v1524
      %v2174 = vunpack.c.h.b16 %v1524
      %v2175 = vunpack.c.l.b16 %v1525
      %v2176 = vunpack.c.h.b16 %v1525
      %v2177 = vunpack.c.l.b16 %v1526
      %v2178 = vunpack.c.h.b16 %v1526
      %v2179 = vunpack.c.l.b16 %v1527
      %v2180 = vunpack.c.h.b16 %v1527
      %v2181 = vunpack.c.l.b16 %v1528
      %v2182 = vunpack.c.h.b16 %v1528
      %v2183 = vunpack.c.l.b16 %v1529
      %v2184 = vunpack.c.h.b16 %v1529
      %v2185 = vunpack.c.l.b16 %v1530
      %v2186 = vunpack.c.h.b16 %v1530
      %v2187 = vunpack.c.l.b16 %v1531
      %v2188 = vunpack.c.h.b16 %v1531
      %v2189 = vunpack.c.l.b16 %v1532
      %v2190 = vunpack.c.h.b16 %v1532
      %v2191 = vunpack.c.l.b16 %v1533
      %v2192 = vunpack.c.h.b16 %v1533
      %v2193 = vunpack.c.l.b16 %v1534
      %v2194 = vunpack.c.h.b16 %v1534
      %v2195 = vunpack.c.l.b16 %v1535
      %v2196 = vunpack.c.h.b16 %v1535
      %v2197 = vunpack.c.l.b16 %v1536
      %v2198 = vunpack.c.h.b16 %v1536
      %v2199 = vunpack.c.l.b16 %v1537
      %v2200 = vunpack.c.h.b16 %v1537
      %v2201 = vunpack.c.l.b16 %v1538
      %v2202 = vunpack.c.h.b16 %v1538
      %v2203 = vunpack.c.l.b16 %v1539
      %v2204 = vunpack.c.h.b16 %v1539
      %v2205 = vunpack.c.l.b16 %v1540
      %v2206 = vunpack.c.h.b16 %v1540
      %v2207 = vunpack.c.l.b16 %v1541
      %v2208 = vunpack.c.h.b16 %v1541
      %v2209 = vunpack.c.l.b16 %v1542
      %v2210 = vunpack.c.h.b16 %v1542
      %v2211 = vunpack.c.l.b16 %v1543
      %v2212 = vunpack.c.h.b16 %v1543
      %v2213 = vunpack.c.l.b16 %v1544
      %v2214 = vunpack.c.h.b16 %v1544
      %v2215 = vunpack.c.l.b16 %v1545
      %v2216 = vunpack.c.h.b16 %v1545
      %v2217 = vunpack.c.l.b16 %v1546
      %v2218 = vunpack.c.h.b16 %v1546
      %v2219 = vunpack.c.l.b16 %v1547
      %v2220 = vunpack.c.h.b16 %v1547
      %v2221 = vunpack.c.l.b16 %v1548
      %v2222 = vunpack.c.h.b16 %v1548
      %v2223 = vunpack.c.l.b16 %v1549
      %v2224 = vunpack.c.h.b16 %v1549
      %v2225 = vunpack.c.l.b16 %v1550
      %v2226 = vunpack.c.h.b16 %v1550
      %v2227 = vpack.c.b16 %v2167, %v2163
      %v2228 = vpack.c.b16 %v2168, %v2164
      %v2229 = vpack.c.b16 %v2169, %v2165
      %v2230 = vpack.c.b16 %v2170, %v2166
      %v2231 = vpack.c.b16 %v2175, %v2171
      %v2232 = vpack.c.b16 %v2176, %v2172
      %v2233 = vpack.c.b16 %v2177, %v2173
      %v2234 = vpack.c.b16 %v2178, %v2174
      %v2235 = vpack.c.b16 %v2183, %v2179
      %v2236 = vpack.c.b16 %v2184, %v2180
      %v2237 = vpack.c.b16 %v2185, %v2181
      %v2238 = vpack.c.b16 %v2186, %v2182
      %v2239 = vpack.c.b16 %v2191, %v2187
      %v2240 = vpack.c.b16 %v2192, %v2188
      %v2241 = vpack.c.b16 %v2193, %v2189
      %v2242 = vpack.c.b16 %v2194, %v2190
      %v2243 = vpack.c.b16 %v2199, %v2195
      %v2244 = vpack.c.b16 %v2200, %v2196
      %v2245 = vpack.c.b16 %v2201, %v2197
      %v2246 = vpack.c.b16 %v2202, %v2198
      %v2247 = vpack.c.b16 %v2207, %v2203
      %v2248 = vpack.c.b16 %v2208, %v2204
      %v2249 = vpack.c.b16 %v2209, %v2205
      %v2250 = vpack.c.b16 %v2210, %v2206
      %v2251 = vpack.c.b16 %v2215, %v2211
      %v2252 = vpack.c.b16 %v2216, %v2212
      %v2253 = vpack.c.b16 %v2217, %v2213
      %v2254 = vpack.c.b16 %v2218, %v2214
      %v2255 = vpack.c.b16 %v2223, %v2219
      %v2256 = vpack.c.b16 %v2224, %v2220
      %v2257 = vpack.c.b16 %v2225, %v2221
      %v2258 = vpack.c.b16 %v2226, %v2222
      %2291 = vmatpush.bf16.msra.mxu0 %v1494
      %2292 = vmatpush.bf16.msra.mxu0 %v1493
      %2293 = vmatpush.bf16.msra.mxu0 %v1492
      %2294 = vmatpush.bf16.msra.mxu0 %v1491
      %2295 = vmatpush.bf16.msra.mxu0 %v1490
      %2296 = vmatpush.bf16.msra.mxu0 %v1489
      %2297 = vmatpush.bf16.msra.mxu0 %v1488
      %2298 = vmatpush.bf16.msra.mxu0 %v1487
      %2299 = vmatmul.bf16.gmra.mxu0 %v2227
      %v2300 = vpop.f32.mrf.mxu0
      %v2301 = vadd.f32 %v2092, %v2300
      %v2302 = vpop.f32.mrf.mxu0
      %v2303 = vadd.f32 %v2094, %v2302
      %2304 = vmatmul.bf16.gmra.mxu0 %v2231
      %v2305 = vpop.f32.mrf.mxu0
      %v2306 = vadd.f32 %v2097, %v2305
      %v2307 = vpop.f32.mrf.mxu0
      %v2308 = vadd.f32 %v2099, %v2307
      %2309 = vmatmul.bf16.gmra.mxu0 %v2235
      %v2310 = vpop.f32.mrf.mxu0
      %v2311 = vadd.f32 %v2102, %v2310
      %v2312 = vpop.f32.mrf.mxu0
      %v2313 = vadd.f32 %v2104, %v2312
      %2314 = vmatmul.bf16.gmra.mxu0 %v2239
      %v2315 = vpop.f32.mrf.mxu0
      %v2316 = vadd.f32 %v2107, %v2315
      %v2317 = vpop.f32.mrf.mxu0
      %v2318 = vadd.f32 %v2109, %v2317
      %2319 = vmatmul.bf16.gmra.mxu0 %v2243
      %v2320 = vpop.f32.mrf.mxu0
      %v2321 = vadd.f32 %v2112, %v2320
      %v2322 = vpop.f32.mrf.mxu0
      %v2323 = vadd.f32 %v2114, %v2322
      %2324 = vmatmul.bf16.gmra.mxu0 %v2247
      %v2325 = vpop.f32.mrf.mxu0
      %v2326 = vadd.f32 %v2117, %v2325
      %v2327 = vpop.f32.mrf.mxu0
      %v2328 = vadd.f32 %v2119, %v2327
      %2329 = vmatmul.bf16.gmra.mxu0 %v2251
      %v2330 = vpop.f32.mrf.mxu0
      %v2331 = vadd.f32 %v2122, %v2330
      %v2332 = vpop.f32.mrf.mxu0
      %v2333 = vadd.f32 %v2124, %v2332
      %2334 = vmatmul.bf16.gmra.mxu0 %v2255
      %v2335 = vpop.f32.mrf.mxu0
      %v2336 = vadd.f32 %v2127, %v2335
      %v2337 = vpop.f32.mrf.mxu0
      %v2338 = vadd.f32 %v2129, %v2337
      %2339 = vdwg.mxu0
      %2340 = vmatpush.bf16.msra.mxu0 %v1502
      %2341 = vmatpush.bf16.msra.mxu0 %v1501
      %2342 = vmatpush.bf16.msra.mxu0 %v1500
      %2343 = vmatpush.bf16.msra.mxu0 %v1499
      %2344 = vmatpush.bf16.msra.mxu0 %v1498
      %2345 = vmatpush.bf16.msra.mxu0 %v1497
      %2346 = vmatpush.bf16.msra.mxu0 %v1496
      %2347 = vmatpush.bf16.msra.mxu0 %v1495
      %2348 = vmatmul.bf16.gmra.mxu0 %v2228
      %v2349 = vpop.f32.mrf.mxu0
      %v2350 = vadd.f32 %v2301, %v2349
      %v2351 = vpop.f32.mrf.mxu0
      %v2352 = vadd.f32 %v2303, %v2351
      %2353 = vmatmul.bf16.gmra.mxu0 %v2232
      %v2354 = vpop.f32.mrf.mxu0
      %v2355 = vadd.f32 %v2306, %v2354
      %v2356 = vpop.f32.mrf.mxu0
      %v2357 = vadd.f32 %v2308, %v2356
      %2358 = vmatmul.bf16.gmra.mxu0 %v2236
      %v2359 = vpop.f32.mrf.mxu0
      %v2360 = vadd.f32 %v2311, %v2359
      %v2361 = vpop.f32.mrf.mxu0
      %v2362 = vadd.f32 %v2313, %v2361
      %2363 = vmatmul.bf16.gmra.mxu0 %v2240
      %v2364 = vpop.f32.mrf.mxu0
      %v2365 = vadd.f32 %v2316, %v2364
      %v2366 = vpop.f32.mrf.mxu0
      %v2367 = vadd.f32 %v2318, %v2366
      %2368 = vmatmul.bf16.gmra.mxu0 %v2244
      %v2369 = vpop.f32.mrf.mxu0
      %v2370 = vadd.f32 %v2321, %v2369
      %v2371 = vpop.f32.mrf.mxu0
      %v2372 = vadd.f32 %v2323, %v2371
      %2373 = vmatmul.bf16.gmra.mxu0 %v2248
      %v2374 = vpop.f32.mrf.mxu0
      %v2375 = vadd.f32 %v2326, %v2374
      %v2376 = vpop.f32.mrf.mxu0
      %v2377 = vadd.f32 %v2328, %v2376
      %2378 = vmatmul.bf16.gmra.mxu0 %v2252
      %v2379 = vpop.f32.mrf.mxu0
      %v2380 = vadd.f32 %v2331, %v2379
      %v2381 = vpop.f32.mrf.mxu0
      %v2382 = vadd.f32 %v2333, %v2381
      %2383 = vmatmul.bf16.gmra.mxu0 %v2256
      %v2384 = vpop.f32.mrf.mxu0
      %v2385 = vadd.f32 %v2336, %v2384
      %v2386 = vpop.f32.mrf.mxu0
      %v2387 = vadd.f32 %v2338, %v2386
      %2388 = vdwg.mxu0
      %2389 = vmatpush.bf16.msra.mxu0 %v1510
      %2390 = vmatpush.bf16.msra.mxu0 %v1509
      %2391 = vmatpush.bf16.msra.mxu0 %v1508
      %2392 = vmatpush.bf16.msra.mxu0 %v1507
      %2393 = vmatpush.bf16.msra.mxu0 %v1506
      %2394 = vmatpush.bf16.msra.mxu0 %v1505
      %2395 = vmatpush.bf16.msra.mxu0 %v1504
      %2396 = vmatpush.bf16.msra.mxu0 %v1503
      %2397 = vmatmul.bf16.gmra.mxu0 %v2229
      %v2398 = vpop.f32.mrf.mxu0
      %v2399 = vadd.f32 %v2350, %v2398
      %v2400 = vpop.f32.mrf.mxu0
      %v2401 = vadd.f32 %v2352, %v2400
      %2402 = vmatmul.bf16.gmra.mxu0 %v2233
      %v2403 = vpop.f32.mrf.mxu0
      %v2404 = vadd.f32 %v2355, %v2403
      %v2405 = vpop.f32.mrf.mxu0
      %v2406 = vadd.f32 %v2357, %v2405
      %2407 = vmatmul.bf16.gmra.mxu0 %v2237
      %v2408 = vpop.f32.mrf.mxu0
      %v2409 = vadd.f32 %v2360, %v2408
      %v2410 = vpop.f32.mrf.mxu0
      %v2411 = vadd.f32 %v2362, %v2410
      %2412 = vmatmul.bf16.gmra.mxu0 %v2241
      %v2413 = vpop.f32.mrf.mxu0
      %v2414 = vadd.f32 %v2365, %v2413
      %v2415 = vpop.f32.mrf.mxu0
      %v2416 = vadd.f32 %v2367, %v2415
      %2417 = vmatmul.bf16.gmra.mxu0 %v2245
      %v2418 = vpop.f32.mrf.mxu0
      %v2419 = vadd.f32 %v2370, %v2418
      %v2420 = vpop.f32.mrf.mxu0
      %v2421 = vadd.f32 %v2372, %v2420
      %2422 = vmatmul.bf16.gmra.mxu0 %v2249
      %v2423 = vpop.f32.mrf.mxu0
      %v2424 = vadd.f32 %v2375, %v2423
      %v2425 = vpop.f32.mrf.mxu0
      %v2426 = vadd.f32 %v2377, %v2425
      %2427 = vmatmul.bf16.gmra.mxu0 %v2253
      %v2428 = vpop.f32.mrf.mxu0
      %v2429 = vadd.f32 %v2380, %v2428
      %v2430 = vpop.f32.mrf.mxu0
      %v2431 = vadd.f32 %v2382, %v2430
      %2432 = vmatmul.bf16.gmra.mxu0 %v2257
      %v2433 = vpop.f32.mrf.mxu0
      %v2434 = vadd.f32 %v2385, %v2433
      %v2435 = vpop.f32.mrf.mxu0
      %v2436 = vadd.f32 %v2387, %v2435
      %2437 = vdwg.mxu0
      %2438 = vmatpush.bf16.msra.mxu0 %v1518
      %2439 = vmatpush.bf16.msra.mxu0 %v1517
      %2440 = vmatpush.bf16.msra.mxu0 %v1516
      %2441 = vmatpush.bf16.msra.mxu0 %v1515
      %2442 = vmatpush.bf16.msra.mxu0 %v1514
      %2443 = vmatpush.bf16.msra.mxu0 %v1513
      %2444 = vmatpush.bf16.msra.mxu0 %v1512
      %2445 = vmatpush.bf16.msra.mxu0 %v1511
      %2446 = vmatmul.bf16.gmra.mxu0 %v2230
      %v2447 = vpop.f32.mrf.mxu0
      %v2448 = vadd.f32 %v2399, %v2447
      %v2449 = vpop.f32.mrf.mxu0
      %v2450 = vadd.f32 %v2401, %v2449
      %2451 = vmatmul.bf16.gmra.mxu0 %v2234
      %v2452 = vpop.f32.mrf.mxu0
      %v2453 = vadd.f32 %v2404, %v2452
      %v2454 = vpop.f32.mrf.mxu0
      %v2455 = vadd.f32 %v2406, %v2454
      %2456 = vmatmul.bf16.gmra.mxu0 %v2238
      %v2457 = vpop.f32.mrf.mxu0
      %v2458 = vadd.f32 %v2409, %v2457
      %v2459 = vpop.f32.mrf.mxu0
      %v2460 = vadd.f32 %v2411, %v2459
      %2461 = vmatmul.bf16.gmra.mxu0 %v2242
      %v2462 = vpop.f32.mrf.mxu0
      %v2463 = vadd.f32 %v2414, %v2462
      %v2464 = vpop.f32.mrf.mxu0
      %v2465 = vadd.f32 %v2416, %v2464
      %2466 = vmatmul.bf16.gmra.mxu0 %v2246
      %v2467 = vpop.f32.mrf.mxu0
      %v2468 = vadd.f32 %v2419, %v2467
      %v2469 = vpop.f32.mrf.mxu0
      %v2470 = vadd.f32 %v2421, %v2469
      %2471 = vmatmul.bf16.gmra.mxu0 %v2250
      %v2472 = vpop.f32.mrf.mxu0
      %v2473 = vadd.f32 %v2424, %v2472
      %v2474 = vpop.f32.mrf.mxu0
      %v2475 = vadd.f32 %v2426, %v2474
      %2476 = vmatmul.bf16.gmra.mxu0 %v2254
      %v2477 = vpop.f32.mrf.mxu0
      %v2478 = vadd.f32 %v2429, %v2477
      %v2479 = vpop.f32.mrf.mxu0
      %v2480 = vadd.f32 %v2431, %v2479
      %2481 = vmatmul.bf16.gmra.mxu0 %v2258
      %v2482 = vpop.f32.mrf.mxu0
      %v2483 = vadd.f32 %v2434, %v2482
      %v2484 = vpop.f32.mrf.mxu0
      %v2485 = vadd.f32 %v2436, %v2484
      %2486 = vdwg.mxu0
      %v2487 = vld [vmem:[%s12] sm:$0xff]
      %v2488 = vld [vmem:[%s12 + $0x8] sm:$0xff]
      %v2489 = vld [vmem:[%s12 + $0x10] sm:$0xff]
      %v2490 = vld [vmem:[%s12 + $0x18] sm:$0xff]
      %v2491 = vld [vmem:[%s12 + $0x20] sm:$0xff]
      %v2492 = vld [vmem:[%s12 + $0x28] sm:$0xff]
      %v2493 = vld [vmem:[%s12 + $0x30] sm:$0xff]
      %v2494 = vld [vmem:[%s12 + $0x38] sm:$0xff]
      %v2495 = vld [vmem:[%s12 + $0x40] sm:$0xff]
      %v2496 = vld [vmem:[%s12 + $0x48] sm:$0xff]
      %v2497 = vld [vmem:[%s12 + $0x50] sm:$0xff]
      %v2498 = vld [vmem:[%s12 + $0x58] sm:$0xff]
      %v2499 = vld [vmem:[%s12 + $0x60] sm:$0xff]
      %v2500 = vld [vmem:[%s12 + $0x68] sm:$0xff]
      %v2501 = vld [vmem:[%s12 + $0x70] sm:$0xff]
      %v2502 = vld [vmem:[%s12 + $0x78] sm:$0xff]
      %2504 = vset.pattern.permute.xlu0 0
      %2505 = vperm.xlu0 %2504, %v2487
      %v2506 = vpop.permute.xlu0 %2505
      %2509 = vset.pattern.permute.xlu0 0
      %2510 = vperm.xlu0 %2509, %v2488
      %v2511 = vpop.permute.xlu0 %2510
      %2514 = vset.pattern.permute.xlu0 0
      %2515 = vperm.xlu0 %2514, %v2489
      %v2516 = vpop.permute.xlu0 %2515
      %2519 = vset.pattern.permute.xlu0 0
      %2520 = vperm.xlu0 %2519, %v2490
      %v2521 = vpop.permute.xlu0 %2520
      %2524 = vset.pattern.permute.xlu0 0
      %2525 = vperm.xlu0 %2524, %v2491
      %v2526 = vpop.permute.xlu0 %2525
      %2529 = vset.pattern.permute.xlu0 0
      %2530 = vperm.xlu0 %2529, %v2492
      %v2531 = vpop.permute.xlu0 %2530
      %2534 = vset.pattern.permute.xlu0 0
      %2535 = vperm.xlu0 %2534, %v2493
      %v2536 = vpop.permute.xlu0 %2535
      %2539 = vset.pattern.permute.xlu0 0
      %2540 = vperm.xlu0 %2539, %v2494
      %v2541 = vpop.permute.xlu0 %2540
      %2544 = vset.pattern.permute.xlu0 0
      %2545 = vperm.xlu0 %2544, %v2495
      %v2546 = vpop.permute.xlu0 %2545
      %2549 = vset.pattern.permute.xlu0 0
      %2550 = vperm.xlu0 %2549, %v2496
      %v2551 = vpop.permute.xlu0 %2550
      %2554 = vset.pattern.permute.xlu0 0
      %2555 = vperm.xlu0 %2554, %v2497
      %v2556 = vpop.permute.xlu0 %2555
      %2559 = vset.pattern.permute.xlu0 0
      %2560 = vperm.xlu0 %2559, %v2498
      %v2561 = vpop.permute.xlu0 %2560
      %2564 = vset.pattern.permute.xlu0 0
      %2565 = vperm.xlu0 %2564, %v2499
      %v2566 = vpop.permute.xlu0 %2565
      %2569 = vset.pattern.permute.xlu0 0
      %2570 = vperm.xlu0 %2569, %v2500
      %v2571 = vpop.permute.xlu0 %2570
      %2574 = vset.pattern.permute.xlu0 0
      %2575 = vperm.xlu0 %2574, %v2501
      %v2576 = vpop.permute.xlu0 %2575
      %2579 = vset.pattern.permute.xlu0 0
      %2580 = vperm.xlu0 %2579, %v2502
      %v2581 = vpop.permute.xlu0 %2580
      %v2583 = vadd.f32 %v2448, %v2506
      %v2584 = vadd.f32 %v2450, %v2511
      %v2585 = vadd.f32 %v2453, %v2516
      %v2586 = vadd.f32 %v2455, %v2521
      %v2587 = vadd.f32 %v2458, %v2526
      %v2588 = vadd.f32 %v2460, %v2531
      %v2589 = vadd.f32 %v2463, %v2536
      %v2590 = vadd.f32 %v2465, %v2541
      %v2591 = vadd.f32 %v2468, %v2546
      %v2592 = vadd.f32 %v2470, %v2551
      %v2593 = vadd.f32 %v2473, %v2556
      %v2594 = vadd.f32 %v2475, %v2561
      %v2595 = vadd.f32 %v2478, %v2566
      %v2596 = vadd.f32 %v2480, %v2571
      %v2597 = vadd.f32 %v2483, %v2576
      %v2598 = vadd.f32 %v2485, %v2581
      %v2599 = vmax.f32 %v2583, 0.0
      %v2600 = vmax.f32 %v2584, 0.0
      %v2601 = vmax.f32 %v2585, 0.0
      %v2602 = vmax.f32 %v2586, 0.0
      %v2603 = vmax.f32 %v2587, 0.0
      %v2604 = vmax.f32 %v2588, 0.0
      %v2605 = vmax.f32 %v2589, 0.0
      %v2606 = vmax.f32 %v2590, 0.0
      %v2607 = vmax.f32 %v2591, 0.0
      %v2608 = vmax.f32 %v2592, 0.0
      %v2609 = vmax.f32 %v2593, 0.0
      %v2610 = vmax.f32 %v2594, 0.0
      %v2611 = vmax.f32 %v2595, 0.0
      %v2612 = vmax.f32 %v2596, 0.0
      %v2613 = vmax.f32 %v2597, 0.0
      %v2614 = vmax.f32 %v2598, 0.0
      %v2615 = vpack.c.bf16 %v2600, %v2599
      %v2616 = vpack.c.bf16 %v2602, %v2601
      %v2617 = vpack.c.bf16 %v2604, %v2603
      %v2618 = vpack.c.bf16 %v2606, %v2605
      %v2619 = vpack.c.bf16 %v2608, %v2607
      %v2620 = vpack.c.bf16 %v2610, %v2609
      %v2621 = vpack.c.bf16 %v2612, %v2611
      %v2622 = vpack.c.bf16 %v2614, %v2613
      %v2623 = vld [vmem:[%s7] sm:$0xf]
      %v2624 = vld [vmem:[%s7 + $0x4] sm:$0xf]
      %v2627 = vunpack.c.l.b16 %v2623
      %v2628 = vunpack.c.l.b16 %v2624
      %v2629 = vpack.c.b16 %v2628, %v2627
      %vm2631 = vcmask 130048
      %v2633 = vsel %vm2631, %v2615, 0
      %v2636 = vsel %vm2631, %v2616, 0
      %v2639 = vsel %vm2631, %v2617, 0
      %v2642 = vsel %vm2631, %v2618, 0
      %v2645 = vsel %vm2631, %v2619, 0
      %v2648 = vsel %vm2631, %v2620, 0
      %v2651 = vsel %vm2631, %v2621, 0
      %v2654 = vsel %vm2631, %v2622, 0
      %2656 = vmatpush.bf16.msra.mxu0 0
      %2657 = vmatpush.bf16.msra.mxu0 0
      %2658 = vmatpush.bf16.msra.mxu0 0
      %2659 = vmatpush.bf16.msra.mxu0 0
      %2660 = vmatpush.bf16.msra.mxu0 0
      %2661 = vmatpush.bf16.msra.mxu0 0
      %2662 = vmatpush.bf16.msra.mxu0 0
      %2663 = vmatpush.bf16.msra.mxu0 %v2629
      %2664 = vmatmul.bf16.gmra.mxu0 %v2633
      %v2665 = vpop.f32.mrf.mxu0
      %v2666 = vadd.f32 0.0, %v2665
      %v2667 = vpop.f32.mrf.mxu0
      %v2668 = vadd.f32 0.0, %v2667
      %2669 = vmatmul.bf16.gmra.mxu0 %v2636
      %v2670 = vpop.f32.mrf.mxu0
      %v2671 = vadd.f32 0.0, %v2670
      %v2672 = vpop.f32.mrf.mxu0
      %v2673 = vadd.f32 0.0, %v2672
      %2674 = vmatmul.bf16.gmra.mxu0 %v2639
      %v2675 = vpop.f32.mrf.mxu0
      %v2676 = vadd.f32 0.0, %v2675
      %v2677 = vpop.f32.mrf.mxu0
      %v2678 = vadd.f32 0.0, %v2677
      %2679 = vmatmul.bf16.gmra.mxu0 %v2642
      %v2680 = vpop.f32.mrf.mxu0
      %v2681 = vadd.f32 0.0, %v2680
      %v2682 = vpop.f32.mrf.mxu0
      %v2683 = vadd.f32 0.0, %v2682
      %2684 = vmatmul.bf16.gmra.mxu0 %v2645
      %v2685 = vpop.f32.mrf.mxu0
      %v2686 = vadd.f32 0.0, %v2685
      %v2687 = vpop.f32.mrf.mxu0
      %v2688 = vadd.f32 0.0, %v2687
      %2689 = vmatmul.bf16.gmra.mxu0 %v2648
      %v2690 = vpop.f32.mrf.mxu0
      %v2691 = vadd.f32 0.0, %v2690
      %v2692 = vpop.f32.mrf.mxu0
      %v2693 = vadd.f32 0.0, %v2692
      %2694 = vmatmul.bf16.gmra.mxu0 %v2651
      %v2695 = vpop.f32.mrf.mxu0
      %v2696 = vadd.f32 0.0, %v2695
      %v2697 = vpop.f32.mrf.mxu0
      %v2698 = vadd.f32 0.0, %v2697
      %2699 = vmatmul.bf16.gmra.mxu0 %v2654
      %v2700 = vpop.f32.mrf.mxu0
      %v2701 = vadd.f32 0.0, %v2700
      %v2702 = vpop.f32.mrf.mxu0
      %v2703 = vadd.f32 0.0, %v2702
      %2704 = vdwg.mxu0
      %v2705 = vpack.c.bf16 %v2668, %v2666
      %v2706 = vpack.c.bf16 %v2673, %v2671
      %v2707 = vpack.c.bf16 %v2678, %v2676
      %v2708 = vpack.c.bf16 %v2683, %v2681
      %v2709 = vpack.c.bf16 %v2688, %v2686
      %v2710 = vpack.c.bf16 %v2693, %v2691
      %v2711 = vpack.c.bf16 %v2698, %v2696
      %v2712 = vpack.c.bf16 %v2703, %v2701
      %v2713 = vld [vmem:[%s13] sm:$0xf]
      %v2714 = vld [vmem:[%s13 + $0x4] sm:$0xf]
      %v2715 = vld [vmem:[%s13 + $0x8] sm:$0xf]
      %v2716 = vld [vmem:[%s13 + $0xc] sm:$0xf]
      %v2717 = vld [vmem:[%s13 + $0x10] sm:$0xf]
      %v2718 = vld [vmem:[%s13 + $0x14] sm:$0xf]
      %v2719 = vld [vmem:[%s13 + $0x18] sm:$0xf]
      %v2720 = vld [vmem:[%s13 + $0x1c] sm:$0xf]
      %v2721 = vld [vmem:[%s13 + $0x20] sm:$0xf]
      %v2722 = vld [vmem:[%s13 + $0x24] sm:$0xf]
      %v2723 = vld [vmem:[%s13 + $0x28] sm:$0xf]
      %v2724 = vld [vmem:[%s13 + $0x2c] sm:$0xf]
      %v2725 = vld [vmem:[%s13 + $0x30] sm:$0xf]
      %v2726 = vld [vmem:[%s13 + $0x34] sm:$0xf]
      %v2727 = vld [vmem:[%s13 + $0x38] sm:$0xf]
      %v2728 = vld [vmem:[%s13 + $0x3c] sm:$0xf]
      %s2729 = scalar_lea.vmem %s7, 8
      %v2730 = vld [vmem:[%s2729] sm:$0xf]
      %v2731 = vld [vmem:[%s2729 + $0x4] sm:$0xf]
      %v2734 = vunpack.c.l.b16 %v2730
      %v2735 = vunpack.c.l.b16 %v2731
      %v2736 = vpack.c.b16 %v2735, %v2734
      %2738 = vmatpush.bf16.msra.mxu0 0
      %2739 = vmatpush.bf16.msra.mxu0 0
      %2740 = vmatpush.bf16.msra.mxu0 0
      %2741 = vmatpush.bf16.msra.mxu0 0
      %2742 = vmatpush.bf16.msra.mxu0 0
      %2743 = vmatpush.bf16.msra.mxu0 0
      %2744 = vmatpush.bf16.msra.mxu0 0
      %2745 = vmatpush.bf16.msra.mxu0 %v2736
      %2746 = vmatmul.bf16.gmra.mxu0 %v2633
      %v2747 = vpop.f32.mrf.mxu0
      %v2748 = vadd.f32 0.0, %v2747
      %v2749 = vpop.f32.mrf.mxu0
      %v2750 = vadd.f32 0.0, %v2749
      %2751 = vmatmul.bf16.gmra.mxu0 %v2636
      %v2752 = vpop.f32.mrf.mxu0
      %v2753 = vadd.f32 0.0, %v2752
      %v2754 = vpop.f32.mrf.mxu0
      %v2755 = vadd.f32 0.0, %v2754
      %2756 = vmatmul.bf16.gmra.mxu0 %v2639
      %v2757 = vpop.f32.mrf.mxu0
      %v2758 = vadd.f32 0.0, %v2757
      %v2759 = vpop.f32.mrf.mxu0
      %v2760 = vadd.f32 0.0, %v2759
      %2761 = vmatmul.bf16.gmra.mxu0 %v2642
      %v2762 = vpop.f32.mrf.mxu0
      %v2763 = vadd.f32 0.0, %v2762
      %v2764 = vpop.f32.mrf.mxu0
      %v2765 = vadd.f32 0.0, %v2764
      %2766 = vmatmul.bf16.gmra.mxu0 %v2645
      %v2767 = vpop.f32.mrf.mxu0
      %v2768 = vadd.f32 0.0, %v2767
      %v2769 = vpop.f32.mrf.mxu0
      %v2770 = vadd.f32 0.0, %v2769
      %2771 = vmatmul.bf16.gmra.mxu0 %v2648
      %v2772 = vpop.f32.mrf.mxu0
      %v2773 = vadd.f32 0.0, %v2772
      %v2774 = vpop.f32.mrf.mxu0
      %v2775 = vadd.f32 0.0, %v2774
      %2776 = vmatmul.bf16.gmra.mxu0 %v2651
      %v2777 = vpop.f32.mrf.mxu0
      %v2778 = vadd.f32 0.0, %v2777
      %v2779 = vpop.f32.mrf.mxu0
      %v2780 = vadd.f32 0.0, %v2779
      %2781 = vmatmul.bf16.gmra.mxu0 %v2654
      %v2782 = vpop.f32.mrf.mxu0
      %v2783 = vadd.f32 0.0, %v2782
      %v2784 = vpop.f32.mrf.mxu0
      %v2785 = vadd.f32 0.0, %v2784
      %2786 = vdwg.mxu0
      %v2787 = vpack.c.bf16 %v2750, %v2748
      %v2788 = vpack.c.bf16 %v2755, %v2753
      %v2789 = vpack.c.bf16 %v2760, %v2758
      %v2790 = vpack.c.bf16 %v2765, %v2763
      %v2791 = vpack.c.bf16 %v2770, %v2768
      %v2792 = vpack.c.bf16 %v2775, %v2773
      %v2793 = vpack.c.bf16 %v2780, %v2778
      %v2794 = vpack.c.bf16 %v2785, %v2783
      %s2795 = scalar_lea.vmem %s13, 64
      %v2796 = vld [vmem:[%s2795] sm:$0xf]
      %v2797 = vld [vmem:[%s2795 + $0x4] sm:$0xf]
      %v2798 = vld [vmem:[%s2795 + $0x8] sm:$0xf]
      %v2799 = vld [vmem:[%s2795 + $0xc] sm:$0xf]
      %v2800 = vld [vmem:[%s2795 + $0x10] sm:$0xf]
      %v2801 = vld [vmem:[%s2795 + $0x14] sm:$0xf]
      %v2802 = vld [vmem:[%s2795 + $0x18] sm:$0xf]
      %v2803 = vld [vmem:[%s2795 + $0x1c] sm:$0xf]
      %v2804 = vld [vmem:[%s2795 + $0x20] sm:$0xf]
      %v2805 = vld [vmem:[%s2795 + $0x24] sm:$0xf]
      %v2806 = vld [vmem:[%s2795 + $0x28] sm:$0xf]
      %v2807 = vld [vmem:[%s2795 + $0x2c] sm:$0xf]
      %v2808 = vld [vmem:[%s2795 + $0x30] sm:$0xf]
      %v2809 = vld [vmem:[%s2795 + $0x34] sm:$0xf]
      %v2810 = vld [vmem:[%s2795 + $0x38] sm:$0xf]
      %v2811 = vld [vmem:[%s2795 + $0x3c] sm:$0xf]
      %v2828 = vunpack.c.l.b16 %v2796
      %v2829 = vunpack.c.l.b16 %v2797
      %v2830 = vunpack.c.l.b16 %v2798
      %v2831 = vunpack.c.l.b16 %v2799
      %v2832 = vunpack.c.l.b16 %v2800
      %v2833 = vunpack.c.l.b16 %v2801
      %v2834 = vunpack.c.l.b16 %v2802
      %v2835 = vunpack.c.l.b16 %v2803
      %v2836 = vunpack.c.l.b16 %v2804
      %v2837 = vunpack.c.l.b16 %v2805
      %v2838 = vunpack.c.l.b16 %v2806
      %v2839 = vunpack.c.l.b16 %v2807
      %v2840 = vunpack.c.l.b16 %v2808
      %v2841 = vunpack.c.l.b16 %v2809
      %v2842 = vunpack.c.l.b16 %v2810
      %v2843 = vunpack.c.l.b16 %v2811
      %v2844 = vpack.c.b16 %v2829, %v2828
      %v2845 = vpack.c.b16 %v2831, %v2830
      %v2846 = vpack.c.b16 %v2833, %v2832
      %v2847 = vpack.c.b16 %v2835, %v2834
      %v2848 = vpack.c.b16 %v2837, %v2836
      %v2849 = vpack.c.b16 %v2839, %v2838
      %v2850 = vpack.c.b16 %v2841, %v2840
      %v2851 = vpack.c.b16 %v2843, %v2842
      %2860 = vmatpush.bf16.msra.mxu0 %v2794
      %2861 = vmatpush.bf16.msra.mxu0 %v2793
      %2862 = vmatpush.bf16.msra.mxu0 %v2792
      %2863 = vmatpush.bf16.msra.mxu0 %v2791
      %2864 = vmatpush.bf16.msra.mxu0 %v2790
      %2865 = vmatpush.bf16.msra.mxu0 %v2789
      %2866 = vmatpush.bf16.msra.mxu0 %v2788
      %2867 = vmatpush.bf16.msra.mxu0 %v2787
      %2868 = vmatmul.bf16.gmra.mxu0 %v2844
      %v2869 = vpop.f32.mrf.mxu0
      %v2870 = vadd.f32 0.0, %v2869
      %v2871 = vpop.f32.mrf.mxu0
      %v2872 = vadd.f32 0.0, %v2871
      %2873 = vmatmul.bf16.gmra.mxu0 %v2845
      %v2874 = vpop.f32.mrf.mxu0
      %v2875 = vadd.f32 0.0, %v2874
      %v2876 = vpop.f32.mrf.mxu0
      %v2877 = vadd.f32 0.0, %v2876
      %2878 = vmatmul.bf16.gmra.mxu0 %v2846
      %v2879 = vpop.f32.mrf.mxu0
      %v2880 = vadd.f32 0.0, %v2879
      %v2881 = vpop.f32.mrf.mxu0
      %v2882 = vadd.f32 0.0, %v2881
      %2883 = vmatmul.bf16.gmra.mxu0 %v2847
      %v2884 = vpop.f32.mrf.mxu0
      %v2885 = vadd.f32 0.0, %v2884
      %v2886 = vpop.f32.mrf.mxu0
      %v2887 = vadd.f32 0.0, %v2886
      %2888 = vmatmul.bf16.gmra.mxu0 %v2848
      %v2889 = vpop.f32.mrf.mxu0
      %v2890 = vadd.f32 0.0, %v2889
      %v2891 = vpop.f32.mrf.mxu0
      %v2892 = vadd.f32 0.0, %v2891
      %2893 = vmatmul.bf16.gmra.mxu0 %v2849
      %v2894 = vpop.f32.mrf.mxu0
      %v2895 = vadd.f32 0.0, %v2894
      %v2896 = vpop.f32.mrf.mxu0
      %v2897 = vadd.f32 0.0, %v2896
      %2898 = vmatmul.bf16.gmra.mxu0 %v2850
      %v2899 = vpop.f32.mrf.mxu0
      %v2900 = vadd.f32 0.0, %v2899
      %v2901 = vpop.f32.mrf.mxu0
      %v2902 = vadd.f32 0.0, %v2901
      %2903 = vmatmul.bf16.gmra.mxu0 %v2851
      %v2904 = vpop.f32.mrf.mxu0
      %v2905 = vadd.f32 0.0, %v2904
      %v2906 = vpop.f32.mrf.mxu0
      %v2907 = vadd.f32 0.0, %v2906
      %2908 = vdwg.mxu0
      %v2925 = vunpack.c.l.b16 %v2713
      %v2926 = vunpack.c.l.b16 %v2714
      %v2927 = vunpack.c.l.b16 %v2715
      %v2928 = vunpack.c.l.b16 %v2716
      %v2929 = vunpack.c.l.b16 %v2717
      %v2930 = vunpack.c.l.b16 %v2718
      %v2931 = vunpack.c.l.b16 %v2719
      %v2932 = vunpack.c.l.b16 %v2720
      %v2933 = vunpack.c.l.b16 %v2721
      %v2934 = vunpack.c.l.b16 %v2722
      %v2935 = vunpack.c.l.b16 %v2723
      %v2936 = vunpack.c.l.b16 %v2724
      %v2937 = vunpack.c.l.b16 %v2725
      %v2938 = vunpack.c.l.b16 %v2726
      %v2939 = vunpack.c.l.b16 %v2727
      %v2940 = vunpack.c.l.b16 %v2728
      %v2941 = vpack.c.b16 %v2926, %v2925
      %v2942 = vpack.c.b16 %v2928, %v2927
      %v2943 = vpack.c.b16 %v2930, %v2929
      %v2944 = vpack.c.b16 %v2932, %v2931
      %v2945 = vpack.c.b16 %v2934, %v2933
      %v2946 = vpack.c.b16 %v2936, %v2935
      %v2947 = vpack.c.b16 %v2938, %v2937
      %v2948 = vpack.c.b16 %v2940, %v2939
      %2957 = vmatpush.bf16.msra.mxu0 %v2712
      %2958 = vmatpush.bf16.msra.mxu0 %v2711
      %2959 = vmatpush.bf16.msra.mxu0 %v2710
      %2960 = vmatpush.bf16.msra.mxu0 %v2709
      %2961 = vmatpush.bf16.msra.mxu0 %v2708
      %2962 = vmatpush.bf16.msra.mxu0 %v2707
      %2963 = vmatpush.bf16.msra.mxu0 %v2706
      %2964 = vmatpush.bf16.msra.mxu0 %v2705
      %2965 = vmatmul.bf16.gmra.mxu0 %v2941
      %v2966 = vpop.f32.mrf.mxu0
      %v2967 = vadd.f32 %v2870, %v2966
      %v2968 = vpop.f32.mrf.mxu0
      %v2969 = vadd.f32 %v2872, %v2968
      %2970 = vmatmul.bf16.gmra.mxu0 %v2942
      %v2971 = vpop.f32.mrf.mxu0
      %v2972 = vadd.f32 %v2875, %v2971
      %v2973 = vpop.f32.mrf.mxu0
      %v2974 = vadd.f32 %v2877, %v2973
      %2975 = vmatmul.bf16.gmra.mxu0 %v2943
      %v2976 = vpop.f32.mrf.mxu0
      %v2977 = vadd.f32 %v2880, %v2976
      %v2978 = vpop.f32.mrf.mxu0
      %v2979 = vadd.f32 %v2882, %v2978
      %2980 = vmatmul.bf16.gmra.mxu0 %v2944
      %v2981 = vpop.f32.mrf.mxu0
      %v2982 = vadd.f32 %v2885, %v2981
      %v2983 = vpop.f32.mrf.mxu0
      %v2984 = vadd.f32 %v2887, %v2983
      %2985 = vmatmul.bf16.gmra.mxu0 %v2945
      %v2986 = vpop.f32.mrf.mxu0
      %v2987 = vadd.f32 %v2890, %v2986
      %v2988 = vpop.f32.mrf.mxu0
      %v2989 = vadd.f32 %v2892, %v2988
      %2990 = vmatmul.bf16.gmra.mxu0 %v2946
      %v2991 = vpop.f32.mrf.mxu0
      %v2992 = vadd.f32 %v2895, %v2991
      %v2993 = vpop.f32.mrf.mxu0
      %v2994 = vadd.f32 %v2897, %v2993
      %2995 = vmatmul.bf16.gmra.mxu0 %v2947
      %v2996 = vpop.f32.mrf.mxu0
      %v2997 = vadd.f32 %v2900, %v2996
      %v2998 = vpop.f32.mrf.mxu0
      %v2999 = vadd.f32 %v2902, %v2998
      %3000 = vmatmul.bf16.gmra.mxu0 %v2948
      %v3001 = vpop.f32.mrf.mxu0
      %v3002 = vadd.f32 %v2905, %v3001
      %v3003 = vpop.f32.mrf.mxu0
      %v3004 = vadd.f32 %v2907, %v3003
      %3005 = vdwg.mxu0
      %s3006 = scalar_lea.vmem %s7, 16
      %v3007 = vld [vmem:[%s3006] sm:$0xf]
      %v3008 = vld [vmem:[%s3006 + $0x4] sm:$0xf]
      %v3011 = vunpack.c.l.b16 %v3007
      %v3012 = vunpack.c.l.b16 %v3008
      %v3013 = vpack.c.b16 %v3012, %v3011
      %3015 = vmatpush.bf16.msra.mxu0 0
      %3016 = vmatpush.bf16.msra.mxu0 0
      %3017 = vmatpush.bf16.msra.mxu0 0
      %3018 = vmatpush.bf16.msra.mxu0 0
      %3019 = vmatpush.bf16.msra.mxu0 0
      %3020 = vmatpush.bf16.msra.mxu0 0
      %3021 = vmatpush.bf16.msra.mxu0 0
      %3022 = vmatpush.bf16.msra.mxu0 %v3013
      %3023 = vmatmul.bf16.gmra.mxu0 %v2633
      %v3024 = vpop.f32.mrf.mxu0
      %v3025 = vadd.f32 0.0, %v3024
      %v3026 = vpop.f32.mrf.mxu0
      %v3027 = vadd.f32 0.0, %v3026
      %3028 = vmatmul.bf16.gmra.mxu0 %v2636
      %v3029 = vpop.f32.mrf.mxu0
      %v3030 = vadd.f32 0.0, %v3029
      %v3031 = vpop.f32.mrf.mxu0
      %v3032 = vadd.f32 0.0, %v3031
      %3033 = vmatmul.bf16.gmra.mxu0 %v2639
      %v3034 = vpop.f32.mrf.mxu0
      %v3035 = vadd.f32 0.0, %v3034
      %v3036 = vpop.f32.mrf.mxu0
      %v3037 = vadd.f32 0.0, %v3036
      %3038 = vmatmul.bf16.gmra.mxu0 %v2642
      %v3039 = vpop.f32.mrf.mxu0
      %v3040 = vadd.f32 0.0, %v3039
      %v3041 = vpop.f32.mrf.mxu0
      %v3042 = vadd.f32 0.0, %v3041
      %3043 = vmatmul.bf16.gmra.mxu0 %v2645
      %v3044 = vpop.f32.mrf.mxu0
      %v3045 = vadd.f32 0.0, %v3044
      %v3046 = vpop.f32.mrf.mxu0
      %v3047 = vadd.f32 0.0, %v3046
      %3048 = vmatmul.bf16.gmra.mxu0 %v2648
      %v3049 = vpop.f32.mrf.mxu0
      %v3050 = vadd.f32 0.0, %v3049
      %v3051 = vpop.f32.mrf.mxu0
      %v3052 = vadd.f32 0.0, %v3051
      %3053 = vmatmul.bf16.gmra.mxu0 %v2651
      %v3054 = vpop.f32.mrf.mxu0
      %v3055 = vadd.f32 0.0, %v3054
      %v3056 = vpop.f32.mrf.mxu0
      %v3057 = vadd.f32 0.0, %v3056
      %3058 = vmatmul.bf16.gmra.mxu0 %v2654
      %v3059 = vpop.f32.mrf.mxu0
      %v3060 = vadd.f32 0.0, %v3059
      %v3061 = vpop.f32.mrf.mxu0
      %v3062 = vadd.f32 0.0, %v3061
      %3063 = vdwg.mxu0
      %v3064 = vpack.c.bf16 %v3027, %v3025
      %v3065 = vpack.c.bf16 %v3032, %v3030
      %v3066 = vpack.c.bf16 %v3037, %v3035
      %v3067 = vpack.c.bf16 %v3042, %v3040
      %v3068 = vpack.c.bf16 %v3047, %v3045
      %v3069 = vpack.c.bf16 %v3052, %v3050
      %v3070 = vpack.c.bf16 %v3057, %v3055
      %v3071 = vpack.c.bf16 %v3062, %v3060
      %s3072 = scalar_lea.vmem %s13, 128
      %v3073 = vld [vmem:[%s3072] sm:$0xf]
      %v3074 = vld [vmem:[%s3072 + $0x4] sm:$0xf]
      %v3075 = vld [vmem:[%s3072 + $0x8] sm:$0xf]
      %v3076 = vld [vmem:[%s3072 + $0xc] sm:$0xf]
      %v3077 = vld [vmem:[%s3072 + $0x10] sm:$0xf]
      %v3078 = vld [vmem:[%s3072 + $0x14] sm:$0xf]
      %v3079 = vld [vmem:[%s3072 + $0x18] sm:$0xf]
      %v3080 = vld [vmem:[%s3072 + $0x1c] sm:$0xf]
      %v3081 = vld [vmem:[%s3072 + $0x20] sm:$0xf]
      %v3082 = vld [vmem:[%s3072 + $0x24] sm:$0xf]
      %v3083 = vld [vmem:[%s3072 + $0x28] sm:$0xf]
      %v3084 = vld [vmem:[%s3072 + $0x2c] sm:$0xf]
      %v3085 = vld [vmem:[%s3072 + $0x30] sm:$0xf]
      %v3086 = vld [vmem:[%s3072 + $0x34] sm:$0xf]
      %v3087 = vld [vmem:[%s3072 + $0x38] sm:$0xf]
      %v3088 = vld [vmem:[%s3072 + $0x3c] sm:$0xf]
      %v3105 = vunpack.c.l.b16 %v3073
      %v3106 = vunpack.c.l.b16 %v3074
      %v3107 = vunpack.c.l.b16 %v3075
      %v3108 = vunpack.c.l.b16 %v3076
      %v3109 = vunpack.c.l.b16 %v3077
      %v3110 = vunpack.c.l.b16 %v3078
      %v3111 = vunpack.c.l.b16 %v3079
      %v3112 = vunpack.c.l.b16 %v3080
      %v3113 = vunpack.c.l.b16 %v3081
      %v3114 = vunpack.c.l.b16 %v3082
      %v3115 = vunpack.c.l.b16 %v3083
      %v3116 = vunpack.c.l.b16 %v3084
      %v3117 = vunpack.c.l.b16 %v3085
      %v3118 = vunpack.c.l.b16 %v3086
      %v3119 = vunpack.c.l.b16 %v3087
      %v3120 = vunpack.c.l.b16 %v3088
      %v3121 = vpack.c.b16 %v3106, %v3105
      %v3122 = vpack.c.b16 %v3108, %v3107
      %v3123 = vpack.c.b16 %v3110, %v3109
      %v3124 = vpack.c.b16 %v3112, %v3111
      %v3125 = vpack.c.b16 %v3114, %v3113
      %v3126 = vpack.c.b16 %v3116, %v3115
      %v3127 = vpack.c.b16 %v3118, %v3117
      %v3128 = vpack.c.b16 %v3120, %v3119
      %3137 = vmatpush.bf16.msra.mxu0 %v3071
      %3138 = vmatpush.bf16.msra.mxu0 %v3070
      %3139 = vmatpush.bf16.msra.mxu0 %v3069
      %3140 = vmatpush.bf16.msra.mxu0 %v3068
      %3141 = vmatpush.bf16.msra.mxu0 %v3067
      %3142 = vmatpush.bf16.msra.mxu0 %v3066
      %3143 = vmatpush.bf16.msra.mxu0 %v3065
      %3144 = vmatpush.bf16.msra.mxu0 %v3064
      %3145 = vmatmul.bf16.gmra.mxu0 %v3121
      %v3146 = vpop.f32.mrf.mxu0
      %v3147 = vadd.f32 0.0, %v3146
      %v3148 = vpop.f32.mrf.mxu0
      %v3149 = vadd.f32 0.0, %v3148
      %3150 = vmatmul.bf16.gmra.mxu0 %v3122
      %v3151 = vpop.f32.mrf.mxu0
      %v3152 = vadd.f32 0.0, %v3151
      %v3153 = vpop.f32.mrf.mxu0
      %v3154 = vadd.f32 0.0, %v3153
      %3155 = vmatmul.bf16.gmra.mxu0 %v3123
      %v3156 = vpop.f32.mrf.mxu0
      %v3157 = vadd.f32 0.0, %v3156
      %v3158 = vpop.f32.mrf.mxu0
      %v3159 = vadd.f32 0.0, %v3158
      %3160 = vmatmul.bf16.gmra.mxu0 %v3124
      %v3161 = vpop.f32.mrf.mxu0
      %v3162 = vadd.f32 0.0, %v3161
      %v3163 = vpop.f32.mrf.mxu0
      %v3164 = vadd.f32 0.0, %v3163
      %3165 = vmatmul.bf16.gmra.mxu0 %v3125
      %v3166 = vpop.f32.mrf.mxu0
      %v3167 = vadd.f32 0.0, %v3166
      %v3168 = vpop.f32.mrf.mxu0
      %v3169 = vadd.f32 0.0, %v3168
      %3170 = vmatmul.bf16.gmra.mxu0 %v3126
      %v3171 = vpop.f32.mrf.mxu0
      %v3172 = vadd.f32 0.0, %v3171
      %v3173 = vpop.f32.mrf.mxu0
      %v3174 = vadd.f32 0.0, %v3173
      %3175 = vmatmul.bf16.gmra.mxu0 %v3127
      %v3176 = vpop.f32.mrf.mxu0
      %v3177 = vadd.f32 0.0, %v3176
      %v3178 = vpop.f32.mrf.mxu0
      %v3179 = vadd.f32 0.0, %v3178
      %3180 = vmatmul.bf16.gmra.mxu0 %v3128
      %v3181 = vpop.f32.mrf.mxu0
      %v3182 = vadd.f32 0.0, %v3181
      %v3183 = vpop.f32.mrf.mxu0
      %v3184 = vadd.f32 0.0, %v3183
      %3185 = vdwg.mxu0
      %v3186 = vadd.f32 %v2967, %v3147
      %v3187 = vadd.f32 %v2969, %v3149
      %v3188 = vadd.f32 %v2972, %v3152
      %v3189 = vadd.f32 %v2974, %v3154
      %v3190 = vadd.f32 %v2977, %v3157
      %v3191 = vadd.f32 %v2979, %v3159
      %v3192 = vadd.f32 %v2982, %v3162
      %v3193 = vadd.f32 %v2984, %v3164
      %v3194 = vadd.f32 %v2987, %v3167
      %v3195 = vadd.f32 %v2989, %v3169
      %v3196 = vadd.f32 %v2992, %v3172
      %v3197 = vadd.f32 %v2994, %v3174
      %v3198 = vadd.f32 %v2997, %v3177
      %v3199 = vadd.f32 %v2999, %v3179
      %v3200 = vadd.f32 %v3002, %v3182
      %v3201 = vadd.f32 %v3004, %v3184
      %s3202 = scalar_lea.vmem %s7, 24
      %v3203 = vld [vmem:[%s3202] sm:$0xf]
      %v3204 = vld [vmem:[%s3202 + $0x4] sm:$0xf]
      %v3207 = vunpack.c.l.b16 %v3203
      %v3208 = vunpack.c.l.b16 %v3204
      %v3209 = vpack.c.b16 %v3208, %v3207
      %3211 = vmatpush.bf16.msra.mxu0 0
      %3212 = vmatpush.bf16.msra.mxu0 0
      %3213 = vmatpush.bf16.msra.mxu0 0
      %3214 = vmatpush.bf16.msra.mxu0 0
      %3215 = vmatpush.bf16.msra.mxu0 0
      %3216 = vmatpush.bf16.msra.mxu0 0
      %3217 = vmatpush.bf16.msra.mxu0 0
      %3218 = vmatpush.bf16.msra.mxu0 %v3209
      %3219 = vmatmul.bf16.gmra.mxu0 %v2633
      %v3220 = vpop.f32.mrf.mxu0
      %v3221 = vadd.f32 0.0, %v3220
      %v3222 = vpop.f32.mrf.mxu0
      %v3223 = vadd.f32 0.0, %v3222
      %3224 = vmatmul.bf16.gmra.mxu0 %v2636
      %v3225 = vpop.f32.mrf.mxu0
      %v3226 = vadd.f32 0.0, %v3225
      %v3227 = vpop.f32.mrf.mxu0
      %v3228 = vadd.f32 0.0, %v3227
      %3229 = vmatmul.bf16.gmra.mxu0 %v2639
      %v3230 = vpop.f32.mrf.mxu0
      %v3231 = vadd.f32 0.0, %v3230
      %v3232 = vpop.f32.mrf.mxu0
      %v3233 = vadd.f32 0.0, %v3232
      %3234 = vmatmul.bf16.gmra.mxu0 %v2642
      %v3235 = vpop.f32.mrf.mxu0
      %v3236 = vadd.f32 0.0, %v3235
      %v3237 = vpop.f32.mrf.mxu0
      %v3238 = vadd.f32 0.0, %v3237
      %3239 = vmatmul.bf16.gmra.mxu0 %v2645
      %v3240 = vpop.f32.mrf.mxu0
      %v3241 = vadd.f32 0.0, %v3240
      %v3242 = vpop.f32.mrf.mxu0
      %v3243 = vadd.f32 0.0, %v3242
      %3244 = vmatmul.bf16.gmra.mxu0 %v2648
      %v3245 = vpop.f32.mrf.mxu0
      %v3246 = vadd.f32 0.0, %v3245
      %v3247 = vpop.f32.mrf.mxu0
      %v3248 = vadd.f32 0.0, %v3247
      %3249 = vmatmul.bf16.gmra.mxu0 %v2651
      %v3250 = vpop.f32.mrf.mxu0
      %v3251 = vadd.f32 0.0, %v3250
      %v3252 = vpop.f32.mrf.mxu0
      %v3253 = vadd.f32 0.0, %v3252
      %3254 = vmatmul.bf16.gmra.mxu0 %v2654
      %v3255 = vpop.f32.mrf.mxu0
      %v3256 = vadd.f32 0.0, %v3255
      %v3257 = vpop.f32.mrf.mxu0
      %v3258 = vadd.f32 0.0, %v3257
      %3259 = vdwg.mxu0
      %v3260 = vpack.c.bf16 %v3223, %v3221
      %v3261 = vpack.c.bf16 %v3228, %v3226
      %v3262 = vpack.c.bf16 %v3233, %v3231
      %v3263 = vpack.c.bf16 %v3238, %v3236
      %v3264 = vpack.c.bf16 %v3243, %v3241
      %v3265 = vpack.c.bf16 %v3248, %v3246
      %v3266 = vpack.c.bf16 %v3253, %v3251
      %v3267 = vpack.c.bf16 %v3258, %v3256
      %s3268 = scalar_lea.vmem %s13, 192
      %v3269 = vld [vmem:[%s3268] sm:$0xf]
      %v3270 = vld [vmem:[%s3268 + $0x4] sm:$0xf]
      %v3271 = vld [vmem:[%s3268 + $0x8] sm:$0xf]
      %v3272 = vld [vmem:[%s3268 + $0xc] sm:$0xf]
      %v3273 = vld [vmem:[%s3268 + $0x10] sm:$0xf]
      %v3274 = vld [vmem:[%s3268 + $0x14] sm:$0xf]
      %v3275 = vld [vmem:[%s3268 + $0x18] sm:$0xf]
      %v3276 = vld [vmem:[%s3268 + $0x1c] sm:$0xf]
      %v3277 = vld [vmem:[%s3268 + $0x20] sm:$0xf]
      %v3278 = vld [vmem:[%s3268 + $0x24] sm:$0xf]
      %v3279 = vld [vmem:[%s3268 + $0x28] sm:$0xf]
      %v3280 = vld [vmem:[%s3268 + $0x2c] sm:$0xf]
      %v3281 = vld [vmem:[%s3268 + $0x30] sm:$0xf]
      %v3282 = vld [vmem:[%s3268 + $0x34] sm:$0xf]
      %v3283 = vld [vmem:[%s3268 + $0x38] sm:$0xf]
      %v3284 = vld [vmem:[%s3268 + $0x3c] sm:$0xf]
      %v3301 = vunpack.c.l.b16 %v3269
      %v3302 = vunpack.c.l.b16 %v3270
      %v3303 = vunpack.c.l.b16 %v3271
      %v3304 = vunpack.c.l.b16 %v3272
      %v3305 = vunpack.c.l.b16 %v3273
      %v3306 = vunpack.c.l.b16 %v3274
      %v3307 = vunpack.c.l.b16 %v3275
      %v3308 = vunpack.c.l.b16 %v3276
      %v3309 = vunpack.c.l.b16 %v3277
      %v3310 = vunpack.c.l.b16 %v3278
      %v3311 = vunpack.c.l.b16 %v3279
      %v3312 = vunpack.c.l.b16 %v3280
      %v3313 = vunpack.c.l.b16 %v3281
      %v3314 = vunpack.c.l.b16 %v3282
      %v3315 = vunpack.c.l.b16 %v3283
      %v3316 = vunpack.c.l.b16 %v3284
      %v3317 = vpack.c.b16 %v3302, %v3301
      %v3318 = vpack.c.b16 %v3304, %v3303
      %v3319 = vpack.c.b16 %v3306, %v3305
      %v3320 = vpack.c.b16 %v3308, %v3307
      %v3321 = vpack.c.b16 %v3310, %v3309
      %v3322 = vpack.c.b16 %v3312, %v3311
      %v3323 = vpack.c.b16 %v3314, %v3313
      %v3324 = vpack.c.b16 %v3316, %v3315
      %3333 = vmatpush.bf16.msra.mxu0 %v3267
      %3334 = vmatpush.bf16.msra.mxu0 %v3266
      %3335 = vmatpush.bf16.msra.mxu0 %v3265
      %3336 = vmatpush.bf16.msra.mxu0 %v3264
      %3337 = vmatpush.bf16.msra.mxu0 %v3263
      %3338 = vmatpush.bf16.msra.mxu0 %v3262
      %3339 = vmatpush.bf16.msra.mxu0 %v3261
      %3340 = vmatpush.bf16.msra.mxu0 %v3260
      %3341 = vmatmul.bf16.gmra.mxu0 %v3317
      %v3342 = vpop.f32.mrf.mxu0
      %v3343 = vadd.f32 0.0, %v3342
      %v3344 = vpop.f32.mrf.mxu0
      %v3345 = vadd.f32 0.0, %v3344
      %3346 = vmatmul.bf16.gmra.mxu0 %v3318
      %v3347 = vpop.f32.mrf.mxu0
      %v3348 = vadd.f32 0.0, %v3347
      %v3349 = vpop.f32.mrf.mxu0
      %v3350 = vadd.f32 0.0, %v3349
      %3351 = vmatmul.bf16.gmra.mxu0 %v3319
      %v3352 = vpop.f32.mrf.mxu0
      %v3353 = vadd.f32 0.0, %v3352
      %v3354 = vpop.f32.mrf.mxu0
      %v3355 = vadd.f32 0.0, %v3354
      %3356 = vmatmul.bf16.gmra.mxu0 %v3320
      %v3357 = vpop.f32.mrf.mxu0
      %v3358 = vadd.f32 0.0, %v3357
      %v3359 = vpop.f32.mrf.mxu0
      %v3360 = vadd.f32 0.0, %v3359
      %3361 = vmatmul.bf16.gmra.mxu0 %v3321
      %v3362 = vpop.f32.mrf.mxu0
      %v3363 = vadd.f32 0.0, %v3362
      %v3364 = vpop.f32.mrf.mxu0
      %v3365 = vadd.f32 0.0, %v3364
      %3366 = vmatmul.bf16.gmra.mxu0 %v3322
      %v3367 = vpop.f32.mrf.mxu0
      %v3368 = vadd.f32 0.0, %v3367
      %v3369 = vpop.f32.mrf.mxu0
      %v3370 = vadd.f32 0.0, %v3369
      %3371 = vmatmul.bf16.gmra.mxu0 %v3323
      %v3372 = vpop.f32.mrf.mxu0
      %v3373 = vadd.f32 0.0, %v3372
      %v3374 = vpop.f32.mrf.mxu0
      %v3375 = vadd.f32 0.0, %v3374
      %3376 = vmatmul.bf16.gmra.mxu0 %v3324
      %v3377 = vpop.f32.mrf.mxu0
      %v3378 = vadd.f32 0.0, %v3377
      %v3379 = vpop.f32.mrf.mxu0
      %v3380 = vadd.f32 0.0, %v3379
      %3381 = vdwg.mxu0
      %v3382 = vadd.f32 %v3186, %v3343
      %v3383 = vadd.f32 %v3187, %v3345
      %v3384 = vadd.f32 %v3188, %v3348
      %v3385 = vadd.f32 %v3189, %v3350
      %v3386 = vadd.f32 %v3190, %v3353
      %v3387 = vadd.f32 %v3191, %v3355
      %v3388 = vadd.f32 %v3192, %v3358
      %v3389 = vadd.f32 %v3193, %v3360
      %v3390 = vadd.f32 %v3194, %v3363
      %v3391 = vadd.f32 %v3195, %v3365
      %v3392 = vadd.f32 %v3196, %v3368
      %v3393 = vadd.f32 %v3197, %v3370
      %v3394 = vadd.f32 %v3198, %v3373
      %v3395 = vadd.f32 %v3199, %v3375
      %v3396 = vadd.f32 %v3200, %v3378
      %v3397 = vadd.f32 %v3201, %v3380
      %s3398 = scalar_lea.vmem %s7, 32
      %v3399 = vld [vmem:[%s3398] sm:$0xf]
      %v3400 = vld [vmem:[%s3398 + $0x4] sm:$0xf]
      %v3403 = vunpack.c.l.b16 %v3399
      %v3404 = vunpack.c.l.b16 %v3400
      %v3405 = vpack.c.b16 %v3404, %v3403
      %3407 = vmatpush.bf16.msra.mxu0 0
      %3408 = vmatpush.bf16.msra.mxu0 0
      %3409 = vmatpush.bf16.msra.mxu0 0
      %3410 = vmatpush.bf16.msra.mxu0 0
      %3411 = vmatpush.bf16.msra.mxu0 0
      %3412 = vmatpush.bf16.msra.mxu0 0
      %3413 = vmatpush.bf16.msra.mxu0 0
      %3414 = vmatpush.bf16.msra.mxu0 %v3405
      %3415 = vmatmul.bf16.gmra.mxu0 %v2633
      %v3416 = vpop.f32.mrf.mxu0
      %v3417 = vadd.f32 0.0, %v3416
      %v3418 = vpop.f32.mrf.mxu0
      %v3419 = vadd.f32 0.0, %v3418
      %3420 = vmatmul.bf16.gmra.mxu0 %v2636
      %v3421 = vpop.f32.mrf.mxu0
      %v3422 = vadd.f32 0.0, %v3421
      %v3423 = vpop.f32.mrf.mxu0
      %v3424 = vadd.f32 0.0, %v3423
      %3425 = vmatmul.bf16.gmra.mxu0 %v2639
      %v3426 = vpop.f32.mrf.mxu0
      %v3427 = vadd.f32 0.0, %v3426
      %v3428 = vpop.f32.mrf.mxu0
      %v3429 = vadd.f32 0.0, %v3428
      %3430 = vmatmul.bf16.gmra.mxu0 %v2642
      %v3431 = vpop.f32.mrf.mxu0
      %v3432 = vadd.f32 0.0, %v3431
      %v3433 = vpop.f32.mrf.mxu0
      %v3434 = vadd.f32 0.0, %v3433
      %3435 = vmatmul.bf16.gmra.mxu0 %v2645
      %v3436 = vpop.f32.mrf.mxu0
      %v3437 = vadd.f32 0.0, %v3436
      %v3438 = vpop.f32.mrf.mxu0
      %v3439 = vadd.f32 0.0, %v3438
      %3440 = vmatmul.bf16.gmra.mxu0 %v2648
      %v3441 = vpop.f32.mrf.mxu0
      %v3442 = vadd.f32 0.0, %v3441
      %v3443 = vpop.f32.mrf.mxu0
      %v3444 = vadd.f32 0.0, %v3443
      %3445 = vmatmul.bf16.gmra.mxu0 %v2651
      %v3446 = vpop.f32.mrf.mxu0
      %v3447 = vadd.f32 0.0, %v3446
      %v3448 = vpop.f32.mrf.mxu0
      %v3449 = vadd.f32 0.0, %v3448
      %3450 = vmatmul.bf16.gmra.mxu0 %v2654
      %v3451 = vpop.f32.mrf.mxu0
      %v3452 = vadd.f32 0.0, %v3451
      %v3453 = vpop.f32.mrf.mxu0
      %v3454 = vadd.f32 0.0, %v3453
      %3455 = vdwg.mxu0
      %v3456 = vpack.c.bf16 %v3419, %v3417
      %v3457 = vpack.c.bf16 %v3424, %v3422
      %v3458 = vpack.c.bf16 %v3429, %v3427
      %v3459 = vpack.c.bf16 %v3434, %v3432
      %v3460 = vpack.c.bf16 %v3439, %v3437
      %v3461 = vpack.c.bf16 %v3444, %v3442
      %v3462 = vpack.c.bf16 %v3449, %v3447
      %v3463 = vpack.c.bf16 %v3454, %v3452
      %s3464 = scalar_lea.vmem %s13, 256
      %v3465 = vld [vmem:[%s3464] sm:$0xf]
      %v3466 = vld [vmem:[%s3464 + $0x4] sm:$0xf]
      %v3467 = vld [vmem:[%s3464 + $0x8] sm:$0xf]
      %v3468 = vld [vmem:[%s3464 + $0xc] sm:$0xf]
      %v3469 = vld [vmem:[%s3464 + $0x10] sm:$0xf]
      %v3470 = vld [vmem:[%s3464 + $0x14] sm:$0xf]
      %v3471 = vld [vmem:[%s3464 + $0x18] sm:$0xf]
      %v3472 = vld [vmem:[%s3464 + $0x1c] sm:$0xf]
      %v3473 = vld [vmem:[%s3464 + $0x20] sm:$0xf]
      %v3474 = vld [vmem:[%s3464 + $0x24] sm:$0xf]
      %v3475 = vld [vmem:[%s3464 + $0x28] sm:$0xf]
      %v3476 = vld [vmem:[%s3464 + $0x2c] sm:$0xf]
      %v3477 = vld [vmem:[%s3464 + $0x30] sm:$0xf]
      %v3478 = vld [vmem:[%s3464 + $0x34] sm:$0xf]
      %v3479 = vld [vmem:[%s3464 + $0x38] sm:$0xf]
      %v3480 = vld [vmem:[%s3464 + $0x3c] sm:$0xf]
      %v3497 = vunpack.c.l.b16 %v3465
      %v3498 = vunpack.c.l.b16 %v3466
      %v3499 = vunpack.c.l.b16 %v3467
      %v3500 = vunpack.c.l.b16 %v3468
      %v3501 = vunpack.c.l.b16 %v3469
      %v3502 = vunpack.c.l.b16 %v3470
      %v3503 = vunpack.c.l.b16 %v3471
      %v3504 = vunpack.c.l.b16 %v3472
      %v3505 = vunpack.c.l.b16 %v3473
      %v3506 = vunpack.c.l.b16 %v3474
      %v3507 = vunpack.c.l.b16 %v3475
      %v3508 = vunpack.c.l.b16 %v3476
      %v3509 = vunpack.c.l.b16 %v3477
      %v3510 = vunpack.c.l.b16 %v3478
      %v3511 = vunpack.c.l.b16 %v3479
      %v3512 = vunpack.c.l.b16 %v3480
      %v3513 = vpack.c.b16 %v3498, %v3497
      %v3514 = vpack.c.b16 %v3500, %v3499
      %v3515 = vpack.c.b16 %v3502, %v3501
      %v3516 = vpack.c.b16 %v3504, %v3503
      %v3517 = vpack.c.b16 %v3506, %v3505
      %v3518 = vpack.c.b16 %v3508, %v3507
      %v3519 = vpack.c.b16 %v3510, %v3509
      %v3520 = vpack.c.b16 %v3512, %v3511
      %3529 = vmatpush.bf16.msra.mxu0 %v3463
      %3530 = vmatpush.bf16.msra.mxu0 %v3462
      %3531 = vmatpush.bf16.msra.mxu0 %v3461
      %3532 = vmatpush.bf16.msra.mxu0 %v3460
      %3533 = vmatpush.bf16.msra.mxu0 %v3459
      %3534 = vmatpush.bf16.msra.mxu0 %v3458
      %3535 = vmatpush.bf16.msra.mxu0 %v3457
      %3536 = vmatpush.bf16.msra.mxu0 %v3456
      %3537 = vmatmul.bf16.gmra.mxu0 %v3513
      %v3538 = vpop.f32.mrf.mxu0
      %v3539 = vadd.f32 0.0, %v3538
      %v3540 = vpop.f32.mrf.mxu0
      %v3541 = vadd.f32 0.0, %v3540
      %3542 = vmatmul.bf16.gmra.mxu0 %v3514
      %v3543 = vpop.f32.mrf.mxu0
      %v3544 = vadd.f32 0.0, %v3543
      %v3545 = vpop.f32.mrf.mxu0
      %v3546 = vadd.f32 0.0, %v3545
      %3547 = vmatmul.bf16.gmra.mxu0 %v3515
      %v3548 = vpop.f32.mrf.mxu0
      %v3549 = vadd.f32 0.0, %v3548
      %v3550 = vpop.f32.mrf.mxu0
      %v3551 = vadd.f32 0.0, %v3550
      %3552 = vmatmul.bf16.gmra.mxu0 %v3516
      %v3553 = vpop.f32.mrf.mxu0
      %v3554 = vadd.f32 0.0, %v3553
      %v3555 = vpop.f32.mrf.mxu0
      %v3556 = vadd.f32 0.0, %v3555
      %3557 = vmatmul.bf16.gmra.mxu0 %v3517
      %v3558 = vpop.f32.mrf.mxu0
      %v3559 = vadd.f32 0.0, %v3558
      %v3560 = vpop.f32.mrf.mxu0
      %v3561 = vadd.f32 0.0, %v3560
      %3562 = vmatmul.bf16.gmra.mxu0 %v3518
      %v3563 = vpop.f32.mrf.mxu0
      %v3564 = vadd.f32 0.0, %v3563
      %v3565 = vpop.f32.mrf.mxu0
      %v3566 = vadd.f32 0.0, %v3565
      %3567 = vmatmul.bf16.gmra.mxu0 %v3519
      %v3568 = vpop.f32.mrf.mxu0
      %v3569 = vadd.f32 0.0, %v3568
      %v3570 = vpop.f32.mrf.mxu0
      %v3571 = vadd.f32 0.0, %v3570
      %3572 = vmatmul.bf16.gmra.mxu0 %v3520
      %v3573 = vpop.f32.mrf.mxu0
      %v3574 = vadd.f32 0.0, %v3573
      %v3575 = vpop.f32.mrf.mxu0
      %v3576 = vadd.f32 0.0, %v3575
      %3577 = vdwg.mxu0
      %v3578 = vadd.f32 %v3382, %v3539
      %v3579 = vadd.f32 %v3383, %v3541
      %v3580 = vadd.f32 %v3384, %v3544
      %v3581 = vadd.f32 %v3385, %v3546
      %v3582 = vadd.f32 %v3386, %v3549
      %v3583 = vadd.f32 %v3387, %v3551
      %v3584 = vadd.f32 %v3388, %v3554
      %v3585 = vadd.f32 %v3389, %v3556
      %v3586 = vadd.f32 %v3390, %v3559
      %v3587 = vadd.f32 %v3391, %v3561
      %v3588 = vadd.f32 %v3392, %v3564
      %v3589 = vadd.f32 %v3393, %v3566
      %v3590 = vadd.f32 %v3394, %v3569
      %v3591 = vadd.f32 %v3395, %v3571
      %v3592 = vadd.f32 %v3396, %v3574
      %v3593 = vadd.f32 %v3397, %v3576
      %s3594 = scalar_lea.vmem %s7, 40
      %v3595 = vld [vmem:[%s3594] sm:$0xf]
      %v3596 = vld [vmem:[%s3594 + $0x4] sm:$0xf]
      %v3599 = vunpack.c.l.b16 %v3595
      %v3600 = vunpack.c.l.b16 %v3596
      %v3601 = vpack.c.b16 %v3600, %v3599
      %3603 = vmatpush.bf16.msra.mxu0 0
      %3604 = vmatpush.bf16.msra.mxu0 0
      %3605 = vmatpush.bf16.msra.mxu0 0
      %3606 = vmatpush.bf16.msra.mxu0 0
      %3607 = vmatpush.bf16.msra.mxu0 0
      %3608 = vmatpush.bf16.msra.mxu0 0
      %3609 = vmatpush.bf16.msra.mxu0 0
      %3610 = vmatpush.bf16.msra.mxu0 %v3601
      %3611 = vmatmul.bf16.gmra.mxu0 %v2633
      %v3612 = vpop.f32.mrf.mxu0
      %v3613 = vadd.f32 0.0, %v3612
      %v3614 = vpop.f32.mrf.mxu0
      %v3615 = vadd.f32 0.0, %v3614
      %3616 = vmatmul.bf16.gmra.mxu0 %v2636
      %v3617 = vpop.f32.mrf.mxu0
      %v3618 = vadd.f32 0.0, %v3617
      %v3619 = vpop.f32.mrf.mxu0
      %v3620 = vadd.f32 0.0, %v3619
      %3621 = vmatmul.bf16.gmra.mxu0 %v2639
      %v3622 = vpop.f32.mrf.mxu0
      %v3623 = vadd.f32 0.0, %v3622
      %v3624 = vpop.f32.mrf.mxu0
      %v3625 = vadd.f32 0.0, %v3624
      %3626 = vmatmul.bf16.gmra.mxu0 %v2642
      %v3627 = vpop.f32.mrf.mxu0
      %v3628 = vadd.f32 0.0, %v3627
      %v3629 = vpop.f32.mrf.mxu0
      %v3630 = vadd.f32 0.0, %v3629
      %3631 = vmatmul.bf16.gmra.mxu0 %v2645
      %v3632 = vpop.f32.mrf.mxu0
      %v3633 = vadd.f32 0.0, %v3632
      %v3634 = vpop.f32.mrf.mxu0
      %v3635 = vadd.f32 0.0, %v3634
      %3636 = vmatmul.bf16.gmra.mxu0 %v2648
      %v3637 = vpop.f32.mrf.mxu0
      %v3638 = vadd.f32 0.0, %v3637
      %v3639 = vpop.f32.mrf.mxu0
      %v3640 = vadd.f32 0.0, %v3639
      %3641 = vmatmul.bf16.gmra.mxu0 %v2651
      %v3642 = vpop.f32.mrf.mxu0
      %v3643 = vadd.f32 0.0, %v3642
      %v3644 = vpop.f32.mrf.mxu0
      %v3645 = vadd.f32 0.0, %v3644
      %3646 = vmatmul.bf16.gmra.mxu0 %v2654
      %v3647 = vpop.f32.mrf.mxu0
      %v3648 = vadd.f32 0.0, %v3647
      %v3649 = vpop.f32.mrf.mxu0
      %v3650 = vadd.f32 0.0, %v3649
      %3651 = vdwg.mxu0
      %v3652 = vpack.c.bf16 %v3615, %v3613
      %v3653 = vpack.c.bf16 %v3620, %v3618
      %v3654 = vpack.c.bf16 %v3625, %v3623
      %v3655 = vpack.c.bf16 %v3630, %v3628
      %v3656 = vpack.c.bf16 %v3635, %v3633
      %v3657 = vpack.c.bf16 %v3640, %v3638
      %v3658 = vpack.c.bf16 %v3645, %v3643
      %v3659 = vpack.c.bf16 %v3650, %v3648
      %s3660 = scalar_lea.vmem %s13, 320
      %v3661 = vld [vmem:[%s3660] sm:$0xf]
      %v3662 = vld [vmem:[%s3660 + $0x4] sm:$0xf]
      %v3663 = vld [vmem:[%s3660 + $0x8] sm:$0xf]
      %v3664 = vld [vmem:[%s3660 + $0xc] sm:$0xf]
      %v3665 = vld [vmem:[%s3660 + $0x10] sm:$0xf]
      %v3666 = vld [vmem:[%s3660 + $0x14] sm:$0xf]
      %v3667 = vld [vmem:[%s3660 + $0x18] sm:$0xf]
      %v3668 = vld [vmem:[%s3660 + $0x1c] sm:$0xf]
      %v3669 = vld [vmem:[%s3660 + $0x20] sm:$0xf]
      %v3670 = vld [vmem:[%s3660 + $0x24] sm:$0xf]
      %v3671 = vld [vmem:[%s3660 + $0x28] sm:$0xf]
      %v3672 = vld [vmem:[%s3660 + $0x2c] sm:$0xf]
      %v3673 = vld [vmem:[%s3660 + $0x30] sm:$0xf]
      %v3674 = vld [vmem:[%s3660 + $0x34] sm:$0xf]
      %v3675 = vld [vmem:[%s3660 + $0x38] sm:$0xf]
      %v3676 = vld [vmem:[%s3660 + $0x3c] sm:$0xf]
      %v3693 = vunpack.c.l.b16 %v3661
      %v3694 = vunpack.c.l.b16 %v3662
      %v3695 = vunpack.c.l.b16 %v3663
      %v3696 = vunpack.c.l.b16 %v3664
      %v3697 = vunpack.c.l.b16 %v3665
      %v3698 = vunpack.c.l.b16 %v3666
      %v3699 = vunpack.c.l.b16 %v3667
      %v3700 = vunpack.c.l.b16 %v3668
      %v3701 = vunpack.c.l.b16 %v3669
      %v3702 = vunpack.c.l.b16 %v3670
      %v3703 = vunpack.c.l.b16 %v3671
      %v3704 = vunpack.c.l.b16 %v3672
      %v3705 = vunpack.c.l.b16 %v3673
      %v3706 = vunpack.c.l.b16 %v3674
      %v3707 = vunpack.c.l.b16 %v3675
      %v3708 = vunpack.c.l.b16 %v3676
      %v3709 = vpack.c.b16 %v3694, %v3693
      %v3710 = vpack.c.b16 %v3696, %v3695
      %v3711 = vpack.c.b16 %v3698, %v3697
      %v3712 = vpack.c.b16 %v3700, %v3699
      %v3713 = vpack.c.b16 %v3702, %v3701
      %v3714 = vpack.c.b16 %v3704, %v3703
      %v3715 = vpack.c.b16 %v3706, %v3705
      %v3716 = vpack.c.b16 %v3708, %v3707
      %3725 = vmatpush.bf16.msra.mxu0 %v3659
      %3726 = vmatpush.bf16.msra.mxu0 %v3658
      %3727 = vmatpush.bf16.msra.mxu0 %v3657
      %3728 = vmatpush.bf16.msra.mxu0 %v3656
      %3729 = vmatpush.bf16.msra.mxu0 %v3655
      %3730 = vmatpush.bf16.msra.mxu0 %v3654
      %3731 = vmatpush.bf16.msra.mxu0 %v3653
      %3732 = vmatpush.bf16.msra.mxu0 %v3652
      %3733 = vmatmul.bf16.gmra.mxu0 %v3709
      %v3734 = vpop.f32.mrf.mxu0
      %v3735 = vadd.f32 0.0, %v3734
      %v3736 = vpop.f32.mrf.mxu0
      %v3737 = vadd.f32 0.0, %v3736
      %3738 = vmatmul.bf16.gmra.mxu0 %v3710
      %v3739 = vpop.f32.mrf.mxu0
      %v3740 = vadd.f32 0.0, %v3739
      %v3741 = vpop.f32.mrf.mxu0
      %v3742 = vadd.f32 0.0, %v3741
      %3743 = vmatmul.bf16.gmra.mxu0 %v3711
      %v3744 = vpop.f32.mrf.mxu0
      %v3745 = vadd.f32 0.0, %v3744
      %v3746 = vpop.f32.mrf.mxu0
      %v3747 = vadd.f32 0.0, %v3746
      %3748 = vmatmul.bf16.gmra.mxu0 %v3712
      %v3749 = vpop.f32.mrf.mxu0
      %v3750 = vadd.f32 0.0, %v3749
      %v3751 = vpop.f32.mrf.mxu0
      %v3752 = vadd.f32 0.0, %v3751
      %3753 = vmatmul.bf16.gmra.mxu0 %v3713
      %v3754 = vpop.f32.mrf.mxu0
      %v3755 = vadd.f32 0.0, %v3754
      %v3756 = vpop.f32.mrf.mxu0
      %v3757 = vadd.f32 0.0, %v3756
      %3758 = vmatmul.bf16.gmra.mxu0 %v3714
      %v3759 = vpop.f32.mrf.mxu0
      %v3760 = vadd.f32 0.0, %v3759
      %v3761 = vpop.f32.mrf.mxu0
      %v3762 = vadd.f32 0.0, %v3761
      %3763 = vmatmul.bf16.gmra.mxu0 %v3715
      %v3764 = vpop.f32.mrf.mxu0
      %v3765 = vadd.f32 0.0, %v3764
      %v3766 = vpop.f32.mrf.mxu0
      %v3767 = vadd.f32 0.0, %v3766
      %3768 = vmatmul.bf16.gmra.mxu0 %v3716
      %v3769 = vpop.f32.mrf.mxu0
      %v3770 = vadd.f32 0.0, %v3769
      %v3771 = vpop.f32.mrf.mxu0
      %v3772 = vadd.f32 0.0, %v3771
      %3773 = vdwg.mxu0
      %v3774 = vadd.f32 %v3578, %v3735
      %v3775 = vadd.f32 %v3579, %v3737
      %v3776 = vadd.f32 %v3580, %v3740
      %v3777 = vadd.f32 %v3581, %v3742
      %v3778 = vadd.f32 %v3582, %v3745
      %v3779 = vadd.f32 %v3583, %v3747
      %v3780 = vadd.f32 %v3584, %v3750
      %v3781 = vadd.f32 %v3585, %v3752
      %v3782 = vadd.f32 %v3586, %v3755
      %v3783 = vadd.f32 %v3587, %v3757
      %v3784 = vadd.f32 %v3588, %v3760
      %v3785 = vadd.f32 %v3589, %v3762
      %v3786 = vadd.f32 %v3590, %v3765
      %v3787 = vadd.f32 %v3591, %v3767
      %v3788 = vadd.f32 %v3592, %v3770
      %v3789 = vadd.f32 %v3593, %v3772
      %s3790 = scalar_lea.vmem %s7, 48
      %v3791 = vld [vmem:[%s3790] sm:$0xf]
      %v3792 = vld [vmem:[%s3790 + $0x4] sm:$0xf]
      %v3795 = vunpack.c.l.b16 %v3791
      %v3796 = vunpack.c.l.b16 %v3792
      %v3797 = vpack.c.b16 %v3796, %v3795
      %3799 = vmatpush.bf16.msra.mxu0 0
      %3800 = vmatpush.bf16.msra.mxu0 0
      %3801 = vmatpush.bf16.msra.mxu0 0
      %3802 = vmatpush.bf16.msra.mxu0 0
      %3803 = vmatpush.bf16.msra.mxu0 0
      %3804 = vmatpush.bf16.msra.mxu0 0
      %3805 = vmatpush.bf16.msra.mxu0 0
      %3806 = vmatpush.bf16.msra.mxu0 %v3797
      %3807 = vmatmul.bf16.gmra.mxu0 %v2633
      %v3808 = vpop.f32.mrf.mxu0
      %v3809 = vadd.f32 0.0, %v3808
      %v3810 = vpop.f32.mrf.mxu0
      %v3811 = vadd.f32 0.0, %v3810
      %3812 = vmatmul.bf16.gmra.mxu0 %v2636
      %v3813 = vpop.f32.mrf.mxu0
      %v3814 = vadd.f32 0.0, %v3813
      %v3815 = vpop.f32.mrf.mxu0
      %v3816 = vadd.f32 0.0, %v3815
      %3817 = vmatmul.bf16.gmra.mxu0 %v2639
      %v3818 = vpop.f32.mrf.mxu0
      %v3819 = vadd.f32 0.0, %v3818
      %v3820 = vpop.f32.mrf.mxu0
      %v3821 = vadd.f32 0.0, %v3820
      %3822 = vmatmul.bf16.gmra.mxu0 %v2642
      %v3823 = vpop.f32.mrf.mxu0
      %v3824 = vadd.f32 0.0, %v3823
      %v3825 = vpop.f32.mrf.mxu0
      %v3826 = vadd.f32 0.0, %v3825
      %3827 = vmatmul.bf16.gmra.mxu0 %v2645
      %v3828 = vpop.f32.mrf.mxu0
      %v3829 = vadd.f32 0.0, %v3828
      %v3830 = vpop.f32.mrf.mxu0
      %v3831 = vadd.f32 0.0, %v3830
      %3832 = vmatmul.bf16.gmra.mxu0 %v2648
      %v3833 = vpop.f32.mrf.mxu0
      %v3834 = vadd.f32 0.0, %v3833
      %v3835 = vpop.f32.mrf.mxu0
      %v3836 = vadd.f32 0.0, %v3835
      %3837 = vmatmul.bf16.gmra.mxu0 %v2651
      %v3838 = vpop.f32.mrf.mxu0
      %v3839 = vadd.f32 0.0, %v3838
      %v3840 = vpop.f32.mrf.mxu0
      %v3841 = vadd.f32 0.0, %v3840
      %3842 = vmatmul.bf16.gmra.mxu0 %v2654
      %v3843 = vpop.f32.mrf.mxu0
      %v3844 = vadd.f32 0.0, %v3843
      %v3845 = vpop.f32.mrf.mxu0
      %v3846 = vadd.f32 0.0, %v3845
      %3847 = vdwg.mxu0
      %v3848 = vpack.c.bf16 %v3811, %v3809
      %v3849 = vpack.c.bf16 %v3816, %v3814
      %v3850 = vpack.c.bf16 %v3821, %v3819
      %v3851 = vpack.c.bf16 %v3826, %v3824
      %v3852 = vpack.c.bf16 %v3831, %v3829
      %v3853 = vpack.c.bf16 %v3836, %v3834
      %v3854 = vpack.c.bf16 %v3841, %v3839
      %v3855 = vpack.c.bf16 %v3846, %v3844
      %s3856 = scalar_lea.vmem %s13, 384
      %v3857 = vld [vmem:[%s3856] sm:$0xf]
      %v3858 = vld [vmem:[%s3856 + $0x4] sm:$0xf]
      %v3859 = vld [vmem:[%s3856 + $0x8] sm:$0xf]
      %v3860 = vld [vmem:[%s3856 + $0xc] sm:$0xf]
      %v3861 = vld [vmem:[%s3856 + $0x10] sm:$0xf]
      %v3862 = vld [vmem:[%s3856 + $0x14] sm:$0xf]
      %v3863 = vld [vmem:[%s3856 + $0x18] sm:$0xf]
      %v3864 = vld [vmem:[%s3856 + $0x1c] sm:$0xf]
      %v3865 = vld [vmem:[%s3856 + $0x20] sm:$0xf]
      %v3866 = vld [vmem:[%s3856 + $0x24] sm:$0xf]
      %v3867 = vld [vmem:[%s3856 + $0x28] sm:$0xf]
      %v3868 = vld [vmem:[%s3856 + $0x2c] sm:$0xf]
      %v3869 = vld [vmem:[%s3856 + $0x30] sm:$0xf]
      %v3870 = vld [vmem:[%s3856 + $0x34] sm:$0xf]
      %v3871 = vld [vmem:[%s3856 + $0x38] sm:$0xf]
      %v3872 = vld [vmem:[%s3856 + $0x3c] sm:$0xf]
      %v3889 = vunpack.c.l.b16 %v3857
      %v3890 = vunpack.c.l.b16 %v3858
      %v3891 = vunpack.c.l.b16 %v3859
      %v3892 = vunpack.c.l.b16 %v3860
      %v3893 = vunpack.c.l.b16 %v3861
      %v3894 = vunpack.c.l.b16 %v3862
      %v3895 = vunpack.c.l.b16 %v3863
      %v3896 = vunpack.c.l.b16 %v3864
      %v3897 = vunpack.c.l.b16 %v3865
      %v3898 = vunpack.c.l.b16 %v3866
      %v3899 = vunpack.c.l.b16 %v3867
      %v3900 = vunpack.c.l.b16 %v3868
      %v3901 = vunpack.c.l.b16 %v3869
      %v3902 = vunpack.c.l.b16 %v3870
      %v3903 = vunpack.c.l.b16 %v3871
      %v3904 = vunpack.c.l.b16 %v3872
      %v3905 = vpack.c.b16 %v3890, %v3889
      %v3906 = vpack.c.b16 %v3892, %v3891
      %v3907 = vpack.c.b16 %v3894, %v3893
      %v3908 = vpack.c.b16 %v3896, %v3895
      %v3909 = vpack.c.b16 %v3898, %v3897
      %v3910 = vpack.c.b16 %v3900, %v3899
      %v3911 = vpack.c.b16 %v3902, %v3901
      %v3912 = vpack.c.b16 %v3904, %v3903
      %3921 = vmatpush.bf16.msra.mxu0 %v3855
      %3922 = vmatpush.bf16.msra.mxu0 %v3854
      %3923 = vmatpush.bf16.msra.mxu0 %v3853
      %3924 = vmatpush.bf16.msra.mxu0 %v3852
      %3925 = vmatpush.bf16.msra.mxu0 %v3851
      %3926 = vmatpush.bf16.msra.mxu0 %v3850
      %3927 = vmatpush.bf16.msra.mxu0 %v3849
      %3928 = vmatpush.bf16.msra.mxu0 %v3848
      %3929 = vmatmul.bf16.gmra.mxu0 %v3905
      %v3930 = vpop.f32.mrf.mxu0
      %v3931 = vadd.f32 0.0, %v3930
      %v3932 = vpop.f32.mrf.mxu0
      %v3933 = vadd.f32 0.0, %v3932
      %3934 = vmatmul.bf16.gmra.mxu0 %v3906
      %v3935 = vpop.f32.mrf.mxu0
      %v3936 = vadd.f32 0.0, %v3935
      %v3937 = vpop.f32.mrf.mxu0
      %v3938 = vadd.f32 0.0, %v3937
      %3939 = vmatmul.bf16.gmra.mxu0 %v3907
      %v3940 = vpop.f32.mrf.mxu0
      %v3941 = vadd.f32 0.0, %v3940
      %v3942 = vpop.f32.mrf.mxu0
      %v3943 = vadd.f32 0.0, %v3942
      %3944 = vmatmul.bf16.gmra.mxu0 %v3908
      %v3945 = vpop.f32.mrf.mxu0
      %v3946 = vadd.f32 0.0, %v3945
      %v3947 = vpop.f32.mrf.mxu0
      %v3948 = vadd.f32 0.0, %v3947
      %3949 = vmatmul.bf16.gmra.mxu0 %v3909
      %v3950 = vpop.f32.mrf.mxu0
      %v3951 = vadd.f32 0.0, %v3950
      %v3952 = vpop.f32.mrf.mxu0
      %v3953 = vadd.f32 0.0, %v3952
      %3954 = vmatmul.bf16.gmra.mxu0 %v3910
      %v3955 = vpop.f32.mrf.mxu0
      %v3956 = vadd.f32 0.0, %v3955
      %v3957 = vpop.f32.mrf.mxu0
      %v3958 = vadd.f32 0.0, %v3957
      %3959 = vmatmul.bf16.gmra.mxu0 %v3911
      %v3960 = vpop.f32.mrf.mxu0
      %v3961 = vadd.f32 0.0, %v3960
      %v3962 = vpop.f32.mrf.mxu0
      %v3963 = vadd.f32 0.0, %v3962
      %3964 = vmatmul.bf16.gmra.mxu0 %v3912
      %v3965 = vpop.f32.mrf.mxu0
      %v3966 = vadd.f32 0.0, %v3965
      %v3967 = vpop.f32.mrf.mxu0
      %v3968 = vadd.f32 0.0, %v3967
      %3969 = vdwg.mxu0
      %v3970 = vadd.f32 %v3774, %v3931
      %v3971 = vadd.f32 %v3775, %v3933
      %v3972 = vadd.f32 %v3776, %v3936
      %v3973 = vadd.f32 %v3777, %v3938
      %v3974 = vadd.f32 %v3778, %v3941
      %v3975 = vadd.f32 %v3779, %v3943
      %v3976 = vadd.f32 %v3780, %v3946
      %v3977 = vadd.f32 %v3781, %v3948
      %v3978 = vadd.f32 %v3782, %v3951
      %v3979 = vadd.f32 %v3783, %v3953
      %v3980 = vadd.f32 %v3784, %v3956
      %v3981 = vadd.f32 %v3785, %v3958
      %v3982 = vadd.f32 %v3786, %v3961
      %v3983 = vadd.f32 %v3787, %v3963
      %v3984 = vadd.f32 %v3788, %v3966
      %v3985 = vadd.f32 %v3789, %v3968
      %s3986 = scalar_lea.vmem %s7, 56
      %v3987 = vld [vmem:[%s3986] sm:$0xf]
      %v3988 = vld [vmem:[%s3986 + $0x4] sm:$0xf]
      %v3991 = vunpack.c.l.b16 %v3987
      %v3992 = vunpack.c.l.b16 %v3988
      %v3993 = vpack.c.b16 %v3992, %v3991
      %3995 = vmatpush.bf16.msra.mxu0 0
      %3996 = vmatpush.bf16.msra.mxu0 0
      %3997 = vmatpush.bf16.msra.mxu0 0
      %3998 = vmatpush.bf16.msra.mxu0 0
      %3999 = vmatpush.bf16.msra.mxu0 0
      %4000 = vmatpush.bf16.msra.mxu0 0
      %4001 = vmatpush.bf16.msra.mxu0 0
      %4002 = vmatpush.bf16.msra.mxu0 %v3993
      %4003 = vmatmul.bf16.gmra.mxu0 %v2633
      %v4004 = vpop.f32.mrf.mxu0
      %v4005 = vadd.f32 0.0, %v4004
      %v4006 = vpop.f32.mrf.mxu0
      %v4007 = vadd.f32 0.0, %v4006
      %4008 = vmatmul.bf16.gmra.mxu0 %v2636
      %v4009 = vpop.f32.mrf.mxu0
      %v4010 = vadd.f32 0.0, %v4009
      %v4011 = vpop.f32.mrf.mxu0
      %v4012 = vadd.f32 0.0, %v4011
      %4013 = vmatmul.bf16.gmra.mxu0 %v2639
      %v4014 = vpop.f32.mrf.mxu0
      %v4015 = vadd.f32 0.0, %v4014
      %v4016 = vpop.f32.mrf.mxu0
      %v4017 = vadd.f32 0.0, %v4016
      %4018 = vmatmul.bf16.gmra.mxu0 %v2642
      %v4019 = vpop.f32.mrf.mxu0
      %v4020 = vadd.f32 0.0, %v4019
      %v4021 = vpop.f32.mrf.mxu0
      %v4022 = vadd.f32 0.0, %v4021
      %4023 = vmatmul.bf16.gmra.mxu0 %v2645
      %v4024 = vpop.f32.mrf.mxu0
      %v4025 = vadd.f32 0.0, %v4024
      %v4026 = vpop.f32.mrf.mxu0
      %v4027 = vadd.f32 0.0, %v4026
      %4028 = vmatmul.bf16.gmra.mxu0 %v2648
      %v4029 = vpop.f32.mrf.mxu0
      %v4030 = vadd.f32 0.0, %v4029
      %v4031 = vpop.f32.mrf.mxu0
      %v4032 = vadd.f32 0.0, %v4031
      %4033 = vmatmul.bf16.gmra.mxu0 %v2651
      %v4034 = vpop.f32.mrf.mxu0
      %v4035 = vadd.f32 0.0, %v4034
      %v4036 = vpop.f32.mrf.mxu0
      %v4037 = vadd.f32 0.0, %v4036
      %4038 = vmatmul.bf16.gmra.mxu0 %v2654
      %v4039 = vpop.f32.mrf.mxu0
      %v4040 = vadd.f32 0.0, %v4039
      %v4041 = vpop.f32.mrf.mxu0
      %v4042 = vadd.f32 0.0, %v4041
      %4043 = vdwg.mxu0
      %v4044 = vpack.c.bf16 %v4007, %v4005
      %v4045 = vpack.c.bf16 %v4012, %v4010
      %v4046 = vpack.c.bf16 %v4017, %v4015
      %v4047 = vpack.c.bf16 %v4022, %v4020
      %v4048 = vpack.c.bf16 %v4027, %v4025
      %v4049 = vpack.c.bf16 %v4032, %v4030
      %v4050 = vpack.c.bf16 %v4037, %v4035
      %v4051 = vpack.c.bf16 %v4042, %v4040
      %s4052 = scalar_lea.vmem %s13, 448
      %v4053 = vld [vmem:[%s4052] sm:$0xf]
      %v4054 = vld [vmem:[%s4052 + $0x4] sm:$0xf]
      %v4055 = vld [vmem:[%s4052 + $0x8] sm:$0xf]
      %v4056 = vld [vmem:[%s4052 + $0xc] sm:$0xf]
      %v4057 = vld [vmem:[%s4052 + $0x10] sm:$0xf]
      %v4058 = vld [vmem:[%s4052 + $0x14] sm:$0xf]
      %v4059 = vld [vmem:[%s4052 + $0x18] sm:$0xf]
      %v4060 = vld [vmem:[%s4052 + $0x1c] sm:$0xf]
      %v4061 = vld [vmem:[%s4052 + $0x20] sm:$0xf]
      %v4062 = vld [vmem:[%s4052 + $0x24] sm:$0xf]
      %v4063 = vld [vmem:[%s4052 + $0x28] sm:$0xf]
      %v4064 = vld [vmem:[%s4052 + $0x2c] sm:$0xf]
      %v4065 = vld [vmem:[%s4052 + $0x30] sm:$0xf]
      %v4066 = vld [vmem:[%s4052 + $0x34] sm:$0xf]
      %v4067 = vld [vmem:[%s4052 + $0x38] sm:$0xf]
      %v4068 = vld [vmem:[%s4052 + $0x3c] sm:$0xf]
      %v4085 = vunpack.c.l.b16 %v4053
      %v4086 = vunpack.c.l.b16 %v4054
      %v4087 = vunpack.c.l.b16 %v4055
      %v4088 = vunpack.c.l.b16 %v4056
      %v4089 = vunpack.c.l.b16 %v4057
      %v4090 = vunpack.c.l.b16 %v4058
      %v4091 = vunpack.c.l.b16 %v4059
      %v4092 = vunpack.c.l.b16 %v4060
      %v4093 = vunpack.c.l.b16 %v4061
      %v4094 = vunpack.c.l.b16 %v4062
      %v4095 = vunpack.c.l.b16 %v4063
      %v4096 = vunpack.c.l.b16 %v4064
      %v4097 = vunpack.c.l.b16 %v4065
      %v4098 = vunpack.c.l.b16 %v4066
      %v4099 = vunpack.c.l.b16 %v4067
      %v4100 = vunpack.c.l.b16 %v4068
      %v4101 = vpack.c.b16 %v4086, %v4085
      %v4102 = vpack.c.b16 %v4088, %v4087
      %v4103 = vpack.c.b16 %v4090, %v4089
      %v4104 = vpack.c.b16 %v4092, %v4091
      %v4105 = vpack.c.b16 %v4094, %v4093
      %v4106 = vpack.c.b16 %v4096, %v4095
      %v4107 = vpack.c.b16 %v4098, %v4097
      %v4108 = vpack.c.b16 %v4100, %v4099
      %4117 = vmatpush.bf16.msra.mxu0 %v4051
      %4118 = vmatpush.bf16.msra.mxu0 %v4050
      %4119 = vmatpush.bf16.msra.mxu0 %v4049
      %4120 = vmatpush.bf16.msra.mxu0 %v4048
      %4121 = vmatpush.bf16.msra.mxu0 %v4047
      %4122 = vmatpush.bf16.msra.mxu0 %v4046
      %4123 = vmatpush.bf16.msra.mxu0 %v4045
      %4124 = vmatpush.bf16.msra.mxu0 %v4044
      %4125 = vmatmul.bf16.gmra.mxu0 %v4101
      %v4126 = vpop.f32.mrf.mxu0
      %v4127 = vadd.f32 0.0, %v4126
      %v4128 = vpop.f32.mrf.mxu0
      %v4129 = vadd.f32 0.0, %v4128
      %4130 = vmatmul.bf16.gmra.mxu0 %v4102
      %v4131 = vpop.f32.mrf.mxu0
      %v4132 = vadd.f32 0.0, %v4131
      %v4133 = vpop.f32.mrf.mxu0
      %v4134 = vadd.f32 0.0, %v4133
      %4135 = vmatmul.bf16.gmra.mxu0 %v4103
      %v4136 = vpop.f32.mrf.mxu0
      %v4137 = vadd.f32 0.0, %v4136
      %v4138 = vpop.f32.mrf.mxu0
      %v4139 = vadd.f32 0.0, %v4138
      %4140 = vmatmul.bf16.gmra.mxu0 %v4104
      %v4141 = vpop.f32.mrf.mxu0
      %v4142 = vadd.f32 0.0, %v4141
      %v4143 = vpop.f32.mrf.mxu0
      %v4144 = vadd.f32 0.0, %v4143
      %4145 = vmatmul.bf16.gmra.mxu0 %v4105
      %v4146 = vpop.f32.mrf.mxu0
      %v4147 = vadd.f32 0.0, %v4146
      %v4148 = vpop.f32.mrf.mxu0
      %v4149 = vadd.f32 0.0, %v4148
      %4150 = vmatmul.bf16.gmra.mxu0 %v4106
      %v4151 = vpop.f32.mrf.mxu0
      %v4152 = vadd.f32 0.0, %v4151
      %v4153 = vpop.f32.mrf.mxu0
      %v4154 = vadd.f32 0.0, %v4153
      %4155 = vmatmul.bf16.gmra.mxu0 %v4107
      %v4156 = vpop.f32.mrf.mxu0
      %v4157 = vadd.f32 0.0, %v4156
      %v4158 = vpop.f32.mrf.mxu0
      %v4159 = vadd.f32 0.0, %v4158
      %4160 = vmatmul.bf16.gmra.mxu0 %v4108
      %v4161 = vpop.f32.mrf.mxu0
      %v4162 = vadd.f32 0.0, %v4161
      %v4163 = vpop.f32.mrf.mxu0
      %v4164 = vadd.f32 0.0, %v4163
      %4165 = vdwg.mxu0
      %v4166 = vadd.f32 %v3970, %v4127
      %v4167 = vadd.f32 %v3971, %v4129
      %v4168 = vadd.f32 %v3972, %v4132
      %v4169 = vadd.f32 %v3973, %v4134
      %v4170 = vadd.f32 %v3974, %v4137
      %v4171 = vadd.f32 %v3975, %v4139
      %v4172 = vadd.f32 %v3976, %v4142
      %v4173 = vadd.f32 %v3977, %v4144
      %v4174 = vadd.f32 %v3978, %v4147
      %v4175 = vadd.f32 %v3979, %v4149
      %v4176 = vadd.f32 %v3980, %v4152
      %v4177 = vadd.f32 %v3981, %v4154
      %v4178 = vadd.f32 %v3982, %v4157
      %v4179 = vadd.f32 %v3983, %v4159
      %v4180 = vadd.f32 %v3984, %v4162
      %v4181 = vadd.f32 %v3985, %v4164
      %s4182 = scalar_lea.vmem %s7, 64
      %v4183 = vld [vmem:[%s4182] sm:$0xf]
      %v4184 = vld [vmem:[%s4182 + $0x4] sm:$0xf]
      %v4187 = vunpack.c.l.b16 %v4183
      %v4188 = vunpack.c.l.b16 %v4184
      %v4189 = vpack.c.b16 %v4188, %v4187
      %4191 = vmatpush.bf16.msra.mxu0 0
      %4192 = vmatpush.bf16.msra.mxu0 0
      %4193 = vmatpush.bf16.msra.mxu0 0
      %4194 = vmatpush.bf16.msra.mxu0 0
      %4195 = vmatpush.bf16.msra.mxu0 0
      %4196 = vmatpush.bf16.msra.mxu0 0
      %4197 = vmatpush.bf16.msra.mxu0 0
      %4198 = vmatpush.bf16.msra.mxu0 %v4189
      %4199 = vmatmul.bf16.gmra.mxu0 %v2633
      %v4200 = vpop.f32.mrf.mxu0
      %v4201 = vadd.f32 0.0, %v4200
      %v4202 = vpop.f32.mrf.mxu0
      %v4203 = vadd.f32 0.0, %v4202
      %4204 = vmatmul.bf16.gmra.mxu0 %v2636
      %v4205 = vpop.f32.mrf.mxu0
      %v4206 = vadd.f32 0.0, %v4205
      %v4207 = vpop.f32.mrf.mxu0
      %v4208 = vadd.f32 0.0, %v4207
      %4209 = vmatmul.bf16.gmra.mxu0 %v2639
      %v4210 = vpop.f32.mrf.mxu0
      %v4211 = vadd.f32 0.0, %v4210
      %v4212 = vpop.f32.mrf.mxu0
      %v4213 = vadd.f32 0.0, %v4212
      %4214 = vmatmul.bf16.gmra.mxu0 %v2642
      %v4215 = vpop.f32.mrf.mxu0
      %v4216 = vadd.f32 0.0, %v4215
      %v4217 = vpop.f32.mrf.mxu0
      %v4218 = vadd.f32 0.0, %v4217
      %4219 = vmatmul.bf16.gmra.mxu0 %v2645
      %v4220 = vpop.f32.mrf.mxu0
      %v4221 = vadd.f32 0.0, %v4220
      %v4222 = vpop.f32.mrf.mxu0
      %v4223 = vadd.f32 0.0, %v4222
      %4224 = vmatmul.bf16.gmra.mxu0 %v2648
      %v4225 = vpop.f32.mrf.mxu0
      %v4226 = vadd.f32 0.0, %v4225
      %v4227 = vpop.f32.mrf.mxu0
      %v4228 = vadd.f32 0.0, %v4227
      %4229 = vmatmul.bf16.gmra.mxu0 %v2651
      %v4230 = vpop.f32.mrf.mxu0
      %v4231 = vadd.f32 0.0, %v4230
      %v4232 = vpop.f32.mrf.mxu0
      %v4233 = vadd.f32 0.0, %v4232
      %4234 = vmatmul.bf16.gmra.mxu0 %v2654
      %v4235 = vpop.f32.mrf.mxu0
      %v4236 = vadd.f32 0.0, %v4235
      %v4237 = vpop.f32.mrf.mxu0
      %v4238 = vadd.f32 0.0, %v4237
      %4239 = vdwg.mxu0
      %v4240 = vpack.c.bf16 %v4203, %v4201
      %v4241 = vpack.c.bf16 %v4208, %v4206
      %v4242 = vpack.c.bf16 %v4213, %v4211
      %v4243 = vpack.c.bf16 %v4218, %v4216
      %v4244 = vpack.c.bf16 %v4223, %v4221
      %v4245 = vpack.c.bf16 %v4228, %v4226
      %v4246 = vpack.c.bf16 %v4233, %v4231
      %v4247 = vpack.c.bf16 %v4238, %v4236
      %s4248 = scalar_lea.vmem %s13, 512
      %v4249 = vld [vmem:[%s4248] sm:$0xf]
      %v4250 = vld [vmem:[%s4248 + $0x4] sm:$0xf]
      %v4251 = vld [vmem:[%s4248 + $0x8] sm:$0xf]
      %v4252 = vld [vmem:[%s4248 + $0xc] sm:$0xf]
      %v4253 = vld [vmem:[%s4248 + $0x10] sm:$0xf]
      %v4254 = vld [vmem:[%s4248 + $0x14] sm:$0xf]
      %v4255 = vld [vmem:[%s4248 + $0x18] sm:$0xf]
      %v4256 = vld [vmem:[%s4248 + $0x1c] sm:$0xf]
      %v4257 = vld [vmem:[%s4248 + $0x20] sm:$0xf]
      %v4258 = vld [vmem:[%s4248 + $0x24] sm:$0xf]
      %v4259 = vld [vmem:[%s4248 + $0x28] sm:$0xf]
      %v4260 = vld [vmem:[%s4248 + $0x2c] sm:$0xf]
      %v4261 = vld [vmem:[%s4248 + $0x30] sm:$0xf]
      %v4262 = vld [vmem:[%s4248 + $0x34] sm:$0xf]
      %v4263 = vld [vmem:[%s4248 + $0x38] sm:$0xf]
      %v4264 = vld [vmem:[%s4248 + $0x3c] sm:$0xf]
      %v4281 = vunpack.c.l.b16 %v4249
      %v4282 = vunpack.c.l.b16 %v4250
      %v4283 = vunpack.c.l.b16 %v4251
      %v4284 = vunpack.c.l.b16 %v4252
      %v4285 = vunpack.c.l.b16 %v4253
      %v4286 = vunpack.c.l.b16 %v4254
      %v4287 = vunpack.c.l.b16 %v4255
      %v4288 = vunpack.c.l.b16 %v4256
      %v4289 = vunpack.c.l.b16 %v4257
      %v4290 = vunpack.c.l.b16 %v4258
      %v4291 = vunpack.c.l.b16 %v4259
      %v4292 = vunpack.c.l.b16 %v4260
      %v4293 = vunpack.c.l.b16 %v4261
      %v4294 = vunpack.c.l.b16 %v4262
      %v4295 = vunpack.c.l.b16 %v4263
      %v4296 = vunpack.c.l.b16 %v4264
      %v4297 = vpack.c.b16 %v4282, %v4281
      %v4298 = vpack.c.b16 %v4284, %v4283
      %v4299 = vpack.c.b16 %v4286, %v4285
      %v4300 = vpack.c.b16 %v4288, %v4287
      %v4301 = vpack.c.b16 %v4290, %v4289
      %v4302 = vpack.c.b16 %v4292, %v4291
      %v4303 = vpack.c.b16 %v4294, %v4293
      %v4304 = vpack.c.b16 %v4296, %v4295
      %4313 = vmatpush.bf16.msra.mxu0 %v4247
      %4314 = vmatpush.bf16.msra.mxu0 %v4246
      %4315 = vmatpush.bf16.msra.mxu0 %v4245
      %4316 = vmatpush.bf16.msra.mxu0 %v4244
      %4317 = vmatpush.bf16.msra.mxu0 %v4243
      %4318 = vmatpush.bf16.msra.mxu0 %v4242
      %4319 = vmatpush.bf16.msra.mxu0 %v4241
      %4320 = vmatpush.bf16.msra.mxu0 %v4240
      %4321 = vmatmul.bf16.gmra.mxu0 %v4297
      %v4322 = vpop.f32.mrf.mxu0
      %v4323 = vadd.f32 0.0, %v4322
      %v4324 = vpop.f32.mrf.mxu0
      %v4325 = vadd.f32 0.0, %v4324
      %4326 = vmatmul.bf16.gmra.mxu0 %v4298
      %v4327 = vpop.f32.mrf.mxu0
      %v4328 = vadd.f32 0.0, %v4327
      %v4329 = vpop.f32.mrf.mxu0
      %v4330 = vadd.f32 0.0, %v4329
      %4331 = vmatmul.bf16.gmra.mxu0 %v4299
      %v4332 = vpop.f32.mrf.mxu0
      %v4333 = vadd.f32 0.0, %v4332
      %v4334 = vpop.f32.mrf.mxu0
      %v4335 = vadd.f32 0.0, %v4334
      %4336 = vmatmul.bf16.gmra.mxu0 %v4300
      %v4337 = vpop.f32.mrf.mxu0
      %v4338 = vadd.f32 0.0, %v4337
      %v4339 = vpop.f32.mrf.mxu0
      %v4340 = vadd.f32 0.0, %v4339
      %4341 = vmatmul.bf16.gmra.mxu0 %v4301
      %v4342 = vpop.f32.mrf.mxu0
      %v4343 = vadd.f32 0.0, %v4342
      %v4344 = vpop.f32.mrf.mxu0
      %v4345 = vadd.f32 0.0, %v4344
      %4346 = vmatmul.bf16.gmra.mxu0 %v4302
      %v4347 = vpop.f32.mrf.mxu0
      %v4348 = vadd.f32 0.0, %v4347
      %v4349 = vpop.f32.mrf.mxu0
      %v4350 = vadd.f32 0.0, %v4349
      %4351 = vmatmul.bf16.gmra.mxu0 %v4303
      %v4352 = vpop.f32.mrf.mxu0
      %v4353 = vadd.f32 0.0, %v4352
      %v4354 = vpop.f32.mrf.mxu0
      %v4355 = vadd.f32 0.0, %v4354
      %4356 = vmatmul.bf16.gmra.mxu0 %v4304
      %v4357 = vpop.f32.mrf.mxu0
      %v4358 = vadd.f32 0.0, %v4357
      %v4359 = vpop.f32.mrf.mxu0
      %v4360 = vadd.f32 0.0, %v4359
      %4361 = vdwg.mxu0
      %v4362 = vadd.f32 %v4166, %v4323
      %v4363 = vadd.f32 %v4167, %v4325
      %v4364 = vadd.f32 %v4168, %v4328
      %v4365 = vadd.f32 %v4169, %v4330
      %v4366 = vadd.f32 %v4170, %v4333
      %v4367 = vadd.f32 %v4171, %v4335
      %v4368 = vadd.f32 %v4172, %v4338
      %v4369 = vadd.f32 %v4173, %v4340
      %v4370 = vadd.f32 %v4174, %v4343
      %v4371 = vadd.f32 %v4175, %v4345
      %v4372 = vadd.f32 %v4176, %v4348
      %v4373 = vadd.f32 %v4177, %v4350
      %v4374 = vadd.f32 %v4178, %v4353
      %v4375 = vadd.f32 %v4179, %v4355
      %v4376 = vadd.f32 %v4180, %v4358
      %v4377 = vadd.f32 %v4181, %v4360
      %v4378 = vld [vmem:[%s14] sm:$0xff]
      %v4379 = vld [vmem:[%s14 + $0x8] sm:$0xff]
      %v4380 = vld [vmem:[%s14 + $0x10] sm:$0xff]
      %v4381 = vld [vmem:[%s14 + $0x18] sm:$0xff]
      %v4382 = vld [vmem:[%s14 + $0x20] sm:$0xff]
      %v4383 = vld [vmem:[%s14 + $0x28] sm:$0xff]
      %v4384 = vld [vmem:[%s14 + $0x30] sm:$0xff]
      %v4385 = vld [vmem:[%s14 + $0x38] sm:$0xff]
      %v4386 = vld [vmem:[%s14 + $0x40] sm:$0xff]
      %v4387 = vld [vmem:[%s14 + $0x48] sm:$0xff]
      %v4388 = vld [vmem:[%s14 + $0x50] sm:$0xff]
      %v4389 = vld [vmem:[%s14 + $0x58] sm:$0xff]
      %v4390 = vld [vmem:[%s14 + $0x60] sm:$0xff]
      %v4391 = vld [vmem:[%s14 + $0x68] sm:$0xff]
      %v4392 = vld [vmem:[%s14 + $0x70] sm:$0xff]
      %v4393 = vld [vmem:[%s14 + $0x78] sm:$0xff]
      %4395 = vset.pattern.permute.xlu0 0
      %4396 = vperm.xlu0 %4395, %v4378
      %v4397 = vpop.permute.xlu0 %4396
      %4400 = vset.pattern.permute.xlu0 0
      %4401 = vperm.xlu0 %4400, %v4379
      %v4402 = vpop.permute.xlu0 %4401
      %4405 = vset.pattern.permute.xlu0 0
      %4406 = vperm.xlu0 %4405, %v4380
      %v4407 = vpop.permute.xlu0 %4406
      %4410 = vset.pattern.permute.xlu0 0
      %4411 = vperm.xlu0 %4410, %v4381
      %v4412 = vpop.permute.xlu0 %4411
      %4415 = vset.pattern.permute.xlu0 0
      %4416 = vperm.xlu0 %4415, %v4382
      %v4417 = vpop.permute.xlu0 %4416
      %4420 = vset.pattern.permute.xlu0 0
      %4421 = vperm.xlu0 %4420, %v4383
      %v4422 = vpop.permute.xlu0 %4421
      %4425 = vset.pattern.permute.xlu0 0
      %4426 = vperm.xlu0 %4425, %v4384
      %v4427 = vpop.permute.xlu0 %4426
      %4430 = vset.pattern.permute.xlu0 0
      %4431 = vperm.xlu0 %4430, %v4385
      %v4432 = vpop.permute.xlu0 %4431
      %4435 = vset.pattern.permute.xlu0 0
      %4436 = vperm.xlu0 %4435, %v4386
      %v4437 = vpop.permute.xlu0 %4436
      %4440 = vset.pattern.permute.xlu0 0
      %4441 = vperm.xlu0 %4440, %v4387
      %v4442 = vpop.permute.xlu0 %4441
      %4445 = vset.pattern.permute.xlu0 0
      %4446 = vperm.xlu0 %4445, %v4388
      %v4447 = vpop.permute.xlu0 %4446
      %4450 = vset.pattern.permute.xlu0 0
      %4451 = vperm.xlu0 %4450, %v4389
      %v4452 = vpop.permute.xlu0 %4451
      %4455 = vset.pattern.permute.xlu0 0
      %4456 = vperm.xlu0 %4455, %v4390
      %v4457 = vpop.permute.xlu0 %4456
      %4460 = vset.pattern.permute.xlu0 0
      %4461 = vperm.xlu0 %4460, %v4391
      %v4462 = vpop.permute.xlu0 %4461
      %4465 = vset.pattern.permute.xlu0 0
      %4466 = vperm.xlu0 %4465, %v4392
      %v4467 = vpop.permute.xlu0 %4466
      %4470 = vset.pattern.permute.xlu0 0
      %4471 = vperm.xlu0 %4470, %v4393
      %v4472 = vpop.permute.xlu0 %4471
      %v4474 = vadd.f32 %v4362, %v4397
      %v4475 = vadd.f32 %v4363, %v4402
      %v4476 = vadd.f32 %v4364, %v4407
      %v4477 = vadd.f32 %v4365, %v4412
      %v4478 = vadd.f32 %v4366, %v4417
      %v4479 = vadd.f32 %v4367, %v4422
      %v4480 = vadd.f32 %v4368, %v4427
      %v4481 = vadd.f32 %v4369, %v4432
      %v4482 = vadd.f32 %v4370, %v4437
      %v4483 = vadd.f32 %v4371, %v4442
      %v4484 = vadd.f32 %v4372, %v4447
      %v4485 = vadd.f32 %v4373, %v4452
      %v4486 = vadd.f32 %v4374, %v4457
      %v4487 = vadd.f32 %v4375, %v4462
      %v4488 = vadd.f32 %v4376, %v4467
      %v4489 = vadd.f32 %v4377, %v4472
      %v4490 = vmax.f32 %v4474, 0.0
      %v4491 = vmax.f32 %v4475, 0.0
      %v4492 = vmax.f32 %v4476, 0.0
      %v4493 = vmax.f32 %v4477, 0.0
      %v4494 = vmax.f32 %v4478, 0.0
      %v4495 = vmax.f32 %v4479, 0.0
      %v4496 = vmax.f32 %v4480, 0.0
      %v4497 = vmax.f32 %v4481, 0.0
      %v4498 = vmax.f32 %v4482, 0.0
      %v4499 = vmax.f32 %v4483, 0.0
      %v4500 = vmax.f32 %v4484, 0.0
      %v4501 = vmax.f32 %v4485, 0.0
      %v4502 = vmax.f32 %v4486, 0.0
      %v4503 = vmax.f32 %v4487, 0.0
      %v4504 = vmax.f32 %v4488, 0.0
      %v4505 = vmax.f32 %v4489, 0.0
      %v4506 = vpack.c.bf16 %v4491, %v4490
      %v4507 = vpack.c.bf16 %v4493, %v4492
      %v4508 = vpack.c.bf16 %v4495, %v4494
      %v4509 = vpack.c.bf16 %v4497, %v4496
      %v4510 = vpack.c.bf16 %v4499, %v4498
      %v4511 = vpack.c.bf16 %v4501, %v4500
      %v4512 = vpack.c.bf16 %v4503, %v4502
      %v4513 = vpack.c.bf16 %v4505, %v4504
      %v4514 = vld [vmem:[%s5] sm:$0xf]
      %v4515 = vld [vmem:[%s5 + $0x4] sm:$0xf]
      %v4518 = vunpack.c.l.b16 %v4514
      %v4519 = vunpack.c.l.b16 %v4515
      %v4520 = vpack.c.b16 %v4519, %v4518
      %v4523 = vsel %vm2631, %v4506, 0
      %v4526 = vsel %vm2631, %v4507, 0
      %v4529 = vsel %vm2631, %v4508, 0
      %v4532 = vsel %vm2631, %v4509, 0
      %v4535 = vsel %vm2631, %v4510, 0
      %v4538 = vsel %vm2631, %v4511, 0
      %v4541 = vsel %vm2631, %v4512, 0
      %v4544 = vsel %vm2631, %v4513, 0
      %4546 = vmatpush.bf16.msra.mxu0 0
      %4547 = vmatpush.bf16.msra.mxu0 0
      %4548 = vmatpush.bf16.msra.mxu0 0
      %4549 = vmatpush.bf16.msra.mxu0 0
      %4550 = vmatpush.bf16.msra.mxu0 0
      %4551 = vmatpush.bf16.msra.mxu0 0
      %4552 = vmatpush.bf16.msra.mxu0 0
      %4553 = vmatpush.bf16.msra.mxu0 %v4520
      %4554 = vmatmul.bf16.gmra.mxu0 %v4523
      %v4555 = vpop.f32.mrf.mxu0
      %v4556 = vadd.f32 0.0, %v4555
      %v4557 = vpop.f32.mrf.mxu0
      %v4558 = vadd.f32 0.0, %v4557
      %4559 = vmatmul.bf16.gmra.mxu0 %v4526
      %v4560 = vpop.f32.mrf.mxu0
      %v4561 = vadd.f32 0.0, %v4560
      %v4562 = vpop.f32.mrf.mxu0
      %v4563 = vadd.f32 0.0, %v4562
      %4564 = vmatmul.bf16.gmra.mxu0 %v4529
      %v4565 = vpop.f32.mrf.mxu0
      %v4566 = vadd.f32 0.0, %v4565
      %v4567 = vpop.f32.mrf.mxu0
      %v4568 = vadd.f32 0.0, %v4567
      %4569 = vmatmul.bf16.gmra.mxu0 %v4532
      %v4570 = vpop.f32.mrf.mxu0
      %v4571 = vadd.f32 0.0, %v4570
      %v4572 = vpop.f32.mrf.mxu0
      %v4573 = vadd.f32 0.0, %v4572
      %4574 = vmatmul.bf16.gmra.mxu0 %v4535
      %v4575 = vpop.f32.mrf.mxu0
      %v4576 = vadd.f32 0.0, %v4575
      %v4577 = vpop.f32.mrf.mxu0
      %v4578 = vadd.f32 0.0, %v4577
      %4579 = vmatmul.bf16.gmra.mxu0 %v4538
      %v4580 = vpop.f32.mrf.mxu0
      %v4581 = vadd.f32 0.0, %v4580
      %v4582 = vpop.f32.mrf.mxu0
      %v4583 = vadd.f32 0.0, %v4582
      %4584 = vmatmul.bf16.gmra.mxu0 %v4541
      %v4585 = vpop.f32.mrf.mxu0
      %v4586 = vadd.f32 0.0, %v4585
      %v4587 = vpop.f32.mrf.mxu0
      %v4588 = vadd.f32 0.0, %v4587
      %4589 = vmatmul.bf16.gmra.mxu0 %v4544
      %v4590 = vpop.f32.mrf.mxu0
      %v4591 = vadd.f32 0.0, %v4590
      %v4592 = vpop.f32.mrf.mxu0
      %v4593 = vadd.f32 0.0, %v4592
      %4594 = vdwg.mxu0
      %v4595 = vpack.c.bf16 %v4558, %v4556
      %v4596 = vpack.c.bf16 %v4563, %v4561
      %v4597 = vpack.c.bf16 %v4568, %v4566
      %v4598 = vpack.c.bf16 %v4573, %v4571
      %v4599 = vpack.c.bf16 %v4578, %v4576
      %v4600 = vpack.c.bf16 %v4583, %v4581
      %v4601 = vpack.c.bf16 %v4588, %v4586
      %v4602 = vpack.c.bf16 %v4593, %v4591
      %v4603 = vld [vmem:[%s15] sm:$0xf]
      %v4604 = vld [vmem:[%s15 + $0x4] sm:$0xf]
      %v4605 = vld [vmem:[%s15 + $0x8] sm:$0xf]
      %v4606 = vld [vmem:[%s15 + $0xc] sm:$0xf]
      %v4607 = vld [vmem:[%s15 + $0x10] sm:$0xf]
      %v4608 = vld [vmem:[%s15 + $0x14] sm:$0xf]
      %v4609 = vld [vmem:[%s15 + $0x18] sm:$0xf]
      %v4610 = vld [vmem:[%s15 + $0x1c] sm:$0xf]
      %v4611 = vld [vmem:[%s16] sm:$0xff]
      %v4612 = vld [vmem:[%s16 + $0x8] sm:$0xff]
      %v4613 = vld [vmem:[%s16 + $0x10] sm:$0xff]
      %v4614 = vld [vmem:[%s16 + $0x18] sm:$0xff]
      %v4615 = vld [vmem:[%s16 + $0x20] sm:$0xff]
      %v4616 = vld [vmem:[%s16 + $0x28] sm:$0xff]
      %v4617 = vld [vmem:[%s16 + $0x30] sm:$0xff]
      %v4618 = vld [vmem:[%s16 + $0x38] sm:$0xff]
      %v4627 = vunpack.c.l.b16 %v4611
      %v4628 = vunpack.c.h.b16 %v4611
      %v4629 = vunpack.c.l.b16 %v4612
      %v4630 = vunpack.c.h.b16 %v4612
      %v4631 = vunpack.c.l.b16 %v4613
      %v4632 = vunpack.c.h.b16 %v4613
      %v4633 = vunpack.c.l.b16 %v4614
      %v4634 = vunpack.c.h.b16 %v4614
      %v4635 = vunpack.c.l.b16 %v4615
      %v4636 = vunpack.c.h.b16 %v4615
      %v4637 = vunpack.c.l.b16 %v4616
      %v4638 = vunpack.c.h.b16 %v4616
      %v4639 = vunpack.c.l.b16 %v4617
      %v4640 = vunpack.c.h.b16 %v4617
      %v4641 = vunpack.c.l.b16 %v4618
      %v4642 = vunpack.c.h.b16 %v4618
      %v4643 = vpack.c.b16 %v4629, %v4627
      %v4644 = vpack.c.b16 %v4630, %v4628
      %v4645 = vpack.c.b16 %v4633, %v4631
      %v4646 = vpack.c.b16 %v4634, %v4632
      %v4647 = vpack.c.b16 %v4637, %v4635
      %v4648 = vpack.c.b16 %v4638, %v4636
      %v4649 = vpack.c.b16 %v4641, %v4639
      %v4650 = vpack.c.b16 %v4642, %v4640
      %v4691 = vunpack.c.l.b16 %v896
      %v4692 = vunpack.c.l.b16 %v897
      %v4693 = vunpack.c.l.b16 %v898
      %v4694 = vunpack.c.l.b16 %v899
      %v4695 = vunpack.c.l.b16 %v900
      %v4696 = vunpack.c.l.b16 %v901
      %v4697 = vunpack.c.l.b16 %v902
      %v4698 = vunpack.c.l.b16 %v903
      %v4699 = vunpack.c.l.b16 %v904
      %v4700 = vunpack.c.l.b16 %v905
      %v4701 = vunpack.c.l.b16 %v906
      %v4702 = vunpack.c.l.b16 %v907
      %v4703 = vunpack.c.l.b16 %v908
      %v4704 = vunpack.c.l.b16 %v909
      %v4705 = vunpack.c.l.b16 %v910
      %v4706 = vunpack.c.l.b16 %v911
      %v4707 = vunpack.c.l.b16 %v912
      %v4708 = vunpack.c.l.b16 %v913
      %v4709 = vunpack.c.l.b16 %v914
      %v4710 = vunpack.c.l.b16 %v915
      %v4711 = vunpack.c.l.b16 %v916
      %v4712 = vunpack.c.l.b16 %v917
      %v4713 = vunpack.c.l.b16 %v918
      %v4714 = vunpack.c.l.b16 %v919
      %v4715 = vunpack.c.l.b16 %v920
      %v4716 = vunpack.c.l.b16 %v921
      %v4717 = vunpack.c.l.b16 %v922
      %v4718 = vunpack.c.l.b16 %v923
      %v4719 = vunpack.c.l.b16 %v924
      %v4720 = vunpack.c.l.b16 %v925
      %v4721 = vunpack.c.l.b16 %v926
      %v4722 = vunpack.c.l.b16 %v927
      %v4723 = vpack.c.b16 %v4692, %v4691
      %v4724 = vpack.c.b16 %v4694, %v4693
      %v4725 = vpack.c.b16 %v4696, %v4695
      %v4726 = vpack.c.b16 %v4698, %v4697
      %v4727 = vpack.c.b16 %v4700, %v4699
      %v4728 = vpack.c.b16 %v4702, %v4701
      %v4729 = vpack.c.b16 %v4704, %v4703
      %v4730 = vpack.c.b16 %v4706, %v4705
      %v4731 = vpack.c.b16 %v4708, %v4707
      %v4732 = vpack.c.b16 %v4710, %v4709
      %v4733 = vpack.c.b16 %v4712, %v4711
      %v4734 = vpack.c.b16 %v4714, %v4713
      %v4735 = vpack.c.b16 %v4716, %v4715
      %v4736 = vpack.c.b16 %v4718, %v4717
      %v4737 = vpack.c.b16 %v4720, %v4719
      %v4738 = vpack.c.b16 %v4722, %v4721
      %4755 = vmatpush.bf16.msra.mxu0 %v4730
      %4756 = vmatpush.bf16.msra.mxu0 %v4729
      %4757 = vmatpush.bf16.msra.mxu0 %v4728
      %4758 = vmatpush.bf16.msra.mxu0 %v4727
      %4759 = vmatpush.bf16.msra.mxu0 %v4726
      %4760 = vmatpush.bf16.msra.mxu0 %v4725
      %4761 = vmatpush.bf16.msra.mxu0 %v4724
      %4762 = vmatpush.bf16.msra.mxu0 %v4723
      %4763 = vmatmul.bf16.gmra.mxu0 %v4643
      %v4764 = vpop.f32.mrf.mxu0
      %v4765 = vadd.f32 0.0, %v4764
      %v4766 = vpop.f32.mrf.mxu0
      %v4767 = vadd.f32 0.0, %v4766
      %4768 = vmatmul.bf16.gmra.mxu0 %v4645
      %v4769 = vpop.f32.mrf.mxu0
      %v4770 = vadd.f32 0.0, %v4769
      %v4771 = vpop.f32.mrf.mxu0
      %v4772 = vadd.f32 0.0, %v4771
      %4773 = vmatmul.bf16.gmra.mxu0 %v4647
      %v4774 = vpop.f32.mrf.mxu0
      %v4775 = vadd.f32 0.0, %v4774
      %v4776 = vpop.f32.mrf.mxu0
      %v4777 = vadd.f32 0.0, %v4776
      %4778 = vmatmul.bf16.gmra.mxu0 %v4649
      %v4779 = vpop.f32.mrf.mxu0
      %v4780 = vadd.f32 0.0, %v4779
      %v4781 = vpop.f32.mrf.mxu0
      %v4782 = vadd.f32 0.0, %v4781
      %4783 = vdwg.mxu0
      %4784 = vmatpush.bf16.msra.mxu0 %v4738
      %4785 = vmatpush.bf16.msra.mxu0 %v4737
      %4786 = vmatpush.bf16.msra.mxu0 %v4736
      %4787 = vmatpush.bf16.msra.mxu0 %v4735
      %4788 = vmatpush.bf16.msra.mxu0 %v4734
      %4789 = vmatpush.bf16.msra.mxu0 %v4733
      %4790 = vmatpush.bf16.msra.mxu0 %v4732
      %4791 = vmatpush.bf16.msra.mxu0 %v4731
      %4792 = vmatmul.bf16.gmra.mxu0 %v4644
      %v4793 = vpop.f32.mrf.mxu0
      %v4794 = vadd.f32 %v4765, %v4793
      %v4795 = vpop.f32.mrf.mxu0
      %v4796 = vadd.f32 %v4767, %v4795
      %4797 = vmatmul.bf16.gmra.mxu0 %v4646
      %v4798 = vpop.f32.mrf.mxu0
      %v4799 = vadd.f32 %v4770, %v4798
      %v4800 = vpop.f32.mrf.mxu0
      %v4801 = vadd.f32 %v4772, %v4800
      %4802 = vmatmul.bf16.gmra.mxu0 %v4648
      %v4803 = vpop.f32.mrf.mxu0
      %v4804 = vadd.f32 %v4775, %v4803
      %v4805 = vpop.f32.mrf.mxu0
      %v4806 = vadd.f32 %v4777, %v4805
      %4807 = vmatmul.bf16.gmra.mxu0 %v4650
      %v4808 = vpop.f32.mrf.mxu0
      %v4809 = vadd.f32 %v4780, %v4808
      %v4810 = vpop.f32.mrf.mxu0
      %v4811 = vadd.f32 %v4782, %v4810
      %4812 = vdwg.mxu0
      %v4821 = vunpack.c.l.b16 %v4603
      %v4822 = vunpack.c.l.b16 %v4604
      %v4823 = vunpack.c.l.b16 %v4605
      %v4824 = vunpack.c.l.b16 %v4606
      %v4825 = vunpack.c.l.b16 %v4607
      %v4826 = vunpack.c.l.b16 %v4608
      %v4827 = vunpack.c.l.b16 %v4609
      %v4828 = vunpack.c.l.b16 %v4610
      %v4829 = vpack.c.b16 %v4822, %v4821
      %v4830 = vpack.c.b16 %v4824, %v4823
      %v4831 = vpack.c.b16 %v4826, %v4825
      %v4832 = vpack.c.b16 %v4828, %v4827
      %4837 = vmatpush.bf16.msra.mxu0 %v4602
      %4838 = vmatpush.bf16.msra.mxu0 %v4601
      %4839 = vmatpush.bf16.msra.mxu0 %v4600
      %4840 = vmatpush.bf16.msra.mxu0 %v4599
      %4841 = vmatpush.bf16.msra.mxu0 %v4598
      %4842 = vmatpush.bf16.msra.mxu0 %v4597
      %4843 = vmatpush.bf16.msra.mxu0 %v4596
      %4844 = vmatpush.bf16.msra.mxu0 %v4595
      %4845 = vmatmul.bf16.gmra.mxu0 %v4829
      %v4846 = vpop.f32.mrf.mxu0
      %v4847 = vadd.f32 %v4794, %v4846
      %v4848 = vpop.f32.mrf.mxu0
      %v4849 = vadd.f32 %v4796, %v4848
      %4850 = vmatmul.bf16.gmra.mxu0 %v4830
      %v4851 = vpop.f32.mrf.mxu0
      %v4852 = vadd.f32 %v4799, %v4851
      %v4853 = vpop.f32.mrf.mxu0
      %v4854 = vadd.f32 %v4801, %v4853
      %4855 = vmatmul.bf16.gmra.mxu0 %v4831
      %v4856 = vpop.f32.mrf.mxu0
      %v4857 = vadd.f32 %v4804, %v4856
      %v4858 = vpop.f32.mrf.mxu0
      %v4859 = vadd.f32 %v4806, %v4858
      %4860 = vmatmul.bf16.gmra.mxu0 %v4832
      %v4861 = vpop.f32.mrf.mxu0
      %v4862 = vadd.f32 %v4809, %v4861
      %v4863 = vpop.f32.mrf.mxu0
      %v4864 = vadd.f32 %v4811, %v4863
      %4865 = vdwg.mxu0
      %v4866 = vld [vmem:[%s17] sm:$0xff]
      %v4867 = vld [vmem:[%s17 + $0x8] sm:$0xff]
      %v4868 = vld [vmem:[%s17 + $0x10] sm:$0xff]
      %v4869 = vld [vmem:[%s17 + $0x18] sm:$0xff]
      %v4870 = vld [vmem:[%s17 + $0x20] sm:$0xff]
      %v4871 = vld [vmem:[%s17 + $0x28] sm:$0xff]
      %v4872 = vld [vmem:[%s17 + $0x30] sm:$0xff]
      %v4873 = vld [vmem:[%s17 + $0x38] sm:$0xff]
      %4875 = vset.pattern.permute.xlu0 0
      %4876 = vperm.xlu0 %4875, %v4866
      %v4877 = vpop.permute.xlu0 %4876
      %4880 = vset.pattern.permute.xlu0 0
      %4881 = vperm.xlu0 %4880, %v4867
      %v4882 = vpop.permute.xlu0 %4881
      %4885 = vset.pattern.permute.xlu0 0
      %4886 = vperm.xlu0 %4885, %v4868
      %v4887 = vpop.permute.xlu0 %4886
      %4890 = vset.pattern.permute.xlu0 0
      %4891 = vperm.xlu0 %4890, %v4869
      %v4892 = vpop.permute.xlu0 %4891
      %4895 = vset.pattern.permute.xlu0 0
      %4896 = vperm.xlu0 %4895, %v4870
      %v4897 = vpop.permute.xlu0 %4896
      %4900 = vset.pattern.permute.xlu0 0
      %4901 = vperm.xlu0 %4900, %v4871
      %v4902 = vpop.permute.xlu0 %4901
      %4905 = vset.pattern.permute.xlu0 0
      %4906 = vperm.xlu0 %4905, %v4872
      %v4907 = vpop.permute.xlu0 %4906
      %4910 = vset.pattern.permute.xlu0 0
      %4911 = vperm.xlu0 %4910, %v4873
      %v4912 = vpop.permute.xlu0 %4911
      %v4914 = vadd.f32 %v4847, %v4877
      %v4915 = vadd.f32 %v4849, %v4882
      %v4916 = vadd.f32 %v4852, %v4887
      %v4917 = vadd.f32 %v4854, %v4892
      %v4918 = vadd.f32 %v4857, %v4897
      %v4919 = vadd.f32 %v4859, %v4902
      %v4920 = vadd.f32 %v4862, %v4907
      %v4921 = vadd.f32 %v4864, %v4912
      %v4922 = vmax.f32 %v4914, 0.0
      %v4923 = vmax.f32 %v4915, 0.0
      %v4924 = vmax.f32 %v4916, 0.0
      %v4925 = vmax.f32 %v4917, 0.0
      %v4926 = vmax.f32 %v4918, 0.0
      %v4927 = vmax.f32 %v4919, 0.0
      %v4928 = vmax.f32 %v4920, 0.0
      %v4929 = vmax.f32 %v4921, 0.0
      %v4930 = vpack.c.bf16 %v4923, %v4922
      %v4931 = vpack.c.bf16 %v4925, %v4924
      %v4932 = vpack.c.bf16 %v4927, %v4926
      %v4933 = vpack.c.bf16 %v4929, %v4928
      %v4934 = vld [vmem:[%s8] sm:$0xf]
      %v4935 = vld [vmem:[%s8 + $0x4] sm:$0xf]
      %v4936 = vld [vmem:[%s8 + $0x8] sm:$0xf]
      %v4937 = vld [vmem:[%s8 + $0xc] sm:$0xf]
      %v4938 = vld [vmem:[%s8 + $0x10] sm:$0xf]
      %v4939 = vld [vmem:[%s8 + $0x14] sm:$0xf]
      %v4940 = vld [vmem:[%s8 + $0x18] sm:$0xf]
      %v4941 = vld [vmem:[%s8 + $0x1c] sm:$0xf]
      %v4950 = vunpack.c.l.b16 %v4934
      %v4951 = vunpack.c.l.b16 %v4935
      %v4952 = vunpack.c.l.b16 %v4936
      %v4953 = vunpack.c.l.b16 %v4937
      %v4954 = vunpack.c.l.b16 %v4938
      %v4955 = vunpack.c.l.b16 %v4939
      %v4956 = vunpack.c.l.b16 %v4940
      %v4957 = vunpack.c.l.b16 %v4941
      %v4958 = vpack.c.b16 %v4951, %v4950
      %v4959 = vpack.c.b16 %v4953, %v4952
      %v4960 = vpack.c.b16 %v4955, %v4954
      %v4961 = vpack.c.b16 %v4957, %v4956
      %vm4966 = vcmask 523264
      %v4968 = vsel %vm4966, %v4930, 0
      %v4971 = vsel %vm4966, %v4931, 0
      %v4974 = vsel %vm4966, %v4932, 0
      %v4977 = vsel %vm4966, %v4933, 0
      %4979 = vmatpush.bf16.msra.mxu0 0
      %4980 = vmatpush.bf16.msra.mxu0 0
      %4981 = vmatpush.bf16.msra.mxu0 0
      %4982 = vmatpush.bf16.msra.mxu0 0
      %4983 = vmatpush.bf16.msra.mxu0 %v4961
      %4984 = vmatpush.bf16.msra.mxu0 %v4960
      %4985 = vmatpush.bf16.msra.mxu0 %v4959
      %4986 = vmatpush.bf16.msra.mxu0 %v4958
      %4987 = vmatmul.bf16.gmra.mxu0 %v4968
      %v4988 = vpop.f32.mrf.mxu0
      %v4989 = vadd.f32 0.0, %v4988
      %v4990 = vpop.f32.mrf.mxu0
      %v4991 = vadd.f32 0.0, %v4990
      %4992 = vmatmul.bf16.gmra.mxu0 %v4971
      %v4993 = vpop.f32.mrf.mxu0
      %v4994 = vadd.f32 0.0, %v4993
      %v4995 = vpop.f32.mrf.mxu0
      %v4996 = vadd.f32 0.0, %v4995
      %4997 = vmatmul.bf16.gmra.mxu0 %v4974
      %v4998 = vpop.f32.mrf.mxu0
      %v4999 = vadd.f32 0.0, %v4998
      %v5000 = vpop.f32.mrf.mxu0
      %v5001 = vadd.f32 0.0, %v5000
      %5002 = vmatmul.bf16.gmra.mxu0 %v4977
      %v5003 = vpop.f32.mrf.mxu0
      %v5004 = vadd.f32 0.0, %v5003
      %v5005 = vpop.f32.mrf.mxu0
      %v5006 = vadd.f32 0.0, %v5005
      %5007 = vdwg.mxu0
      %v5008 = vpack.c.bf16 %v4991, %v4989
      %v5009 = vpack.c.bf16 %v4996, %v4994
      %v5010 = vpack.c.bf16 %v5001, %v4999
      %v5011 = vpack.c.bf16 %v5006, %v5004
      %v5012 = vld [vmem:[%s18] sm:$0xf]
      %v5013 = vld [vmem:[%s18 + $0x4] sm:$0xf]
      %v5014 = vld [vmem:[%s18 + $0x8] sm:$0xf]
      %v5015 = vld [vmem:[%s18 + $0xc] sm:$0xf]
      %v5016 = vld [vmem:[%s18 + $0x10] sm:$0xf]
      %v5017 = vld [vmem:[%s18 + $0x14] sm:$0xf]
      %v5018 = vld [vmem:[%s18 + $0x18] sm:$0xf]
      %v5019 = vld [vmem:[%s18 + $0x1c] sm:$0xf]
      %s5020 = scalar_lea.vmem %s8, 32
      %v5021 = vld [vmem:[%s5020] sm:$0xf]
      %v5022 = vld [vmem:[%s5020 + $0x4] sm:$0xf]
      %v5023 = vld [vmem:[%s5020 + $0x8] sm:$0xf]
      %v5024 = vld [vmem:[%s5020 + $0xc] sm:$0xf]
      %v5025 = vld [vmem:[%s5020 + $0x10] sm:$0xf]
      %v5026 = vld [vmem:[%s5020 + $0x14] sm:$0xf]
      %v5027 = vld [vmem:[%s5020 + $0x18] sm:$0xf]
      %v5028 = vld [vmem:[%s5020 + $0x1c] sm:$0xf]
      %v5037 = vunpack.c.l.b16 %v5021
      %v5038 = vunpack.c.l.b16 %v5022
      %v5039 = vunpack.c.l.b16 %v5023
      %v5040 = vunpack.c.l.b16 %v5024
      %v5041 = vunpack.c.l.b16 %v5025
      %v5042 = vunpack.c.l.b16 %v5026
      %v5043 = vunpack.c.l.b16 %v5027
      %v5044 = vunpack.c.l.b16 %v5028
      %v5045 = vpack.c.b16 %v5038, %v5037
      %v5046 = vpack.c.b16 %v5040, %v5039
      %v5047 = vpack.c.b16 %v5042, %v5041
      %v5048 = vpack.c.b16 %v5044, %v5043
      %5053 = vmatpush.bf16.msra.mxu0 0
      %5054 = vmatpush.bf16.msra.mxu0 0
      %5055 = vmatpush.bf16.msra.mxu0 0
      %5056 = vmatpush.bf16.msra.mxu0 0
      %5057 = vmatpush.bf16.msra.mxu0 %v5048
      %5058 = vmatpush.bf16.msra.mxu0 %v5047
      %5059 = vmatpush.bf16.msra.mxu0 %v5046
      %5060 = vmatpush.bf16.msra.mxu0 %v5045
      %5061 = vmatmul.bf16.gmra.mxu0 %v4968
      %v5062 = vpop.f32.mrf.mxu0
      %v5063 = vadd.f32 0.0, %v5062
      %v5064 = vpop.f32.mrf.mxu0
      %v5065 = vadd.f32 0.0, %v5064
      %5066 = vmatmul.bf16.gmra.mxu0 %v4971
      %v5067 = vpop.f32.mrf.mxu0
      %v5068 = vadd.f32 0.0, %v5067
      %v5069 = vpop.f32.mrf.mxu0
      %v5070 = vadd.f32 0.0, %v5069
      %5071 = vmatmul.bf16.gmra.mxu0 %v4974
      %v5072 = vpop.f32.mrf.mxu0
      %v5073 = vadd.f32 0.0, %v5072
      %v5074 = vpop.f32.mrf.mxu0
      %v5075 = vadd.f32 0.0, %v5074
      %5076 = vmatmul.bf16.gmra.mxu0 %v4977
      %v5077 = vpop.f32.mrf.mxu0
      %v5078 = vadd.f32 0.0, %v5077
      %v5079 = vpop.f32.mrf.mxu0
      %v5080 = vadd.f32 0.0, %v5079
      %5081 = vdwg.mxu0
      %v5082 = vpack.c.bf16 %v5065, %v5063
      %v5083 = vpack.c.bf16 %v5070, %v5068
      %v5084 = vpack.c.bf16 %v5075, %v5073
      %v5085 = vpack.c.bf16 %v5080, %v5078
      %s5086 = scalar_lea.vmem %s18, 32
      %v5087 = vld [vmem:[%s5086] sm:$0xf]
      %v5088 = vld [vmem:[%s5086 + $0x4] sm:$0xf]
      %v5089 = vld [vmem:[%s5086 + $0x8] sm:$0xf]
      %v5090 = vld [vmem:[%s5086 + $0xc] sm:$0xf]
      %v5091 = vld [vmem:[%s5086 + $0x10] sm:$0xf]
      %v5092 = vld [vmem:[%s5086 + $0x14] sm:$0xf]
      %v5093 = vld [vmem:[%s5086 + $0x18] sm:$0xf]
      %v5094 = vld [vmem:[%s5086 + $0x1c] sm:$0xf]
      %v5103 = vunpack.c.l.b16 %v5087
      %v5104 = vunpack.c.l.b16 %v5088
      %v5105 = vunpack.c.l.b16 %v5089
      %v5106 = vunpack.c.l.b16 %v5090
      %v5107 = vunpack.c.l.b16 %v5091
      %v5108 = vunpack.c.l.b16 %v5092
      %v5109 = vunpack.c.l.b16 %v5093
      %v5110 = vunpack.c.l.b16 %v5094
      %v5111 = vpack.c.b16 %v5104, %v5103
      %v5112 = vpack.c.b16 %v5106, %v5105
      %v5113 = vpack.c.b16 %v5108, %v5107
      %v5114 = vpack.c.b16 %v5110, %v5109
      %v5116 = vsel %vm4966, %v5111, 0
      %v5119 = vsel %vm4966, %v5112, 0
      %v5122 = vsel %vm4966, %v5113, 0
      %v5125 = vsel %vm4966, %v5114, 0
      %5127 = vmatpush.bf16.msra.mxu0 0
      %5128 = vmatpush.bf16.msra.mxu0 0
      %5129 = vmatpush.bf16.msra.mxu0 0
      %5130 = vmatpush.bf16.msra.mxu0 0
      %5131 = vmatpush.bf16.msra.mxu0 %v5085
      %5132 = vmatpush.bf16.msra.mxu0 %v5084
      %5133 = vmatpush.bf16.msra.mxu0 %v5083
      %5134 = vmatpush.bf16.msra.mxu0 %v5082
      %5135 = vmatmul.bf16.gmra.mxu0 %v5116
      %v5136 = vpop.f32.mrf.mxu0
      %v5137 = vadd.f32 0.0, %v5136
      %v5138 = vpop.f32.mrf.mxu0
      %v5139 = vadd.f32 0.0, %v5138
      %5140 = vmatmul.bf16.gmra.mxu0 %v5119
      %v5141 = vpop.f32.mrf.mxu0
      %v5142 = vadd.f32 0.0, %v5141
      %v5143 = vpop.f32.mrf.mxu0
      %v5144 = vadd.f32 0.0, %v5143
      %5145 = vmatmul.bf16.gmra.mxu0 %v5122
      %v5146 = vpop.f32.mrf.mxu0
      %v5147 = vadd.f32 0.0, %v5146
      %v5148 = vpop.f32.mrf.mxu0
      %v5149 = vadd.f32 0.0, %v5148
      %5150 = vmatmul.bf16.gmra.mxu0 %v5125
      %v5151 = vpop.f32.mrf.mxu0
      %v5152 = vadd.f32 0.0, %v5151
      %v5153 = vpop.f32.mrf.mxu0
      %v5154 = vadd.f32 0.0, %v5153
      %5155 = vdwg.mxu0
      %v5164 = vunpack.c.l.b16 %v5012
      %v5165 = vunpack.c.l.b16 %v5013
      %v5166 = vunpack.c.l.b16 %v5014
      %v5167 = vunpack.c.l.b16 %v5015
      %v5168 = vunpack.c.l.b16 %v5016
      %v5169 = vunpack.c.l.b16 %v5017
      %v5170 = vunpack.c.l.b16 %v5018
      %v5171 = vunpack.c.l.b16 %v5019
      %v5172 = vpack.c.b16 %v5165, %v5164
      %v5173 = vpack.c.b16 %v5167, %v5166
      %v5174 = vpack.c.b16 %v5169, %v5168
      %v5175 = vpack.c.b16 %v5171, %v5170
      %v5177 = vsel %vm4966, %v5172, 0
      %v5180 = vsel %vm4966, %v5173, 0
      %v5183 = vsel %vm4966, %v5174, 0
      %v5186 = vsel %vm4966, %v5175, 0
      %5188 = vmatpush.bf16.msra.mxu0 0
      %5189 = vmatpush.bf16.msra.mxu0 0
      %5190 = vmatpush.bf16.msra.mxu0 0
      %5191 = vmatpush.bf16.msra.mxu0 0
      %5192 = vmatpush.bf16.msra.mxu0 %v5011
      %5193 = vmatpush.bf16.msra.mxu0 %v5010
      %5194 = vmatpush.bf16.msra.mxu0 %v5009
      %5195 = vmatpush.bf16.msra.mxu0 %v5008
      %5196 = vmatmul.bf16.gmra.mxu0 %v5177
      %v5197 = vpop.f32.mrf.mxu0
      %v5198 = vadd.f32 %v5137, %v5197
      %v5199 = vpop.f32.mrf.mxu0
      %v5200 = vadd.f32 %v5139, %v5199
      %5201 = vmatmul.bf16.gmra.mxu0 %v5180
      %v5202 = vpop.f32.mrf.mxu0
      %v5203 = vadd.f32 %v5142, %v5202
      %v5204 = vpop.f32.mrf.mxu0
      %v5205 = vadd.f32 %v5144, %v5204
      %5206 = vmatmul.bf16.gmra.mxu0 %v5183
      %v5207 = vpop.f32.mrf.mxu0
      %v5208 = vadd.f32 %v5147, %v5207
      %v5209 = vpop.f32.mrf.mxu0
      %v5210 = vadd.f32 %v5149, %v5209
      %5211 = vmatmul.bf16.gmra.mxu0 %v5186
      %v5212 = vpop.f32.mrf.mxu0
      %v5213 = vadd.f32 %v5152, %v5212
      %v5214 = vpop.f32.mrf.mxu0
      %v5215 = vadd.f32 %v5154, %v5214
      %5216 = vdwg.mxu0
      %s5217 = scalar_lea.vmem %s8, 64
      %v5218 = vld [vmem:[%s5217] sm:$0xf]
      %v5219 = vld [vmem:[%s5217 + $0x4] sm:$0xf]
      %v5220 = vld [vmem:[%s5217 + $0x8] sm:$0xf]
      %v5221 = vld [vmem:[%s5217 + $0xc] sm:$0xf]
      %v5222 = vld [vmem:[%s5217 + $0x10] sm:$0xf]
      %v5223 = vld [vmem:[%s5217 + $0x14] sm:$0xf]
      %v5224 = vld [vmem:[%s5217 + $0x18] sm:$0xf]
      %v5225 = vld [vmem:[%s5217 + $0x1c] sm:$0xf]
      %v5234 = vunpack.c.l.b16 %v5218
      %v5235 = vunpack.c.l.b16 %v5219
      %v5236 = vunpack.c.l.b16 %v5220
      %v5237 = vunpack.c.l.b16 %v5221
      %v5238 = vunpack.c.l.b16 %v5222
      %v5239 = vunpack.c.l.b16 %v5223
      %v5240 = vunpack.c.l.b16 %v5224
      %v5241 = vunpack.c.l.b16 %v5225
      %v5242 = vpack.c.b16 %v5235, %v5234
      %v5243 = vpack.c.b16 %v5237, %v5236
      %v5244 = vpack.c.b16 %v5239, %v5238
      %v5245 = vpack.c.b16 %v5241, %v5240
      %5250 = vmatpush.bf16.msra.mxu0 0
      %5251 = vmatpush.bf16.msra.mxu0 0
      %5252 = vmatpush.bf16.msra.mxu0 0
      %5253 = vmatpush.bf16.msra.mxu0 0
      %5254 = vmatpush.bf16.msra.mxu0 %v5245
      %5255 = vmatpush.bf16.msra.mxu0 %v5244
      %5256 = vmatpush.bf16.msra.mxu0 %v5243
      %5257 = vmatpush.bf16.msra.mxu0 %v5242
      %5258 = vmatmul.bf16.gmra.mxu0 %v4968
      %v5259 = vpop.f32.mrf.mxu0
      %v5260 = vadd.f32 0.0, %v5259
      %v5261 = vpop.f32.mrf.mxu0
      %v5262 = vadd.f32 0.0, %v5261
      %5263 = vmatmul.bf16.gmra.mxu0 %v4971
      %v5264 = vpop.f32.mrf.mxu0
      %v5265 = vadd.f32 0.0, %v5264
      %v5266 = vpop.f32.mrf.mxu0
      %v5267 = vadd.f32 0.0, %v5266
      %5268 = vmatmul.bf16.gmra.mxu0 %v4974
      %v5269 = vpop.f32.mrf.mxu0
      %v5270 = vadd.f32 0.0, %v5269
      %v5271 = vpop.f32.mrf.mxu0
      %v5272 = vadd.f32 0.0, %v5271
      %5273 = vmatmul.bf16.gmra.mxu0 %v4977
      %v5274 = vpop.f32.mrf.mxu0
      %v5275 = vadd.f32 0.0, %v5274
      %v5276 = vpop.f32.mrf.mxu0
      %v5277 = vadd.f32 0.0, %v5276
      %5278 = vdwg.mxu0
      %v5279 = vpack.c.bf16 %v5262, %v5260
      %v5280 = vpack.c.bf16 %v5267, %v5265
      %v5281 = vpack.c.bf16 %v5272, %v5270
      %v5282 = vpack.c.bf16 %v5277, %v5275
      %s5283 = scalar_lea.vmem %s18, 64
      %v5284 = vld [vmem:[%s5283] sm:$0xf]
      %v5285 = vld [vmem:[%s5283 + $0x4] sm:$0xf]
      %v5286 = vld [vmem:[%s5283 + $0x8] sm:$0xf]
      %v5287 = vld [vmem:[%s5283 + $0xc] sm:$0xf]
      %v5288 = vld [vmem:[%s5283 + $0x10] sm:$0xf]
      %v5289 = vld [vmem:[%s5283 + $0x14] sm:$0xf]
      %v5290 = vld [vmem:[%s5283 + $0x18] sm:$0xf]
      %v5291 = vld [vmem:[%s5283 + $0x1c] sm:$0xf]
      %v5300 = vunpack.c.l.b16 %v5284
      %v5301 = vunpack.c.l.b16 %v5285
      %v5302 = vunpack.c.l.b16 %v5286
      %v5303 = vunpack.c.l.b16 %v5287
      %v5304 = vunpack.c.l.b16 %v5288
      %v5305 = vunpack.c.l.b16 %v5289
      %v5306 = vunpack.c.l.b16 %v5290
      %v5307 = vunpack.c.l.b16 %v5291
      %v5308 = vpack.c.b16 %v5301, %v5300
      %v5309 = vpack.c.b16 %v5303, %v5302
      %v5310 = vpack.c.b16 %v5305, %v5304
      %v5311 = vpack.c.b16 %v5307, %v5306
      %v5313 = vsel %vm4966, %v5308, 0
      %v5316 = vsel %vm4966, %v5309, 0
      %v5319 = vsel %vm4966, %v5310, 0
      %v5322 = vsel %vm4966, %v5311, 0
      %5324 = vmatpush.bf16.msra.mxu0 0
      %5325 = vmatpush.bf16.msra.mxu0 0
      %5326 = vmatpush.bf16.msra.mxu0 0
      %5327 = vmatpush.bf16.msra.mxu0 0
      %5328 = vmatpush.bf16.msra.mxu0 %v5282
      %5329 = vmatpush.bf16.msra.mxu0 %v5281
      %5330 = vmatpush.bf16.msra.mxu0 %v5280
      %5331 = vmatpush.bf16.msra.mxu0 %v5279
      %5332 = vmatmul.bf16.gmra.mxu0 %v5313
      %v5333 = vpop.f32.mrf.mxu0
      %v5334 = vadd.f32 0.0, %v5333
      %v5335 = vpop.f32.mrf.mxu0
      %v5336 = vadd.f32 0.0, %v5335
      %5337 = vmatmul.bf16.gmra.mxu0 %v5316
      %v5338 = vpop.f32.mrf.mxu0
      %v5339 = vadd.f32 0.0, %v5338
      %v5340 = vpop.f32.mrf.mxu0
      %v5341 = vadd.f32 0.0, %v5340
      %5342 = vmatmul.bf16.gmra.mxu0 %v5319
      %v5343 = vpop.f32.mrf.mxu0
      %v5344 = vadd.f32 0.0, %v5343
      %v5345 = vpop.f32.mrf.mxu0
      %v5346 = vadd.f32 0.0, %v5345
      %5347 = vmatmul.bf16.gmra.mxu0 %v5322
      %v5348 = vpop.f32.mrf.mxu0
      %v5349 = vadd.f32 0.0, %v5348
      %v5350 = vpop.f32.mrf.mxu0
      %v5351 = vadd.f32 0.0, %v5350
      %5352 = vdwg.mxu0
      %v5353 = vadd.f32 %v5198, %v5334
      %v5354 = vadd.f32 %v5200, %v5336
      %v5355 = vadd.f32 %v5203, %v5339
      %v5356 = vadd.f32 %v5205, %v5341
      %v5357 = vadd.f32 %v5208, %v5344
      %v5358 = vadd.f32 %v5210, %v5346
      %v5359 = vadd.f32 %v5213, %v5349
      %v5360 = vadd.f32 %v5215, %v5351
      %s5361 = scalar_lea.vmem %s8, 96
      %v5362 = vld [vmem:[%s5361] sm:$0xf]
      %v5363 = vld [vmem:[%s5361 + $0x4] sm:$0xf]
      %v5364 = vld [vmem:[%s5361 + $0x8] sm:$0xf]
      %v5365 = vld [vmem:[%s5361 + $0xc] sm:$0xf]
      %v5366 = vld [vmem:[%s5361 + $0x10] sm:$0xf]
      %v5367 = vld [vmem:[%s5361 + $0x14] sm:$0xf]
      %v5368 = vld [vmem:[%s5361 + $0x18] sm:$0xf]
      %v5369 = vld [vmem:[%s5361 + $0x1c] sm:$0xf]
      %v5378 = vunpack.c.l.b16 %v5362
      %v5379 = vunpack.c.l.b16 %v5363
      %v5380 = vunpack.c.l.b16 %v5364
      %v5381 = vunpack.c.l.b16 %v5365
      %v5382 = vunpack.c.l.b16 %v5366
      %v5383 = vunpack.c.l.b16 %v5367
      %v5384 = vunpack.c.l.b16 %v5368
      %v5385 = vunpack.c.l.b16 %v5369
      %v5386 = vpack.c.b16 %v5379, %v5378
      %v5387 = vpack.c.b16 %v5381, %v5380
      %v5388 = vpack.c.b16 %v5383, %v5382
      %v5389 = vpack.c.b16 %v5385, %v5384
      %5394 = vmatpush.bf16.msra.mxu0 0
      %5395 = vmatpush.bf16.msra.mxu0 0
      %5396 = vmatpush.bf16.msra.mxu0 0
      %5397 = vmatpush.bf16.msra.mxu0 0
      %5398 = vmatpush.bf16.msra.mxu0 %v5389
      %5399 = vmatpush.bf16.msra.mxu0 %v5388
      %5400 = vmatpush.bf16.msra.mxu0 %v5387
      %5401 = vmatpush.bf16.msra.mxu0 %v5386
      %5402 = vmatmul.bf16.gmra.mxu0 %v4968
      %v5403 = vpop.f32.mrf.mxu0
      %v5404 = vadd.f32 0.0, %v5403
      %v5405 = vpop.f32.mrf.mxu0
      %v5406 = vadd.f32 0.0, %v5405
      %5407 = vmatmul.bf16.gmra.mxu0 %v4971
      %v5408 = vpop.f32.mrf.mxu0
      %v5409 = vadd.f32 0.0, %v5408
      %v5410 = vpop.f32.mrf.mxu0
      %v5411 = vadd.f32 0.0, %v5410
      %5412 = vmatmul.bf16.gmra.mxu0 %v4974
      %v5413 = vpop.f32.mrf.mxu0
      %v5414 = vadd.f32 0.0, %v5413
      %v5415 = vpop.f32.mrf.mxu0
      %v5416 = vadd.f32 0.0, %v5415
      %5417 = vmatmul.bf16.gmra.mxu0 %v4977
      %v5418 = vpop.f32.mrf.mxu0
      %v5419 = vadd.f32 0.0, %v5418
      %v5420 = vpop.f32.mrf.mxu0
      %v5421 = vadd.f32 0.0, %v5420
      %5422 = vdwg.mxu0
      %v5423 = vpack.c.bf16 %v5406, %v5404
      %v5424 = vpack.c.bf16 %v5411, %v5409
      %v5425 = vpack.c.bf16 %v5416, %v5414
      %v5426 = vpack.c.bf16 %v5421, %v5419
      %s5427 = scalar_lea.vmem %s18, 96
      %v5428 = vld [vmem:[%s5427] sm:$0xf]
      %v5429 = vld [vmem:[%s5427 + $0x4] sm:$0xf]
      %v5430 = vld [vmem:[%s5427 + $0x8] sm:$0xf]
      %v5431 = vld [vmem:[%s5427 + $0xc] sm:$0xf]
      %v5432 = vld [vmem:[%s5427 + $0x10] sm:$0xf]
      %v5433 = vld [vmem:[%s5427 + $0x14] sm:$0xf]
      %v5434 = vld [vmem:[%s5427 + $0x18] sm:$0xf]
      %v5435 = vld [vmem:[%s5427 + $0x1c] sm:$0xf]
      %v5444 = vunpack.c.l.b16 %v5428
      %v5445 = vunpack.c.l.b16 %v5429
      %v5446 = vunpack.c.l.b16 %v5430
      %v5447 = vunpack.c.l.b16 %v5431
      %v5448 = vunpack.c.l.b16 %v5432
      %v5449 = vunpack.c.l.b16 %v5433
      %v5450 = vunpack.c.l.b16 %v5434
      %v5451 = vunpack.c.l.b16 %v5435
      %v5452 = vpack.c.b16 %v5445, %v5444
      %v5453 = vpack.c.b16 %v5447, %v5446
      %v5454 = vpack.c.b16 %v5449, %v5448
      %v5455 = vpack.c.b16 %v5451, %v5450
      %v5457 = vsel %vm4966, %v5452, 0
      %v5460 = vsel %vm4966, %v5453, 0
      %v5463 = vsel %vm4966, %v5454, 0
      %v5466 = vsel %vm4966, %v5455, 0
      %5468 = vmatpush.bf16.msra.mxu0 0
      %5469 = vmatpush.bf16.msra.mxu0 0
      %5470 = vmatpush.bf16.msra.mxu0 0
      %5471 = vmatpush.bf16.msra.mxu0 0
      %5472 = vmatpush.bf16.msra.mxu0 %v5426
      %5473 = vmatpush.bf16.msra.mxu0 %v5425
      %5474 = vmatpush.bf16.msra.mxu0 %v5424
      %5475 = vmatpush.bf16.msra.mxu0 %v5423
      %5476 = vmatmul.bf16.gmra.mxu0 %v5457
      %v5477 = vpop.f32.mrf.mxu0
      %v5478 = vadd.f32 0.0, %v5477
      %v5479 = vpop.f32.mrf.mxu0
      %v5480 = vadd.f32 0.0, %v5479
      %5481 = vmatmul.bf16.gmra.mxu0 %v5460
      %v5482 = vpop.f32.mrf.mxu0
      %v5483 = vadd.f32 0.0, %v5482
      %v5484 = vpop.f32.mrf.mxu0
      %v5485 = vadd.f32 0.0, %v5484
      %5486 = vmatmul.bf16.gmra.mxu0 %v5463
      %v5487 = vpop.f32.mrf.mxu0
      %v5488 = vadd.f32 0.0, %v5487
      %v5489 = vpop.f32.mrf.mxu0
      %v5490 = vadd.f32 0.0, %v5489
      %5491 = vmatmul.bf16.gmra.mxu0 %v5466
      %v5492 = vpop.f32.mrf.mxu0
      %v5493 = vadd.f32 0.0, %v5492
      %v5494 = vpop.f32.mrf.mxu0
      %v5495 = vadd.f32 0.0, %v5494
      %5496 = vdwg.mxu0
      %v5497 = vadd.f32 %v5353, %v5478
      %v5498 = vadd.f32 %v5354, %v5480
      %v5499 = vadd.f32 %v5355, %v5483
      %v5500 = vadd.f32 %v5356, %v5485
      %v5501 = vadd.f32 %v5357, %v5488
      %v5502 = vadd.f32 %v5358, %v5490
      %v5503 = vadd.f32 %v5359, %v5493
      %v5504 = vadd.f32 %v5360, %v5495
      %s5505 = scalar_lea.vmem %s8, 128
      %v5506 = vld [vmem:[%s5505] sm:$0xf]
      %v5507 = vld [vmem:[%s5505 + $0x4] sm:$0xf]
      %v5508 = vld [vmem:[%s5505 + $0x8] sm:$0xf]
      %v5509 = vld [vmem:[%s5505 + $0xc] sm:$0xf]
      %v5510 = vld [vmem:[%s5505 + $0x10] sm:$0xf]
      %v5511 = vld [vmem:[%s5505 + $0x14] sm:$0xf]
      %v5512 = vld [vmem:[%s5505 + $0x18] sm:$0xf]
      %v5513 = vld [vmem:[%s5505 + $0x1c] sm:$0xf]
      %v5522 = vunpack.c.l.b16 %v5506
      %v5523 = vunpack.c.l.b16 %v5507
      %v5524 = vunpack.c.l.b16 %v5508
      %v5525 = vunpack.c.l.b16 %v5509
      %v5526 = vunpack.c.l.b16 %v5510
      %v5527 = vunpack.c.l.b16 %v5511
      %v5528 = vunpack.c.l.b16 %v5512
      %v5529 = vunpack.c.l.b16 %v5513
      %v5530 = vpack.c.b16 %v5523, %v5522
      %v5531 = vpack.c.b16 %v5525, %v5524
      %v5532 = vpack.c.b16 %v5527, %v5526
      %v5533 = vpack.c.b16 %v5529, %v5528
      %5538 = vmatpush.bf16.msra.mxu0 0
      %5539 = vmatpush.bf16.msra.mxu0 0
      %5540 = vmatpush.bf16.msra.mxu0 0
      %5541 = vmatpush.bf16.msra.mxu0 0
      %5542 = vmatpush.bf16.msra.mxu0 %v5533
      %5543 = vmatpush.bf16.msra.mxu0 %v5532
      %5544 = vmatpush.bf16.msra.mxu0 %v5531
      %5545 = vmatpush.bf16.msra.mxu0 %v5530
      %5546 = vmatmul.bf16.gmra.mxu0 %v4968
      %v5547 = vpop.f32.mrf.mxu0
      %v5548 = vadd.f32 0.0, %v5547
      %v5549 = vpop.f32.mrf.mxu0
      %v5550 = vadd.f32 0.0, %v5549
      %5551 = vmatmul.bf16.gmra.mxu0 %v4971
      %v5552 = vpop.f32.mrf.mxu0
      %v5553 = vadd.f32 0.0, %v5552
      %v5554 = vpop.f32.mrf.mxu0
      %v5555 = vadd.f32 0.0, %v5554
      %5556 = vmatmul.bf16.gmra.mxu0 %v4974
      %v5557 = vpop.f32.mrf.mxu0
      %v5558 = vadd.f32 0.0, %v5557
      %v5559 = vpop.f32.mrf.mxu0
      %v5560 = vadd.f32 0.0, %v5559
      %5561 = vmatmul.bf16.gmra.mxu0 %v4977
      %v5562 = vpop.f32.mrf.mxu0
      %v5563 = vadd.f32 0.0, %v5562
      %v5564 = vpop.f32.mrf.mxu0
      %v5565 = vadd.f32 0.0, %v5564
      %5566 = vdwg.mxu0
      %v5567 = vpack.c.bf16 %v5550, %v5548
      %v5568 = vpack.c.bf16 %v5555, %v5553
      %v5569 = vpack.c.bf16 %v5560, %v5558
      %v5570 = vpack.c.bf16 %v5565, %v5563
      %s5571 = scalar_lea.vmem %s18, 128
      %v5572 = vld [vmem:[%s5571] sm:$0xf]
      %v5573 = vld [vmem:[%s5571 + $0x4] sm:$0xf]
      %v5574 = vld [vmem:[%s5571 + $0x8] sm:$0xf]
      %v5575 = vld [vmem:[%s5571 + $0xc] sm:$0xf]
      %v5576 = vld [vmem:[%s5571 + $0x10] sm:$0xf]
      %v5577 = vld [vmem:[%s5571 + $0x14] sm:$0xf]
      %v5578 = vld [vmem:[%s5571 + $0x18] sm:$0xf]
      %v5579 = vld [vmem:[%s5571 + $0x1c] sm:$0xf]
      %v5588 = vunpack.c.l.b16 %v5572
      %v5589 = vunpack.c.l.b16 %v5573
      %v5590 = vunpack.c.l.b16 %v5574
      %v5591 = vunpack.c.l.b16 %v5575
      %v5592 = vunpack.c.l.b16 %v5576
      %v5593 = vunpack.c.l.b16 %v5577
      %v5594 = vunpack.c.l.b16 %v5578
      %v5595 = vunpack.c.l.b16 %v5579
      %v5596 = vpack.c.b16 %v5589, %v5588
      %v5597 = vpack.c.b16 %v5591, %v5590
      %v5598 = vpack.c.b16 %v5593, %v5592
      %v5599 = vpack.c.b16 %v5595, %v5594
      %v5601 = vsel %vm4966, %v5596, 0
      %v5604 = vsel %vm4966, %v5597, 0
      %v5607 = vsel %vm4966, %v5598, 0
      %v5610 = vsel %vm4966, %v5599, 0
      %5612 = vmatpush.bf16.msra.mxu0 0
      %5613 = vmatpush.bf16.msra.mxu0 0
      %5614 = vmatpush.bf16.msra.mxu0 0
      %5615 = vmatpush.bf16.msra.mxu0 0
      %5616 = vmatpush.bf16.msra.mxu0 %v5570
      %5617 = vmatpush.bf16.msra.mxu0 %v5569
      %5618 = vmatpush.bf16.msra.mxu0 %v5568
      %5619 = vmatpush.bf16.msra.mxu0 %v5567
      %5620 = vmatmul.bf16.gmra.mxu0 %v5601
      %v5621 = vpop.f32.mrf.mxu0
      %v5622 = vadd.f32 0.0, %v5621
      %v5623 = vpop.f32.mrf.mxu0
      %v5624 = vadd.f32 0.0, %v5623
      %5625 = vmatmul.bf16.gmra.mxu0 %v5604
      %v5626 = vpop.f32.mrf.mxu0
      %v5627 = vadd.f32 0.0, %v5626
      %v5628 = vpop.f32.mrf.mxu0
      %v5629 = vadd.f32 0.0, %v5628
      %5630 = vmatmul.bf16.gmra.mxu0 %v5607
      %v5631 = vpop.f32.mrf.mxu0
      %v5632 = vadd.f32 0.0, %v5631
      %v5633 = vpop.f32.mrf.mxu0
      %v5634 = vadd.f32 0.0, %v5633
      %5635 = vmatmul.bf16.gmra.mxu0 %v5610
      %v5636 = vpop.f32.mrf.mxu0
      %v5637 = vadd.f32 0.0, %v5636
      %v5638 = vpop.f32.mrf.mxu0
      %v5639 = vadd.f32 0.0, %v5638
      %5640 = vdwg.mxu0
      %v5641 = vadd.f32 %v5497, %v5622
      %v5642 = vadd.f32 %v5498, %v5624
      %v5643 = vadd.f32 %v5499, %v5627
      %v5644 = vadd.f32 %v5500, %v5629
      %v5645 = vadd.f32 %v5501, %v5632
      %v5646 = vadd.f32 %v5502, %v5634
      %v5647 = vadd.f32 %v5503, %v5637
      %v5648 = vadd.f32 %v5504, %v5639
      %s5649 = scalar_lea.vmem %s8, 160
      %v5650 = vld [vmem:[%s5649] sm:$0xf]
      %v5651 = vld [vmem:[%s5649 + $0x4] sm:$0xf]
      %v5652 = vld [vmem:[%s5649 + $0x8] sm:$0xf]
      %v5653 = vld [vmem:[%s5649 + $0xc] sm:$0xf]
      %v5654 = vld [vmem:[%s5649 + $0x10] sm:$0xf]
      %v5655 = vld [vmem:[%s5649 + $0x14] sm:$0xf]
      %v5656 = vld [vmem:[%s5649 + $0x18] sm:$0xf]
      %v5657 = vld [vmem:[%s5649 + $0x1c] sm:$0xf]
      %v5666 = vunpack.c.l.b16 %v5650
      %v5667 = vunpack.c.l.b16 %v5651
      %v5668 = vunpack.c.l.b16 %v5652
      %v5669 = vunpack.c.l.b16 %v5653
      %v5670 = vunpack.c.l.b16 %v5654
      %v5671 = vunpack.c.l.b16 %v5655
      %v5672 = vunpack.c.l.b16 %v5656
      %v5673 = vunpack.c.l.b16 %v5657
      %v5674 = vpack.c.b16 %v5667, %v5666
      %v5675 = vpack.c.b16 %v5669, %v5668
      %v5676 = vpack.c.b16 %v5671, %v5670
      %v5677 = vpack.c.b16 %v5673, %v5672
      %5682 = vmatpush.bf16.msra.mxu0 0
      %5683 = vmatpush.bf16.msra.mxu0 0
      %5684 = vmatpush.bf16.msra.mxu0 0
      %5685 = vmatpush.bf16.msra.mxu0 0
      %5686 = vmatpush.bf16.msra.mxu0 %v5677
      %5687 = vmatpush.bf16.msra.mxu0 %v5676
      %5688 = vmatpush.bf16.msra.mxu0 %v5675
      %5689 = vmatpush.bf16.msra.mxu0 %v5674
      %5690 = vmatmul.bf16.gmra.mxu0 %v4968
      %v5691 = vpop.f32.mrf.mxu0
      %v5692 = vadd.f32 0.0, %v5691
      %v5693 = vpop.f32.mrf.mxu0
      %v5694 = vadd.f32 0.0, %v5693
      %5695 = vmatmul.bf16.gmra.mxu0 %v4971
      %v5696 = vpop.f32.mrf.mxu0
      %v5697 = vadd.f32 0.0, %v5696
      %v5698 = vpop.f32.mrf.mxu0
      %v5699 = vadd.f32 0.0, %v5698
      %5700 = vmatmul.bf16.gmra.mxu0 %v4974
      %v5701 = vpop.f32.mrf.mxu0
      %v5702 = vadd.f32 0.0, %v5701
      %v5703 = vpop.f32.mrf.mxu0
      %v5704 = vadd.f32 0.0, %v5703
      %5705 = vmatmul.bf16.gmra.mxu0 %v4977
      %v5706 = vpop.f32.mrf.mxu0
      %v5707 = vadd.f32 0.0, %v5706
      %v5708 = vpop.f32.mrf.mxu0
      %v5709 = vadd.f32 0.0, %v5708
      %5710 = vdwg.mxu0
      %v5711 = vpack.c.bf16 %v5694, %v5692
      %v5712 = vpack.c.bf16 %v5699, %v5697
      %v5713 = vpack.c.bf16 %v5704, %v5702
      %v5714 = vpack.c.bf16 %v5709, %v5707
      %s5715 = scalar_lea.vmem %s18, 160
      %v5716 = vld [vmem:[%s5715] sm:$0xf]
      %v5717 = vld [vmem:[%s5715 + $0x4] sm:$0xf]
      %v5718 = vld [vmem:[%s5715 + $0x8] sm:$0xf]
      %v5719 = vld [vmem:[%s5715 + $0xc] sm:$0xf]
      %v5720 = vld [vmem:[%s5715 + $0x10] sm:$0xf]
      %v5721 = vld [vmem:[%s5715 + $0x14] sm:$0xf]
      %v5722 = vld [vmem:[%s5715 + $0x18] sm:$0xf]
      %v5723 = vld [vmem:[%s5715 + $0x1c] sm:$0xf]
      %v5732 = vunpack.c.l.b16 %v5716
      %v5733 = vunpack.c.l.b16 %v5717
      %v5734 = vunpack.c.l.b16 %v5718
      %v5735 = vunpack.c.l.b16 %v5719
      %v5736 = vunpack.c.l.b16 %v5720
      %v5737 = vunpack.c.l.b16 %v5721
      %v5738 = vunpack.c.l.b16 %v5722
      %v5739 = vunpack.c.l.b16 %v5723
      %v5740 = vpack.c.b16 %v5733, %v5732
      %v5741 = vpack.c.b16 %v5735, %v5734
      %v5742 = vpack.c.b16 %v5737, %v5736
      %v5743 = vpack.c.b16 %v5739, %v5738
      %v5745 = vsel %vm4966, %v5740, 0
      %v5748 = vsel %vm4966, %v5741, 0
      %v5751 = vsel %vm4966, %v5742, 0
      %v5754 = vsel %vm4966, %v5743, 0
      %5756 = vmatpush.bf16.msra.mxu0 0
      %5757 = vmatpush.bf16.msra.mxu0 0
      %5758 = vmatpush.bf16.msra.mxu0 0
      %5759 = vmatpush.bf16.msra.mxu0 0
      %5760 = vmatpush.bf16.msra.mxu0 %v5714
      %5761 = vmatpush.bf16.msra.mxu0 %v5713
      %5762 = vmatpush.bf16.msra.mxu0 %v5712
      %5763 = vmatpush.bf16.msra.mxu0 %v5711
      %5764 = vmatmul.bf16.gmra.mxu0 %v5745
      %v5765 = vpop.f32.mrf.mxu0
      %v5766 = vadd.f32 0.0, %v5765
      %v5767 = vpop.f32.mrf.mxu0
      %v5768 = vadd.f32 0.0, %v5767
      %5769 = vmatmul.bf16.gmra.mxu0 %v5748
      %v5770 = vpop.f32.mrf.mxu0
      %v5771 = vadd.f32 0.0, %v5770
      %v5772 = vpop.f32.mrf.mxu0
      %v5773 = vadd.f32 0.0, %v5772
      %5774 = vmatmul.bf16.gmra.mxu0 %v5751
      %v5775 = vpop.f32.mrf.mxu0
      %v5776 = vadd.f32 0.0, %v5775
      %v5777 = vpop.f32.mrf.mxu0
      %v5778 = vadd.f32 0.0, %v5777
      %5779 = vmatmul.bf16.gmra.mxu0 %v5754
      %v5780 = vpop.f32.mrf.mxu0
      %v5781 = vadd.f32 0.0, %v5780
      %v5782 = vpop.f32.mrf.mxu0
      %v5783 = vadd.f32 0.0, %v5782
      %5784 = vdwg.mxu0
      %v5785 = vadd.f32 %v5641, %v5766
      %v5786 = vadd.f32 %v5642, %v5768
      %v5787 = vadd.f32 %v5643, %v5771
      %v5788 = vadd.f32 %v5644, %v5773
      %v5789 = vadd.f32 %v5645, %v5776
      %v5790 = vadd.f32 %v5646, %v5778
      %v5791 = vadd.f32 %v5647, %v5781
      %v5792 = vadd.f32 %v5648, %v5783
      %s5793 = scalar_lea.vmem %s8, 192
      %v5794 = vld [vmem:[%s5793] sm:$0xf]
      %v5795 = vld [vmem:[%s5793 + $0x4] sm:$0xf]
      %v5796 = vld [vmem:[%s5793 + $0x8] sm:$0xf]
      %v5797 = vld [vmem:[%s5793 + $0xc] sm:$0xf]
      %v5798 = vld [vmem:[%s5793 + $0x10] sm:$0xf]
      %v5799 = vld [vmem:[%s5793 + $0x14] sm:$0xf]
      %v5800 = vld [vmem:[%s5793 + $0x18] sm:$0xf]
      %v5801 = vld [vmem:[%s5793 + $0x1c] sm:$0xf]
      %v5810 = vunpack.c.l.b16 %v5794
      %v5811 = vunpack.c.l.b16 %v5795
      %v5812 = vunpack.c.l.b16 %v5796
      %v5813 = vunpack.c.l.b16 %v5797
      %v5814 = vunpack.c.l.b16 %v5798
      %v5815 = vunpack.c.l.b16 %v5799
      %v5816 = vunpack.c.l.b16 %v5800
      %v5817 = vunpack.c.l.b16 %v5801
      %v5818 = vpack.c.b16 %v5811, %v5810
      %v5819 = vpack.c.b16 %v5813, %v5812
      %v5820 = vpack.c.b16 %v5815, %v5814
      %v5821 = vpack.c.b16 %v5817, %v5816
      %5826 = vmatpush.bf16.msra.mxu0 0
      %5827 = vmatpush.bf16.msra.mxu0 0
      %5828 = vmatpush.bf16.msra.mxu0 0
      %5829 = vmatpush.bf16.msra.mxu0 0
      %5830 = vmatpush.bf16.msra.mxu0 %v5821
      %5831 = vmatpush.bf16.msra.mxu0 %v5820
      %5832 = vmatpush.bf16.msra.mxu0 %v5819
      %5833 = vmatpush.bf16.msra.mxu0 %v5818
      %5834 = vmatmul.bf16.gmra.mxu0 %v4968
      %v5835 = vpop.f32.mrf.mxu0
      %v5836 = vadd.f32 0.0, %v5835
      %v5837 = vpop.f32.mrf.mxu0
      %v5838 = vadd.f32 0.0, %v5837
      %5839 = vmatmul.bf16.gmra.mxu0 %v4971
      %v5840 = vpop.f32.mrf.mxu0
      %v5841 = vadd.f32 0.0, %v5840
      %v5842 = vpop.f32.mrf.mxu0
      %v5843 = vadd.f32 0.0, %v5842
      %5844 = vmatmul.bf16.gmra.mxu0 %v4974
      %v5845 = vpop.f32.mrf.mxu0
      %v5846 = vadd.f32 0.0, %v5845
      %v5847 = vpop.f32.mrf.mxu0
      %v5848 = vadd.f32 0.0, %v5847
      %5849 = vmatmul.bf16.gmra.mxu0 %v4977
      %v5850 = vpop.f32.mrf.mxu0
      %v5851 = vadd.f32 0.0, %v5850
      %v5852 = vpop.f32.mrf.mxu0
      %v5853 = vadd.f32 0.0, %v5852
      %5854 = vdwg.mxu0
      %v5855 = vpack.c.bf16 %v5838, %v5836
      %v5856 = vpack.c.bf16 %v5843, %v5841
      %v5857 = vpack.c.bf16 %v5848, %v5846
      %v5858 = vpack.c.bf16 %v5853, %v5851
      %s5859 = scalar_lea.vmem %s18, 192
      %v5860 = vld [vmem:[%s5859] sm:$0xf]
      %v5861 = vld [vmem:[%s5859 + $0x4] sm:$0xf]
      %v5862 = vld [vmem:[%s5859 + $0x8] sm:$0xf]
      %v5863 = vld [vmem:[%s5859 + $0xc] sm:$0xf]
      %v5864 = vld [vmem:[%s5859 + $0x10] sm:$0xf]
      %v5865 = vld [vmem:[%s5859 + $0x14] sm:$0xf]
      %v5866 = vld [vmem:[%s5859 + $0x18] sm:$0xf]
      %v5867 = vld [vmem:[%s5859 + $0x1c] sm:$0xf]
      %v5876 = vunpack.c.l.b16 %v5860
      %v5877 = vunpack.c.l.b16 %v5861
      %v5878 = vunpack.c.l.b16 %v5862
      %v5879 = vunpack.c.l.b16 %v5863
      %v5880 = vunpack.c.l.b16 %v5864
      %v5881 = vunpack.c.l.b16 %v5865
      %v5882 = vunpack.c.l.b16 %v5866
      %v5883 = vunpack.c.l.b16 %v5867
      %v5884 = vpack.c.b16 %v5877, %v5876
      %v5885 = vpack.c.b16 %v5879, %v5878
      %v5886 = vpack.c.b16 %v5881, %v5880
      %v5887 = vpack.c.b16 %v5883, %v5882
      %v5889 = vsel %vm4966, %v5884, 0
      %v5892 = vsel %vm4966, %v5885, 0
      %v5895 = vsel %vm4966, %v5886, 0
      %v5898 = vsel %vm4966, %v5887, 0
      %5900 = vmatpush.bf16.msra.mxu0 0
      %5901 = vmatpush.bf16.msra.mxu0 0
      %5902 = vmatpush.bf16.msra.mxu0 0
      %5903 = vmatpush.bf16.msra.mxu0 0
      %5904 = vmatpush.bf16.msra.mxu0 %v5858
      %5905 = vmatpush.bf16.msra.mxu0 %v5857
      %5906 = vmatpush.bf16.msra.mxu0 %v5856
      %5907 = vmatpush.bf16.msra.mxu0 %v5855
      %5908 = vmatmul.bf16.gmra.mxu0 %v5889
      %v5909 = vpop.f32.mrf.mxu0
      %v5910 = vadd.f32 0.0, %v5909
      %v5911 = vpop.f32.mrf.mxu0
      %v5912 = vadd.f32 0.0, %v5911
      %5913 = vmatmul.bf16.gmra.mxu0 %v5892
      %v5914 = vpop.f32.mrf.mxu0
      %v5915 = vadd.f32 0.0, %v5914
      %v5916 = vpop.f32.mrf.mxu0
      %v5917 = vadd.f32 0.0, %v5916
      %5918 = vmatmul.bf16.gmra.mxu0 %v5895
      %v5919 = vpop.f32.mrf.mxu0
      %v5920 = vadd.f32 0.0, %v5919
      %v5921 = vpop.f32.mrf.mxu0
      %v5922 = vadd.f32 0.0, %v5921
      %5923 = vmatmul.bf16.gmra.mxu0 %v5898
      %v5924 = vpop.f32.mrf.mxu0
      %v5925 = vadd.f32 0.0, %v5924
      %v5926 = vpop.f32.mrf.mxu0
      %v5927 = vadd.f32 0.0, %v5926
      %5928 = vdwg.mxu0
      %v5929 = vadd.f32 %v5785, %v5910
      %v5930 = vadd.f32 %v5786, %v5912
      %v5931 = vadd.f32 %v5787, %v5915
      %v5932 = vadd.f32 %v5788, %v5917
      %v5933 = vadd.f32 %v5789, %v5920
      %v5934 = vadd.f32 %v5790, %v5922
      %v5935 = vadd.f32 %v5791, %v5925
      %v5936 = vadd.f32 %v5792, %v5927
      %s5937 = scalar_lea.vmem %s8, 224
      %v5938 = vld [vmem:[%s5937] sm:$0xf]
      %v5939 = vld [vmem:[%s5937 + $0x4] sm:$0xf]
      %v5940 = vld [vmem:[%s5937 + $0x8] sm:$0xf]
      %v5941 = vld [vmem:[%s5937 + $0xc] sm:$0xf]
      %v5942 = vld [vmem:[%s5937 + $0x10] sm:$0xf]
      %v5943 = vld [vmem:[%s5937 + $0x14] sm:$0xf]
      %v5944 = vld [vmem:[%s5937 + $0x18] sm:$0xf]
      %v5945 = vld [vmem:[%s5937 + $0x1c] sm:$0xf]
      %v5954 = vunpack.c.l.b16 %v5938
      %v5955 = vunpack.c.l.b16 %v5939
      %v5956 = vunpack.c.l.b16 %v5940
      %v5957 = vunpack.c.l.b16 %v5941
      %v5958 = vunpack.c.l.b16 %v5942
      %v5959 = vunpack.c.l.b16 %v5943
      %v5960 = vunpack.c.l.b16 %v5944
      %v5961 = vunpack.c.l.b16 %v5945
      %v5962 = vpack.c.b16 %v5955, %v5954
      %v5963 = vpack.c.b16 %v5957, %v5956
      %v5964 = vpack.c.b16 %v5959, %v5958
      %v5965 = vpack.c.b16 %v5961, %v5960
      %5970 = vmatpush.bf16.msra.mxu0 0
      %5971 = vmatpush.bf16.msra.mxu0 0
      %5972 = vmatpush.bf16.msra.mxu0 0
      %5973 = vmatpush.bf16.msra.mxu0 0
      %5974 = vmatpush.bf16.msra.mxu0 %v5965
      %5975 = vmatpush.bf16.msra.mxu0 %v5964
      %5976 = vmatpush.bf16.msra.mxu0 %v5963
      %5977 = vmatpush.bf16.msra.mxu0 %v5962
      %5978 = vmatmul.bf16.gmra.mxu0 %v4968
      %v5979 = vpop.f32.mrf.mxu0
      %v5980 = vadd.f32 0.0, %v5979
      %v5981 = vpop.f32.mrf.mxu0
      %v5982 = vadd.f32 0.0, %v5981
      %5983 = vmatmul.bf16.gmra.mxu0 %v4971
      %v5984 = vpop.f32.mrf.mxu0
      %v5985 = vadd.f32 0.0, %v5984
      %v5986 = vpop.f32.mrf.mxu0
      %v5987 = vadd.f32 0.0, %v5986
      %5988 = vmatmul.bf16.gmra.mxu0 %v4974
      %v5989 = vpop.f32.mrf.mxu0
      %v5990 = vadd.f32 0.0, %v5989
      %v5991 = vpop.f32.mrf.mxu0
      %v5992 = vadd.f32 0.0, %v5991
      %5993 = vmatmul.bf16.gmra.mxu0 %v4977
      %v5994 = vpop.f32.mrf.mxu0
      %v5995 = vadd.f32 0.0, %v5994
      %v5996 = vpop.f32.mrf.mxu0
      %v5997 = vadd.f32 0.0, %v5996
      %5998 = vdwg.mxu0
      %v5999 = vpack.c.bf16 %v5982, %v5980
      %v6000 = vpack.c.bf16 %v5987, %v5985
      %v6001 = vpack.c.bf16 %v5992, %v5990
      %v6002 = vpack.c.bf16 %v5997, %v5995
      %s6003 = scalar_lea.vmem %s18, 224
      %v6004 = vld [vmem:[%s6003] sm:$0xf]
      %v6005 = vld [vmem:[%s6003 + $0x4] sm:$0xf]
      %v6006 = vld [vmem:[%s6003 + $0x8] sm:$0xf]
      %v6007 = vld [vmem:[%s6003 + $0xc] sm:$0xf]
      %v6008 = vld [vmem:[%s6003 + $0x10] sm:$0xf]
      %v6009 = vld [vmem:[%s6003 + $0x14] sm:$0xf]
      %v6010 = vld [vmem:[%s6003 + $0x18] sm:$0xf]
      %v6011 = vld [vmem:[%s6003 + $0x1c] sm:$0xf]
      %v6020 = vunpack.c.l.b16 %v6004
      %v6021 = vunpack.c.l.b16 %v6005
      %v6022 = vunpack.c.l.b16 %v6006
      %v6023 = vunpack.c.l.b16 %v6007
      %v6024 = vunpack.c.l.b16 %v6008
      %v6025 = vunpack.c.l.b16 %v6009
      %v6026 = vunpack.c.l.b16 %v6010
      %v6027 = vunpack.c.l.b16 %v6011
      %v6028 = vpack.c.b16 %v6021, %v6020
      %v6029 = vpack.c.b16 %v6023, %v6022
      %v6030 = vpack.c.b16 %v6025, %v6024
      %v6031 = vpack.c.b16 %v6027, %v6026
      %v6033 = vsel %vm4966, %v6028, 0
      %v6036 = vsel %vm4966, %v6029, 0
      %v6039 = vsel %vm4966, %v6030, 0
      %v6042 = vsel %vm4966, %v6031, 0
      %6044 = vmatpush.bf16.msra.mxu0 0
      %6045 = vmatpush.bf16.msra.mxu0 0
      %6046 = vmatpush.bf16.msra.mxu0 0
      %6047 = vmatpush.bf16.msra.mxu0 0
      %6048 = vmatpush.bf16.msra.mxu0 %v6002
      %6049 = vmatpush.bf16.msra.mxu0 %v6001
      %6050 = vmatpush.bf16.msra.mxu0 %v6000
      %6051 = vmatpush.bf16.msra.mxu0 %v5999
      %6052 = vmatmul.bf16.gmra.mxu0 %v6033
      %v6053 = vpop.f32.mrf.mxu0
      %v6054 = vadd.f32 0.0, %v6053
      %v6055 = vpop.f32.mrf.mxu0
      %v6056 = vadd.f32 0.0, %v6055
      %6057 = vmatmul.bf16.gmra.mxu0 %v6036
      %v6058 = vpop.f32.mrf.mxu0
      %v6059 = vadd.f32 0.0, %v6058
      %v6060 = vpop.f32.mrf.mxu0
      %v6061 = vadd.f32 0.0, %v6060
      %6062 = vmatmul.bf16.gmra.mxu0 %v6039
      %v6063 = vpop.f32.mrf.mxu0
      %v6064 = vadd.f32 0.0, %v6063
      %v6065 = vpop.f32.mrf.mxu0
      %v6066 = vadd.f32 0.0, %v6065
      %6067 = vmatmul.bf16.gmra.mxu0 %v6042
      %v6068 = vpop.f32.mrf.mxu0
      %v6069 = vadd.f32 0.0, %v6068
      %v6070 = vpop.f32.mrf.mxu0
      %v6071 = vadd.f32 0.0, %v6070
      %6072 = vdwg.mxu0
      %v6073 = vadd.f32 %v5929, %v6054
      %v6074 = vadd.f32 %v5930, %v6056
      %v6075 = vadd.f32 %v5931, %v6059
      %v6076 = vadd.f32 %v5932, %v6061
      %v6077 = vadd.f32 %v5933, %v6064
      %v6078 = vadd.f32 %v5934, %v6066
      %v6079 = vadd.f32 %v5935, %v6069
      %v6080 = vadd.f32 %v5936, %v6071
      %s6081 = scalar_lea.vmem %s8, 256
      %v6082 = vld [vmem:[%s6081] sm:$0xf]
      %v6083 = vld [vmem:[%s6081 + $0x4] sm:$0xf]
      %v6084 = vld [vmem:[%s6081 + $0x8] sm:$0xf]
      %v6085 = vld [vmem:[%s6081 + $0xc] sm:$0xf]
      %v6086 = vld [vmem:[%s6081 + $0x10] sm:$0xf]
      %v6087 = vld [vmem:[%s6081 + $0x14] sm:$0xf]
      %v6088 = vld [vmem:[%s6081 + $0x18] sm:$0xf]
      %v6089 = vld [vmem:[%s6081 + $0x1c] sm:$0xf]
      %v6098 = vunpack.c.l.b16 %v6082
      %v6099 = vunpack.c.l.b16 %v6083
      %v6100 = vunpack.c.l.b16 %v6084
      %v6101 = vunpack.c.l.b16 %v6085
      %v6102 = vunpack.c.l.b16 %v6086
      %v6103 = vunpack.c.l.b16 %v6087
      %v6104 = vunpack.c.l.b16 %v6088
      %v6105 = vunpack.c.l.b16 %v6089
      %v6106 = vpack.c.b16 %v6099, %v6098
      %v6107 = vpack.c.b16 %v6101, %v6100
      %v6108 = vpack.c.b16 %v6103, %v6102
      %v6109 = vpack.c.b16 %v6105, %v6104
      %6114 = vmatpush.bf16.msra.mxu0 0
      %6115 = vmatpush.bf16.msra.mxu0 0
      %6116 = vmatpush.bf16.msra.mxu0 0
      %6117 = vmatpush.bf16.msra.mxu0 0
      %6118 = vmatpush.bf16.msra.mxu0 %v6109
      %6119 = vmatpush.bf16.msra.mxu0 %v6108
      %6120 = vmatpush.bf16.msra.mxu0 %v6107
      %6121 = vmatpush.bf16.msra.mxu0 %v6106
      %6122 = vmatmul.bf16.gmra.mxu0 %v4968
      %v6123 = vpop.f32.mrf.mxu0
      %v6124 = vadd.f32 0.0, %v6123
      %v6125 = vpop.f32.mrf.mxu0
      %v6126 = vadd.f32 0.0, %v6125
      %6127 = vmatmul.bf16.gmra.mxu0 %v4971
      %v6128 = vpop.f32.mrf.mxu0
      %v6129 = vadd.f32 0.0, %v6128
      %v6130 = vpop.f32.mrf.mxu0
      %v6131 = vadd.f32 0.0, %v6130
      %6132 = vmatmul.bf16.gmra.mxu0 %v4974
      %v6133 = vpop.f32.mrf.mxu0
      %v6134 = vadd.f32 0.0, %v6133
      %v6135 = vpop.f32.mrf.mxu0
      %v6136 = vadd.f32 0.0, %v6135
      %6137 = vmatmul.bf16.gmra.mxu0 %v4977
      %v6138 = vpop.f32.mrf.mxu0
      %v6139 = vadd.f32 0.0, %v6138
      %v6140 = vpop.f32.mrf.mxu0
      %v6141 = vadd.f32 0.0, %v6140
      %6142 = vdwg.mxu0
      %v6143 = vpack.c.bf16 %v6126, %v6124
      %v6144 = vpack.c.bf16 %v6131, %v6129
      %v6145 = vpack.c.bf16 %v6136, %v6134
      %v6146 = vpack.c.bf16 %v6141, %v6139
      %s6147 = scalar_lea.vmem %s18, 256
      %v6148 = vld [vmem:[%s6147] sm:$0xf]
      %v6149 = vld [vmem:[%s6147 + $0x4] sm:$0xf]
      %v6150 = vld [vmem:[%s6147 + $0x8] sm:$0xf]
      %v6151 = vld [vmem:[%s6147 + $0xc] sm:$0xf]
      %v6152 = vld [vmem:[%s6147 + $0x10] sm:$0xf]
      %v6153 = vld [vmem:[%s6147 + $0x14] sm:$0xf]
      %v6154 = vld [vmem:[%s6147 + $0x18] sm:$0xf]
      %v6155 = vld [vmem:[%s6147 + $0x1c] sm:$0xf]
      %v6164 = vunpack.c.l.b16 %v6148
      %v6165 = vunpack.c.l.b16 %v6149
      %v6166 = vunpack.c.l.b16 %v6150
      %v6167 = vunpack.c.l.b16 %v6151
      %v6168 = vunpack.c.l.b16 %v6152
      %v6169 = vunpack.c.l.b16 %v6153
      %v6170 = vunpack.c.l.b16 %v6154
      %v6171 = vunpack.c.l.b16 %v6155
      %v6172 = vpack.c.b16 %v6165, %v6164
      %v6173 = vpack.c.b16 %v6167, %v6166
      %v6174 = vpack.c.b16 %v6169, %v6168
      %v6175 = vpack.c.b16 %v6171, %v6170
      %v6177 = vsel %vm4966, %v6172, 0
      %v6180 = vsel %vm4966, %v6173, 0
      %v6183 = vsel %vm4966, %v6174, 0
      %v6186 = vsel %vm4966, %v6175, 0
      %6188 = vmatpush.bf16.msra.mxu0 0
      %6189 = vmatpush.bf16.msra.mxu0 0
      %6190 = vmatpush.bf16.msra.mxu0 0
      %6191 = vmatpush.bf16.msra.mxu0 0
      %6192 = vmatpush.bf16.msra.mxu0 %v6146
      %6193 = vmatpush.bf16.msra.mxu0 %v6145
      %6194 = vmatpush.bf16.msra.mxu0 %v6144
      %6195 = vmatpush.bf16.msra.mxu0 %v6143
      %6196 = vmatmul.bf16.gmra.mxu0 %v6177
      %v6197 = vpop.f32.mrf.mxu0
      %v6198 = vadd.f32 0.0, %v6197
      %v6199 = vpop.f32.mrf.mxu0
      %v6200 = vadd.f32 0.0, %v6199
      %6201 = vmatmul.bf16.gmra.mxu0 %v6180
      %v6202 = vpop.f32.mrf.mxu0
      %v6203 = vadd.f32 0.0, %v6202
      %v6204 = vpop.f32.mrf.mxu0
      %v6205 = vadd.f32 0.0, %v6204
      %6206 = vmatmul.bf16.gmra.mxu0 %v6183
      %v6207 = vpop.f32.mrf.mxu0
      %v6208 = vadd.f32 0.0, %v6207
      %v6209 = vpop.f32.mrf.mxu0
      %v6210 = vadd.f32 0.0, %v6209
      %6211 = vmatmul.bf16.gmra.mxu0 %v6186
      %v6212 = vpop.f32.mrf.mxu0
      %v6213 = vadd.f32 0.0, %v6212
      %v6214 = vpop.f32.mrf.mxu0
      %v6215 = vadd.f32 0.0, %v6214
      %6216 = vdwg.mxu0
      %v6217 = vadd.f32 %v6073, %v6198
      %v6218 = vadd.f32 %v6074, %v6200
      %v6219 = vadd.f32 %v6075, %v6203
      %v6220 = vadd.f32 %v6076, %v6205
      %v6221 = vadd.f32 %v6077, %v6208
      %v6222 = vadd.f32 %v6078, %v6210
      %v6223 = vadd.f32 %v6079, %v6213
      %v6224 = vadd.f32 %v6080, %v6215
      %v6225 = vld [vmem:[%s19] sm:$0xff]
      %v6226 = vld [vmem:[%s19 + $0x8] sm:$0xff]
      %v6227 = vld [vmem:[%s19 + $0x10] sm:$0xff]
      %v6228 = vld [vmem:[%s19 + $0x18] sm:$0xff]
      %v6229 = vld [vmem:[%s19 + $0x20] sm:$0xff]
      %v6230 = vld [vmem:[%s19 + $0x28] sm:$0xff]
      %v6231 = vld [vmem:[%s19 + $0x30] sm:$0xff]
      %v6232 = vld [vmem:[%s19 + $0x38] sm:$0xff]
      %6234 = vset.pattern.permute.xlu0 0
      %6235 = vperm.xlu0 %6234, %v6225
      %v6236 = vpop.permute.xlu0 %6235
      %6239 = vset.pattern.permute.xlu0 0
      %6240 = vperm.xlu0 %6239, %v6226
      %v6241 = vpop.permute.xlu0 %6240
      %6244 = vset.pattern.permute.xlu0 0
      %6245 = vperm.xlu0 %6244, %v6227
      %v6246 = vpop.permute.xlu0 %6245
      %6249 = vset.pattern.permute.xlu0 0
      %6250 = vperm.xlu0 %6249, %v6228
      %v6251 = vpop.permute.xlu0 %6250
      %6254 = vset.pattern.permute.xlu0 0
      %6255 = vperm.xlu0 %6254, %v6229
      %v6256 = vpop.permute.xlu0 %6255
      %6259 = vset.pattern.permute.xlu0 0
      %6260 = vperm.xlu0 %6259, %v6230
      %v6261 = vpop.permute.xlu0 %6260
      %6264 = vset.pattern.permute.xlu0 0
      %6265 = vperm.xlu0 %6264, %v6231
      %v6266 = vpop.permute.xlu0 %6265
      %6269 = vset.pattern.permute.xlu0 0
      %6270 = vperm.xlu0 %6269, %v6232
      %v6271 = vpop.permute.xlu0 %6270
      %v6273 = vadd.f32 %v6217, %v6236
      %v6274 = vadd.f32 %v6218, %v6241
      %v6275 = vadd.f32 %v6219, %v6246
      %v6276 = vadd.f32 %v6220, %v6251
      %v6277 = vadd.f32 %v6221, %v6256
      %v6278 = vadd.f32 %v6222, %v6261
      %v6279 = vadd.f32 %v6223, %v6266
      %v6280 = vadd.f32 %v6224, %v6271
      %v6281 = vmax.f32 %v6273, 0.0
      %v6282 = vmax.f32 %v6274, 0.0
      %v6283 = vmax.f32 %v6275, 0.0
      %v6284 = vmax.f32 %v6276, 0.0
      %v6285 = vmax.f32 %v6277, 0.0
      %v6286 = vmax.f32 %v6278, 0.0
      %v6287 = vmax.f32 %v6279, 0.0
      %v6288 = vmax.f32 %v6280, 0.0
      %v6289 = vpack.c.bf16 %v6282, %v6281
      %v6290 = vpack.c.bf16 %v6284, %v6283
      %v6291 = vpack.c.bf16 %v6286, %v6285
      %v6292 = vpack.c.bf16 %v6288, %v6287
      %v6293 = vld [vmem:[%s6] sm:$0xff]
      %v6294 = vld [vmem:[%s6 + $0x8] sm:$0xff]
      %v6295 = vld [vmem:[%s6 + $0x10] sm:$0xff]
      %v6296 = vld [vmem:[%s6 + $0x18] sm:$0xff]
      %v6297 = vld [vmem:[%s6 + $0x20] sm:$0xff]
      %v6298 = vld [vmem:[%s6 + $0x28] sm:$0xff]
      %v6299 = vld [vmem:[%s6 + $0x30] sm:$0xff]
      %v6300 = vld [vmem:[%s6 + $0x38] sm:$0xff]
      %v6309 = vunpack.c.l.b16 %v6293
      %v6310 = vunpack.c.h.b16 %v6293
      %v6311 = vunpack.c.l.b16 %v6294
      %v6312 = vunpack.c.h.b16 %v6294
      %v6313 = vunpack.c.l.b16 %v6295
      %v6314 = vunpack.c.h.b16 %v6295
      %v6315 = vunpack.c.l.b16 %v6296
      %v6316 = vunpack.c.h.b16 %v6296
      %v6317 = vunpack.c.l.b16 %v6297
      %v6318 = vunpack.c.h.b16 %v6297
      %v6319 = vunpack.c.l.b16 %v6298
      %v6320 = vunpack.c.h.b16 %v6298
      %v6321 = vunpack.c.l.b16 %v6299
      %v6322 = vunpack.c.h.b16 %v6299
      %v6323 = vunpack.c.l.b16 %v6300
      %v6324 = vunpack.c.h.b16 %v6300
      %v6325 = vpack.c.b16 %v6311, %v6309
      %v6326 = vpack.c.b16 %v6312, %v6310
      %v6327 = vpack.c.b16 %v6315, %v6313
      %v6328 = vpack.c.b16 %v6316, %v6314
      %v6329 = vpack.c.b16 %v6319, %v6317
      %v6330 = vpack.c.b16 %v6320, %v6318
      %v6331 = vpack.c.b16 %v6323, %v6321
      %v6332 = vpack.c.b16 %v6324, %v6322
      %v6342 = vsel %vm4966, %v6289, 0
      %v6345 = vsel %vm4966, %v6290, 0
      %v6348 = vsel %vm4966, %v6291, 0
      %v6351 = vsel %vm4966, %v6292, 0
      %6353 = vmatpush.bf16.msra.mxu0 0
      %6354 = vmatpush.bf16.msra.mxu0 0
      %6355 = vmatpush.bf16.msra.mxu0 0
      %6356 = vmatpush.bf16.msra.mxu0 0
      %6357 = vmatpush.bf16.msra.mxu0 %v6331
      %6358 = vmatpush.bf16.msra.mxu0 %v6329
      %6359 = vmatpush.bf16.msra.mxu0 %v6327
      %6360 = vmatpush.bf16.msra.mxu0 %v6325
      %6361 = vmatmul.bf16.gmra.mxu0 %v6342
      %v6362 = vpop.f32.mrf.mxu0
      %v6363 = vadd.f32 0.0, %v6362
      %v6364 = vpop.f32.mrf.mxu0
      %v6365 = vadd.f32 0.0, %v6364
      %6366 = vmatmul.bf16.gmra.mxu0 %v6345
      %v6367 = vpop.f32.mrf.mxu0
      %v6368 = vadd.f32 0.0, %v6367
      %v6369 = vpop.f32.mrf.mxu0
      %v6370 = vadd.f32 0.0, %v6369
      %6371 = vmatmul.bf16.gmra.mxu0 %v6348
      %v6372 = vpop.f32.mrf.mxu0
      %v6373 = vadd.f32 0.0, %v6372
      %v6374 = vpop.f32.mrf.mxu0
      %v6375 = vadd.f32 0.0, %v6374
      %6376 = vmatmul.bf16.gmra.mxu0 %v6351
      %v6377 = vpop.f32.mrf.mxu0
      %v6378 = vadd.f32 0.0, %v6377
      %v6379 = vpop.f32.mrf.mxu0
      %v6380 = vadd.f32 0.0, %v6379
      %6381 = vdwg.mxu0
      %6382 = vmatpush.bf16.msra.mxu0 0
      %6383 = vmatpush.bf16.msra.mxu0 0
      %6384 = vmatpush.bf16.msra.mxu0 0
      %6385 = vmatpush.bf16.msra.mxu0 0
      %6386 = vmatpush.bf16.msra.mxu0 %v6332
      %6387 = vmatpush.bf16.msra.mxu0 %v6330
      %6388 = vmatpush.bf16.msra.mxu0 %v6328
      %6389 = vmatpush.bf16.msra.mxu0 %v6326
      %6390 = vmatmul.bf16.gmra.mxu0 %v6342
      %v6391 = vpop.f32.mrf.mxu0
      %v6392 = vadd.f32 0.0, %v6391
      %v6393 = vpop.f32.mrf.mxu0
      %v6394 = vadd.f32 0.0, %v6393
      %6395 = vmatmul.bf16.gmra.mxu0 %v6345
      %v6396 = vpop.f32.mrf.mxu0
      %v6397 = vadd.f32 0.0, %v6396
      %v6398 = vpop.f32.mrf.mxu0
      %v6399 = vadd.f32 0.0, %v6398
      %6400 = vmatmul.bf16.gmra.mxu0 %v6348
      %v6401 = vpop.f32.mrf.mxu0
      %v6402 = vadd.f32 0.0, %v6401
      %v6403 = vpop.f32.mrf.mxu0
      %v6404 = vadd.f32 0.0, %v6403
      %6405 = vmatmul.bf16.gmra.mxu0 %v6351
      %v6406 = vpop.f32.mrf.mxu0
      %v6407 = vadd.f32 0.0, %v6406
      %v6408 = vpop.f32.mrf.mxu0
      %v6409 = vadd.f32 0.0, %v6408
      %6410 = vdwg.mxu0
      %v6411 = vpack.c.bf16 %v6365, %v6363
      %v6412 = vpack.c.bf16 %v6394, %v6392
      %v6413 = vpack.c.bf16 %v6370, %v6368
      %v6414 = vpack.c.bf16 %v6399, %v6397
      %v6415 = vpack.c.bf16 %v6375, %v6373
      %v6416 = vpack.c.bf16 %v6404, %v6402
      %v6417 = vpack.c.bf16 %v6380, %v6378
      %v6418 = vpack.c.bf16 %v6409, %v6407
      %v6419 = vld [vmem:[%s20] sm:$0xf]
      %v6420 = vld [vmem:[%s20 + $0x4] sm:$0xf]
      %v6421 = vld [vmem:[%s20 + $0x8] sm:$0xf]
      %v6422 = vld [vmem:[%s20 + $0xc] sm:$0xf]
      %v6423 = vld [vmem:[%s21] sm:$0xf]
      %v6424 = vld [vmem:[%s21 + $0x4] sm:$0xf]
      %v6425 = vld [vmem:[%s21 + $0x8] sm:$0xf]
      %v6426 = vld [vmem:[%s21 + $0xc] sm:$0xf]
      %v6431 = vunpack.c.l.b16 %v6423
      %v6432 = vunpack.c.l.b16 %v6424
      %v6433 = vunpack.c.l.b16 %v6425
      %v6434 = vunpack.c.l.b16 %v6426
      %v6435 = vpack.c.b16 %v6432, %v6431
      %v6436 = vpack.c.b16 %v6434, %v6433
      %v6455 = vunpack.c.l.b16 %v880
      %v6456 = vunpack.c.h.b16 %v880
      %v6457 = vunpack.c.l.b16 %v881
      %v6458 = vunpack.c.h.b16 %v881
      %v6459 = vunpack.c.l.b16 %v882
      %v6460 = vunpack.c.h.b16 %v882
      %v6461 = vunpack.c.l.b16 %v883
      %v6462 = vunpack.c.h.b16 %v883
      %v6463 = vunpack.c.l.b16 %v884
      %v6464 = vunpack.c.h.b16 %v884
      %v6465 = vunpack.c.l.b16 %v885
      %v6466 = vunpack.c.h.b16 %v885
      %v6467 = vunpack.c.l.b16 %v886
      %v6468 = vunpack.c.h.b16 %v886
      %v6469 = vunpack.c.l.b16 %v887
      %v6470 = vunpack.c.h.b16 %v887
      %v6471 = vunpack.c.l.b16 %v888
      %v6472 = vunpack.c.h.b16 %v888
      %v6473 = vunpack.c.l.b16 %v889
      %v6474 = vunpack.c.h.b16 %v889
      %v6475 = vunpack.c.l.b16 %v890
      %v6476 = vunpack.c.h.b16 %v890
      %v6477 = vunpack.c.l.b16 %v891
      %v6478 = vunpack.c.h.b16 %v891
      %v6479 = vunpack.c.l.b16 %v892
      %v6480 = vunpack.c.h.b16 %v892
      %v6481 = vunpack.c.l.b16 %v893
      %v6482 = vunpack.c.h.b16 %v893
      %v6483 = vunpack.c.l.b16 %v894
      %v6484 = vunpack.c.h.b16 %v894
      %v6485 = vunpack.c.l.b16 %v895
      %v6486 = vunpack.c.h.b16 %v895
      %v6487 = vpack.c.b16 %v6457, %v6455
      %v6488 = vpack.c.b16 %v6458, %v6456
      %v6489 = vpack.c.b16 %v6461, %v6459
      %v6490 = vpack.c.b16 %v6462, %v6460
      %v6491 = vpack.c.b16 %v6465, %v6463
      %v6492 = vpack.c.b16 %v6466, %v6464
      %v6493 = vpack.c.b16 %v6469, %v6467
      %v6494 = vpack.c.b16 %v6470, %v6468
      %v6495 = vpack.c.b16 %v6473, %v6471
      %v6496 = vpack.c.b16 %v6474, %v6472
      %v6497 = vpack.c.b16 %v6477, %v6475
      %v6498 = vpack.c.b16 %v6478, %v6476
      %v6499 = vpack.c.b16 %v6481, %v6479
      %v6500 = vpack.c.b16 %v6482, %v6480
      %v6501 = vpack.c.b16 %v6485, %v6483
      %v6502 = vpack.c.b16 %v6486, %v6484
      %6519 = vmatpush.bf16.msra.mxu0 %v6501
      %6520 = vmatpush.bf16.msra.mxu0 %v6499
      %6521 = vmatpush.bf16.msra.mxu0 %v6497
      %6522 = vmatpush.bf16.msra.mxu0 %v6495
      %6523 = vmatpush.bf16.msra.mxu0 %v6493
      %6524 = vmatpush.bf16.msra.mxu0 %v6491
      %6525 = vmatpush.bf16.msra.mxu0 %v6489
      %6526 = vmatpush.bf16.msra.mxu0 %v6487
      %6527 = vmatmul.bf16.gmra.mxu0 %v6435
      %v6528 = vpop.f32.mrf.mxu0
      %v6529 = vadd.f32 0.0, %v6528
      %v6530 = vpop.f32.mrf.mxu0
      %v6531 = vadd.f32 0.0, %v6530
      %6532 = vmatmul.bf16.gmra.mxu0 %v6436
      %v6533 = vpop.f32.mrf.mxu0
      %v6534 = vadd.f32 0.0, %v6533
      %v6535 = vpop.f32.mrf.mxu0
      %v6536 = vadd.f32 0.0, %v6535
      %6537 = vdwg.mxu0
      %6538 = vmatpush.bf16.msra.mxu0 %v6502
      %6539 = vmatpush.bf16.msra.mxu0 %v6500
      %6540 = vmatpush.bf16.msra.mxu0 %v6498
      %6541 = vmatpush.bf16.msra.mxu0 %v6496
      %6542 = vmatpush.bf16.msra.mxu0 %v6494
      %6543 = vmatpush.bf16.msra.mxu0 %v6492
      %6544 = vmatpush.bf16.msra.mxu0 %v6490
      %6545 = vmatpush.bf16.msra.mxu0 %v6488
      %6546 = vmatmul.bf16.gmra.mxu0 %v6435
      %v6547 = vpop.f32.mrf.mxu0
      %v6548 = vadd.f32 0.0, %v6547
      %v6549 = vpop.f32.mrf.mxu0
      %v6550 = vadd.f32 0.0, %v6549
      %6551 = vmatmul.bf16.gmra.mxu0 %v6436
      %v6552 = vpop.f32.mrf.mxu0
      %v6553 = vadd.f32 0.0, %v6552
      %v6554 = vpop.f32.mrf.mxu0
      %v6555 = vadd.f32 0.0, %v6554
      %6556 = vdwg.mxu0
      %v6561 = vunpack.c.l.b16 %v6419
      %v6562 = vunpack.c.l.b16 %v6420
      %v6563 = vunpack.c.l.b16 %v6421
      %v6564 = vunpack.c.l.b16 %v6422
      %v6565 = vpack.c.b16 %v6562, %v6561
      %v6566 = vpack.c.b16 %v6564, %v6563
      %v6568 = vsel %vm4966, %v6565, 0
      %v6571 = vsel %vm4966, %v6566, 0
      %6573 = vmatpush.bf16.msra.mxu0 0
      %6574 = vmatpush.bf16.msra.mxu0 0
      %6575 = vmatpush.bf16.msra.mxu0 0
      %6576 = vmatpush.bf16.msra.mxu0 0
      %6577 = vmatpush.bf16.msra.mxu0 %v6417
      %6578 = vmatpush.bf16.msra.mxu0 %v6415
      %6579 = vmatpush.bf16.msra.mxu0 %v6413
      %6580 = vmatpush.bf16.msra.mxu0 %v6411
      %6581 = vmatmul.bf16.gmra.mxu0 %v6568
      %v6582 = vpop.f32.mrf.mxu0
      %v6583 = vadd.f32 %v6529, %v6582
      %v6584 = vpop.f32.mrf.mxu0
      %v6585 = vadd.f32 %v6531, %v6584
      %6586 = vmatmul.bf16.gmra.mxu0 %v6571
      %v6587 = vpop.f32.mrf.mxu0
      %v6588 = vadd.f32 %v6534, %v6587
      %v6589 = vpop.f32.mrf.mxu0
      %v6590 = vadd.f32 %v6536, %v6589
      %6591 = vdwg.mxu0
      %6592 = vmatpush.bf16.msra.mxu0 0
      %6593 = vmatpush.bf16.msra.mxu0 0
      %6594 = vmatpush.bf16.msra.mxu0 0
      %6595 = vmatpush.bf16.msra.mxu0 0
      %6596 = vmatpush.bf16.msra.mxu0 %v6418
      %6597 = vmatpush.bf16.msra.mxu0 %v6416
      %6598 = vmatpush.bf16.msra.mxu0 %v6414
      %6599 = vmatpush.bf16.msra.mxu0 %v6412
      %6600 = vmatmul.bf16.gmra.mxu0 %v6568
      %v6601 = vpop.f32.mrf.mxu0
      %v6602 = vadd.f32 %v6548, %v6601
      %v6603 = vpop.f32.mrf.mxu0
      %v6604 = vadd.f32 %v6550, %v6603
      %6605 = vmatmul.bf16.gmra.mxu0 %v6571
      %v6606 = vpop.f32.mrf.mxu0
      %v6607 = vadd.f32 %v6553, %v6606
      %v6608 = vpop.f32.mrf.mxu0
      %v6609 = vadd.f32 %v6555, %v6608
      %6610 = vdwg.mxu0
      %v6611 = vld [vmem:[%s22] sm:$0xff]
      %v6612 = vld [vmem:[%s22 + $0x8] sm:$0xff]
      %v6613 = vld [vmem:[%s22 + $0x10] sm:$0xff]
      %v6614 = vld [vmem:[%s22 + $0x18] sm:$0xff]
      %6616 = vset.pattern.permute.xlu0 0
      %6617 = vperm.xlu0 %6616, %v6611
      %v6618 = vpop.permute.xlu0 %6617
      %6621 = vset.pattern.permute.xlu0 0
      %6622 = vperm.xlu0 %6621, %v6612
      %v6623 = vpop.permute.xlu0 %6622
      %6626 = vset.pattern.permute.xlu0 0
      %6627 = vperm.xlu0 %6626, %v6613
      %v6628 = vpop.permute.xlu0 %6627
      %6631 = vset.pattern.permute.xlu0 0
      %6632 = vperm.xlu0 %6631, %v6614
      %v6633 = vpop.permute.xlu0 %6632
      %v6635 = vadd.f32 %v6583, %v6618
      %v6636 = vadd.f32 %v6602, %v6618
      %v6637 = vadd.f32 %v6585, %v6623
      %v6638 = vadd.f32 %v6604, %v6623
      %v6639 = vadd.f32 %v6588, %v6628
      %v6640 = vadd.f32 %v6607, %v6628
      %v6641 = vadd.f32 %v6590, %v6633
      %v6642 = vadd.f32 %v6609, %v6633
      %v6643 = vmax.f32 %v6635, 0.0
      %v6644 = vmax.f32 %v6636, 0.0
      %v6645 = vmax.f32 %v6637, 0.0
      %v6646 = vmax.f32 %v6638, 0.0
      %v6647 = vmax.f32 %v6639, 0.0
      %v6648 = vmax.f32 %v6640, 0.0
      %v6649 = vmax.f32 %v6641, 0.0
      %v6650 = vmax.f32 %v6642, 0.0
      %v6651 = vpack.c.bf16 %v6645, %v6643
      %v6652 = vpack.c.bf16 %v6646, %v6644
      %v6653 = vpack.c.bf16 %v6649, %v6647
      %v6654 = vpack.c.bf16 %v6650, %v6648
      %v6655 = vld [vmem:[%s9] sm:$0xff]
      %v6656 = vld [vmem:[%s9 + $0x8] sm:$0xff]
      %v6657 = vld [vmem:[%s9 + $0x10] sm:$0xff]
      %v6658 = vld [vmem:[%s9 + $0x18] sm:$0xff]
      %v6659 = vld [vmem:[%s9 + $0x20] sm:$0xff]
      %v6660 = vld [vmem:[%s9 + $0x28] sm:$0xff]
      %v6661 = vld [vmem:[%s9 + $0x30] sm:$0xff]
      %v6662 = vld [vmem:[%s9 + $0x38] sm:$0xff]
      %v6663 = vld [vmem:[%s9 + $0x40] sm:$0xff]
      %v6664 = vld [vmem:[%s9 + $0x48] sm:$0xff]
      %v6665 = vld [vmem:[%s9 + $0x50] sm:$0xff]
      %v6666 = vld [vmem:[%s9 + $0x58] sm:$0xff]
      %v6667 = vld [vmem:[%s9 + $0x60] sm:$0xff]
      %v6668 = vld [vmem:[%s9 + $0x68] sm:$0xff]
      %v6669 = vld [vmem:[%s9 + $0x70] sm:$0xff]
      %v6670 = vld [vmem:[%s9 + $0x78] sm:$0xff]
      %v6671 = vld [vmem:[%s9 + $0x80] sm:$0xff]
      %v6672 = vld [vmem:[%s9 + $0x88] sm:$0xff]
      %v6673 = vld [vmem:[%s9 + $0x90] sm:$0xff]
      %v6674 = vld [vmem:[%s9 + $0x98] sm:$0xff]
      %v6675 = vld [vmem:[%s9 + $0xa0] sm:$0xff]
      %v6676 = vld [vmem:[%s9 + $0xa8] sm:$0xff]
      %v6677 = vld [vmem:[%s9 + $0xb0] sm:$0xff]
      %v6678 = vld [vmem:[%s9 + $0xb8] sm:$0xff]
      %v6679 = vld [vmem:[%s9 + $0xc0] sm:$0xff]
      %v6680 = vld [vmem:[%s9 + $0xc8] sm:$0xff]
      %v6681 = vld [vmem:[%s9 + $0xd0] sm:$0xff]
      %v6682 = vld [vmem:[%s9 + $0xd8] sm:$0xff]
      %v6683 = vld [vmem:[%s9 + $0xe0] sm:$0xff]
      %v6684 = vld [vmem:[%s9 + $0xe8] sm:$0xff]
      %v6685 = vld [vmem:[%s9 + $0xf0] sm:$0xff]
      %v6686 = vld [vmem:[%s9 + $0xf8] sm:$0xff]
      %v6719 = vunpack.c.l.b16 %v6655
      %v6720 = vunpack.c.h.b16 %v6655
      %v6721 = vunpack.c.l.b16 %v6656
      %v6722 = vunpack.c.h.b16 %v6656
      %v6723 = vunpack.c.l.b16 %v6657
      %v6724 = vunpack.c.h.b16 %v6657
      %v6725 = vunpack.c.l.b16 %v6658
      %v6726 = vunpack.c.h.b16 %v6658
      %v6727 = vunpack.c.l.b16 %v6659
      %v6728 = vunpack.c.h.b16 %v6659
      %v6729 = vunpack.c.l.b16 %v6660
      %v6730 = vunpack.c.h.b16 %v6660
      %v6731 = vunpack.c.l.b16 %v6661
      %v6732 = vunpack.c.h.b16 %v6661
      %v6733 = vunpack.c.l.b16 %v6662
      %v6734 = vunpack.c.h.b16 %v6662
      %v6735 = vunpack.c.l.b16 %v6663
      %v6736 = vunpack.c.h.b16 %v6663
      %v6737 = vunpack.c.l.b16 %v6664
      %v6738 = vunpack.c.h.b16 %v6664
      %v6739 = vunpack.c.l.b16 %v6665
      %v6740 = vunpack.c.h.b16 %v6665
      %v6741 = vunpack.c.l.b16 %v6666
      %v6742 = vunpack.c.h.b16 %v6666
      %v6743 = vunpack.c.l.b16 %v6667
      %v6744 = vunpack.c.h.b16 %v6667
      %v6745 = vunpack.c.l.b16 %v6668
      %v6746 = vunpack.c.h.b16 %v6668
      %v6747 = vunpack.c.l.b16 %v6669
      %v6748 = vunpack.c.h.b16 %v6669
      %v6749 = vunpack.c.l.b16 %v6670
      %v6750 = vunpack.c.h.b16 %v6670
      %v6751 = vunpack.c.l.b16 %v6671
      %v6752 = vunpack.c.h.b16 %v6671
      %v6753 = vunpack.c.l.b16 %v6672
      %v6754 = vunpack.c.h.b16 %v6672
      %v6755 = vunpack.c.l.b16 %v6673
      %v6756 = vunpack.c.h.b16 %v6673
      %v6757 = vunpack.c.l.b16 %v6674
      %v6758 = vunpack.c.h.b16 %v6674
      %v6759 = vunpack.c.l.b16 %v6675
      %v6760 = vunpack.c.h.b16 %v6675
      %v6761 = vunpack.c.l.b16 %v6676
      %v6762 = vunpack.c.h.b16 %v6676
      %v6763 = vunpack.c.l.b16 %v6677
      %v6764 = vunpack.c.h.b16 %v6677
      %v6765 = vunpack.c.l.b16 %v6678
      %v6766 = vunpack.c.h.b16 %v6678
      %v6767 = vunpack.c.l.b16 %v6679
      %v6768 = vunpack.c.h.b16 %v6679
      %v6769 = vunpack.c.l.b16 %v6680
      %v6770 = vunpack.c.h.b16 %v6680
      %v6771 = vunpack.c.l.b16 %v6681
      %v6772 = vunpack.c.h.b16 %v6681
      %v6773 = vunpack.c.l.b16 %v6682
      %v6774 = vunpack.c.h.b16 %v6682
      %v6775 = vunpack.c.l.b16 %v6683
      %v6776 = vunpack.c.h.b16 %v6683
      %v6777 = vunpack.c.l.b16 %v6684
      %v6778 = vunpack.c.h.b16 %v6684
      %v6779 = vunpack.c.l.b16 %v6685
      %v6780 = vunpack.c.h.b16 %v6685
      %v6781 = vunpack.c.l.b16 %v6686
      %v6782 = vunpack.c.h.b16 %v6686
      %v6783 = vpack.c.b16 %v6721, %v6719
      %v6784 = vpack.c.b16 %v6722, %v6720
      %v6785 = vpack.c.b16 %v6725, %v6723
      %v6786 = vpack.c.b16 %v6726, %v6724
      %v6787 = vpack.c.b16 %v6729, %v6727
      %v6788 = vpack.c.b16 %v6730, %v6728
      %v6789 = vpack.c.b16 %v6733, %v6731
      %v6790 = vpack.c.b16 %v6734, %v6732
      %v6791 = vpack.c.b16 %v6737, %v6735
      %v6792 = vpack.c.b16 %v6738, %v6736
      %v6793 = vpack.c.b16 %v6741, %v6739
      %v6794 = vpack.c.b16 %v6742, %v6740
      %v6795 = vpack.c.b16 %v6745, %v6743
      %v6796 = vpack.c.b16 %v6746, %v6744
      %v6797 = vpack.c.b16 %v6749, %v6747
      %v6798 = vpack.c.b16 %v6750, %v6748
      %v6799 = vpack.c.b16 %v6753, %v6751
      %v6800 = vpack.c.b16 %v6754, %v6752
      %v6801 = vpack.c.b16 %v6757, %v6755
      %v6802 = vpack.c.b16 %v6758, %v6756
      %v6803 = vpack.c.b16 %v6761, %v6759
      %v6804 = vpack.c.b16 %v6762, %v6760
      %v6805 = vpack.c.b16 %v6765, %v6763
      %v6806 = vpack.c.b16 %v6766, %v6764
      %v6807 = vpack.c.b16 %v6769, %v6767
      %v6808 = vpack.c.b16 %v6770, %v6768
      %v6809 = vpack.c.b16 %v6773, %v6771
      %v6810 = vpack.c.b16 %v6774, %v6772
      %v6811 = vpack.c.b16 %v6777, %v6775
      %v6812 = vpack.c.b16 %v6778, %v6776
      %v6813 = vpack.c.b16 %v6781, %v6779
      %v6814 = vpack.c.b16 %v6782, %v6780
      %6847 = vmatpush.bf16.msra.mxu0 %v6797
      %6848 = vmatpush.bf16.msra.mxu0 %v6795
      %6849 = vmatpush.bf16.msra.mxu0 %v6793
      %6850 = vmatpush.bf16.msra.mxu0 %v6791
      %6851 = vmatpush.bf16.msra.mxu0 %v6789
      %6852 = vmatpush.bf16.msra.mxu0 %v6787
      %6853 = vmatpush.bf16.msra.mxu0 %v6785
      %6854 = vmatpush.bf16.msra.mxu0 %v6783
      %6855 = vmatmul.bf16.gmra.mxu0 %v6651
      %v6856 = vpop.f32.mrf.mxu0
      %v6857 = vadd.f32 0.0, %v6856
      %v6858 = vpop.f32.mrf.mxu0
      %v6859 = vadd.f32 0.0, %v6858
      %6860 = vmatmul.bf16.gmra.mxu0 %v6653
      %v6861 = vpop.f32.mrf.mxu0
      %v6862 = vadd.f32 0.0, %v6861
      %v6863 = vpop.f32.mrf.mxu0
      %v6864 = vadd.f32 0.0, %v6863
      %6865 = vdwg.mxu0
      %6866 = vmatpush.bf16.msra.mxu0 %v6813
      %6867 = vmatpush.bf16.msra.mxu0 %v6811
      %6868 = vmatpush.bf16.msra.mxu0 %v6809
      %6869 = vmatpush.bf16.msra.mxu0 %v6807
      %6870 = vmatpush.bf16.msra.mxu0 %v6805
      %6871 = vmatpush.bf16.msra.mxu0 %v6803
      %6872 = vmatpush.bf16.msra.mxu0 %v6801
      %6873 = vmatpush.bf16.msra.mxu0 %v6799
      %6874 = vmatmul.bf16.gmra.mxu0 %v6652
      %v6875 = vpop.f32.mrf.mxu0
      %v6876 = vadd.f32 %v6857, %v6875
      %v6877 = vpop.f32.mrf.mxu0
      %v6878 = vadd.f32 %v6859, %v6877
      %6879 = vmatmul.bf16.gmra.mxu0 %v6654
      %v6880 = vpop.f32.mrf.mxu0
      %v6881 = vadd.f32 %v6862, %v6880
      %v6882 = vpop.f32.mrf.mxu0
      %v6883 = vadd.f32 %v6864, %v6882
      %6884 = vdwg.mxu0
      %6885 = vmatpush.bf16.msra.mxu0 %v6798
      %6886 = vmatpush.bf16.msra.mxu0 %v6796
      %6887 = vmatpush.bf16.msra.mxu0 %v6794
      %6888 = vmatpush.bf16.msra.mxu0 %v6792
      %6889 = vmatpush.bf16.msra.mxu0 %v6790
      %6890 = vmatpush.bf16.msra.mxu0 %v6788
      %6891 = vmatpush.bf16.msra.mxu0 %v6786
      %6892 = vmatpush.bf16.msra.mxu0 %v6784
      %6893 = vmatmul.bf16.gmra.mxu0 %v6651
      %v6894 = vpop.f32.mrf.mxu0
      %v6895 = vadd.f32 0.0, %v6894
      %v6896 = vpop.f32.mrf.mxu0
      %v6897 = vadd.f32 0.0, %v6896
      %6898 = vmatmul.bf16.gmra.mxu0 %v6653
      %v6899 = vpop.f32.mrf.mxu0
      %v6900 = vadd.f32 0.0, %v6899
      %v6901 = vpop.f32.mrf.mxu0
      %v6902 = vadd.f32 0.0, %v6901
      %6903 = vdwg.mxu0
      %6904 = vmatpush.bf16.msra.mxu0 %v6814
      %6905 = vmatpush.bf16.msra.mxu0 %v6812
      %6906 = vmatpush.bf16.msra.mxu0 %v6810
      %6907 = vmatpush.bf16.msra.mxu0 %v6808
      %6908 = vmatpush.bf16.msra.mxu0 %v6806
      %6909 = vmatpush.bf16.msra.mxu0 %v6804
      %6910 = vmatpush.bf16.msra.mxu0 %v6802
      %6911 = vmatpush.bf16.msra.mxu0 %v6800
      %6912 = vmatmul.bf16.gmra.mxu0 %v6652
      %v6913 = vpop.f32.mrf.mxu0
      %v6914 = vadd.f32 %v6895, %v6913
      %v6915 = vpop.f32.mrf.mxu0
      %v6916 = vadd.f32 %v6897, %v6915
      %6917 = vmatmul.bf16.gmra.mxu0 %v6654
      %v6918 = vpop.f32.mrf.mxu0
      %v6919 = vadd.f32 %v6900, %v6918
      %v6920 = vpop.f32.mrf.mxu0
      %v6921 = vadd.f32 %v6902, %v6920
      %6922 = vdwg.mxu0
      %v6923 = vpack.c.bf16 %v6878, %v6876
      %v6924 = vpack.c.bf16 %v6916, %v6914
      %v6925 = vpack.c.bf16 %v6883, %v6881
      %v6926 = vpack.c.bf16 %v6921, %v6919
      %v6927 = vld [vmem:[%s23] sm:$0xf]
      %v6928 = vld [vmem:[%s23 + $0x4] sm:$0xf]
      %v6929 = vld [vmem:[%s23 + $0x8] sm:$0xf]
      %v6930 = vld [vmem:[%s23 + $0xc] sm:$0xf]
      %s6931 = scalar_lea.vmem %s9, 256
      %v6932 = vld [vmem:[%s6931] sm:$0xff]
      %v6933 = vld [vmem:[%s6931 + $0x8] sm:$0xff]
      %v6934 = vld [vmem:[%s6931 + $0x10] sm:$0xff]
      %v6935 = vld [vmem:[%s6931 + $0x18] sm:$0xff]
      %v6936 = vld [vmem:[%s6931 + $0x20] sm:$0xff]
      %v6937 = vld [vmem:[%s6931 + $0x28] sm:$0xff]
      %v6938 = vld [vmem:[%s6931 + $0x30] sm:$0xff]
      %v6939 = vld [vmem:[%s6931 + $0x38] sm:$0xff]
      %v6940 = vld [vmem:[%s6931 + $0x40] sm:$0xff]
      %v6941 = vld [vmem:[%s6931 + $0x48] sm:$0xff]
      %v6942 = vld [vmem:[%s6931 + $0x50] sm:$0xff]
      %v6943 = vld [vmem:[%s6931 + $0x58] sm:$0xff]
      %v6944 = vld [vmem:[%s6931 + $0x60] sm:$0xff]
      %v6945 = vld [vmem:[%s6931 + $0x68] sm:$0xff]
      %v6946 = vld [vmem:[%s6931 + $0x70] sm:$0xff]
      %v6947 = vld [vmem:[%s6931 + $0x78] sm:$0xff]
      %v6948 = vld [vmem:[%s6931 + $0x80] sm:$0xff]
      %v6949 = vld [vmem:[%s6931 + $0x88] sm:$0xff]
      %v6950 = vld [vmem:[%s6931 + $0x90] sm:$0xff]
      %v6951 = vld [vmem:[%s6931 + $0x98] sm:$0xff]
      %v6952 = vld [vmem:[%s6931 + $0xa0] sm:$0xff]
      %v6953 = vld [vmem:[%s6931 + $0xa8] sm:$0xff]
      %v6954 = vld [vmem:[%s6931 + $0xb0] sm:$0xff]
      %v6955 = vld [vmem:[%s6931 + $0xb8] sm:$0xff]
      %v6956 = vld [vmem:[%s6931 + $0xc0] sm:$0xff]
      %v6957 = vld [vmem:[%s6931 + $0xc8] sm:$0xff]
      %v6958 = vld [vmem:[%s6931 + $0xd0] sm:$0xff]
      %v6959 = vld [vmem:[%s6931 + $0xd8] sm:$0xff]
      %v6960 = vld [vmem:[%s6931 + $0xe0] sm:$0xff]
      %v6961 = vld [vmem:[%s6931 + $0xe8] sm:$0xff]
      %v6962 = vld [vmem:[%s6931 + $0xf0] sm:$0xff]
      %v6963 = vld [vmem:[%s6931 + $0xf8] sm:$0xff]
      %v6996 = vunpack.c.l.b16 %v6932
      %v6997 = vunpack.c.h.b16 %v6932
      %v6998 = vunpack.c.l.b16 %v6933
      %v6999 = vunpack.c.h.b16 %v6933
      %v7000 = vunpack.c.l.b16 %v6934
      %v7001 = vunpack.c.h.b16 %v6934
      %v7002 = vunpack.c.l.b16 %v6935
      %v7003 = vunpack.c.h.b16 %v6935
      %v7004 = vunpack.c.l.b16 %v6936
      %v7005 = vunpack.c.h.b16 %v6936
      %v7006 = vunpack.c.l.b16 %v6937
      %v7007 = vunpack.c.h.b16 %v6937
      %v7008 = vunpack.c.l.b16 %v6938
      %v7009 = vunpack.c.h.b16 %v6938
      %v7010 = vunpack.c.l.b16 %v6939
      %v7011 = vunpack.c.h.b16 %v6939
      %v7012 = vunpack.c.l.b16 %v6940
      %v7013 = vunpack.c.h.b16 %v6940
      %v7014 = vunpack.c.l.b16 %v6941
      %v7015 = vunpack.c.h.b16 %v6941
      %v7016 = vunpack.c.l.b16 %v6942
      %v7017 = vunpack.c.h.b16 %v6942
      %v7018 = vunpack.c.l.b16 %v6943
      %v7019 = vunpack.c.h.b16 %v6943
      %v7020 = vunpack.c.l.b16 %v6944
      %v7021 = vunpack.c.h.b16 %v6944
      %v7022 = vunpack.c.l.b16 %v6945
      %v7023 = vunpack.c.h.b16 %v6945
      %v7024 = vunpack.c.l.b16 %v6946
      %v7025 = vunpack.c.h.b16 %v6946
      %v7026 = vunpack.c.l.b16 %v6947
      %v7027 = vunpack.c.h.b16 %v6947
      %v7028 = vunpack.c.l.b16 %v6948
      %v7029 = vunpack.c.h.b16 %v6948
      %v7030 = vunpack.c.l.b16 %v6949
      %v7031 = vunpack.c.h.b16 %v6949
      %v7032 = vunpack.c.l.b16 %v6950
      %v7033 = vunpack.c.h.b16 %v6950
      %v7034 = vunpack.c.l.b16 %v6951
      %v7035 = vunpack.c.h.b16 %v6951
      %v7036 = vunpack.c.l.b16 %v6952
      %v7037 = vunpack.c.h.b16 %v6952
      %v7038 = vunpack.c.l.b16 %v6953
      %v7039 = vunpack.c.h.b16 %v6953
      %v7040 = vunpack.c.l.b16 %v6954
      %v7041 = vunpack.c.h.b16 %v6954
      %v7042 = vunpack.c.l.b16 %v6955
      %v7043 = vunpack.c.h.b16 %v6955
      %v7044 = vunpack.c.l.b16 %v6956
      %v7045 = vunpack.c.h.b16 %v6956
      %v7046 = vunpack.c.l.b16 %v6957
      %v7047 = vunpack.c.h.b16 %v6957
      %v7048 = vunpack.c.l.b16 %v6958
      %v7049 = vunpack.c.h.b16 %v6958
      %v7050 = vunpack.c.l.b16 %v6959
      %v7051 = vunpack.c.h.b16 %v6959
      %v7052 = vunpack.c.l.b16 %v6960
      %v7053 = vunpack.c.h.b16 %v6960
      %v7054 = vunpack.c.l.b16 %v6961
      %v7055 = vunpack.c.h.b16 %v6961
      %v7056 = vunpack.c.l.b16 %v6962
      %v7057 = vunpack.c.h.b16 %v6962
      %v7058 = vunpack.c.l.b16 %v6963
      %v7059 = vunpack.c.h.b16 %v6963
      %v7060 = vpack.c.b16 %v6998, %v6996
      %v7061 = vpack.c.b16 %v6999, %v6997
      %v7062 = vpack.c.b16 %v7002, %v7000
      %v7063 = vpack.c.b16 %v7003, %v7001
      %v7064 = vpack.c.b16 %v7006, %v7004
      %v7065 = vpack.c.b16 %v7007, %v7005
      %v7066 = vpack.c.b16 %v7010, %v7008
      %v7067 = vpack.c.b16 %v7011, %v7009
      %v7068 = vpack.c.b16 %v7014, %v7012
      %v7069 = vpack.c.b16 %v7015, %v7013
      %v7070 = vpack.c.b16 %v7018, %v7016
      %v7071 = vpack.c.b16 %v7019, %v7017
      %v7072 = vpack.c.b16 %v7022, %v7020
      %v7073 = vpack.c.b16 %v7023, %v7021
      %v7074 = vpack.c.b16 %v7026, %v7024
      %v7075 = vpack.c.b16 %v7027, %v7025
      %v7076 = vpack.c.b16 %v7030, %v7028
      %v7077 = vpack.c.b16 %v7031, %v7029
      %v7078 = vpack.c.b16 %v7034, %v7032
      %v7079 = vpack.c.b16 %v7035, %v7033
      %v7080 = vpack.c.b16 %v7038, %v7036
      %v7081 = vpack.c.b16 %v7039, %v7037
      %v7082 = vpack.c.b16 %v7042, %v7040
      %v7083 = vpack.c.b16 %v7043, %v7041
      %v7084 = vpack.c.b16 %v7046, %v7044
      %v7085 = vpack.c.b16 %v7047, %v7045
      %v7086 = vpack.c.b16 %v7050, %v7048
      %v7087 = vpack.c.b16 %v7051, %v7049
      %v7088 = vpack.c.b16 %v7054, %v7052
      %v7089 = vpack.c.b16 %v7055, %v7053
      %v7090 = vpack.c.b16 %v7058, %v7056
      %v7091 = vpack.c.b16 %v7059, %v7057
      %7124 = vmatpush.bf16.msra.mxu0 %v7074
      %7125 = vmatpush.bf16.msra.mxu0 %v7072
      %7126 = vmatpush.bf16.msra.mxu0 %v7070
      %7127 = vmatpush.bf16.msra.mxu0 %v7068
      %7128 = vmatpush.bf16.msra.mxu0 %v7066
      %7129 = vmatpush.bf16.msra.mxu0 %v7064
      %7130 = vmatpush.bf16.msra.mxu0 %v7062
      %7131 = vmatpush.bf16.msra.mxu0 %v7060
      %7132 = vmatmul.bf16.gmra.mxu0 %v6651
      %v7133 = vpop.f32.mrf.mxu0
      %v7134 = vadd.f32 0.0, %v7133
      %v7135 = vpop.f32.mrf.mxu0
      %v7136 = vadd.f32 0.0, %v7135
      %7137 = vmatmul.bf16.gmra.mxu0 %v6653
      %v7138 = vpop.f32.mrf.mxu0
      %v7139 = vadd.f32 0.0, %v7138
      %v7140 = vpop.f32.mrf.mxu0
      %v7141 = vadd.f32 0.0, %v7140
      %7142 = vdwg.mxu0
      %7143 = vmatpush.bf16.msra.mxu0 %v7090
      %7144 = vmatpush.bf16.msra.mxu0 %v7088
      %7145 = vmatpush.bf16.msra.mxu0 %v7086
      %7146 = vmatpush.bf16.msra.mxu0 %v7084
      %7147 = vmatpush.bf16.msra.mxu0 %v7082
      %7148 = vmatpush.bf16.msra.mxu0 %v7080
      %7149 = vmatpush.bf16.msra.mxu0 %v7078
      %7150 = vmatpush.bf16.msra.mxu0 %v7076
      %7151 = vmatmul.bf16.gmra.mxu0 %v6652
      %v7152 = vpop.f32.mrf.mxu0
      %v7153 = vadd.f32 %v7134, %v7152
      %v7154 = vpop.f32.mrf.mxu0
      %v7155 = vadd.f32 %v7136, %v7154
      %7156 = vmatmul.bf16.gmra.mxu0 %v6654
      %v7157 = vpop.f32.mrf.mxu0
      %v7158 = vadd.f32 %v7139, %v7157
      %v7159 = vpop.f32.mrf.mxu0
      %v7160 = vadd.f32 %v7141, %v7159
      %7161 = vdwg.mxu0
      %7162 = vmatpush.bf16.msra.mxu0 %v7075
      %7163 = vmatpush.bf16.msra.mxu0 %v7073
      %7164 = vmatpush.bf16.msra.mxu0 %v7071
      %7165 = vmatpush.bf16.msra.mxu0 %v7069
      %7166 = vmatpush.bf16.msra.mxu0 %v7067
      %7167 = vmatpush.bf16.msra.mxu0 %v7065
      %7168 = vmatpush.bf16.msra.mxu0 %v7063
      %7169 = vmatpush.bf16.msra.mxu0 %v7061
      %7170 = vmatmul.bf16.gmra.mxu0 %v6651
      %v7171 = vpop.f32.mrf.mxu0
      %v7172 = vadd.f32 0.0, %v7171
      %v7173 = vpop.f32.mrf.mxu0
      %v7174 = vadd.f32 0.0, %v7173
      %7175 = vmatmul.bf16.gmra.mxu0 %v6653
      %v7176 = vpop.f32.mrf.mxu0
      %v7177 = vadd.f32 0.0, %v7176
      %v7178 = vpop.f32.mrf.mxu0
      %v7179 = vadd.f32 0.0, %v7178
      %7180 = vdwg.mxu0
      %7181 = vmatpush.bf16.msra.mxu0 %v7091
      %7182 = vmatpush.bf16.msra.mxu0 %v7089
      %7183 = vmatpush.bf16.msra.mxu0 %v7087
      %7184 = vmatpush.bf16.msra.mxu0 %v7085
      %7185 = vmatpush.bf16.msra.mxu0 %v7083
      %7186 = vmatpush.bf16.msra.mxu0 %v7081
      %7187 = vmatpush.bf16.msra.mxu0 %v7079
      %7188 = vmatpush.bf16.msra.mxu0 %v7077
      %7189 = vmatmul.bf16.gmra.mxu0 %v6652
      %v7190 = vpop.f32.mrf.mxu0
      %v7191 = vadd.f32 %v7172, %v7190
      %v7192 = vpop.f32.mrf.mxu0
      %v7193 = vadd.f32 %v7174, %v7192
      %7194 = vmatmul.bf16.gmra.mxu0 %v6654
      %v7195 = vpop.f32.mrf.mxu0
      %v7196 = vadd.f32 %v7177, %v7195
      %v7197 = vpop.f32.mrf.mxu0
      %v7198 = vadd.f32 %v7179, %v7197
      %7199 = vdwg.mxu0
      %v7200 = vpack.c.bf16 %v7155, %v7153
      %v7201 = vpack.c.bf16 %v7193, %v7191
      %v7202 = vpack.c.bf16 %v7160, %v7158
      %v7203 = vpack.c.bf16 %v7198, %v7196
      %s7204 = scalar_lea.vmem %s23, 16
      %v7205 = vld [vmem:[%s7204] sm:$0xf]
      %v7206 = vld [vmem:[%s7204 + $0x4] sm:$0xf]
      %v7207 = vld [vmem:[%s7204 + $0x8] sm:$0xf]
      %v7208 = vld [vmem:[%s7204 + $0xc] sm:$0xf]
      %v7213 = vunpack.c.l.b16 %v7205
      %v7214 = vunpack.c.l.b16 %v7206
      %v7215 = vunpack.c.l.b16 %v7207
      %v7216 = vunpack.c.l.b16 %v7208
      %v7217 = vpack.c.b16 %v7214, %v7213
      %v7218 = vpack.c.b16 %v7216, %v7215
      %vm7219 = vcmask 261120
      %v7221 = vsel %vm7219, %v7217, 0
      %v7224 = vsel %vm7219, %v7218, 0
      %7226 = vmatpush.bf16.msra.mxu0 0
      %7227 = vmatpush.bf16.msra.mxu0 0
      %7228 = vmatpush.bf16.msra.mxu0 0
      %7229 = vmatpush.bf16.msra.mxu0 0
      %7230 = vmatpush.bf16.msra.mxu0 0
      %7231 = vmatpush.bf16.msra.mxu0 0
      %7232 = vmatpush.bf16.msra.mxu0 %v7202
      %7233 = vmatpush.bf16.msra.mxu0 %v7200
      %7234 = vmatmul.bf16.gmra.mxu0 %v7221
      %v7235 = vpop.f32.mrf.mxu0
      %v7236 = vadd.f32 0.0, %v7235
      %v7237 = vpop.f32.mrf.mxu0
      %v7238 = vadd.f32 0.0, %v7237
      %7239 = vmatmul.bf16.gmra.mxu0 %v7224
      %v7240 = vpop.f32.mrf.mxu0
      %v7241 = vadd.f32 0.0, %v7240
      %v7242 = vpop.f32.mrf.mxu0
      %v7243 = vadd.f32 0.0, %v7242
      %7244 = vdwg.mxu0
      %7245 = vmatpush.bf16.msra.mxu0 0
      %7246 = vmatpush.bf16.msra.mxu0 0
      %7247 = vmatpush.bf16.msra.mxu0 0
      %7248 = vmatpush.bf16.msra.mxu0 0
      %7249 = vmatpush.bf16.msra.mxu0 0
      %7250 = vmatpush.bf16.msra.mxu0 0
      %7251 = vmatpush.bf16.msra.mxu0 %v7203
      %7252 = vmatpush.bf16.msra.mxu0 %v7201
      %7253 = vmatmul.bf16.gmra.mxu0 %v7221
      %v7254 = vpop.f32.mrf.mxu0
      %v7255 = vadd.f32 0.0, %v7254
      %v7256 = vpop.f32.mrf.mxu0
      %v7257 = vadd.f32 0.0, %v7256
      %7258 = vmatmul.bf16.gmra.mxu0 %v7224
      %v7259 = vpop.f32.mrf.mxu0
      %v7260 = vadd.f32 0.0, %v7259
      %v7261 = vpop.f32.mrf.mxu0
      %v7262 = vadd.f32 0.0, %v7261
      %7263 = vdwg.mxu0
      %v7268 = vunpack.c.l.b16 %v6927
      %v7269 = vunpack.c.l.b16 %v6928
      %v7270 = vunpack.c.l.b16 %v6929
      %v7271 = vunpack.c.l.b16 %v6930
      %v7272 = vpack.c.b16 %v7269, %v7268
      %v7273 = vpack.c.b16 %v7271, %v7270
      %v7275 = vsel %vm7219, %v7272, 0
      %v7278 = vsel %vm7219, %v7273, 0
      %7280 = vmatpush.bf16.msra.mxu0 0
      %7281 = vmatpush.bf16.msra.mxu0 0
      %7282 = vmatpush.bf16.msra.mxu0 0
      %7283 = vmatpush.bf16.msra.mxu0 0
      %7284 = vmatpush.bf16.msra.mxu0 0
      %7285 = vmatpush.bf16.msra.mxu0 0
      %7286 = vmatpush.bf16.msra.mxu0 %v6925
      %7287 = vmatpush.bf16.msra.mxu0 %v6923
      %7288 = vmatmul.bf16.gmra.mxu0 %v7275
      %v7289 = vpop.f32.mrf.mxu0
      %v7290 = vadd.f32 %v7236, %v7289
      %v7291 = vpop.f32.mrf.mxu0
      %v7292 = vadd.f32 %v7238, %v7291
      %7293 = vmatmul.bf16.gmra.mxu0 %v7278
      %v7294 = vpop.f32.mrf.mxu0
      %v7295 = vadd.f32 %v7241, %v7294
      %v7296 = vpop.f32.mrf.mxu0
      %v7297 = vadd.f32 %v7243, %v7296
      %7298 = vdwg.mxu0
      %7299 = vmatpush.bf16.msra.mxu0 0
      %7300 = vmatpush.bf16.msra.mxu0 0
      %7301 = vmatpush.bf16.msra.mxu0 0
      %7302 = vmatpush.bf16.msra.mxu0 0
      %7303 = vmatpush.bf16.msra.mxu0 0
      %7304 = vmatpush.bf16.msra.mxu0 0
      %7305 = vmatpush.bf16.msra.mxu0 %v6926
      %7306 = vmatpush.bf16.msra.mxu0 %v6924
      %7307 = vmatmul.bf16.gmra.mxu0 %v7275
      %v7308 = vpop.f32.mrf.mxu0
      %v7309 = vadd.f32 %v7255, %v7308
      %v7310 = vpop.f32.mrf.mxu0
      %v7311 = vadd.f32 %v7257, %v7310
      %7312 = vmatmul.bf16.gmra.mxu0 %v7278
      %v7313 = vpop.f32.mrf.mxu0
      %v7314 = vadd.f32 %v7260, %v7313
      %v7315 = vpop.f32.mrf.mxu0
      %v7316 = vadd.f32 %v7262, %v7315
      %7317 = vdwg.mxu0
      %s7318 = scalar_lea.vmem %s9, 512
      %v7319 = vld [vmem:[%s7318] sm:$0xff]
      %v7320 = vld [vmem:[%s7318 + $0x8] sm:$0xff]
      %v7321 = vld [vmem:[%s7318 + $0x10] sm:$0xff]
      %v7322 = vld [vmem:[%s7318 + $0x18] sm:$0xff]
      %v7323 = vld [vmem:[%s7318 + $0x20] sm:$0xff]
      %v7324 = vld [vmem:[%s7318 + $0x28] sm:$0xff]
      %v7325 = vld [vmem:[%s7318 + $0x30] sm:$0xff]
      %v7326 = vld [vmem:[%s7318 + $0x38] sm:$0xff]
      %v7327 = vld [vmem:[%s7318 + $0x40] sm:$0xff]
      %v7328 = vld [vmem:[%s7318 + $0x48] sm:$0xff]
      %v7329 = vld [vmem:[%s7318 + $0x50] sm:$0xff]
      %v7330 = vld [vmem:[%s7318 + $0x58] sm:$0xff]
      %v7331 = vld [vmem:[%s7318 + $0x60] sm:$0xff]
      %v7332 = vld [vmem:[%s7318 + $0x68] sm:$0xff]
      %v7333 = vld [vmem:[%s7318 + $0x70] sm:$0xff]
      %v7334 = vld [vmem:[%s7318 + $0x78] sm:$0xff]
      %v7335 = vld [vmem:[%s7318 + $0x80] sm:$0xff]
      %v7336 = vld [vmem:[%s7318 + $0x88] sm:$0xff]
      %v7337 = vld [vmem:[%s7318 + $0x90] sm:$0xff]
      %v7338 = vld [vmem:[%s7318 + $0x98] sm:$0xff]
      %v7339 = vld [vmem:[%s7318 + $0xa0] sm:$0xff]
      %v7340 = vld [vmem:[%s7318 + $0xa8] sm:$0xff]
      %v7341 = vld [vmem:[%s7318 + $0xb0] sm:$0xff]
      %v7342 = vld [vmem:[%s7318 + $0xb8] sm:$0xff]
      %v7343 = vld [vmem:[%s7318 + $0xc0] sm:$0xff]
      %v7344 = vld [vmem:[%s7318 + $0xc8] sm:$0xff]
      %v7345 = vld [vmem:[%s7318 + $0xd0] sm:$0xff]
      %v7346 = vld [vmem:[%s7318 + $0xd8] sm:$0xff]
      %v7347 = vld [vmem:[%s7318 + $0xe0] sm:$0xff]
      %v7348 = vld [vmem:[%s7318 + $0xe8] sm:$0xff]
      %v7349 = vld [vmem:[%s7318 + $0xf0] sm:$0xff]
      %v7350 = vld [vmem:[%s7318 + $0xf8] sm:$0xff]
      %v7383 = vunpack.c.l.b16 %v7319
      %v7384 = vunpack.c.h.b16 %v7319
      %v7385 = vunpack.c.l.b16 %v7320
      %v7386 = vunpack.c.h.b16 %v7320
      %v7387 = vunpack.c.l.b16 %v7321
      %v7388 = vunpack.c.h.b16 %v7321
      %v7389 = vunpack.c.l.b16 %v7322
      %v7390 = vunpack.c.h.b16 %v7322
      %v7391 = vunpack.c.l.b16 %v7323
      %v7392 = vunpack.c.h.b16 %v7323
      %v7393 = vunpack.c.l.b16 %v7324
      %v7394 = vunpack.c.h.b16 %v7324
      %v7395 = vunpack.c.l.b16 %v7325
      %v7396 = vunpack.c.h.b16 %v7325
      %v7397 = vunpack.c.l.b16 %v7326
      %v7398 = vunpack.c.h.b16 %v7326
      %v7399 = vunpack.c.l.b16 %v7327
      %v7400 = vunpack.c.h.b16 %v7327
      %v7401 = vunpack.c.l.b16 %v7328
      %v7402 = vunpack.c.h.b16 %v7328
      %v7403 = vunpack.c.l.b16 %v7329
      %v7404 = vunpack.c.h.b16 %v7329
      %v7405 = vunpack.c.l.b16 %v7330
      %v7406 = vunpack.c.h.b16 %v7330
      %v7407 = vunpack.c.l.b16 %v7331
      %v7408 = vunpack.c.h.b16 %v7331
      %v7409 = vunpack.c.l.b16 %v7332
      %v7410 = vunpack.c.h.b16 %v7332
      %v7411 = vunpack.c.l.b16 %v7333
      %v7412 = vunpack.c.h.b16 %v7333
      %v7413 = vunpack.c.l.b16 %v7334
      %v7414 = vunpack.c.h.b16 %v7334
      %v7415 = vunpack.c.l.b16 %v7335
      %v7416 = vunpack.c.h.b16 %v7335
      %v7417 = vunpack.c.l.b16 %v7336
      %v7418 = vunpack.c.h.b16 %v7336
      %v7419 = vunpack.c.l.b16 %v7337
      %v7420 = vunpack.c.h.b16 %v7337
      %v7421 = vunpack.c.l.b16 %v7338
      %v7422 = vunpack.c.h.b16 %v7338
      %v7423 = vunpack.c.l.b16 %v7339
      %v7424 = vunpack.c.h.b16 %v7339
      %v7425 = vunpack.c.l.b16 %v7340
      %v7426 = vunpack.c.h.b16 %v7340
      %v7427 = vunpack.c.l.b16 %v7341
      %v7428 = vunpack.c.h.b16 %v7341
      %v7429 = vunpack.c.l.b16 %v7342
      %v7430 = vunpack.c.h.b16 %v7342
      %v7431 = vunpack.c.l.b16 %v7343
      %v7432 = vunpack.c.h.b16 %v7343
      %v7433 = vunpack.c.l.b16 %v7344
      %v7434 = vunpack.c.h.b16 %v7344
      %v7435 = vunpack.c.l.b16 %v7345
      %v7436 = vunpack.c.h.b16 %v7345
      %v7437 = vunpack.c.l.b16 %v7346
      %v7438 = vunpack.c.h.b16 %v7346
      %v7439 = vunpack.c.l.b16 %v7347
      %v7440 = vunpack.c.h.b16 %v7347
      %v7441 = vunpack.c.l.b16 %v7348
      %v7442 = vunpack.c.h.b16 %v7348
      %v7443 = vunpack.c.l.b16 %v7349
      %v7444 = vunpack.c.h.b16 %v7349
      %v7445 = vunpack.c.l.b16 %v7350
      %v7446 = vunpack.c.h.b16 %v7350
      %v7447 = vpack.c.b16 %v7385, %v7383
      %v7448 = vpack.c.b16 %v7386, %v7384
      %v7449 = vpack.c.b16 %v7389, %v7387
      %v7450 = vpack.c.b16 %v7390, %v7388
      %v7451 = vpack.c.b16 %v7393, %v7391
      %v7452 = vpack.c.b16 %v7394, %v7392
      %v7453 = vpack.c.b16 %v7397, %v7395
      %v7454 = vpack.c.b16 %v7398, %v7396
      %v7455 = vpack.c.b16 %v7401, %v7399
      %v7456 = vpack.c.b16 %v7402, %v7400
      %v7457 = vpack.c.b16 %v7405, %v7403
      %v7458 = vpack.c.b16 %v7406, %v7404
      %v7459 = vpack.c.b16 %v7409, %v7407
      %v7460 = vpack.c.b16 %v7410, %v7408
      %v7461 = vpack.c.b16 %v7413, %v7411
      %v7462 = vpack.c.b16 %v7414, %v7412
      %v7463 = vpack.c.b16 %v7417, %v7415
      %v7464 = vpack.c.b16 %v7418, %v7416
      %v7465 = vpack.c.b16 %v7421, %v7419
      %v7466 = vpack.c.b16 %v7422, %v7420
      %v7467 = vpack.c.b16 %v7425, %v7423
      %v7468 = vpack.c.b16 %v7426, %v7424
      %v7469 = vpack.c.b16 %v7429, %v7427
      %v7470 = vpack.c.b16 %v7430, %v7428
      %v7471 = vpack.c.b16 %v7433, %v7431
      %v7472 = vpack.c.b16 %v7434, %v7432
      %v7473 = vpack.c.b16 %v7437, %v7435
      %v7474 = vpack.c.b16 %v7438, %v7436
      %v7475 = vpack.c.b16 %v7441, %v7439
      %v7476 = vpack.c.b16 %v7442, %v7440
      %v7477 = vpack.c.b16 %v7445, %v7443
      %v7478 = vpack.c.b16 %v7446, %v7444
      %7511 = vmatpush.bf16.msra.mxu0 %v7461
      %7512 = vmatpush.bf16.msra.mxu0 %v7459
      %7513 = vmatpush.bf16.msra.mxu0 %v7457
      %7514 = vmatpush.bf16.msra.mxu0 %v7455
      %7515 = vmatpush.bf16.msra.mxu0 %v7453
      %7516 = vmatpush.bf16.msra.mxu0 %v7451
      %7517 = vmatpush.bf16.msra.mxu0 %v7449
      %7518 = vmatpush.bf16.msra.mxu0 %v7447
      %7519 = vmatmul.bf16.gmra.mxu0 %v6651
      %v7520 = vpop.f32.mrf.mxu0
      %v7521 = vadd.f32 0.0, %v7520
      %v7522 = vpop.f32.mrf.mxu0
      %v7523 = vadd.f32 0.0, %v7522
      %7524 = vmatmul.bf16.gmra.mxu0 %v6653
      %v7525 = vpop.f32.mrf.mxu0
      %v7526 = vadd.f32 0.0, %v7525
      %v7527 = vpop.f32.mrf.mxu0
      %v7528 = vadd.f32 0.0, %v7527
      %7529 = vdwg.mxu0
      %7530 = vmatpush.bf16.msra.mxu0 %v7477
      %7531 = vmatpush.bf16.msra.mxu0 %v7475
      %7532 = vmatpush.bf16.msra.mxu0 %v7473
      %7533 = vmatpush.bf16.msra.mxu0 %v7471
      %7534 = vmatpush.bf16.msra.mxu0 %v7469
      %7535 = vmatpush.bf16.msra.mxu0 %v7467
      %7536 = vmatpush.bf16.msra.mxu0 %v7465
      %7537 = vmatpush.bf16.msra.mxu0 %v7463
      %7538 = vmatmul.bf16.gmra.mxu0 %v6652
      %v7539 = vpop.f32.mrf.mxu0
      %v7540 = vadd.f32 %v7521, %v7539
      %v7541 = vpop.f32.mrf.mxu0
      %v7542 = vadd.f32 %v7523, %v7541
      %7543 = vmatmul.bf16.gmra.mxu0 %v6654
      %v7544 = vpop.f32.mrf.mxu0
      %v7545 = vadd.f32 %v7526, %v7544
      %v7546 = vpop.f32.mrf.mxu0
      %v7547 = vadd.f32 %v7528, %v7546
      %7548 = vdwg.mxu0
      %7549 = vmatpush.bf16.msra.mxu0 %v7462
      %7550 = vmatpush.bf16.msra.mxu0 %v7460
      %7551 = vmatpush.bf16.msra.mxu0 %v7458
      %7552 = vmatpush.bf16.msra.mxu0 %v7456
      %7553 = vmatpush.bf16.msra.mxu0 %v7454
      %7554 = vmatpush.bf16.msra.mxu0 %v7452
      %7555 = vmatpush.bf16.msra.mxu0 %v7450
      %7556 = vmatpush.bf16.msra.mxu0 %v7448
      %7557 = vmatmul.bf16.gmra.mxu0 %v6651
      %v7558 = vpop.f32.mrf.mxu0
      %v7559 = vadd.f32 0.0, %v7558
      %v7560 = vpop.f32.mrf.mxu0
      %v7561 = vadd.f32 0.0, %v7560
      %7562 = vmatmul.bf16.gmra.mxu0 %v6653
      %v7563 = vpop.f32.mrf.mxu0
      %v7564 = vadd.f32 0.0, %v7563
      %v7565 = vpop.f32.mrf.mxu0
      %v7566 = vadd.f32 0.0, %v7565
      %7567 = vdwg.mxu0
      %7568 = vmatpush.bf16.msra.mxu0 %v7478
      %7569 = vmatpush.bf16.msra.mxu0 %v7476
      %7570 = vmatpush.bf16.msra.mxu0 %v7474
      %7571 = vmatpush.bf16.msra.mxu0 %v7472
      %7572 = vmatpush.bf16.msra.mxu0 %v7470
      %7573 = vmatpush.bf16.msra.mxu0 %v7468
      %7574 = vmatpush.bf16.msra.mxu0 %v7466
      %7575 = vmatpush.bf16.msra.mxu0 %v7464
      %7576 = vmatmul.bf16.gmra.mxu0 %v6652
      %v7577 = vpop.f32.mrf.mxu0
      %v7578 = vadd.f32 %v7559, %v7577
      %v7579 = vpop.f32.mrf.mxu0
      %v7580 = vadd.f32 %v7561, %v7579
      %7581 = vmatmul.bf16.gmra.mxu0 %v6654
      %v7582 = vpop.f32.mrf.mxu0
      %v7583 = vadd.f32 %v7564, %v7582
      %v7584 = vpop.f32.mrf.mxu0
      %v7585 = vadd.f32 %v7566, %v7584
      %7586 = vdwg.mxu0
      %v7587 = vpack.c.bf16 %v7542, %v7540
      %v7588 = vpack.c.bf16 %v7580, %v7578
      %v7589 = vpack.c.bf16 %v7547, %v7545
      %v7590 = vpack.c.bf16 %v7585, %v7583
      %s7591 = scalar_lea.vmem %s23, 32
      %v7592 = vld [vmem:[%s7591] sm:$0xf]
      %v7593 = vld [vmem:[%s7591 + $0x4] sm:$0xf]
      %v7594 = vld [vmem:[%s7591 + $0x8] sm:$0xf]
      %v7595 = vld [vmem:[%s7591 + $0xc] sm:$0xf]
      %v7600 = vunpack.c.l.b16 %v7592
      %v7601 = vunpack.c.l.b16 %v7593
      %v7602 = vunpack.c.l.b16 %v7594
      %v7603 = vunpack.c.l.b16 %v7595
      %v7604 = vpack.c.b16 %v7601, %v7600
      %v7605 = vpack.c.b16 %v7603, %v7602
      %v7607 = vsel %vm7219, %v7604, 0
      %v7610 = vsel %vm7219, %v7605, 0
      %7612 = vmatpush.bf16.msra.mxu0 0
      %7613 = vmatpush.bf16.msra.mxu0 0
      %7614 = vmatpush.bf16.msra.mxu0 0
      %7615 = vmatpush.bf16.msra.mxu0 0
      %7616 = vmatpush.bf16.msra.mxu0 0
      %7617 = vmatpush.bf16.msra.mxu0 0
      %7618 = vmatpush.bf16.msra.mxu0 %v7589
      %7619 = vmatpush.bf16.msra.mxu0 %v7587
      %7620 = vmatmul.bf16.gmra.mxu0 %v7607
      %v7621 = vpop.f32.mrf.mxu0
      %v7622 = vadd.f32 0.0, %v7621
      %v7623 = vpop.f32.mrf.mxu0
      %v7624 = vadd.f32 0.0, %v7623
      %7625 = vmatmul.bf16.gmra.mxu0 %v7610
      %v7626 = vpop.f32.mrf.mxu0
      %v7627 = vadd.f32 0.0, %v7626
      %v7628 = vpop.f32.mrf.mxu0
      %v7629 = vadd.f32 0.0, %v7628
      %7630 = vdwg.mxu0
      %7631 = vmatpush.bf16.msra.mxu0 0
      %7632 = vmatpush.bf16.msra.mxu0 0
      %7633 = vmatpush.bf16.msra.mxu0 0
      %7634 = vmatpush.bf16.msra.mxu0 0
      %7635 = vmatpush.bf16.msra.mxu0 0
      %7636 = vmatpush.bf16.msra.mxu0 0
      %7637 = vmatpush.bf16.msra.mxu0 %v7590
      %7638 = vmatpush.bf16.msra.mxu0 %v7588
      %7639 = vmatmul.bf16.gmra.mxu0 %v7607
      %v7640 = vpop.f32.mrf.mxu0
      %v7641 = vadd.f32 0.0, %v7640
      %v7642 = vpop.f32.mrf.mxu0
      %v7643 = vadd.f32 0.0, %v7642
      %7644 = vmatmul.bf16.gmra.mxu0 %v7610
      %v7645 = vpop.f32.mrf.mxu0
      %v7646 = vadd.f32 0.0, %v7645
      %v7647 = vpop.f32.mrf.mxu0
      %v7648 = vadd.f32 0.0, %v7647
      %7649 = vdwg.mxu0
      %v7650 = vadd.f32 %v7290, %v7622
      %v7651 = vadd.f32 %v7309, %v7641
      %v7652 = vadd.f32 %v7292, %v7624
      %v7653 = vadd.f32 %v7311, %v7643
      %v7654 = vadd.f32 %v7295, %v7627
      %v7655 = vadd.f32 %v7314, %v7646
      %v7656 = vadd.f32 %v7297, %v7629
      %v7657 = vadd.f32 %v7316, %v7648
      %s7658 = scalar_lea.vmem %s9, 768
      %v7659 = vld [vmem:[%s7658] sm:$0xff]
      %v7660 = vld [vmem:[%s7658 + $0x8] sm:$0xff]
      %v7661 = vld [vmem:[%s7658 + $0x10] sm:$0xff]
      %v7662 = vld [vmem:[%s7658 + $0x18] sm:$0xff]
      %v7663 = vld [vmem:[%s7658 + $0x20] sm:$0xff]
      %v7664 = vld [vmem:[%s7658 + $0x28] sm:$0xff]
      %v7665 = vld [vmem:[%s7658 + $0x30] sm:$0xff]
      %v7666 = vld [vmem:[%s7658 + $0x38] sm:$0xff]
      %v7667 = vld [vmem:[%s7658 + $0x40] sm:$0xff]
      %v7668 = vld [vmem:[%s7658 + $0x48] sm:$0xff]
      %v7669 = vld [vmem:[%s7658 + $0x50] sm:$0xff]
      %v7670 = vld [vmem:[%s7658 + $0x58] sm:$0xff]
      %v7671 = vld [vmem:[%s7658 + $0x60] sm:$0xff]
      %v7672 = vld [vmem:[%s7658 + $0x68] sm:$0xff]
      %v7673 = vld [vmem:[%s7658 + $0x70] sm:$0xff]
      %v7674 = vld [vmem:[%s7658 + $0x78] sm:$0xff]
      %v7675 = vld [vmem:[%s7658 + $0x80] sm:$0xff]
      %v7676 = vld [vmem:[%s7658 + $0x88] sm:$0xff]
      %v7677 = vld [vmem:[%s7658 + $0x90] sm:$0xff]
      %v7678 = vld [vmem:[%s7658 + $0x98] sm:$0xff]
      %v7679 = vld [vmem:[%s7658 + $0xa0] sm:$0xff]
      %v7680 = vld [vmem:[%s7658 + $0xa8] sm:$0xff]
      %v7681 = vld [vmem:[%s7658 + $0xb0] sm:$0xff]
      %v7682 = vld [vmem:[%s7658 + $0xb8] sm:$0xff]
      %v7683 = vld [vmem:[%s7658 + $0xc0] sm:$0xff]
      %v7684 = vld [vmem:[%s7658 + $0xc8] sm:$0xff]
      %v7685 = vld [vmem:[%s7658 + $0xd0] sm:$0xff]
      %v7686 = vld [vmem:[%s7658 + $0xd8] sm:$0xff]
      %v7687 = vld [vmem:[%s7658 + $0xe0] sm:$0xff]
      %v7688 = vld [vmem:[%s7658 + $0xe8] sm:$0xff]
      %v7689 = vld [vmem:[%s7658 + $0xf0] sm:$0xff]
      %v7690 = vld [vmem:[%s7658 + $0xf8] sm:$0xff]
      %v7723 = vunpack.c.l.b16 %v7659
      %v7724 = vunpack.c.h.b16 %v7659
      %v7725 = vunpack.c.l.b16 %v7660
      %v7726 = vunpack.c.h.b16 %v7660
      %v7727 = vunpack.c.l.b16 %v7661
      %v7728 = vunpack.c.h.b16 %v7661
      %v7729 = vunpack.c.l.b16 %v7662
      %v7730 = vunpack.c.h.b16 %v7662
      %v7731 = vunpack.c.l.b16 %v7663
      %v7732 = vunpack.c.h.b16 %v7663
      %v7733 = vunpack.c.l.b16 %v7664
      %v7734 = vunpack.c.h.b16 %v7664
      %v7735 = vunpack.c.l.b16 %v7665
      %v7736 = vunpack.c.h.b16 %v7665
      %v7737 = vunpack.c.l.b16 %v7666
      %v7738 = vunpack.c.h.b16 %v7666
      %v7739 = vunpack.c.l.b16 %v7667
      %v7740 = vunpack.c.h.b16 %v7667
      %v7741 = vunpack.c.l.b16 %v7668
      %v7742 = vunpack.c.h.b16 %v7668
      %v7743 = vunpack.c.l.b16 %v7669
      %v7744 = vunpack.c.h.b16 %v7669
      %v7745 = vunpack.c.l.b16 %v7670
      %v7746 = vunpack.c.h.b16 %v7670
      %v7747 = vunpack.c.l.b16 %v7671
      %v7748 = vunpack.c.h.b16 %v7671
      %v7749 = vunpack.c.l.b16 %v7672
      %v7750 = vunpack.c.h.b16 %v7672
      %v7751 = vunpack.c.l.b16 %v7673
      %v7752 = vunpack.c.h.b16 %v7673
      %v7753 = vunpack.c.l.b16 %v7674
      %v7754 = vunpack.c.h.b16 %v7674
      %v7755 = vunpack.c.l.b16 %v7675
      %v7756 = vunpack.c.h.b16 %v7675
      %v7757 = vunpack.c.l.b16 %v7676
      %v7758 = vunpack.c.h.b16 %v7676
      %v7759 = vunpack.c.l.b16 %v7677
      %v7760 = vunpack.c.h.b16 %v7677
      %v7761 = vunpack.c.l.b16 %v7678
      %v7762 = vunpack.c.h.b16 %v7678
      %v7763 = vunpack.c.l.b16 %v7679
      %v7764 = vunpack.c.h.b16 %v7679
      %v7765 = vunpack.c.l.b16 %v7680
      %v7766 = vunpack.c.h.b16 %v7680
      %v7767 = vunpack.c.l.b16 %v7681
      %v7768 = vunpack.c.h.b16 %v7681
      %v7769 = vunpack.c.l.b16 %v7682
      %v7770 = vunpack.c.h.b16 %v7682
      %v7771 = vunpack.c.l.b16 %v7683
      %v7772 = vunpack.c.h.b16 %v7683
      %v7773 = vunpack.c.l.b16 %v7684
      %v7774 = vunpack.c.h.b16 %v7684
      %v7775 = vunpack.c.l.b16 %v7685
      %v7776 = vunpack.c.h.b16 %v7685
      %v7777 = vunpack.c.l.b16 %v7686
      %v7778 = vunpack.c.h.b16 %v7686
      %v7779 = vunpack.c.l.b16 %v7687
      %v7780 = vunpack.c.h.b16 %v7687
      %v7781 = vunpack.c.l.b16 %v7688
      %v7782 = vunpack.c.h.b16 %v7688
      %v7783 = vunpack.c.l.b16 %v7689
      %v7784 = vunpack.c.h.b16 %v7689
      %v7785 = vunpack.c.l.b16 %v7690
      %v7786 = vunpack.c.h.b16 %v7690
      %v7787 = vpack.c.b16 %v7725, %v7723
      %v7788 = vpack.c.b16 %v7726, %v7724
      %v7789 = vpack.c.b16 %v7729, %v7727
      %v7790 = vpack.c.b16 %v7730, %v7728
      %v7791 = vpack.c.b16 %v7733, %v7731
      %v7792 = vpack.c.b16 %v7734, %v7732
      %v7793 = vpack.c.b16 %v7737, %v7735
      %v7794 = vpack.c.b16 %v7738, %v7736
      %v7795 = vpack.c.b16 %v7741, %v7739
      %v7796 = vpack.c.b16 %v7742, %v7740
      %v7797 = vpack.c.b16 %v7745, %v7743
      %v7798 = vpack.c.b16 %v7746, %v7744
      %v7799 = vpack.c.b16 %v7749, %v7747
      %v7800 = vpack.c.b16 %v7750, %v7748
      %v7801 = vpack.c.b16 %v7753, %v7751
      %v7802 = vpack.c.b16 %v7754, %v7752
      %v7803 = vpack.c.b16 %v7757, %v7755
      %v7804 = vpack.c.b16 %v7758, %v7756
      %v7805 = vpack.c.b16 %v7761, %v7759
      %v7806 = vpack.c.b16 %v7762, %v7760
      %v7807 = vpack.c.b16 %v7765, %v7763
      %v7808 = vpack.c.b16 %v7766, %v7764
      %v7809 = vpack.c.b16 %v7769, %v7767
      %v7810 = vpack.c.b16 %v7770, %v7768
      %v7811 = vpack.c.b16 %v7773, %v7771
      %v7812 = vpack.c.b16 %v7774, %v7772
      %v7813 = vpack.c.b16 %v7777, %v7775
      %v7814 = vpack.c.b16 %v7778, %v7776
      %v7815 = vpack.c.b16 %v7781, %v7779
      %v7816 = vpack.c.b16 %v7782, %v7780
      %v7817 = vpack.c.b16 %v7785, %v7783
      %v7818 = vpack.c.b16 %v7786, %v7784
      %7851 = vmatpush.bf16.msra.mxu0 %v7801
      %7852 = vmatpush.bf16.msra.mxu0 %v7799
      %7853 = vmatpush.bf16.msra.mxu0 %v7797
      %7854 = vmatpush.bf16.msra.mxu0 %v7795
      %7855 = vmatpush.bf16.msra.mxu0 %v7793
      %7856 = vmatpush.bf16.msra.mxu0 %v7791
      %7857 = vmatpush.bf16.msra.mxu0 %v7789
      %7858 = vmatpush.bf16.msra.mxu0 %v7787
      %7859 = vmatmul.bf16.gmra.mxu0 %v6651
      %v7860 = vpop.f32.mrf.mxu0
      %v7861 = vadd.f32 0.0, %v7860
      %v7862 = vpop.f32.mrf.mxu0
      %v7863 = vadd.f32 0.0, %v7862
      %7864 = vmatmul.bf16.gmra.mxu0 %v6653
      %v7865 = vpop.f32.mrf.mxu0
      %v7866 = vadd.f32 0.0, %v7865
      %v7867 = vpop.f32.mrf.mxu0
      %v7868 = vadd.f32 0.0, %v7867
      %7869 = vdwg.mxu0
      %7870 = vmatpush.bf16.msra.mxu0 %v7817
      %7871 = vmatpush.bf16.msra.mxu0 %v7815
      %7872 = vmatpush.bf16.msra.mxu0 %v7813
      %7873 = vmatpush.bf16.msra.mxu0 %v7811
      %7874 = vmatpush.bf16.msra.mxu0 %v7809
      %7875 = vmatpush.bf16.msra.mxu0 %v7807
      %7876 = vmatpush.bf16.msra.mxu0 %v7805
      %7877 = vmatpush.bf16.msra.mxu0 %v7803
      %7878 = vmatmul.bf16.gmra.mxu0 %v6652
      %v7879 = vpop.f32.mrf.mxu0
      %v7880 = vadd.f32 %v7861, %v7879
      %v7881 = vpop.f32.mrf.mxu0
      %v7882 = vadd.f32 %v7863, %v7881
      %7883 = vmatmul.bf16.gmra.mxu0 %v6654
      %v7884 = vpop.f32.mrf.mxu0
      %v7885 = vadd.f32 %v7866, %v7884
      %v7886 = vpop.f32.mrf.mxu0
      %v7887 = vadd.f32 %v7868, %v7886
      %7888 = vdwg.mxu0
      %7889 = vmatpush.bf16.msra.mxu0 %v7802
      %7890 = vmatpush.bf16.msra.mxu0 %v7800
      %7891 = vmatpush.bf16.msra.mxu0 %v7798
      %7892 = vmatpush.bf16.msra.mxu0 %v7796
      %7893 = vmatpush.bf16.msra.mxu0 %v7794
      %7894 = vmatpush.bf16.msra.mxu0 %v7792
      %7895 = vmatpush.bf16.msra.mxu0 %v7790
      %7896 = vmatpush.bf16.msra.mxu0 %v7788
      %7897 = vmatmul.bf16.gmra.mxu0 %v6651
      %v7898 = vpop.f32.mrf.mxu0
      %v7899 = vadd.f32 0.0, %v7898
      %v7900 = vpop.f32.mrf.mxu0
      %v7901 = vadd.f32 0.0, %v7900
      %7902 = vmatmul.bf16.gmra.mxu0 %v6653
      %v7903 = vpop.f32.mrf.mxu0
      %v7904 = vadd.f32 0.0, %v7903
      %v7905 = vpop.f32.mrf.mxu0
      %v7906 = vadd.f32 0.0, %v7905
      %7907 = vdwg.mxu0
      %7908 = vmatpush.bf16.msra.mxu0 %v7818
      %7909 = vmatpush.bf16.msra.mxu0 %v7816
      %7910 = vmatpush.bf16.msra.mxu0 %v7814
      %7911 = vmatpush.bf16.msra.mxu0 %v7812
      %7912 = vmatpush.bf16.msra.mxu0 %v7810
      %7913 = vmatpush.bf16.msra.mxu0 %v7808
      %7914 = vmatpush.bf16.msra.mxu0 %v7806
      %7915 = vmatpush.bf16.msra.mxu0 %v7804
      %7916 = vmatmul.bf16.gmra.mxu0 %v6652
      %v7917 = vpop.f32.mrf.mxu0
      %v7918 = vadd.f32 %v7899, %v7917
      %v7919 = vpop.f32.mrf.mxu0
      %v7920 = vadd.f32 %v7901, %v7919
      %7921 = vmatmul.bf16.gmra.mxu0 %v6654
      %v7922 = vpop.f32.mrf.mxu0
      %v7923 = vadd.f32 %v7904, %v7922
      %v7924 = vpop.f32.mrf.mxu0
      %v7925 = vadd.f32 %v7906, %v7924
      %7926 = vdwg.mxu0
      %v7927 = vpack.c.bf16 %v7882, %v7880
      %v7928 = vpack.c.bf16 %v7920, %v7918
      %v7929 = vpack.c.bf16 %v7887, %v7885
      %v7930 = vpack.c.bf16 %v7925, %v7923
      %s7931 = scalar_lea.vmem %s23, 48
      %v7932 = vld [vmem:[%s7931] sm:$0xf]
      %v7933 = vld [vmem:[%s7931 + $0x4] sm:$0xf]
      %v7934 = vld [vmem:[%s7931 + $0x8] sm:$0xf]
      %v7935 = vld [vmem:[%s7931 + $0xc] sm:$0xf]
      %v7940 = vunpack.c.l.b16 %v7932
      %v7941 = vunpack.c.l.b16 %v7933
      %v7942 = vunpack.c.l.b16 %v7934
      %v7943 = vunpack.c.l.b16 %v7935
      %v7944 = vpack.c.b16 %v7941, %v7940
      %v7945 = vpack.c.b16 %v7943, %v7942
      %v7947 = vsel %vm7219, %v7944, 0
      %v7950 = vsel %vm7219, %v7945, 0
      %7952 = vmatpush.bf16.msra.mxu0 0
      %7953 = vmatpush.bf16.msra.mxu0 0
      %7954 = vmatpush.bf16.msra.mxu0 0
      %7955 = vmatpush.bf16.msra.mxu0 0
      %7956 = vmatpush.bf16.msra.mxu0 0
      %7957 = vmatpush.bf16.msra.mxu0 0
      %7958 = vmatpush.bf16.msra.mxu0 %v7929
      %7959 = vmatpush.bf16.msra.mxu0 %v7927
      %7960 = vmatmul.bf16.gmra.mxu0 %v7947
      %v7961 = vpop.f32.mrf.mxu0
      %v7962 = vadd.f32 0.0, %v7961
      %v7963 = vpop.f32.mrf.mxu0
      %v7964 = vadd.f32 0.0, %v7963
      %7965 = vmatmul.bf16.gmra.mxu0 %v7950
      %v7966 = vpop.f32.mrf.mxu0
      %v7967 = vadd.f32 0.0, %v7966
      %v7968 = vpop.f32.mrf.mxu0
      %v7969 = vadd.f32 0.0, %v7968
      %7970 = vdwg.mxu0
      %7971 = vmatpush.bf16.msra.mxu0 0
      %7972 = vmatpush.bf16.msra.mxu0 0
      %7973 = vmatpush.bf16.msra.mxu0 0
      %7974 = vmatpush.bf16.msra.mxu0 0
      %7975 = vmatpush.bf16.msra.mxu0 0
      %7976 = vmatpush.bf16.msra.mxu0 0
      %7977 = vmatpush.bf16.msra.mxu0 %v7930
      %7978 = vmatpush.bf16.msra.mxu0 %v7928
      %7979 = vmatmul.bf16.gmra.mxu0 %v7947
      %v7980 = vpop.f32.mrf.mxu0
      %v7981 = vadd.f32 0.0, %v7980
      %v7982 = vpop.f32.mrf.mxu0
      %v7983 = vadd.f32 0.0, %v7982
      %7984 = vmatmul.bf16.gmra.mxu0 %v7950
      %v7985 = vpop.f32.mrf.mxu0
      %v7986 = vadd.f32 0.0, %v7985
      %v7987 = vpop.f32.mrf.mxu0
      %v7988 = vadd.f32 0.0, %v7987
      %7989 = vdwg.mxu0
      %v7990 = vadd.f32 %v7650, %v7962
      %v7991 = vadd.f32 %v7651, %v7981
      %v7992 = vadd.f32 %v7652, %v7964
      %v7993 = vadd.f32 %v7653, %v7983
      %v7994 = vadd.f32 %v7654, %v7967
      %v7995 = vadd.f32 %v7655, %v7986
      %v7996 = vadd.f32 %v7656, %v7969
      %v7997 = vadd.f32 %v7657, %v7988
      %s7998 = scalar_lea.vmem %s9, 1024
      %v7999 = vld [vmem:[%s7998] sm:$0xff]
      %v8000 = vld [vmem:[%s7998 + $0x8] sm:$0xff]
      %v8001 = vld [vmem:[%s7998 + $0x10] sm:$0xff]
      %v8002 = vld [vmem:[%s7998 + $0x18] sm:$0xff]
      %v8003 = vld [vmem:[%s7998 + $0x20] sm:$0xff]
      %v8004 = vld [vmem:[%s7998 + $0x28] sm:$0xff]
      %v8005 = vld [vmem:[%s7998 + $0x30] sm:$0xff]
      %v8006 = vld [vmem:[%s7998 + $0x38] sm:$0xff]
      %v8007 = vld [vmem:[%s7998 + $0x40] sm:$0xff]
      %v8008 = vld [vmem:[%s7998 + $0x48] sm:$0xff]
      %v8009 = vld [vmem:[%s7998 + $0x50] sm:$0xff]
      %v8010 = vld [vmem:[%s7998 + $0x58] sm:$0xff]
      %v8011 = vld [vmem:[%s7998 + $0x60] sm:$0xff]
      %v8012 = vld [vmem:[%s7998 + $0x68] sm:$0xff]
      %v8013 = vld [vmem:[%s7998 + $0x70] sm:$0xff]
      %v8014 = vld [vmem:[%s7998 + $0x78] sm:$0xff]
      %v8015 = vld [vmem:[%s7998 + $0x80] sm:$0xff]
      %v8016 = vld [vmem:[%s7998 + $0x88] sm:$0xff]
      %v8017 = vld [vmem:[%s7998 + $0x90] sm:$0xff]
      %v8018 = vld [vmem:[%s7998 + $0x98] sm:$0xff]
      %v8019 = vld [vmem:[%s7998 + $0xa0] sm:$0xff]
      %v8020 = vld [vmem:[%s7998 + $0xa8] sm:$0xff]
      %v8021 = vld [vmem:[%s7998 + $0xb0] sm:$0xff]
      %v8022 = vld [vmem:[%s7998 + $0xb8] sm:$0xff]
      %v8023 = vld [vmem:[%s7998 + $0xc0] sm:$0xff]
      %v8024 = vld [vmem:[%s7998 + $0xc8] sm:$0xff]
      %v8025 = vld [vmem:[%s7998 + $0xd0] sm:$0xff]
      %v8026 = vld [vmem:[%s7998 + $0xd8] sm:$0xff]
      %v8027 = vld [vmem:[%s7998 + $0xe0] sm:$0xff]
      %v8028 = vld [vmem:[%s7998 + $0xe8] sm:$0xff]
      %v8029 = vld [vmem:[%s7998 + $0xf0] sm:$0xff]
      %v8030 = vld [vmem:[%s7998 + $0xf8] sm:$0xff]
      %v8063 = vunpack.c.l.b16 %v7999
      %v8064 = vunpack.c.h.b16 %v7999
      %v8065 = vunpack.c.l.b16 %v8000
      %v8066 = vunpack.c.h.b16 %v8000
      %v8067 = vunpack.c.l.b16 %v8001
      %v8068 = vunpack.c.h.b16 %v8001
      %v8069 = vunpack.c.l.b16 %v8002
      %v8070 = vunpack.c.h.b16 %v8002
      %v8071 = vunpack.c.l.b16 %v8003
      %v8072 = vunpack.c.h.b16 %v8003
      %v8073 = vunpack.c.l.b16 %v8004
      %v8074 = vunpack.c.h.b16 %v8004
      %v8075 = vunpack.c.l.b16 %v8005
      %v8076 = vunpack.c.h.b16 %v8005
      %v8077 = vunpack.c.l.b16 %v8006
      %v8078 = vunpack.c.h.b16 %v8006
      %v8079 = vunpack.c.l.b16 %v8007
      %v8080 = vunpack.c.h.b16 %v8007
      %v8081 = vunpack.c.l.b16 %v8008
      %v8082 = vunpack.c.h.b16 %v8008
      %v8083 = vunpack.c.l.b16 %v8009
      %v8084 = vunpack.c.h.b16 %v8009
      %v8085 = vunpack.c.l.b16 %v8010
      %v8086 = vunpack.c.h.b16 %v8010
      %v8087 = vunpack.c.l.b16 %v8011
      %v8088 = vunpack.c.h.b16 %v8011
      %v8089 = vunpack.c.l.b16 %v8012
      %v8090 = vunpack.c.h.b16 %v8012
      %v8091 = vunpack.c.l.b16 %v8013
      %v8092 = vunpack.c.h.b16 %v8013
      %v8093 = vunpack.c.l.b16 %v8014
      %v8094 = vunpack.c.h.b16 %v8014
      %v8095 = vunpack.c.l.b16 %v8015
      %v8096 = vunpack.c.h.b16 %v8015
      %v8097 = vunpack.c.l.b16 %v8016
      %v8098 = vunpack.c.h.b16 %v8016
      %v8099 = vunpack.c.l.b16 %v8017
      %v8100 = vunpack.c.h.b16 %v8017
      %v8101 = vunpack.c.l.b16 %v8018
      %v8102 = vunpack.c.h.b16 %v8018
      %v8103 = vunpack.c.l.b16 %v8019
      %v8104 = vunpack.c.h.b16 %v8019
      %v8105 = vunpack.c.l.b16 %v8020
      %v8106 = vunpack.c.h.b16 %v8020
      %v8107 = vunpack.c.l.b16 %v8021
      %v8108 = vunpack.c.h.b16 %v8021
      %v8109 = vunpack.c.l.b16 %v8022
      %v8110 = vunpack.c.h.b16 %v8022
      %v8111 = vunpack.c.l.b16 %v8023
      %v8112 = vunpack.c.h.b16 %v8023
      %v8113 = vunpack.c.l.b16 %v8024
      %v8114 = vunpack.c.h.b16 %v8024
      %v8115 = vunpack.c.l.b16 %v8025
      %v8116 = vunpack.c.h.b16 %v8025
      %v8117 = vunpack.c.l.b16 %v8026
      %v8118 = vunpack.c.h.b16 %v8026
      %v8119 = vunpack.c.l.b16 %v8027
      %v8120 = vunpack.c.h.b16 %v8027
      %v8121 = vunpack.c.l.b16 %v8028
      %v8122 = vunpack.c.h.b16 %v8028
      %v8123 = vunpack.c.l.b16 %v8029
      %v8124 = vunpack.c.h.b16 %v8029
      %v8125 = vunpack.c.l.b16 %v8030
      %v8126 = vunpack.c.h.b16 %v8030
      %v8127 = vpack.c.b16 %v8065, %v8063
      %v8128 = vpack.c.b16 %v8066, %v8064
      %v8129 = vpack.c.b16 %v8069, %v8067
      %v8130 = vpack.c.b16 %v8070, %v8068
      %v8131 = vpack.c.b16 %v8073, %v8071
      %v8132 = vpack.c.b16 %v8074, %v8072
      %v8133 = vpack.c.b16 %v8077, %v8075
      %v8134 = vpack.c.b16 %v8078, %v8076
      %v8135 = vpack.c.b16 %v8081, %v8079
      %v8136 = vpack.c.b16 %v8082, %v8080
      %v8137 = vpack.c.b16 %v8085, %v8083
      %v8138 = vpack.c.b16 %v8086, %v8084
      %v8139 = vpack.c.b16 %v8089, %v8087
      %v8140 = vpack.c.b16 %v8090, %v8088
      %v8141 = vpack.c.b16 %v8093, %v8091
      %v8142 = vpack.c.b16 %v8094, %v8092
      %v8143 = vpack.c.b16 %v8097, %v8095
      %v8144 = vpack.c.b16 %v8098, %v8096
      %v8145 = vpack.c.b16 %v8101, %v8099
      %v8146 = vpack.c.b16 %v8102, %v8100
      %v8147 = vpack.c.b16 %v8105, %v8103
      %v8148 = vpack.c.b16 %v8106, %v8104
      %v8149 = vpack.c.b16 %v8109, %v8107
      %v8150 = vpack.c.b16 %v8110, %v8108
      %v8151 = vpack.c.b16 %v8113, %v8111
      %v8152 = vpack.c.b16 %v8114, %v8112
      %v8153 = vpack.c.b16 %v8117, %v8115
      %v8154 = vpack.c.b16 %v8118, %v8116
      %v8155 = vpack.c.b16 %v8121, %v8119
      %v8156 = vpack.c.b16 %v8122, %v8120
      %v8157 = vpack.c.b16 %v8125, %v8123
      %v8158 = vpack.c.b16 %v8126, %v8124
      %8191 = vmatpush.bf16.msra.mxu0 %v8141
      %8192 = vmatpush.bf16.msra.mxu0 %v8139
      %8193 = vmatpush.bf16.msra.mxu0 %v8137
      %8194 = vmatpush.bf16.msra.mxu0 %v8135
      %8195 = vmatpush.bf16.msra.mxu0 %v8133
      %8196 = vmatpush.bf16.msra.mxu0 %v8131
      %8197 = vmatpush.bf16.msra.mxu0 %v8129
      %8198 = vmatpush.bf16.msra.mxu0 %v8127
      %8199 = vmatmul.bf16.gmra.mxu0 %v6651
      %v8200 = vpop.f32.mrf.mxu0
      %v8201 = vadd.f32 0.0, %v8200
      %v8202 = vpop.f32.mrf.mxu0
      %v8203 = vadd.f32 0.0, %v8202
      %8204 = vmatmul.bf16.gmra.mxu0 %v6653
      %v8205 = vpop.f32.mrf.mxu0
      %v8206 = vadd.f32 0.0, %v8205
      %v8207 = vpop.f32.mrf.mxu0
      %v8208 = vadd.f32 0.0, %v8207
      %8209 = vdwg.mxu0
      %8210 = vmatpush.bf16.msra.mxu0 %v8157
      %8211 = vmatpush.bf16.msra.mxu0 %v8155
      %8212 = vmatpush.bf16.msra.mxu0 %v8153
      %8213 = vmatpush.bf16.msra.mxu0 %v8151
      %8214 = vmatpush.bf16.msra.mxu0 %v8149
      %8215 = vmatpush.bf16.msra.mxu0 %v8147
      %8216 = vmatpush.bf16.msra.mxu0 %v8145
      %8217 = vmatpush.bf16.msra.mxu0 %v8143
      %8218 = vmatmul.bf16.gmra.mxu0 %v6652
      %v8219 = vpop.f32.mrf.mxu0
      %v8220 = vadd.f32 %v8201, %v8219
      %v8221 = vpop.f32.mrf.mxu0
      %v8222 = vadd.f32 %v8203, %v8221
      %8223 = vmatmul.bf16.gmra.mxu0 %v6654
      %v8224 = vpop.f32.mrf.mxu0
      %v8225 = vadd.f32 %v8206, %v8224
      %v8226 = vpop.f32.mrf.mxu0
      %v8227 = vadd.f32 %v8208, %v8226
      %8228 = vdwg.mxu0
      %8229 = vmatpush.bf16.msra.mxu0 %v8142
      %8230 = vmatpush.bf16.msra.mxu0 %v8140
      %8231 = vmatpush.bf16.msra.mxu0 %v8138
      %8232 = vmatpush.bf16.msra.mxu0 %v8136
      %8233 = vmatpush.bf16.msra.mxu0 %v8134
      %8234 = vmatpush.bf16.msra.mxu0 %v8132
      %8235 = vmatpush.bf16.msra.mxu0 %v8130
      %8236 = vmatpush.bf16.msra.mxu0 %v8128
      %8237 = vmatmul.bf16.gmra.mxu0 %v6651
      %v8238 = vpop.f32.mrf.mxu0
      %v8239 = vadd.f32 0.0, %v8238
      %v8240 = vpop.f32.mrf.mxu0
      %v8241 = vadd.f32 0.0, %v8240
      %8242 = vmatmul.bf16.gmra.mxu0 %v6653
      %v8243 = vpop.f32.mrf.mxu0
      %v8244 = vadd.f32 0.0, %v8243
      %v8245 = vpop.f32.mrf.mxu0
      %v8246 = vadd.f32 0.0, %v8245
      %8247 = vdwg.mxu0
      %8248 = vmatpush.bf16.msra.mxu0 %v8158
      %8249 = vmatpush.bf16.msra.mxu0 %v8156
      %8250 = vmatpush.bf16.msra.mxu0 %v8154
      %8251 = vmatpush.bf16.msra.mxu0 %v8152
      %8252 = vmatpush.bf16.msra.mxu0 %v8150
      %8253 = vmatpush.bf16.msra.mxu0 %v8148
      %8254 = vmatpush.bf16.msra.mxu0 %v8146
      %8255 = vmatpush.bf16.msra.mxu0 %v8144
      %8256 = vmatmul.bf16.gmra.mxu0 %v6652
      %v8257 = vpop.f32.mrf.mxu0
      %v8258 = vadd.f32 %v8239, %v8257
      %v8259 = vpop.f32.mrf.mxu0
      %v8260 = vadd.f32 %v8241, %v8259
      %8261 = vmatmul.bf16.gmra.mxu0 %v6654
      %v8262 = vpop.f32.mrf.mxu0
      %v8263 = vadd.f32 %v8244, %v8262
      %v8264 = vpop.f32.mrf.mxu0
      %v8265 = vadd.f32 %v8246, %v8264
      %8266 = vdwg.mxu0
      %v8267 = vpack.c.bf16 %v8222, %v8220
      %v8268 = vpack.c.bf16 %v8260, %v8258
      %v8269 = vpack.c.bf16 %v8227, %v8225
      %v8270 = vpack.c.bf16 %v8265, %v8263
      %s8271 = scalar_lea.vmem %s23, 64
      %v8272 = vld [vmem:[%s8271] sm:$0xf]
      %v8273 = vld [vmem:[%s8271 + $0x4] sm:$0xf]
      %v8274 = vld [vmem:[%s8271 + $0x8] sm:$0xf]
      %v8275 = vld [vmem:[%s8271 + $0xc] sm:$0xf]
      %v8280 = vunpack.c.l.b16 %v8272
      %v8281 = vunpack.c.l.b16 %v8273
      %v8282 = vunpack.c.l.b16 %v8274
      %v8283 = vunpack.c.l.b16 %v8275
      %v8284 = vpack.c.b16 %v8281, %v8280
      %v8285 = vpack.c.b16 %v8283, %v8282
      %v8287 = vsel %vm7219, %v8284, 0
      %v8290 = vsel %vm7219, %v8285, 0
      %8292 = vmatpush.bf16.msra.mxu0 0
      %8293 = vmatpush.bf16.msra.mxu0 0
      %8294 = vmatpush.bf16.msra.mxu0 0
      %8295 = vmatpush.bf16.msra.mxu0 0
      %8296 = vmatpush.bf16.msra.mxu0 0
      %8297 = vmatpush.bf16.msra.mxu0 0
      %8298 = vmatpush.bf16.msra.mxu0 %v8269
      %8299 = vmatpush.bf16.msra.mxu0 %v8267
      %8300 = vmatmul.bf16.gmra.mxu0 %v8287
      %v8301 = vpop.f32.mrf.mxu0
      %v8302 = vadd.f32 0.0, %v8301
      %v8303 = vpop.f32.mrf.mxu0
      %v8304 = vadd.f32 0.0, %v8303
      %8305 = vmatmul.bf16.gmra.mxu0 %v8290
      %v8306 = vpop.f32.mrf.mxu0
      %v8307 = vadd.f32 0.0, %v8306
      %v8308 = vpop.f32.mrf.mxu0
      %v8309 = vadd.f32 0.0, %v8308
      %8310 = vdwg.mxu0
      %8311 = vmatpush.bf16.msra.mxu0 0
      %8312 = vmatpush.bf16.msra.mxu0 0
      %8313 = vmatpush.bf16.msra.mxu0 0
      %8314 = vmatpush.bf16.msra.mxu0 0
      %8315 = vmatpush.bf16.msra.mxu0 0
      %8316 = vmatpush.bf16.msra.mxu0 0
      %8317 = vmatpush.bf16.msra.mxu0 %v8270
      %8318 = vmatpush.bf16.msra.mxu0 %v8268
      %8319 = vmatmul.bf16.gmra.mxu0 %v8287
      %v8320 = vpop.f32.mrf.mxu0
      %v8321 = vadd.f32 0.0, %v8320
      %v8322 = vpop.f32.mrf.mxu0
      %v8323 = vadd.f32 0.0, %v8322
      %8324 = vmatmul.bf16.gmra.mxu0 %v8290
      %v8325 = vpop.f32.mrf.mxu0
      %v8326 = vadd.f32 0.0, %v8325
      %v8327 = vpop.f32.mrf.mxu0
      %v8328 = vadd.f32 0.0, %v8327
      %8329 = vdwg.mxu0
      %v8330 = vadd.f32 %v7990, %v8302
      %v8331 = vadd.f32 %v7991, %v8321
      %v8332 = vadd.f32 %v7992, %v8304
      %v8333 = vadd.f32 %v7993, %v8323
      %v8334 = vadd.f32 %v7994, %v8307
      %v8335 = vadd.f32 %v7995, %v8326
      %v8336 = vadd.f32 %v7996, %v8309
      %v8337 = vadd.f32 %v7997, %v8328
      %s8338 = scalar_lea.vmem %s9, 1280
      %v8339 = vld [vmem:[%s8338] sm:$0xff]
      %v8340 = vld [vmem:[%s8338 + $0x8] sm:$0xff]
      %v8341 = vld [vmem:[%s8338 + $0x10] sm:$0xff]
      %v8342 = vld [vmem:[%s8338 + $0x18] sm:$0xff]
      %v8343 = vld [vmem:[%s8338 + $0x20] sm:$0xff]
      %v8344 = vld [vmem:[%s8338 + $0x28] sm:$0xff]
      %v8345 = vld [vmem:[%s8338 + $0x30] sm:$0xff]
      %v8346 = vld [vmem:[%s8338 + $0x38] sm:$0xff]
      %v8347 = vld [vmem:[%s8338 + $0x40] sm:$0xff]
      %v8348 = vld [vmem:[%s8338 + $0x48] sm:$0xff]
      %v8349 = vld [vmem:[%s8338 + $0x50] sm:$0xff]
      %v8350 = vld [vmem:[%s8338 + $0x58] sm:$0xff]
      %v8351 = vld [vmem:[%s8338 + $0x60] sm:$0xff]
      %v8352 = vld [vmem:[%s8338 + $0x68] sm:$0xff]
      %v8353 = vld [vmem:[%s8338 + $0x70] sm:$0xff]
      %v8354 = vld [vmem:[%s8338 + $0x78] sm:$0xff]
      %v8355 = vld [vmem:[%s8338 + $0x80] sm:$0xff]
      %v8356 = vld [vmem:[%s8338 + $0x88] sm:$0xff]
      %v8357 = vld [vmem:[%s8338 + $0x90] sm:$0xff]
      %v8358 = vld [vmem:[%s8338 + $0x98] sm:$0xff]
      %v8359 = vld [vmem:[%s8338 + $0xa0] sm:$0xff]
      %v8360 = vld [vmem:[%s8338 + $0xa8] sm:$0xff]
      %v8361 = vld [vmem:[%s8338 + $0xb0] sm:$0xff]
      %v8362 = vld [vmem:[%s8338 + $0xb8] sm:$0xff]
      %v8363 = vld [vmem:[%s8338 + $0xc0] sm:$0xff]
      %v8364 = vld [vmem:[%s8338 + $0xc8] sm:$0xff]
      %v8365 = vld [vmem:[%s8338 + $0xd0] sm:$0xff]
      %v8366 = vld [vmem:[%s8338 + $0xd8] sm:$0xff]
      %v8367 = vld [vmem:[%s8338 + $0xe0] sm:$0xff]
      %v8368 = vld [vmem:[%s8338 + $0xe8] sm:$0xff]
      %v8369 = vld [vmem:[%s8338 + $0xf0] sm:$0xff]
      %v8370 = vld [vmem:[%s8338 + $0xf8] sm:$0xff]
      %v8403 = vunpack.c.l.b16 %v8339
      %v8404 = vunpack.c.h.b16 %v8339
      %v8405 = vunpack.c.l.b16 %v8340
      %v8406 = vunpack.c.h.b16 %v8340
      %v8407 = vunpack.c.l.b16 %v8341
      %v8408 = vunpack.c.h.b16 %v8341
      %v8409 = vunpack.c.l.b16 %v8342
      %v8410 = vunpack.c.h.b16 %v8342
      %v8411 = vunpack.c.l.b16 %v8343
      %v8412 = vunpack.c.h.b16 %v8343
      %v8413 = vunpack.c.l.b16 %v8344
      %v8414 = vunpack.c.h.b16 %v8344
      %v8415 = vunpack.c.l.b16 %v8345
      %v8416 = vunpack.c.h.b16 %v8345
      %v8417 = vunpack.c.l.b16 %v8346
      %v8418 = vunpack.c.h.b16 %v8346
      %v8419 = vunpack.c.l.b16 %v8347
      %v8420 = vunpack.c.h.b16 %v8347
      %v8421 = vunpack.c.l.b16 %v8348
      %v8422 = vunpack.c.h.b16 %v8348
      %v8423 = vunpack.c.l.b16 %v8349
      %v8424 = vunpack.c.h.b16 %v8349
      %v8425 = vunpack.c.l.b16 %v8350
      %v8426 = vunpack.c.h.b16 %v8350
      %v8427 = vunpack.c.l.b16 %v8351
      %v8428 = vunpack.c.h.b16 %v8351
      %v8429 = vunpack.c.l.b16 %v8352
      %v8430 = vunpack.c.h.b16 %v8352
      %v8431 = vunpack.c.l.b16 %v8353
      %v8432 = vunpack.c.h.b16 %v8353
      %v8433 = vunpack.c.l.b16 %v8354
      %v8434 = vunpack.c.h.b16 %v8354
      %v8435 = vunpack.c.l.b16 %v8355
      %v8436 = vunpack.c.h.b16 %v8355
      %v8437 = vunpack.c.l.b16 %v8356
      %v8438 = vunpack.c.h.b16 %v8356
      %v8439 = vunpack.c.l.b16 %v8357
      %v8440 = vunpack.c.h.b16 %v8357
      %v8441 = vunpack.c.l.b16 %v8358
      %v8442 = vunpack.c.h.b16 %v8358
      %v8443 = vunpack.c.l.b16 %v8359
      %v8444 = vunpack.c.h.b16 %v8359
      %v8445 = vunpack.c.l.b16 %v8360
      %v8446 = vunpack.c.h.b16 %v8360
      %v8447 = vunpack.c.l.b16 %v8361
      %v8448 = vunpack.c.h.b16 %v8361
      %v8449 = vunpack.c.l.b16 %v8362
      %v8450 = vunpack.c.h.b16 %v8362
      %v8451 = vunpack.c.l.b16 %v8363
      %v8452 = vunpack.c.h.b16 %v8363
      %v8453 = vunpack.c.l.b16 %v8364
      %v8454 = vunpack.c.h.b16 %v8364
      %v8455 = vunpack.c.l.b16 %v8365
      %v8456 = vunpack.c.h.b16 %v8365
      %v8457 = vunpack.c.l.b16 %v8366
      %v8458 = vunpack.c.h.b16 %v8366
      %v8459 = vunpack.c.l.b16 %v8367
      %v8460 = vunpack.c.h.b16 %v8367
      %v8461 = vunpack.c.l.b16 %v8368
      %v8462 = vunpack.c.h.b16 %v8368
      %v8463 = vunpack.c.l.b16 %v8369
      %v8464 = vunpack.c.h.b16 %v8369
      %v8465 = vunpack.c.l.b16 %v8370
      %v8466 = vunpack.c.h.b16 %v8370
      %v8467 = vpack.c.b16 %v8405, %v8403
      %v8468 = vpack.c.b16 %v8406, %v8404
      %v8469 = vpack.c.b16 %v8409, %v8407
      %v8470 = vpack.c.b16 %v8410, %v8408
      %v8471 = vpack.c.b16 %v8413, %v8411
      %v8472 = vpack.c.b16 %v8414, %v8412
      %v8473 = vpack.c.b16 %v8417, %v8415
      %v8474 = vpack.c.b16 %v8418, %v8416
      %v8475 = vpack.c.b16 %v8421, %v8419
      %v8476 = vpack.c.b16 %v8422, %v8420
      %v8477 = vpack.c.b16 %v8425, %v8423
      %v8478 = vpack.c.b16 %v8426, %v8424
      %v8479 = vpack.c.b16 %v8429, %v8427
      %v8480 = vpack.c.b16 %v8430, %v8428
      %v8481 = vpack.c.b16 %v8433, %v8431
      %v8482 = vpack.c.b16 %v8434, %v8432
      %v8483 = vpack.c.b16 %v8437, %v8435
      %v8484 = vpack.c.b16 %v8438, %v8436
      %v8485 = vpack.c.b16 %v8441, %v8439
      %v8486 = vpack.c.b16 %v8442, %v8440
      %v8487 = vpack.c.b16 %v8445, %v8443
      %v8488 = vpack.c.b16 %v8446, %v8444
      %v8489 = vpack.c.b16 %v8449, %v8447
      %v8490 = vpack.c.b16 %v8450, %v8448
      %v8491 = vpack.c.b16 %v8453, %v8451
      %v8492 = vpack.c.b16 %v8454, %v8452
      %v8493 = vpack.c.b16 %v8457, %v8455
      %v8494 = vpack.c.b16 %v8458, %v8456
      %v8495 = vpack.c.b16 %v8461, %v8459
      %v8496 = vpack.c.b16 %v8462, %v8460
      %v8497 = vpack.c.b16 %v8465, %v8463
      %v8498 = vpack.c.b16 %v8466, %v8464
      %8531 = vmatpush.bf16.msra.mxu0 %v8481
      %8532 = vmatpush.bf16.msra.mxu0 %v8479
      %8533 = vmatpush.bf16.msra.mxu0 %v8477
      %8534 = vmatpush.bf16.msra.mxu0 %v8475
      %8535 = vmatpush.bf16.msra.mxu0 %v8473
      %8536 = vmatpush.bf16.msra.mxu0 %v8471
      %8537 = vmatpush.bf16.msra.mxu0 %v8469
      %8538 = vmatpush.bf16.msra.mxu0 %v8467
      %8539 = vmatmul.bf16.gmra.mxu0 %v6651
      %v8540 = vpop.f32.mrf.mxu0
      %v8541 = vadd.f32 0.0, %v8540
      %v8542 = vpop.f32.mrf.mxu0
      %v8543 = vadd.f32 0.0, %v8542
      %8544 = vmatmul.bf16.gmra.mxu0 %v6653
      %v8545 = vpop.f32.mrf.mxu0
      %v8546 = vadd.f32 0.0, %v8545
      %v8547 = vpop.f32.mrf.mxu0
      %v8548 = vadd.f32 0.0, %v8547
      %8549 = vdwg.mxu0
      %8550 = vmatpush.bf16.msra.mxu0 %v8497
      %8551 = vmatpush.bf16.msra.mxu0 %v8495
      %8552 = vmatpush.bf16.msra.mxu0 %v8493
      %8553 = vmatpush.bf16.msra.mxu0 %v8491
      %8554 = vmatpush.bf16.msra.mxu0 %v8489
      %8555 = vmatpush.bf16.msra.mxu0 %v8487
      %8556 = vmatpush.bf16.msra.mxu0 %v8485
      %8557 = vmatpush.bf16.msra.mxu0 %v8483
      %8558 = vmatmul.bf16.gmra.mxu0 %v6652
      %v8559 = vpop.f32.mrf.mxu0
      %v8560 = vadd.f32 %v8541, %v8559
      %v8561 = vpop.f32.mrf.mxu0
      %v8562 = vadd.f32 %v8543, %v8561
      %8563 = vmatmul.bf16.gmra.mxu0 %v6654
      %v8564 = vpop.f32.mrf.mxu0
      %v8565 = vadd.f32 %v8546, %v8564
      %v8566 = vpop.f32.mrf.mxu0
      %v8567 = vadd.f32 %v8548, %v8566
      %8568 = vdwg.mxu0
      %8569 = vmatpush.bf16.msra.mxu0 %v8482
      %8570 = vmatpush.bf16.msra.mxu0 %v8480
      %8571 = vmatpush.bf16.msra.mxu0 %v8478
      %8572 = vmatpush.bf16.msra.mxu0 %v8476
      %8573 = vmatpush.bf16.msra.mxu0 %v8474
      %8574 = vmatpush.bf16.msra.mxu0 %v8472
      %8575 = vmatpush.bf16.msra.mxu0 %v8470
      %8576 = vmatpush.bf16.msra.mxu0 %v8468
      %8577 = vmatmul.bf16.gmra.mxu0 %v6651
      %v8578 = vpop.f32.mrf.mxu0
      %v8579 = vadd.f32 0.0, %v8578
      %v8580 = vpop.f32.mrf.mxu0
      %v8581 = vadd.f32 0.0, %v8580
      %8582 = vmatmul.bf16.gmra.mxu0 %v6653
      %v8583 = vpop.f32.mrf.mxu0
      %v8584 = vadd.f32 0.0, %v8583
      %v8585 = vpop.f32.mrf.mxu0
      %v8586 = vadd.f32 0.0, %v8585
      %8587 = vdwg.mxu0
      %8588 = vmatpush.bf16.msra.mxu0 %v8498
      %8589 = vmatpush.bf16.msra.mxu0 %v8496
      %8590 = vmatpush.bf16.msra.mxu0 %v8494
      %8591 = vmatpush.bf16.msra.mxu0 %v8492
      %8592 = vmatpush.bf16.msra.mxu0 %v8490
      %8593 = vmatpush.bf16.msra.mxu0 %v8488
      %8594 = vmatpush.bf16.msra.mxu0 %v8486
      %8595 = vmatpush.bf16.msra.mxu0 %v8484
      %8596 = vmatmul.bf16.gmra.mxu0 %v6652
      %v8597 = vpop.f32.mrf.mxu0
      %v8598 = vadd.f32 %v8579, %v8597
      %v8599 = vpop.f32.mrf.mxu0
      %v8600 = vadd.f32 %v8581, %v8599
      %8601 = vmatmul.bf16.gmra.mxu0 %v6654
      %v8602 = vpop.f32.mrf.mxu0
      %v8603 = vadd.f32 %v8584, %v8602
      %v8604 = vpop.f32.mrf.mxu0
      %v8605 = vadd.f32 %v8586, %v8604
      %8606 = vdwg.mxu0
      %v8607 = vpack.c.bf16 %v8562, %v8560
      %v8608 = vpack.c.bf16 %v8600, %v8598
      %v8609 = vpack.c.bf16 %v8567, %v8565
      %v8610 = vpack.c.bf16 %v8605, %v8603
      %s8611 = scalar_lea.vmem %s23, 80
      %v8612 = vld [vmem:[%s8611] sm:$0xf]
      %v8613 = vld [vmem:[%s8611 + $0x4] sm:$0xf]
      %v8614 = vld [vmem:[%s8611 + $0x8] sm:$0xf]
      %v8615 = vld [vmem:[%s8611 + $0xc] sm:$0xf]
      %v8620 = vunpack.c.l.b16 %v8612
      %v8621 = vunpack.c.l.b16 %v8613
      %v8622 = vunpack.c.l.b16 %v8614
      %v8623 = vunpack.c.l.b16 %v8615
      %v8624 = vpack.c.b16 %v8621, %v8620
      %v8625 = vpack.c.b16 %v8623, %v8622
      %v8627 = vsel %vm7219, %v8624, 0
      %v8630 = vsel %vm7219, %v8625, 0
      %8632 = vmatpush.bf16.msra.mxu0 0
      %8633 = vmatpush.bf16.msra.mxu0 0
      %8634 = vmatpush.bf16.msra.mxu0 0
      %8635 = vmatpush.bf16.msra.mxu0 0
      %8636 = vmatpush.bf16.msra.mxu0 0
      %8637 = vmatpush.bf16.msra.mxu0 0
      %8638 = vmatpush.bf16.msra.mxu0 %v8609
      %8639 = vmatpush.bf16.msra.mxu0 %v8607
      %8640 = vmatmul.bf16.gmra.mxu0 %v8627
      %v8641 = vpop.f32.mrf.mxu0
      %v8642 = vadd.f32 0.0, %v8641
      %v8643 = vpop.f32.mrf.mxu0
      %v8644 = vadd.f32 0.0, %v8643
      %8645 = vmatmul.bf16.gmra.mxu0 %v8630
      %v8646 = vpop.f32.mrf.mxu0
      %v8647 = vadd.f32 0.0, %v8646
      %v8648 = vpop.f32.mrf.mxu0
      %v8649 = vadd.f32 0.0, %v8648
      %8650 = vdwg.mxu0
      %8651 = vmatpush.bf16.msra.mxu0 0
      %8652 = vmatpush.bf16.msra.mxu0 0
      %8653 = vmatpush.bf16.msra.mxu0 0
      %8654 = vmatpush.bf16.msra.mxu0 0
      %8655 = vmatpush.bf16.msra.mxu0 0
      %8656 = vmatpush.bf16.msra.mxu0 0
      %8657 = vmatpush.bf16.msra.mxu0 %v8610
      %8658 = vmatpush.bf16.msra.mxu0 %v8608
      %8659 = vmatmul.bf16.gmra.mxu0 %v8627
      %v8660 = vpop.f32.mrf.mxu0
      %v8661 = vadd.f32 0.0, %v8660
      %v8662 = vpop.f32.mrf.mxu0
      %v8663 = vadd.f32 0.0, %v8662
      %8664 = vmatmul.bf16.gmra.mxu0 %v8630
      %v8665 = vpop.f32.mrf.mxu0
      %v8666 = vadd.f32 0.0, %v8665
      %v8667 = vpop.f32.mrf.mxu0
      %v8668 = vadd.f32 0.0, %v8667
      %8669 = vdwg.mxu0
      %v8670 = vadd.f32 %v8330, %v8642
      %v8671 = vadd.f32 %v8331, %v8661
      %v8672 = vadd.f32 %v8332, %v8644
      %v8673 = vadd.f32 %v8333, %v8663
      %v8674 = vadd.f32 %v8334, %v8647
      %v8675 = vadd.f32 %v8335, %v8666
      %v8676 = vadd.f32 %v8336, %v8649
      %v8677 = vadd.f32 %v8337, %v8668
      %s8678 = scalar_lea.vmem %s9, 1536
      %v8679 = vld [vmem:[%s8678] sm:$0xff]
      %v8680 = vld [vmem:[%s8678 + $0x8] sm:$0xff]
      %v8681 = vld [vmem:[%s8678 + $0x10] sm:$0xff]
      %v8682 = vld [vmem:[%s8678 + $0x18] sm:$0xff]
      %v8683 = vld [vmem:[%s8678 + $0x20] sm:$0xff]
      %v8684 = vld [vmem:[%s8678 + $0x28] sm:$0xff]
      %v8685 = vld [vmem:[%s8678 + $0x30] sm:$0xff]
      %v8686 = vld [vmem:[%s8678 + $0x38] sm:$0xff]
      %v8687 = vld [vmem:[%s8678 + $0x40] sm:$0xff]
      %v8688 = vld [vmem:[%s8678 + $0x48] sm:$0xff]
      %v8689 = vld [vmem:[%s8678 + $0x50] sm:$0xff]
      %v8690 = vld [vmem:[%s8678 + $0x58] sm:$0xff]
      %v8691 = vld [vmem:[%s8678 + $0x60] sm:$0xff]
      %v8692 = vld [vmem:[%s8678 + $0x68] sm:$0xff]
      %v8693 = vld [vmem:[%s8678 + $0x70] sm:$0xff]
      %v8694 = vld [vmem:[%s8678 + $0x78] sm:$0xff]
      %v8695 = vld [vmem:[%s8678 + $0x80] sm:$0xff]
      %v8696 = vld [vmem:[%s8678 + $0x88] sm:$0xff]
      %v8697 = vld [vmem:[%s8678 + $0x90] sm:$0xff]
      %v8698 = vld [vmem:[%s8678 + $0x98] sm:$0xff]
      %v8699 = vld [vmem:[%s8678 + $0xa0] sm:$0xff]
      %v8700 = vld [vmem:[%s8678 + $0xa8] sm:$0xff]
      %v8701 = vld [vmem:[%s8678 + $0xb0] sm:$0xff]
      %v8702 = vld [vmem:[%s8678 + $0xb8] sm:$0xff]
      %v8703 = vld [vmem:[%s8678 + $0xc0] sm:$0xff]
      %v8704 = vld [vmem:[%s8678 + $0xc8] sm:$0xff]
      %v8705 = vld [vmem:[%s8678 + $0xd0] sm:$0xff]
      %v8706 = vld [vmem:[%s8678 + $0xd8] sm:$0xff]
      %v8707 = vld [vmem:[%s8678 + $0xe0] sm:$0xff]
      %v8708 = vld [vmem:[%s8678 + $0xe8] sm:$0xff]
      %v8709 = vld [vmem:[%s8678 + $0xf0] sm:$0xff]
      %v8710 = vld [vmem:[%s8678 + $0xf8] sm:$0xff]
      %v8743 = vunpack.c.l.b16 %v8679
      %v8744 = vunpack.c.h.b16 %v8679
      %v8745 = vunpack.c.l.b16 %v8680
      %v8746 = vunpack.c.h.b16 %v8680
      %v8747 = vunpack.c.l.b16 %v8681
      %v8748 = vunpack.c.h.b16 %v8681
      %v8749 = vunpack.c.l.b16 %v8682
      %v8750 = vunpack.c.h.b16 %v8682
      %v8751 = vunpack.c.l.b16 %v8683
      %v8752 = vunpack.c.h.b16 %v8683
      %v8753 = vunpack.c.l.b16 %v8684
      %v8754 = vunpack.c.h.b16 %v8684
      %v8755 = vunpack.c.l.b16 %v8685
      %v8756 = vunpack.c.h.b16 %v8685
      %v8757 = vunpack.c.l.b16 %v8686
      %v8758 = vunpack.c.h.b16 %v8686
      %v8759 = vunpack.c.l.b16 %v8687
      %v8760 = vunpack.c.h.b16 %v8687
      %v8761 = vunpack.c.l.b16 %v8688
      %v8762 = vunpack.c.h.b16 %v8688
      %v8763 = vunpack.c.l.b16 %v8689
      %v8764 = vunpack.c.h.b16 %v8689
      %v8765 = vunpack.c.l.b16 %v8690
      %v8766 = vunpack.c.h.b16 %v8690
      %v8767 = vunpack.c.l.b16 %v8691
      %v8768 = vunpack.c.h.b16 %v8691
      %v8769 = vunpack.c.l.b16 %v8692
      %v8770 = vunpack.c.h.b16 %v8692
      %v8771 = vunpack.c.l.b16 %v8693
      %v8772 = vunpack.c.h.b16 %v8693
      %v8773 = vunpack.c.l.b16 %v8694
      %v8774 = vunpack.c.h.b16 %v8694
      %v8775 = vunpack.c.l.b16 %v8695
      %v8776 = vunpack.c.h.b16 %v8695
      %v8777 = vunpack.c.l.b16 %v8696
      %v8778 = vunpack.c.h.b16 %v8696
      %v8779 = vunpack.c.l.b16 %v8697
      %v8780 = vunpack.c.h.b16 %v8697
      %v8781 = vunpack.c.l.b16 %v8698
      %v8782 = vunpack.c.h.b16 %v8698
      %v8783 = vunpack.c.l.b16 %v8699
      %v8784 = vunpack.c.h.b16 %v8699
      %v8785 = vunpack.c.l.b16 %v8700
      %v8786 = vunpack.c.h.b16 %v8700
      %v8787 = vunpack.c.l.b16 %v8701
      %v8788 = vunpack.c.h.b16 %v8701
      %v8789 = vunpack.c.l.b16 %v8702
      %v8790 = vunpack.c.h.b16 %v8702
      %v8791 = vunpack.c.l.b16 %v8703
      %v8792 = vunpack.c.h.b16 %v8703
      %v8793 = vunpack.c.l.b16 %v8704
      %v8794 = vunpack.c.h.b16 %v8704
      %v8795 = vunpack.c.l.b16 %v8705
      %v8796 = vunpack.c.h.b16 %v8705
      %v8797 = vunpack.c.l.b16 %v8706
      %v8798 = vunpack.c.h.b16 %v8706
      %v8799 = vunpack.c.l.b16 %v8707
      %v8800 = vunpack.c.h.b16 %v8707
      %v8801 = vunpack.c.l.b16 %v8708
      %v8802 = vunpack.c.h.b16 %v8708
      %v8803 = vunpack.c.l.b16 %v8709
      %v8804 = vunpack.c.h.b16 %v8709
      %v8805 = vunpack.c.l.b16 %v8710
      %v8806 = vunpack.c.h.b16 %v8710
      %v8807 = vpack.c.b16 %v8745, %v8743
      %v8808 = vpack.c.b16 %v8746, %v8744
      %v8809 = vpack.c.b16 %v8749, %v8747
      %v8810 = vpack.c.b16 %v8750, %v8748
      %v8811 = vpack.c.b16 %v8753, %v8751
      %v8812 = vpack.c.b16 %v8754, %v8752
      %v8813 = vpack.c.b16 %v8757, %v8755
      %v8814 = vpack.c.b16 %v8758, %v8756
      %v8815 = vpack.c.b16 %v8761, %v8759
      %v8816 = vpack.c.b16 %v8762, %v8760
      %v8817 = vpack.c.b16 %v8765, %v8763
      %v8818 = vpack.c.b16 %v8766, %v8764
      %v8819 = vpack.c.b16 %v8769, %v8767
      %v8820 = vpack.c.b16 %v8770, %v8768
      %v8821 = vpack.c.b16 %v8773, %v8771
      %v8822 = vpack.c.b16 %v8774, %v8772
      %v8823 = vpack.c.b16 %v8777, %v8775
      %v8824 = vpack.c.b16 %v8778, %v8776
      %v8825 = vpack.c.b16 %v8781, %v8779
      %v8826 = vpack.c.b16 %v8782, %v8780
      %v8827 = vpack.c.b16 %v8785, %v8783
      %v8828 = vpack.c.b16 %v8786, %v8784
      %v8829 = vpack.c.b16 %v8789, %v8787
      %v8830 = vpack.c.b16 %v8790, %v8788
      %v8831 = vpack.c.b16 %v8793, %v8791
      %v8832 = vpack.c.b16 %v8794, %v8792
      %v8833 = vpack.c.b16 %v8797, %v8795
      %v8834 = vpack.c.b16 %v8798, %v8796
      %v8835 = vpack.c.b16 %v8801, %v8799
      %v8836 = vpack.c.b16 %v8802, %v8800
      %v8837 = vpack.c.b16 %v8805, %v8803
      %v8838 = vpack.c.b16 %v8806, %v8804
      %8871 = vmatpush.bf16.msra.mxu0 %v8821
      %8872 = vmatpush.bf16.msra.mxu0 %v8819
      %8873 = vmatpush.bf16.msra.mxu0 %v8817
      %8874 = vmatpush.bf16.msra.mxu0 %v8815
      %8875 = vmatpush.bf16.msra.mxu0 %v8813
      %8876 = vmatpush.bf16.msra.mxu0 %v8811
      %8877 = vmatpush.bf16.msra.mxu0 %v8809
      %8878 = vmatpush.bf16.msra.mxu0 %v8807
      %8879 = vmatmul.bf16.gmra.mxu0 %v6651
      %v8880 = vpop.f32.mrf.mxu0
      %v8881 = vadd.f32 0.0, %v8880
      %v8882 = vpop.f32.mrf.mxu0
      %v8883 = vadd.f32 0.0, %v8882
      %8884 = vmatmul.bf16.gmra.mxu0 %v6653
      %v8885 = vpop.f32.mrf.mxu0
      %v8886 = vadd.f32 0.0, %v8885
      %v8887 = vpop.f32.mrf.mxu0
      %v8888 = vadd.f32 0.0, %v8887
      %8889 = vdwg.mxu0
      %8890 = vmatpush.bf16.msra.mxu0 %v8837
      %8891 = vmatpush.bf16.msra.mxu0 %v8835
      %8892 = vmatpush.bf16.msra.mxu0 %v8833
      %8893 = vmatpush.bf16.msra.mxu0 %v8831
      %8894 = vmatpush.bf16.msra.mxu0 %v8829
      %8895 = vmatpush.bf16.msra.mxu0 %v8827
      %8896 = vmatpush.bf16.msra.mxu0 %v8825
      %8897 = vmatpush.bf16.msra.mxu0 %v8823
      %8898 = vmatmul.bf16.gmra.mxu0 %v6652
      %v8899 = vpop.f32.mrf.mxu0
      %v8900 = vadd.f32 %v8881, %v8899
      %v8901 = vpop.f32.mrf.mxu0
      %v8902 = vadd.f32 %v8883, %v8901
      %8903 = vmatmul.bf16.gmra.mxu0 %v6654
      %v8904 = vpop.f32.mrf.mxu0
      %v8905 = vadd.f32 %v8886, %v8904
      %v8906 = vpop.f32.mrf.mxu0
      %v8907 = vadd.f32 %v8888, %v8906
      %8908 = vdwg.mxu0
      %8909 = vmatpush.bf16.msra.mxu0 %v8822
      %8910 = vmatpush.bf16.msra.mxu0 %v8820
      %8911 = vmatpush.bf16.msra.mxu0 %v8818
      %8912 = vmatpush.bf16.msra.mxu0 %v8816
      %8913 = vmatpush.bf16.msra.mxu0 %v8814
      %8914 = vmatpush.bf16.msra.mxu0 %v8812
      %8915 = vmatpush.bf16.msra.mxu0 %v8810
      %8916 = vmatpush.bf16.msra.mxu0 %v8808
      %8917 = vmatmul.bf16.gmra.mxu0 %v6651
      %v8918 = vpop.f32.mrf.mxu0
      %v8919 = vadd.f32 0.0, %v8918
      %v8920 = vpop.f32.mrf.mxu0
      %v8921 = vadd.f32 0.0, %v8920
      %8922 = vmatmul.bf16.gmra.mxu0 %v6653
      %v8923 = vpop.f32.mrf.mxu0
      %v8924 = vadd.f32 0.0, %v8923
      %v8925 = vpop.f32.mrf.mxu0
      %v8926 = vadd.f32 0.0, %v8925
      %8927 = vdwg.mxu0
      %8928 = vmatpush.bf16.msra.mxu0 %v8838
      %8929 = vmatpush.bf16.msra.mxu0 %v8836
      %8930 = vmatpush.bf16.msra.mxu0 %v8834
      %8931 = vmatpush.bf16.msra.mxu0 %v8832
      %8932 = vmatpush.bf16.msra.mxu0 %v8830
      %8933 = vmatpush.bf16.msra.mxu0 %v8828
      %8934 = vmatpush.bf16.msra.mxu0 %v8826
      %8935 = vmatpush.bf16.msra.mxu0 %v8824
      %8936 = vmatmul.bf16.gmra.mxu0 %v6652
      %v8937 = vpop.f32.mrf.mxu0
      %v8938 = vadd.f32 %v8919, %v8937
      %v8939 = vpop.f32.mrf.mxu0
      %v8940 = vadd.f32 %v8921, %v8939
      %8941 = vmatmul.bf16.gmra.mxu0 %v6654
      %v8942 = vpop.f32.mrf.mxu0
      %v8943 = vadd.f32 %v8924, %v8942
      %v8944 = vpop.f32.mrf.mxu0
      %v8945 = vadd.f32 %v8926, %v8944
      %8946 = vdwg.mxu0
      %v8947 = vpack.c.bf16 %v8902, %v8900
      %v8948 = vpack.c.bf16 %v8940, %v8938
      %v8949 = vpack.c.bf16 %v8907, %v8905
      %v8950 = vpack.c.bf16 %v8945, %v8943
      %s8951 = scalar_lea.vmem %s23, 96
      %v8952 = vld [vmem:[%s8951] sm:$0xf]
      %v8953 = vld [vmem:[%s8951 + $0x4] sm:$0xf]
      %v8954 = vld [vmem:[%s8951 + $0x8] sm:$0xf]
      %v8955 = vld [vmem:[%s8951 + $0xc] sm:$0xf]
      %v8960 = vunpack.c.l.b16 %v8952
      %v8961 = vunpack.c.l.b16 %v8953
      %v8962 = vunpack.c.l.b16 %v8954
      %v8963 = vunpack.c.l.b16 %v8955
      %v8964 = vpack.c.b16 %v8961, %v8960
      %v8965 = vpack.c.b16 %v8963, %v8962
      %v8967 = vsel %vm7219, %v8964, 0
      %v8970 = vsel %vm7219, %v8965, 0
      %8972 = vmatpush.bf16.msra.mxu0 0
      %8973 = vmatpush.bf16.msra.mxu0 0
      %8974 = vmatpush.bf16.msra.mxu0 0
      %8975 = vmatpush.bf16.msra.mxu0 0
      %8976 = vmatpush.bf16.msra.mxu0 0
      %8977 = vmatpush.bf16.msra.mxu0 0
      %8978 = vmatpush.bf16.msra.mxu0 %v8949
      %8979 = vmatpush.bf16.msra.mxu0 %v8947
      %8980 = vmatmul.bf16.gmra.mxu0 %v8967
      %v8981 = vpop.f32.mrf.mxu0
      %v8982 = vadd.f32 0.0, %v8981
      %v8983 = vpop.f32.mrf.mxu0
      %v8984 = vadd.f32 0.0, %v8983
      %8985 = vmatmul.bf16.gmra.mxu0 %v8970
      %v8986 = vpop.f32.mrf.mxu0
      %v8987 = vadd.f32 0.0, %v8986
      %v8988 = vpop.f32.mrf.mxu0
      %v8989 = vadd.f32 0.0, %v8988
      %8990 = vdwg.mxu0
      %8991 = vmatpush.bf16.msra.mxu0 0
      %8992 = vmatpush.bf16.msra.mxu0 0
      %8993 = vmatpush.bf16.msra.mxu0 0
      %8994 = vmatpush.bf16.msra.mxu0 0
      %8995 = vmatpush.bf16.msra.mxu0 0
      %8996 = vmatpush.bf16.msra.mxu0 0
      %8997 = vmatpush.bf16.msra.mxu0 %v8950
      %8998 = vmatpush.bf16.msra.mxu0 %v8948
      %8999 = vmatmul.bf16.gmra.mxu0 %v8967
      %v9000 = vpop.f32.mrf.mxu0
      %v9001 = vadd.f32 0.0, %v9000
      %v9002 = vpop.f32.mrf.mxu0
      %v9003 = vadd.f32 0.0, %v9002
      %9004 = vmatmul.bf16.gmra.mxu0 %v8970
      %v9005 = vpop.f32.mrf.mxu0
      %v9006 = vadd.f32 0.0, %v9005
      %v9007 = vpop.f32.mrf.mxu0
      %v9008 = vadd.f32 0.0, %v9007
      %9009 = vdwg.mxu0
      %v9010 = vadd.f32 %v8670, %v8982
      %v9011 = vadd.f32 %v8671, %v9001
      %v9012 = vadd.f32 %v8672, %v8984
      %v9013 = vadd.f32 %v8673, %v9003
      %v9014 = vadd.f32 %v8674, %v8987
      %v9015 = vadd.f32 %v8675, %v9006
      %v9016 = vadd.f32 %v8676, %v8989
      %v9017 = vadd.f32 %v8677, %v9008
      %s9018 = scalar_lea.vmem %s9, 1792
      %v9019 = vld [vmem:[%s9018] sm:$0xff]
      %v9020 = vld [vmem:[%s9018 + $0x8] sm:$0xff]
      %v9021 = vld [vmem:[%s9018 + $0x10] sm:$0xff]
      %v9022 = vld [vmem:[%s9018 + $0x18] sm:$0xff]
      %v9023 = vld [vmem:[%s9018 + $0x20] sm:$0xff]
      %v9024 = vld [vmem:[%s9018 + $0x28] sm:$0xff]
      %v9025 = vld [vmem:[%s9018 + $0x30] sm:$0xff]
      %v9026 = vld [vmem:[%s9018 + $0x38] sm:$0xff]
      %v9027 = vld [vmem:[%s9018 + $0x40] sm:$0xff]
      %v9028 = vld [vmem:[%s9018 + $0x48] sm:$0xff]
      %v9029 = vld [vmem:[%s9018 + $0x50] sm:$0xff]
      %v9030 = vld [vmem:[%s9018 + $0x58] sm:$0xff]
      %v9031 = vld [vmem:[%s9018 + $0x60] sm:$0xff]
      %v9032 = vld [vmem:[%s9018 + $0x68] sm:$0xff]
      %v9033 = vld [vmem:[%s9018 + $0x70] sm:$0xff]
      %v9034 = vld [vmem:[%s9018 + $0x78] sm:$0xff]
      %v9035 = vld [vmem:[%s9018 + $0x80] sm:$0xff]
      %v9036 = vld [vmem:[%s9018 + $0x88] sm:$0xff]
      %v9037 = vld [vmem:[%s9018 + $0x90] sm:$0xff]
      %v9038 = vld [vmem:[%s9018 + $0x98] sm:$0xff]
      %v9039 = vld [vmem:[%s9018 + $0xa0] sm:$0xff]
      %v9040 = vld [vmem:[%s9018 + $0xa8] sm:$0xff]
      %v9041 = vld [vmem:[%s9018 + $0xb0] sm:$0xff]
      %v9042 = vld [vmem:[%s9018 + $0xb8] sm:$0xff]
      %v9043 = vld [vmem:[%s9018 + $0xc0] sm:$0xff]
      %v9044 = vld [vmem:[%s9018 + $0xc8] sm:$0xff]
      %v9045 = vld [vmem:[%s9018 + $0xd0] sm:$0xff]
      %v9046 = vld [vmem:[%s9018 + $0xd8] sm:$0xff]
      %v9047 = vld [vmem:[%s9018 + $0xe0] sm:$0xff]
      %v9048 = vld [vmem:[%s9018 + $0xe8] sm:$0xff]
      %v9049 = vld [vmem:[%s9018 + $0xf0] sm:$0xff]
      %v9050 = vld [vmem:[%s9018 + $0xf8] sm:$0xff]
      %v9083 = vunpack.c.l.b16 %v9019
      %v9084 = vunpack.c.h.b16 %v9019
      %v9085 = vunpack.c.l.b16 %v9020
      %v9086 = vunpack.c.h.b16 %v9020
      %v9087 = vunpack.c.l.b16 %v9021
      %v9088 = vunpack.c.h.b16 %v9021
      %v9089 = vunpack.c.l.b16 %v9022
      %v9090 = vunpack.c.h.b16 %v9022
      %v9091 = vunpack.c.l.b16 %v9023
      %v9092 = vunpack.c.h.b16 %v9023
      %v9093 = vunpack.c.l.b16 %v9024
      %v9094 = vunpack.c.h.b16 %v9024
      %v9095 = vunpack.c.l.b16 %v9025
      %v9096 = vunpack.c.h.b16 %v9025
      %v9097 = vunpack.c.l.b16 %v9026
      %v9098 = vunpack.c.h.b16 %v9026
      %v9099 = vunpack.c.l.b16 %v9027
      %v9100 = vunpack.c.h.b16 %v9027
      %v9101 = vunpack.c.l.b16 %v9028
      %v9102 = vunpack.c.h.b16 %v9028
      %v9103 = vunpack.c.l.b16 %v9029
      %v9104 = vunpack.c.h.b16 %v9029
      %v9105 = vunpack.c.l.b16 %v9030
      %v9106 = vunpack.c.h.b16 %v9030
      %v9107 = vunpack.c.l.b16 %v9031
      %v9108 = vunpack.c.h.b16 %v9031
      %v9109 = vunpack.c.l.b16 %v9032
      %v9110 = vunpack.c.h.b16 %v9032
      %v9111 = vunpack.c.l.b16 %v9033
      %v9112 = vunpack.c.h.b16 %v9033
      %v9113 = vunpack.c.l.b16 %v9034
      %v9114 = vunpack.c.h.b16 %v9034
      %v9115 = vunpack.c.l.b16 %v9035
      %v9116 = vunpack.c.h.b16 %v9035
      %v9117 = vunpack.c.l.b16 %v9036
      %v9118 = vunpack.c.h.b16 %v9036
      %v9119 = vunpack.c.l.b16 %v9037
      %v9120 = vunpack.c.h.b16 %v9037
      %v9121 = vunpack.c.l.b16 %v9038
      %v9122 = vunpack.c.h.b16 %v9038
      %v9123 = vunpack.c.l.b16 %v9039
      %v9124 = vunpack.c.h.b16 %v9039
      %v9125 = vunpack.c.l.b16 %v9040
      %v9126 = vunpack.c.h.b16 %v9040
      %v9127 = vunpack.c.l.b16 %v9041
      %v9128 = vunpack.c.h.b16 %v9041
      %v9129 = vunpack.c.l.b16 %v9042
      %v9130 = vunpack.c.h.b16 %v9042
      %v9131 = vunpack.c.l.b16 %v9043
      %v9132 = vunpack.c.h.b16 %v9043
      %v9133 = vunpack.c.l.b16 %v9044
      %v9134 = vunpack.c.h.b16 %v9044
      %v9135 = vunpack.c.l.b16 %v9045
      %v9136 = vunpack.c.h.b16 %v9045
      %v9137 = vunpack.c.l.b16 %v9046
      %v9138 = vunpack.c.h.b16 %v9046
      %v9139 = vunpack.c.l.b16 %v9047
      %v9140 = vunpack.c.h.b16 %v9047
      %v9141 = vunpack.c.l.b16 %v9048
      %v9142 = vunpack.c.h.b16 %v9048
      %v9143 = vunpack.c.l.b16 %v9049
      %v9144 = vunpack.c.h.b16 %v9049
      %v9145 = vunpack.c.l.b16 %v9050
      %v9146 = vunpack.c.h.b16 %v9050
      %v9147 = vpack.c.b16 %v9085, %v9083
      %v9148 = vpack.c.b16 %v9086, %v9084
      %v9149 = vpack.c.b16 %v9089, %v9087
      %v9150 = vpack.c.b16 %v9090, %v9088
      %v9151 = vpack.c.b16 %v9093, %v9091
      %v9152 = vpack.c.b16 %v9094, %v9092
      %v9153 = vpack.c.b16 %v9097, %v9095
      %v9154 = vpack.c.b16 %v9098, %v9096
      %v9155 = vpack.c.b16 %v9101, %v9099
      %v9156 = vpack.c.b16 %v9102, %v9100
      %v9157 = vpack.c.b16 %v9105, %v9103
      %v9158 = vpack.c.b16 %v9106, %v9104
      %v9159 = vpack.c.b16 %v9109, %v9107
      %v9160 = vpack.c.b16 %v9110, %v9108
      %v9161 = vpack.c.b16 %v9113, %v9111
      %v9162 = vpack.c.b16 %v9114, %v9112
      %v9163 = vpack.c.b16 %v9117, %v9115
      %v9164 = vpack.c.b16 %v9118, %v9116
      %v9165 = vpack.c.b16 %v9121, %v9119
      %v9166 = vpack.c.b16 %v9122, %v9120
      %v9167 = vpack.c.b16 %v9125, %v9123
      %v9168 = vpack.c.b16 %v9126, %v9124
      %v9169 = vpack.c.b16 %v9129, %v9127
      %v9170 = vpack.c.b16 %v9130, %v9128
      %v9171 = vpack.c.b16 %v9133, %v9131
      %v9172 = vpack.c.b16 %v9134, %v9132
      %v9173 = vpack.c.b16 %v9137, %v9135
      %v9174 = vpack.c.b16 %v9138, %v9136
      %v9175 = vpack.c.b16 %v9141, %v9139
      %v9176 = vpack.c.b16 %v9142, %v9140
      %v9177 = vpack.c.b16 %v9145, %v9143
      %v9178 = vpack.c.b16 %v9146, %v9144
      %9211 = vmatpush.bf16.msra.mxu0 %v9161
      %9212 = vmatpush.bf16.msra.mxu0 %v9159
      %9213 = vmatpush.bf16.msra.mxu0 %v9157
      %9214 = vmatpush.bf16.msra.mxu0 %v9155
      %9215 = vmatpush.bf16.msra.mxu0 %v9153
      %9216 = vmatpush.bf16.msra.mxu0 %v9151
      %9217 = vmatpush.bf16.msra.mxu0 %v9149
      %9218 = vmatpush.bf16.msra.mxu0 %v9147
      %9219 = vmatmul.bf16.gmra.mxu0 %v6651
      %v9220 = vpop.f32.mrf.mxu0
      %v9221 = vadd.f32 0.0, %v9220
      %v9222 = vpop.f32.mrf.mxu0
      %v9223 = vadd.f32 0.0, %v9222
      %9224 = vmatmul.bf16.gmra.mxu0 %v6653
      %v9225 = vpop.f32.mrf.mxu0
      %v9226 = vadd.f32 0.0, %v9225
      %v9227 = vpop.f32.mrf.mxu0
      %v9228 = vadd.f32 0.0, %v9227
      %9229 = vdwg.mxu0
      %9230 = vmatpush.bf16.msra.mxu0 %v9177
      %9231 = vmatpush.bf16.msra.mxu0 %v9175
      %9232 = vmatpush.bf16.msra.mxu0 %v9173
      %9233 = vmatpush.bf16.msra.mxu0 %v9171
      %9234 = vmatpush.bf16.msra.mxu0 %v9169
      %9235 = vmatpush.bf16.msra.mxu0 %v9167
      %9236 = vmatpush.bf16.msra.mxu0 %v9165
      %9237 = vmatpush.bf16.msra.mxu0 %v9163
      %9238 = vmatmul.bf16.gmra.mxu0 %v6652
      %v9239 = vpop.f32.mrf.mxu0
      %v9240 = vadd.f32 %v9221, %v9239
      %v9241 = vpop.f32.mrf.mxu0
      %v9242 = vadd.f32 %v9223, %v9241
      %9243 = vmatmul.bf16.gmra.mxu0 %v6654
      %v9244 = vpop.f32.mrf.mxu0
      %v9245 = vadd.f32 %v9226, %v9244
      %v9246 = vpop.f32.mrf.mxu0
      %v9247 = vadd.f32 %v9228, %v9246
      %9248 = vdwg.mxu0
      %9249 = vmatpush.bf16.msra.mxu0 %v9162
      %9250 = vmatpush.bf16.msra.mxu0 %v9160
      %9251 = vmatpush.bf16.msra.mxu0 %v9158
      %9252 = vmatpush.bf16.msra.mxu0 %v9156
      %9253 = vmatpush.bf16.msra.mxu0 %v9154
      %9254 = vmatpush.bf16.msra.mxu0 %v9152
      %9255 = vmatpush.bf16.msra.mxu0 %v9150
      %9256 = vmatpush.bf16.msra.mxu0 %v9148
      %9257 = vmatmul.bf16.gmra.mxu0 %v6651
      %v9258 = vpop.f32.mrf.mxu0
      %v9259 = vadd.f32 0.0, %v9258
      %v9260 = vpop.f32.mrf.mxu0
      %v9261 = vadd.f32 0.0, %v9260
      %9262 = vmatmul.bf16.gmra.mxu0 %v6653
      %v9263 = vpop.f32.mrf.mxu0
      %v9264 = vadd.f32 0.0, %v9263
      %v9265 = vpop.f32.mrf.mxu0
      %v9266 = vadd.f32 0.0, %v9265
      %9267 = vdwg.mxu0
      %9268 = vmatpush.bf16.msra.mxu0 %v9178
      %9269 = vmatpush.bf16.msra.mxu0 %v9176
      %9270 = vmatpush.bf16.msra.mxu0 %v9174
      %9271 = vmatpush.bf16.msra.mxu0 %v9172
      %9272 = vmatpush.bf16.msra.mxu0 %v9170
      %9273 = vmatpush.bf16.msra.mxu0 %v9168
      %9274 = vmatpush.bf16.msra.mxu0 %v9166
      %9275 = vmatpush.bf16.msra.mxu0 %v9164
      %9276 = vmatmul.bf16.gmra.mxu0 %v6652
      %v9277 = vpop.f32.mrf.mxu0
      %v9278 = vadd.f32 %v9259, %v9277
      %v9279 = vpop.f32.mrf.mxu0
      %v9280 = vadd.f32 %v9261, %v9279
      %9281 = vmatmul.bf16.gmra.mxu0 %v6654
      %v9282 = vpop.f32.mrf.mxu0
      %v9283 = vadd.f32 %v9264, %v9282
      %v9284 = vpop.f32.mrf.mxu0
      %v9285 = vadd.f32 %v9266, %v9284
      %9286 = vdwg.mxu0
      %v9287 = vpack.c.bf16 %v9242, %v9240
      %v9288 = vpack.c.bf16 %v9280, %v9278
      %v9289 = vpack.c.bf16 %v9247, %v9245
      %v9290 = vpack.c.bf16 %v9285, %v9283
      %s9291 = scalar_lea.vmem %s23, 112
      %v9292 = vld [vmem:[%s9291] sm:$0xf]
      %v9293 = vld [vmem:[%s9291 + $0x4] sm:$0xf]
      %v9294 = vld [vmem:[%s9291 + $0x8] sm:$0xf]
      %v9295 = vld [vmem:[%s9291 + $0xc] sm:$0xf]
      %v9300 = vunpack.c.l.b16 %v9292
      %v9301 = vunpack.c.l.b16 %v9293
      %v9302 = vunpack.c.l.b16 %v9294
      %v9303 = vunpack.c.l.b16 %v9295
      %v9304 = vpack.c.b16 %v9301, %v9300
      %v9305 = vpack.c.b16 %v9303, %v9302
      %v9307 = vsel %vm7219, %v9304, 0
      %v9310 = vsel %vm7219, %v9305, 0
      %9312 = vmatpush.bf16.msra.mxu0 0
      %9313 = vmatpush.bf16.msra.mxu0 0
      %9314 = vmatpush.bf16.msra.mxu0 0
      %9315 = vmatpush.bf16.msra.mxu0 0
      %9316 = vmatpush.bf16.msra.mxu0 0
      %9317 = vmatpush.bf16.msra.mxu0 0
      %9318 = vmatpush.bf16.msra.mxu0 %v9289
      %9319 = vmatpush.bf16.msra.mxu0 %v9287
      %9320 = vmatmul.bf16.gmra.mxu0 %v9307
      %v9321 = vpop.f32.mrf.mxu0
      %v9322 = vadd.f32 0.0, %v9321
      %v9323 = vpop.f32.mrf.mxu0
      %v9324 = vadd.f32 0.0, %v9323
      %9325 = vmatmul.bf16.gmra.mxu0 %v9310
      %v9326 = vpop.f32.mrf.mxu0
      %v9327 = vadd.f32 0.0, %v9326
      %v9328 = vpop.f32.mrf.mxu0
      %v9329 = vadd.f32 0.0, %v9328
      %9330 = vdwg.mxu0
      %9331 = vmatpush.bf16.msra.mxu0 0
      %9332 = vmatpush.bf16.msra.mxu0 0
      %9333 = vmatpush.bf16.msra.mxu0 0
      %9334 = vmatpush.bf16.msra.mxu0 0
      %9335 = vmatpush.bf16.msra.mxu0 0
      %9336 = vmatpush.bf16.msra.mxu0 0
      %9337 = vmatpush.bf16.msra.mxu0 %v9290
      %9338 = vmatpush.bf16.msra.mxu0 %v9288
      %9339 = vmatmul.bf16.gmra.mxu0 %v9307
      %v9340 = vpop.f32.mrf.mxu0
      %v9341 = vadd.f32 0.0, %v9340
      %v9342 = vpop.f32.mrf.mxu0
      %v9343 = vadd.f32 0.0, %v9342
      %9344 = vmatmul.bf16.gmra.mxu0 %v9310
      %v9345 = vpop.f32.mrf.mxu0
      %v9346 = vadd.f32 0.0, %v9345
      %v9347 = vpop.f32.mrf.mxu0
      %v9348 = vadd.f32 0.0, %v9347
      %9349 = vdwg.mxu0
      %v9350 = vadd.f32 %v9010, %v9322
      %v9351 = vadd.f32 %v9011, %v9341
      %v9352 = vadd.f32 %v9012, %v9324
      %v9353 = vadd.f32 %v9013, %v9343
      %v9354 = vadd.f32 %v9014, %v9327
      %v9355 = vadd.f32 %v9015, %v9346
      %v9356 = vadd.f32 %v9016, %v9329
      %v9357 = vadd.f32 %v9017, %v9348
      %s9358 = scalar_lea.vmem %s9, 2048
      %v9359 = vld [vmem:[%s9358] sm:$0xff]
      %v9360 = vld [vmem:[%s9358 + $0x8] sm:$0xff]
      %v9361 = vld [vmem:[%s9358 + $0x10] sm:$0xff]
      %v9362 = vld [vmem:[%s9358 + $0x18] sm:$0xff]
      %v9363 = vld [vmem:[%s9358 + $0x20] sm:$0xff]
      %v9364 = vld [vmem:[%s9358 + $0x28] sm:$0xff]
      %v9365 = vld [vmem:[%s9358 + $0x30] sm:$0xff]
      %v9366 = vld [vmem:[%s9358 + $0x38] sm:$0xff]
      %v9367 = vld [vmem:[%s9358 + $0x40] sm:$0xff]
      %v9368 = vld [vmem:[%s9358 + $0x48] sm:$0xff]
      %v9369 = vld [vmem:[%s9358 + $0x50] sm:$0xff]
      %v9370 = vld [vmem:[%s9358 + $0x58] sm:$0xff]
      %v9371 = vld [vmem:[%s9358 + $0x60] sm:$0xff]
      %v9372 = vld [vmem:[%s9358 + $0x68] sm:$0xff]
      %v9373 = vld [vmem:[%s9358 + $0x70] sm:$0xff]
      %v9374 = vld [vmem:[%s9358 + $0x78] sm:$0xff]
      %v9375 = vld [vmem:[%s9358 + $0x80] sm:$0xff]
      %v9376 = vld [vmem:[%s9358 + $0x88] sm:$0xff]
      %v9377 = vld [vmem:[%s9358 + $0x90] sm:$0xff]
      %v9378 = vld [vmem:[%s9358 + $0x98] sm:$0xff]
      %v9379 = vld [vmem:[%s9358 + $0xa0] sm:$0xff]
      %v9380 = vld [vmem:[%s9358 + $0xa8] sm:$0xff]
      %v9381 = vld [vmem:[%s9358 + $0xb0] sm:$0xff]
      %v9382 = vld [vmem:[%s9358 + $0xb8] sm:$0xff]
      %v9383 = vld [vmem:[%s9358 + $0xc0] sm:$0xff]
      %v9384 = vld [vmem:[%s9358 + $0xc8] sm:$0xff]
      %v9385 = vld [vmem:[%s9358 + $0xd0] sm:$0xff]
      %v9386 = vld [vmem:[%s9358 + $0xd8] sm:$0xff]
      %v9387 = vld [vmem:[%s9358 + $0xe0] sm:$0xff]
      %v9388 = vld [vmem:[%s9358 + $0xe8] sm:$0xff]
      %v9389 = vld [vmem:[%s9358 + $0xf0] sm:$0xff]
      %v9390 = vld [vmem:[%s9358 + $0xf8] sm:$0xff]
      %v9423 = vunpack.c.l.b16 %v9359
      %v9424 = vunpack.c.h.b16 %v9359
      %v9425 = vunpack.c.l.b16 %v9360
      %v9426 = vunpack.c.h.b16 %v9360
      %v9427 = vunpack.c.l.b16 %v9361
      %v9428 = vunpack.c.h.b16 %v9361
      %v9429 = vunpack.c.l.b16 %v9362
      %v9430 = vunpack.c.h.b16 %v9362
      %v9431 = vunpack.c.l.b16 %v9363
      %v9432 = vunpack.c.h.b16 %v9363
      %v9433 = vunpack.c.l.b16 %v9364
      %v9434 = vunpack.c.h.b16 %v9364
      %v9435 = vunpack.c.l.b16 %v9365
      %v9436 = vunpack.c.h.b16 %v9365
      %v9437 = vunpack.c.l.b16 %v9366
      %v9438 = vunpack.c.h.b16 %v9366
      %v9439 = vunpack.c.l.b16 %v9367
      %v9440 = vunpack.c.h.b16 %v9367
      %v9441 = vunpack.c.l.b16 %v9368
      %v9442 = vunpack.c.h.b16 %v9368
      %v9443 = vunpack.c.l.b16 %v9369
      %v9444 = vunpack.c.h.b16 %v9369
      %v9445 = vunpack.c.l.b16 %v9370
      %v9446 = vunpack.c.h.b16 %v9370
      %v9447 = vunpack.c.l.b16 %v9371
      %v9448 = vunpack.c.h.b16 %v9371
      %v9449 = vunpack.c.l.b16 %v9372
      %v9450 = vunpack.c.h.b16 %v9372
      %v9451 = vunpack.c.l.b16 %v9373
      %v9452 = vunpack.c.h.b16 %v9373
      %v9453 = vunpack.c.l.b16 %v9374
      %v9454 = vunpack.c.h.b16 %v9374
      %v9455 = vunpack.c.l.b16 %v9375
      %v9456 = vunpack.c.h.b16 %v9375
      %v9457 = vunpack.c.l.b16 %v9376
      %v9458 = vunpack.c.h.b16 %v9376
      %v9459 = vunpack.c.l.b16 %v9377
      %v9460 = vunpack.c.h.b16 %v9377
      %v9461 = vunpack.c.l.b16 %v9378
      %v9462 = vunpack.c.h.b16 %v9378
      %v9463 = vunpack.c.l.b16 %v9379
      %v9464 = vunpack.c.h.b16 %v9379
      %v9465 = vunpack.c.l.b16 %v9380
      %v9466 = vunpack.c.h.b16 %v9380
      %v9467 = vunpack.c.l.b16 %v9381
      %v9468 = vunpack.c.h.b16 %v9381
      %v9469 = vunpack.c.l.b16 %v9382
      %v9470 = vunpack.c.h.b16 %v9382
      %v9471 = vunpack.c.l.b16 %v9383
      %v9472 = vunpack.c.h.b16 %v9383
      %v9473 = vunpack.c.l.b16 %v9384
      %v9474 = vunpack.c.h.b16 %v9384
      %v9475 = vunpack.c.l.b16 %v9385
      %v9476 = vunpack.c.h.b16 %v9385
      %v9477 = vunpack.c.l.b16 %v9386
      %v9478 = vunpack.c.h.b16 %v9386
      %v9479 = vunpack.c.l.b16 %v9387
      %v9480 = vunpack.c.h.b16 %v9387
      %v9481 = vunpack.c.l.b16 %v9388
      %v9482 = vunpack.c.h.b16 %v9388
      %v9483 = vunpack.c.l.b16 %v9389
      %v9484 = vunpack.c.h.b16 %v9389
      %v9485 = vunpack.c.l.b16 %v9390
      %v9486 = vunpack.c.h.b16 %v9390
      %v9487 = vpack.c.b16 %v9425, %v9423
      %v9488 = vpack.c.b16 %v9426, %v9424
      %v9489 = vpack.c.b16 %v9429, %v9427
      %v9490 = vpack.c.b16 %v9430, %v9428
      %v9491 = vpack.c.b16 %v9433, %v9431
      %v9492 = vpack.c.b16 %v9434, %v9432
      %v9493 = vpack.c.b16 %v9437, %v9435
      %v9494 = vpack.c.b16 %v9438, %v9436
      %v9495 = vpack.c.b16 %v9441, %v9439
      %v9496 = vpack.c.b16 %v9442, %v9440
      %v9497 = vpack.c.b16 %v9445, %v9443
      %v9498 = vpack.c.b16 %v9446, %v9444
      %v9499 = vpack.c.b16 %v9449, %v9447
      %v9500 = vpack.c.b16 %v9450, %v9448
      %v9501 = vpack.c.b16 %v9453, %v9451
      %v9502 = vpack.c.b16 %v9454, %v9452
      %v9503 = vpack.c.b16 %v9457, %v9455
      %v9504 = vpack.c.b16 %v9458, %v9456
      %v9505 = vpack.c.b16 %v9461, %v9459
      %v9506 = vpack.c.b16 %v9462, %v9460
      %v9507 = vpack.c.b16 %v9465, %v9463
      %v9508 = vpack.c.b16 %v9466, %v9464
      %v9509 = vpack.c.b16 %v9469, %v9467
      %v9510 = vpack.c.b16 %v9470, %v9468
      %v9511 = vpack.c.b16 %v9473, %v9471
      %v9512 = vpack.c.b16 %v9474, %v9472
      %v9513 = vpack.c.b16 %v9477, %v9475
      %v9514 = vpack.c.b16 %v9478, %v9476
      %v9515 = vpack.c.b16 %v9481, %v9479
      %v9516 = vpack.c.b16 %v9482, %v9480
      %v9517 = vpack.c.b16 %v9485, %v9483
      %v9518 = vpack.c.b16 %v9486, %v9484
      %9551 = vmatpush.bf16.msra.mxu0 %v9501
      %9552 = vmatpush.bf16.msra.mxu0 %v9499
      %9553 = vmatpush.bf16.msra.mxu0 %v9497
      %9554 = vmatpush.bf16.msra.mxu0 %v9495
      %9555 = vmatpush.bf16.msra.mxu0 %v9493
      %9556 = vmatpush.bf16.msra.mxu0 %v9491
      %9557 = vmatpush.bf16.msra.mxu0 %v9489
      %9558 = vmatpush.bf16.msra.mxu0 %v9487
      %9559 = vmatmul.bf16.gmra.mxu0 %v6651
      %v9560 = vpop.f32.mrf.mxu0
      %v9561 = vadd.f32 0.0, %v9560
      %v9562 = vpop.f32.mrf.mxu0
      %v9563 = vadd.f32 0.0, %v9562
      %9564 = vmatmul.bf16.gmra.mxu0 %v6653
      %v9565 = vpop.f32.mrf.mxu0
      %v9566 = vadd.f32 0.0, %v9565
      %v9567 = vpop.f32.mrf.mxu0
      %v9568 = vadd.f32 0.0, %v9567
      %9569 = vdwg.mxu0
      %9570 = vmatpush.bf16.msra.mxu0 %v9517
      %9571 = vmatpush.bf16.msra.mxu0 %v9515
      %9572 = vmatpush.bf16.msra.mxu0 %v9513
      %9573 = vmatpush.bf16.msra.mxu0 %v9511
      %9574 = vmatpush.bf16.msra.mxu0 %v9509
      %9575 = vmatpush.bf16.msra.mxu0 %v9507
      %9576 = vmatpush.bf16.msra.mxu0 %v9505
      %9577 = vmatpush.bf16.msra.mxu0 %v9503
      %9578 = vmatmul.bf16.gmra.mxu0 %v6652
      %v9579 = vpop.f32.mrf.mxu0
      %v9580 = vadd.f32 %v9561, %v9579
      %v9581 = vpop.f32.mrf.mxu0
      %v9582 = vadd.f32 %v9563, %v9581
      %9583 = vmatmul.bf16.gmra.mxu0 %v6654
      %v9584 = vpop.f32.mrf.mxu0
      %v9585 = vadd.f32 %v9566, %v9584
      %v9586 = vpop.f32.mrf.mxu0
      %v9587 = vadd.f32 %v9568, %v9586
      %9588 = vdwg.mxu0
      %9589 = vmatpush.bf16.msra.mxu0 %v9502
      %9590 = vmatpush.bf16.msra.mxu0 %v9500
      %9591 = vmatpush.bf16.msra.mxu0 %v9498
      %9592 = vmatpush.bf16.msra.mxu0 %v9496
      %9593 = vmatpush.bf16.msra.mxu0 %v9494
      %9594 = vmatpush.bf16.msra.mxu0 %v9492
      %9595 = vmatpush.bf16.msra.mxu0 %v9490
      %9596 = vmatpush.bf16.msra.mxu0 %v9488
      %9597 = vmatmul.bf16.gmra.mxu0 %v6651
      %v9598 = vpop.f32.mrf.mxu0
      %v9599 = vadd.f32 0.0, %v9598
      %v9600 = vpop.f32.mrf.mxu0
      %v9601 = vadd.f32 0.0, %v9600
      %9602 = vmatmul.bf16.gmra.mxu0 %v6653
      %v9603 = vpop.f32.mrf.mxu0
      %v9604 = vadd.f32 0.0, %v9603
      %v9605 = vpop.f32.mrf.mxu0
      %v9606 = vadd.f32 0.0, %v9605
      %9607 = vdwg.mxu0
      %9608 = vmatpush.bf16.msra.mxu0 %v9518
      %9609 = vmatpush.bf16.msra.mxu0 %v9516
      %9610 = vmatpush.bf16.msra.mxu0 %v9514
      %9611 = vmatpush.bf16.msra.mxu0 %v9512
      %9612 = vmatpush.bf16.msra.mxu0 %v9510
      %9613 = vmatpush.bf16.msra.mxu0 %v9508
      %9614 = vmatpush.bf16.msra.mxu0 %v9506
      %9615 = vmatpush.bf16.msra.mxu0 %v9504
      %9616 = vmatmul.bf16.gmra.mxu0 %v6652
      %v9617 = vpop.f32.mrf.mxu0
      %v9618 = vadd.f32 %v9599, %v9617
      %v9619 = vpop.f32.mrf.mxu0
      %v9620 = vadd.f32 %v9601, %v9619
      %9621 = vmatmul.bf16.gmra.mxu0 %v6654
      %v9622 = vpop.f32.mrf.mxu0
      %v9623 = vadd.f32 %v9604, %v9622
      %v9624 = vpop.f32.mrf.mxu0
      %v9625 = vadd.f32 %v9606, %v9624
      %9626 = vdwg.mxu0
      %v9627 = vpack.c.bf16 %v9582, %v9580
      %v9628 = vpack.c.bf16 %v9620, %v9618
      %v9629 = vpack.c.bf16 %v9587, %v9585
      %v9630 = vpack.c.bf16 %v9625, %v9623
      %s9631 = scalar_lea.vmem %s23, 128
      %v9632 = vld [vmem:[%s9631] sm:$0xf]
      %v9633 = vld [vmem:[%s9631 + $0x4] sm:$0xf]
      %v9634 = vld [vmem:[%s9631 + $0x8] sm:$0xf]
      %v9635 = vld [vmem:[%s9631 + $0xc] sm:$0xf]
      %v9640 = vunpack.c.l.b16 %v9632
      %v9641 = vunpack.c.l.b16 %v9633
      %v9642 = vunpack.c.l.b16 %v9634
      %v9643 = vunpack.c.l.b16 %v9635
      %v9644 = vpack.c.b16 %v9641, %v9640
      %v9645 = vpack.c.b16 %v9643, %v9642
      %v9647 = vsel %vm7219, %v9644, 0
      %v9650 = vsel %vm7219, %v9645, 0
      %9652 = vmatpush.bf16.msra.mxu0 0
      %9653 = vmatpush.bf16.msra.mxu0 0
      %9654 = vmatpush.bf16.msra.mxu0 0
      %9655 = vmatpush.bf16.msra.mxu0 0
      %9656 = vmatpush.bf16.msra.mxu0 0
      %9657 = vmatpush.bf16.msra.mxu0 0
      %9658 = vmatpush.bf16.msra.mxu0 %v9629
      %9659 = vmatpush.bf16.msra.mxu0 %v9627
      %9660 = vmatmul.bf16.gmra.mxu0 %v9647
      %v9661 = vpop.f32.mrf.mxu0
      %v9662 = vadd.f32 0.0, %v9661
      %v9663 = vpop.f32.mrf.mxu0
      %v9664 = vadd.f32 0.0, %v9663
      %9665 = vmatmul.bf16.gmra.mxu0 %v9650
      %v9666 = vpop.f32.mrf.mxu0
      %v9667 = vadd.f32 0.0, %v9666
      %v9668 = vpop.f32.mrf.mxu0
      %v9669 = vadd.f32 0.0, %v9668
      %9670 = vdwg.mxu0
      %9671 = vmatpush.bf16.msra.mxu0 0
      %9672 = vmatpush.bf16.msra.mxu0 0
      %9673 = vmatpush.bf16.msra.mxu0 0
      %9674 = vmatpush.bf16.msra.mxu0 0
      %9675 = vmatpush.bf16.msra.mxu0 0
      %9676 = vmatpush.bf16.msra.mxu0 0
      %9677 = vmatpush.bf16.msra.mxu0 %v9630
      %9678 = vmatpush.bf16.msra.mxu0 %v9628
      %9679 = vmatmul.bf16.gmra.mxu0 %v9647
      %v9680 = vpop.f32.mrf.mxu0
      %v9681 = vadd.f32 0.0, %v9680
      %v9682 = vpop.f32.mrf.mxu0
      %v9683 = vadd.f32 0.0, %v9682
      %9684 = vmatmul.bf16.gmra.mxu0 %v9650
      %v9685 = vpop.f32.mrf.mxu0
      %v9686 = vadd.f32 0.0, %v9685
      %v9687 = vpop.f32.mrf.mxu0
      %v9688 = vadd.f32 0.0, %v9687
      %9689 = vdwg.mxu0
      %v9690 = vadd.f32 %v9350, %v9662
      %v9691 = vadd.f32 %v9351, %v9681
      %v9692 = vadd.f32 %v9352, %v9664
      %v9693 = vadd.f32 %v9353, %v9683
      %v9694 = vadd.f32 %v9354, %v9667
      %v9695 = vadd.f32 %v9355, %v9686
      %v9696 = vadd.f32 %v9356, %v9669
      %v9697 = vadd.f32 %v9357, %v9688
      %v9698 = vld [vmem:[%s24] sm:$0xff]
      %v9699 = vld [vmem:[%s24 + $0x8] sm:$0xff]
      %v9700 = vld [vmem:[%s24 + $0x10] sm:$0xff]
      %v9701 = vld [vmem:[%s24 + $0x18] sm:$0xff]
      %9703 = vset.pattern.permute.xlu0 0
      %9704 = vperm.xlu0 %9703, %v9698
      %v9705 = vpop.permute.xlu0 %9704
      %9708 = vset.pattern.permute.xlu0 0
      %9709 = vperm.xlu0 %9708, %v9699
      %v9710 = vpop.permute.xlu0 %9709
      %9713 = vset.pattern.permute.xlu0 0
      %9714 = vperm.xlu0 %9713, %v9700
      %v9715 = vpop.permute.xlu0 %9714
      %9718 = vset.pattern.permute.xlu0 0
      %9719 = vperm.xlu0 %9718, %v9701
      %v9720 = vpop.permute.xlu0 %9719
      %v9722 = vadd.f32 %v9690, %v9705
      %v9723 = vadd.f32 %v9691, %v9705
      %v9724 = vadd.f32 %v9692, %v9710
      %v9725 = vadd.f32 %v9693, %v9710
      %v9726 = vadd.f32 %v9694, %v9715
      %v9727 = vadd.f32 %v9695, %v9715
      %v9728 = vadd.f32 %v9696, %v9720
      %v9729 = vadd.f32 %v9697, %v9720
      %v9730 = vmax.f32 %v9722, 0.0
      %v9731 = vmax.f32 %v9723, 0.0
      %v9732 = vmax.f32 %v9724, 0.0
      %v9733 = vmax.f32 %v9725, 0.0
      %v9734 = vmax.f32 %v9726, 0.0
      %v9735 = vmax.f32 %v9727, 0.0
      %v9736 = vmax.f32 %v9728, 0.0
      %v9737 = vmax.f32 %v9729, 0.0
      %v9738 = vpack.c.bf16 %v9732, %v9730
      %v9739 = vpack.c.bf16 %v9733, %v9731
      %v9740 = vpack.c.bf16 %v9736, %v9734
      %v9741 = vpack.c.bf16 %v9737, %v9735
      %9742 = vmatpush.bf16.msra.mxu0 %v6797
      %9743 = vmatpush.bf16.msra.mxu0 %v6795
      %9744 = vmatpush.bf16.msra.mxu0 %v6793
      %9745 = vmatpush.bf16.msra.mxu0 %v6791
      %9746 = vmatpush.bf16.msra.mxu0 %v6789
      %9747 = vmatpush.bf16.msra.mxu0 %v6787
      %9748 = vmatpush.bf16.msra.mxu0 %v6785
      %9749 = vmatpush.bf16.msra.mxu0 %v6783
      %9750 = vmatmul.bf16.gmra.mxu0 %v9738
      %v9751 = vpop.f32.mrf.mxu0
      %v9752 = vadd.f32 0.0, %v9751
      %v9753 = vpop.f32.mrf.mxu0
      %v9754 = vadd.f32 0.0, %v9753
      %9755 = vmatmul.bf16.gmra.mxu0 %v9740
      %v9756 = vpop.f32.mrf.mxu0
      %v9757 = vadd.f32 0.0, %v9756
      %v9758 = vpop.f32.mrf.mxu0
      %v9759 = vadd.f32 0.0, %v9758
      %9760 = vdwg.mxu0
      %9761 = vmatpush.bf16.msra.mxu0 %v6813
      %9762 = vmatpush.bf16.msra.mxu0 %v6811
      %9763 = vmatpush.bf16.msra.mxu0 %v6809
      %9764 = vmatpush.bf16.msra.mxu0 %v6807
      %9765 = vmatpush.bf16.msra.mxu0 %v6805
      %9766 = vmatpush.bf16.msra.mxu0 %v6803
      %9767 = vmatpush.bf16.msra.mxu0 %v6801
      %9768 = vmatpush.bf16.msra.mxu0 %v6799
      %9769 = vmatmul.bf16.gmra.mxu0 %v9739
      %v9770 = vpop.f32.mrf.mxu0
      %v9771 = vadd.f32 %v9752, %v9770
      %v9772 = vpop.f32.mrf.mxu0
      %v9773 = vadd.f32 %v9754, %v9772
      %9774 = vmatmul.bf16.gmra.mxu0 %v9741
      %v9775 = vpop.f32.mrf.mxu0
      %v9776 = vadd.f32 %v9757, %v9775
      %v9777 = vpop.f32.mrf.mxu0
      %v9778 = vadd.f32 %v9759, %v9777
      %9779 = vdwg.mxu0
      %9780 = vmatpush.bf16.msra.mxu0 %v6798
      %9781 = vmatpush.bf16.msra.mxu0 %v6796
      %9782 = vmatpush.bf16.msra.mxu0 %v6794
      %9783 = vmatpush.bf16.msra.mxu0 %v6792
      %9784 = vmatpush.bf16.msra.mxu0 %v6790
      %9785 = vmatpush.bf16.msra.mxu0 %v6788
      %9786 = vmatpush.bf16.msra.mxu0 %v6786
      %9787 = vmatpush.bf16.msra.mxu0 %v6784
      %9788 = vmatmul.bf16.gmra.mxu0 %v9738
      %v9789 = vpop.f32.mrf.mxu0
      %v9790 = vadd.f32 0.0, %v9789
      %v9791 = vpop.f32.mrf.mxu0
      %v9792 = vadd.f32 0.0, %v9791
      %9793 = vmatmul.bf16.gmra.mxu0 %v9740
      %v9794 = vpop.f32.mrf.mxu0
      %v9795 = vadd.f32 0.0, %v9794
      %v9796 = vpop.f32.mrf.mxu0
      %v9797 = vadd.f32 0.0, %v9796
      %9798 = vdwg.mxu0
      %9799 = vmatpush.bf16.msra.mxu0 %v6814
      %9800 = vmatpush.bf16.msra.mxu0 %v6812
      %9801 = vmatpush.bf16.msra.mxu0 %v6810
      %9802 = vmatpush.bf16.msra.mxu0 %v6808
      %9803 = vmatpush.bf16.msra.mxu0 %v6806
      %9804 = vmatpush.bf16.msra.mxu0 %v6804
      %9805 = vmatpush.bf16.msra.mxu0 %v6802
      %9806 = vmatpush.bf16.msra.mxu0 %v6800
      %9807 = vmatmul.bf16.gmra.mxu0 %v9739
      %v9808 = vpop.f32.mrf.mxu0
      %v9809 = vadd.f32 %v9790, %v9808
      %v9810 = vpop.f32.mrf.mxu0
      %v9811 = vadd.f32 %v9792, %v9810
      %9812 = vmatmul.bf16.gmra.mxu0 %v9741
      %v9813 = vpop.f32.mrf.mxu0
      %v9814 = vadd.f32 %v9795, %v9813
      %v9815 = vpop.f32.mrf.mxu0
      %v9816 = vadd.f32 %v9797, %v9815
      %9817 = vdwg.mxu0
      %v9818 = vpack.c.bf16 %v9773, %v9771
      %v9819 = vpack.c.bf16 %v9811, %v9809
      %v9820 = vpack.c.bf16 %v9778, %v9776
      %v9821 = vpack.c.bf16 %v9816, %v9814
      %v9822 = vld [vmem:[%s25] sm:$0xf]
      %v9823 = vld [vmem:[%s25 + $0x4] sm:$0xf]
      %v9824 = vld [vmem:[%s25 + $0x8] sm:$0xf]
      %v9825 = vld [vmem:[%s25 + $0xc] sm:$0xf]
      %9826 = vmatpush.bf16.msra.mxu0 %v7074
      %9827 = vmatpush.bf16.msra.mxu0 %v7072
      %9828 = vmatpush.bf16.msra.mxu0 %v7070
      %9829 = vmatpush.bf16.msra.mxu0 %v7068
      %9830 = vmatpush.bf16.msra.mxu0 %v7066
      %9831 = vmatpush.bf16.msra.mxu0 %v7064
      %9832 = vmatpush.bf16.msra.mxu0 %v7062
      %9833 = vmatpush.bf16.msra.mxu0 %v7060
      %9834 = vmatmul.bf16.gmra.mxu0 %v9738
      %v9835 = vpop.f32.mrf.mxu0
      %v9836 = vadd.f32 0.0, %v9835
      %v9837 = vpop.f32.mrf.mxu0
      %v9838 = vadd.f32 0.0, %v9837
      %9839 = vmatmul.bf16.gmra.mxu0 %v9740
      %v9840 = vpop.f32.mrf.mxu0
      %v9841 = vadd.f32 0.0, %v9840
      %v9842 = vpop.f32.mrf.mxu0
      %v9843 = vadd.f32 0.0, %v9842
      %9844 = vdwg.mxu0
      %9845 = vmatpush.bf16.msra.mxu0 %v7090
      %9846 = vmatpush.bf16.msra.mxu0 %v7088
      %9847 = vmatpush.bf16.msra.mxu0 %v7086
      %9848 = vmatpush.bf16.msra.mxu0 %v7084
      %9849 = vmatpush.bf16.msra.mxu0 %v7082
      %9850 = vmatpush.bf16.msra.mxu0 %v7080
      %9851 = vmatpush.bf16.msra.mxu0 %v7078
      %9852 = vmatpush.bf16.msra.mxu0 %v7076
      %9853 = vmatmul.bf16.gmra.mxu0 %v9739
      %v9854 = vpop.f32.mrf.mxu0
      %v9855 = vadd.f32 %v9836, %v9854
      %v9856 = vpop.f32.mrf.mxu0
      %v9857 = vadd.f32 %v9838, %v9856
      %9858 = vmatmul.bf16.gmra.mxu0 %v9741
      %v9859 = vpop.f32.mrf.mxu0
      %v9860 = vadd.f32 %v9841, %v9859
      %v9861 = vpop.f32.mrf.mxu0
      %v9862 = vadd.f32 %v9843, %v9861
      %9863 = vdwg.mxu0
      %9864 = vmatpush.bf16.msra.mxu0 %v7075
      %9865 = vmatpush.bf16.msra.mxu0 %v7073
      %9866 = vmatpush.bf16.msra.mxu0 %v7071
      %9867 = vmatpush.bf16.msra.mxu0 %v7069
      %9868 = vmatpush.bf16.msra.mxu0 %v7067
      %9869 = vmatpush.bf16.msra.mxu0 %v7065
      %9870 = vmatpush.bf16.msra.mxu0 %v7063
      %9871 = vmatpush.bf16.msra.mxu0 %v7061
      %9872 = vmatmul.bf16.gmra.mxu0 %v9738
      %v9873 = vpop.f32.mrf.mxu0
      %v9874 = vadd.f32 0.0, %v9873
      %v9875 = vpop.f32.mrf.mxu0
      %v9876 = vadd.f32 0.0, %v9875
      %9877 = vmatmul.bf16.gmra.mxu0 %v9740
      %v9878 = vpop.f32.mrf.mxu0
      %v9879 = vadd.f32 0.0, %v9878
      %v9880 = vpop.f32.mrf.mxu0
      %v9881 = vadd.f32 0.0, %v9880
      %9882 = vdwg.mxu0
      %9883 = vmatpush.bf16.msra.mxu0 %v7091
      %9884 = vmatpush.bf16.msra.mxu0 %v7089
      %9885 = vmatpush.bf16.msra.mxu0 %v7087
      %9886 = vmatpush.bf16.msra.mxu0 %v7085
      %9887 = vmatpush.bf16.msra.mxu0 %v7083
      %9888 = vmatpush.bf16.msra.mxu0 %v7081
      %9889 = vmatpush.bf16.msra.mxu0 %v7079
      %9890 = vmatpush.bf16.msra.mxu0 %v7077
      %9891 = vmatmul.bf16.gmra.mxu0 %v9739
      %v9892 = vpop.f32.mrf.mxu0
      %v9893 = vadd.f32 %v9874, %v9892
      %v9894 = vpop.f32.mrf.mxu0
      %v9895 = vadd.f32 %v9876, %v9894
      %9896 = vmatmul.bf16.gmra.mxu0 %v9741
      %v9897 = vpop.f32.mrf.mxu0
      %v9898 = vadd.f32 %v9879, %v9897
      %v9899 = vpop.f32.mrf.mxu0
      %v9900 = vadd.f32 %v9881, %v9899
      %9901 = vdwg.mxu0
      %v9902 = vpack.c.bf16 %v9857, %v9855
      %v9903 = vpack.c.bf16 %v9895, %v9893
      %v9904 = vpack.c.bf16 %v9862, %v9860
      %v9905 = vpack.c.bf16 %v9900, %v9898
      %s9906 = scalar_lea.vmem %s25, 16
      %v9907 = vld [vmem:[%s9906] sm:$0xf]
      %v9908 = vld [vmem:[%s9906 + $0x4] sm:$0xf]
      %v9909 = vld [vmem:[%s9906 + $0x8] sm:$0xf]
      %v9910 = vld [vmem:[%s9906 + $0xc] sm:$0xf]
      %v9915 = vunpack.c.l.b16 %v9907
      %v9916 = vunpack.c.l.b16 %v9908
      %v9917 = vunpack.c.l.b16 %v9909
      %v9918 = vunpack.c.l.b16 %v9910
      %v9919 = vpack.c.b16 %v9916, %v9915
      %v9920 = vpack.c.b16 %v9918, %v9917
      %v9922 = vsel %vm7219, %v9919, 0
      %v9925 = vsel %vm7219, %v9920, 0
      %9927 = vmatpush.bf16.msra.mxu0 0
      %9928 = vmatpush.bf16.msra.mxu0 0
      %9929 = vmatpush.bf16.msra.mxu0 0
      %9930 = vmatpush.bf16.msra.mxu0 0
      %9931 = vmatpush.bf16.msra.mxu0 0
      %9932 = vmatpush.bf16.msra.mxu0 0
      %9933 = vmatpush.bf16.msra.mxu0 %v9904
      %9934 = vmatpush.bf16.msra.mxu0 %v9902
      %9935 = vmatmul.bf16.gmra.mxu0 %v9922
      %v9936 = vpop.f32.mrf.mxu0
      %v9937 = vadd.f32 0.0, %v9936
      %v9938 = vpop.f32.mrf.mxu0
      %v9939 = vadd.f32 0.0, %v9938
      %9940 = vmatmul.bf16.gmra.mxu0 %v9925
      %v9941 = vpop.f32.mrf.mxu0
      %v9942 = vadd.f32 0.0, %v9941
      %v9943 = vpop.f32.mrf.mxu0
      %v9944 = vadd.f32 0.0, %v9943
      %9945 = vdwg.mxu0
      %9946 = vmatpush.bf16.msra.mxu0 0
      %9947 = vmatpush.bf16.msra.mxu0 0
      %9948 = vmatpush.bf16.msra.mxu0 0
      %9949 = vmatpush.bf16.msra.mxu0 0
      %9950 = vmatpush.bf16.msra.mxu0 0
      %9951 = vmatpush.bf16.msra.mxu0 0
      %9952 = vmatpush.bf16.msra.mxu0 %v9905
      %9953 = vmatpush.bf16.msra.mxu0 %v9903
      %9954 = vmatmul.bf16.gmra.mxu0 %v9922
      %v9955 = vpop.f32.mrf.mxu0
      %v9956 = vadd.f32 0.0, %v9955
      %v9957 = vpop.f32.mrf.mxu0
      %v9958 = vadd.f32 0.0, %v9957
      %9959 = vmatmul.bf16.gmra.mxu0 %v9925
      %v9960 = vpop.f32.mrf.mxu0
      %v9961 = vadd.f32 0.0, %v9960
      %v9962 = vpop.f32.mrf.mxu0
      %v9963 = vadd.f32 0.0, %v9962
      %9964 = vdwg.mxu0
      %v9969 = vunpack.c.l.b16 %v9822
      %v9970 = vunpack.c.l.b16 %v9823
      %v9971 = vunpack.c.l.b16 %v9824
      %v9972 = vunpack.c.l.b16 %v9825
      %v9973 = vpack.c.b16 %v9970, %v9969
      %v9974 = vpack.c.b16 %v9972, %v9971
      %v9976 = vsel %vm7219, %v9973, 0
      %v9979 = vsel %vm7219, %v9974, 0
      %9981 = vmatpush.bf16.msra.mxu0 0
      %9982 = vmatpush.bf16.msra.mxu0 0
      %9983 = vmatpush.bf16.msra.mxu0 0
      %9984 = vmatpush.bf16.msra.mxu0 0
      %9985 = vmatpush.bf16.msra.mxu0 0
      %9986 = vmatpush.bf16.msra.mxu0 0
      %9987 = vmatpush.bf16.msra.mxu0 %v9820
      %9988 = vmatpush.bf16.msra.mxu0 %v9818
      %9989 = vmatmul.bf16.gmra.mxu0 %v9976
      %v9990 = vpop.f32.mrf.mxu0
      %v9991 = vadd.f32 %v9937, %v9990
      %v9992 = vpop.f32.mrf.mxu0
      %v9993 = vadd.f32 %v9939, %v9992
      %9994 = vmatmul.bf16.gmra.mxu0 %v9979
      %v9995 = vpop.f32.mrf.mxu0
      %v9996 = vadd.f32 %v9942, %v9995
      %v9997 = vpop.f32.mrf.mxu0
      %v9998 = vadd.f32 %v9944, %v9997
      %9999 = vdwg.mxu0
      %10000 = vmatpush.bf16.msra.mxu0 0
      %10001 = vmatpush.bf16.msra.mxu0 0
      %10002 = vmatpush.bf16.msra.mxu0 0
      %10003 = vmatpush.bf16.msra.mxu0 0
      %10004 = vmatpush.bf16.msra.mxu0 0
      %10005 = vmatpush.bf16.msra.mxu0 0
      %10006 = vmatpush.bf16.msra.mxu0 %v9821
      %10007 = vmatpush.bf16.msra.mxu0 %v9819
      %10008 = vmatmul.bf16.gmra.mxu0 %v9976
      %v10009 = vpop.f32.mrf.mxu0
      %v10010 = vadd.f32 %v9956, %v10009
      %v10011 = vpop.f32.mrf.mxu0
      %v10012 = vadd.f32 %v9958, %v10011
      %10013 = vmatmul.bf16.gmra.mxu0 %v9979
      %v10014 = vpop.f32.mrf.mxu0
      %v10015 = vadd.f32 %v9961, %v10014
      %v10016 = vpop.f32.mrf.mxu0
      %v10017 = vadd.f32 %v9963, %v10016
      %10018 = vdwg.mxu0
      %10019 = vmatpush.bf16.msra.mxu0 %v7461
      %10020 = vmatpush.bf16.msra.mxu0 %v7459
      %10021 = vmatpush.bf16.msra.mxu0 %v7457
      %10022 = vmatpush.bf16.msra.mxu0 %v7455
      %10023 = vmatpush.bf16.msra.mxu0 %v7453
      %10024 = vmatpush.bf16.msra.mxu0 %v7451
      %10025 = vmatpush.bf16.msra.mxu0 %v7449
      %10026 = vmatpush.bf16.msra.mxu0 %v7447
      %10027 = vmatmul.bf16.gmra.mxu0 %v9738
      %v10028 = vpop.f32.mrf.mxu0
      %v10029 = vadd.f32 0.0, %v10028
      %v10030 = vpop.f32.mrf.mxu0
      %v10031 = vadd.f32 0.0, %v10030
      %10032 = vmatmul.bf16.gmra.mxu0 %v9740
      %v10033 = vpop.f32.mrf.mxu0
      %v10034 = vadd.f32 0.0, %v10033
      %v10035 = vpop.f32.mrf.mxu0
      %v10036 = vadd.f32 0.0, %v10035
      %10037 = vdwg.mxu0
      %10038 = vmatpush.bf16.msra.mxu0 %v7477
      %10039 = vmatpush.bf16.msra.mxu0 %v7475
      %10040 = vmatpush.bf16.msra.mxu0 %v7473
      %10041 = vmatpush.bf16.msra.mxu0 %v7471
      %10042 = vmatpush.bf16.msra.mxu0 %v7469
      %10043 = vmatpush.bf16.msra.mxu0 %v7467
      %10044 = vmatpush.bf16.msra.mxu0 %v7465
      %10045 = vmatpush.bf16.msra.mxu0 %v7463
      %10046 = vmatmul.bf16.gmra.mxu0 %v9739
      %v10047 = vpop.f32.mrf.mxu0
      %v10048 = vadd.f32 %v10029, %v10047
      %v10049 = vpop.f32.mrf.mxu0
      %v10050 = vadd.f32 %v10031, %v10049
      %10051 = vmatmul.bf16.gmra.mxu0 %v9741
      %v10052 = vpop.f32.mrf.mxu0
      %v10053 = vadd.f32 %v10034, %v10052
      %v10054 = vpop.f32.mrf.mxu0
      %v10055 = vadd.f32 %v10036, %v10054
      %10056 = vdwg.mxu0
      %10057 = vmatpush.bf16.msra.mxu0 %v7462
      %10058 = vmatpush.bf16.msra.mxu0 %v7460
      %10059 = vmatpush.bf16.msra.mxu0 %v7458
      %10060 = vmatpush.bf16.msra.mxu0 %v7456
      %10061 = vmatpush.bf16.msra.mxu0 %v7454
      %10062 = vmatpush.bf16.msra.mxu0 %v7452
      %10063 = vmatpush.bf16.msra.mxu0 %v7450
      %10064 = vmatpush.bf16.msra.mxu0 %v7448
      %10065 = vmatmul.bf16.gmra.mxu0 %v9738
      %v10066 = vpop.f32.mrf.mxu0
      %v10067 = vadd.f32 0.0, %v10066
      %v10068 = vpop.f32.mrf.mxu0
      %v10069 = vadd.f32 0.0, %v10068
      %10070 = vmatmul.bf16.gmra.mxu0 %v9740
      %v10071 = vpop.f32.mrf.mxu0
      %v10072 = vadd.f32 0.0, %v10071
      %v10073 = vpop.f32.mrf.mxu0
      %v10074 = vadd.f32 0.0, %v10073
      %10075 = vdwg.mxu0
      %10076 = vmatpush.bf16.msra.mxu0 %v7478
      %10077 = vmatpush.bf16.msra.mxu0 %v7476
      %10078 = vmatpush.bf16.msra.mxu0 %v7474
      %10079 = vmatpush.bf16.msra.mxu0 %v7472
      %10080 = vmatpush.bf16.msra.mxu0 %v7470
      %10081 = vmatpush.bf16.msra.mxu0 %v7468
      %10082 = vmatpush.bf16.msra.mxu0 %v7466
      %10083 = vmatpush.bf16.msra.mxu0 %v7464
      %10084 = vmatmul.bf16.gmra.mxu0 %v9739
      %v10085 = vpop.f32.mrf.mxu0
      %v10086 = vadd.f32 %v10067, %v10085
      %v10087 = vpop.f32.mrf.mxu0
      %v10088 = vadd.f32 %v10069, %v10087
      %10089 = vmatmul.bf16.gmra.mxu0 %v9741
      %v10090 = vpop.f32.mrf.mxu0
      %v10091 = vadd.f32 %v10072, %v10090
      %v10092 = vpop.f32.mrf.mxu0
      %v10093 = vadd.f32 %v10074, %v10092
      %10094 = vdwg.mxu0
      %v10095 = vpack.c.bf16 %v10050, %v10048
      %v10096 = vpack.c.bf16 %v10088, %v10086
      %v10097 = vpack.c.bf16 %v10055, %v10053
      %v10098 = vpack.c.bf16 %v10093, %v10091
      %s10099 = scalar_lea.vmem %s25, 32
      %v10100 = vld [vmem:[%s10099] sm:$0xf]
      %v10101 = vld [vmem:[%s10099 + $0x4] sm:$0xf]
      %v10102 = vld [vmem:[%s10099 + $0x8] sm:$0xf]
      %v10103 = vld [vmem:[%s10099 + $0xc] sm:$0xf]
      %v10108 = vunpack.c.l.b16 %v10100
      %v10109 = vunpack.c.l.b16 %v10101
      %v10110 = vunpack.c.l.b16 %v10102
      %v10111 = vunpack.c.l.b16 %v10103
      %v10112 = vpack.c.b16 %v10109, %v10108
      %v10113 = vpack.c.b16 %v10111, %v10110
      %v10115 = vsel %vm7219, %v10112, 0
      %v10118 = vsel %vm7219, %v10113, 0
      %10120 = vmatpush.bf16.msra.mxu0 0
      %10121 = vmatpush.bf16.msra.mxu0 0
      %10122 = vmatpush.bf16.msra.mxu0 0
      %10123 = vmatpush.bf16.msra.mxu0 0
      %10124 = vmatpush.bf16.msra.mxu0 0
      %10125 = vmatpush.bf16.msra.mxu0 0
      %10126 = vmatpush.bf16.msra.mxu0 %v10097
      %10127 = vmatpush.bf16.msra.mxu0 %v10095
      %10128 = vmatmul.bf16.gmra.mxu0 %v10115
      %v10129 = vpop.f32.mrf.mxu0
      %v10130 = vadd.f32 0.0, %v10129
      %v10131 = vpop.f32.mrf.mxu0
      %v10132 = vadd.f32 0.0, %v10131
      %10133 = vmatmul.bf16.gmra.mxu0 %v10118
      %v10134 = vpop.f32.mrf.mxu0
      %v10135 = vadd.f32 0.0, %v10134
      %v10136 = vpop.f32.mrf.mxu0
      %v10137 = vadd.f32 0.0, %v10136
      %10138 = vdwg.mxu0
      %10139 = vmatpush.bf16.msra.mxu0 0
      %10140 = vmatpush.bf16.msra.mxu0 0
      %10141 = vmatpush.bf16.msra.mxu0 0
      %10142 = vmatpush.bf16.msra.mxu0 0
      %10143 = vmatpush.bf16.msra.mxu0 0
      %10144 = vmatpush.bf16.msra.mxu0 0
      %10145 = vmatpush.bf16.msra.mxu0 %v10098
      %10146 = vmatpush.bf16.msra.mxu0 %v10096
      %10147 = vmatmul.bf16.gmra.mxu0 %v10115
      %v10148 = vpop.f32.mrf.mxu0
      %v10149 = vadd.f32 0.0, %v10148
      %v10150 = vpop.f32.mrf.mxu0
      %v10151 = vadd.f32 0.0, %v10150
      %10152 = vmatmul.bf16.gmra.mxu0 %v10118
      %v10153 = vpop.f32.mrf.mxu0
      %v10154 = vadd.f32 0.0, %v10153
      %v10155 = vpop.f32.mrf.mxu0
      %v10156 = vadd.f32 0.0, %v10155
      %10157 = vdwg.mxu0
      %v10158 = vadd.f32 %v9991, %v10130
      %v10159 = vadd.f32 %v10010, %v10149
      %v10160 = vadd.f32 %v9993, %v10132
      %v10161 = vadd.f32 %v10012, %v10151
      %v10162 = vadd.f32 %v9996, %v10135
      %v10163 = vadd.f32 %v10015, %v10154
      %v10164 = vadd.f32 %v9998, %v10137
      %v10165 = vadd.f32 %v10017, %v10156
      %10166 = vmatpush.bf16.msra.mxu0 %v7801
      %10167 = vmatpush.bf16.msra.mxu0 %v7799
      %10168 = vmatpush.bf16.msra.mxu0 %v7797
      %10169 = vmatpush.bf16.msra.mxu0 %v7795
      %10170 = vmatpush.bf16.msra.mxu0 %v7793
      %10171 = vmatpush.bf16.msra.mxu0 %v7791
      %10172 = vmatpush.bf16.msra.mxu0 %v7789
      %10173 = vmatpush.bf16.msra.mxu0 %v7787
      %10174 = vmatmul.bf16.gmra.mxu0 %v9738
      %v10175 = vpop.f32.mrf.mxu0
      %v10176 = vadd.f32 0.0, %v10175
      %v10177 = vpop.f32.mrf.mxu0
      %v10178 = vadd.f32 0.0, %v10177
      %10179 = vmatmul.bf16.gmra.mxu0 %v9740
      %v10180 = vpop.f32.mrf.mxu0
      %v10181 = vadd.f32 0.0, %v10180
      %v10182 = vpop.f32.mrf.mxu0
      %v10183 = vadd.f32 0.0, %v10182
      %10184 = vdwg.mxu0
      %10185 = vmatpush.bf16.msra.mxu0 %v7817
      %10186 = vmatpush.bf16.msra.mxu0 %v7815
      %10187 = vmatpush.bf16.msra.mxu0 %v7813
      %10188 = vmatpush.bf16.msra.mxu0 %v7811
      %10189 = vmatpush.bf16.msra.mxu0 %v7809
      %10190 = vmatpush.bf16.msra.mxu0 %v7807
      %10191 = vmatpush.bf16.msra.mxu0 %v7805
      %10192 = vmatpush.bf16.msra.mxu0 %v7803
      %10193 = vmatmul.bf16.gmra.mxu0 %v9739
      %v10194 = vpop.f32.mrf.mxu0
      %v10195 = vadd.f32 %v10176, %v10194
      %v10196 = vpop.f32.mrf.mxu0
      %v10197 = vadd.f32 %v10178, %v10196
      %10198 = vmatmul.bf16.gmra.mxu0 %v9741
      %v10199 = vpop.f32.mrf.mxu0
      %v10200 = vadd.f32 %v10181, %v10199
      %v10201 = vpop.f32.mrf.mxu0
      %v10202 = vadd.f32 %v10183, %v10201
      %10203 = vdwg.mxu0
      %10204 = vmatpush.bf16.msra.mxu0 %v7802
      %10205 = vmatpush.bf16.msra.mxu0 %v7800
      %10206 = vmatpush.bf16.msra.mxu0 %v7798
      %10207 = vmatpush.bf16.msra.mxu0 %v7796
      %10208 = vmatpush.bf16.msra.mxu0 %v7794
      %10209 = vmatpush.bf16.msra.mxu0 %v7792
      %10210 = vmatpush.bf16.msra.mxu0 %v7790
      %10211 = vmatpush.bf16.msra.mxu0 %v7788
      %10212 = vmatmul.bf16.gmra.mxu0 %v9738
      %v10213 = vpop.f32.mrf.mxu0
      %v10214 = vadd.f32 0.0, %v10213
      %v10215 = vpop.f32.mrf.mxu0
      %v10216 = vadd.f32 0.0, %v10215
      %10217 = vmatmul.bf16.gmra.mxu0 %v9740
      %v10218 = vpop.f32.mrf.mxu0
      %v10219 = vadd.f32 0.0, %v10218
      %v10220 = vpop.f32.mrf.mxu0
      %v10221 = vadd.f32 0.0, %v10220
      %10222 = vdwg.mxu0
      %10223 = vmatpush.bf16.msra.mxu0 %v7818
      %10224 = vmatpush.bf16.msra.mxu0 %v7816
      %10225 = vmatpush.bf16.msra.mxu0 %v7814
      %10226 = vmatpush.bf16.msra.mxu0 %v7812
      %10227 = vmatpush.bf16.msra.mxu0 %v7810
      %10228 = vmatpush.bf16.msra.mxu0 %v7808
      %10229 = vmatpush.bf16.msra.mxu0 %v7806
      %10230 = vmatpush.bf16.msra.mxu0 %v7804
      %10231 = vmatmul.bf16.gmra.mxu0 %v9739
      %v10232 = vpop.f32.mrf.mxu0
      %v10233 = vadd.f32 %v10214, %v10232
      %v10234 = vpop.f32.mrf.mxu0
      %v10235 = vadd.f32 %v10216, %v10234
      %10236 = vmatmul.bf16.gmra.mxu0 %v9741
      %v10237 = vpop.f32.mrf.mxu0
      %v10238 = vadd.f32 %v10219, %v10237
      %v10239 = vpop.f32.mrf.mxu0
      %v10240 = vadd.f32 %v10221, %v10239
      %10241 = vdwg.mxu0
      %v10242 = vpack.c.bf16 %v10197, %v10195
      %v10243 = vpack.c.bf16 %v10235, %v10233
      %v10244 = vpack.c.bf16 %v10202, %v10200
      %v10245 = vpack.c.bf16 %v10240, %v10238
      %s10246 = scalar_lea.vmem %s25, 48
      %v10247 = vld [vmem:[%s10246] sm:$0xf]
      %v10248 = vld [vmem:[%s10246 + $0x4] sm:$0xf]
      %v10249 = vld [vmem:[%s10246 + $0x8] sm:$0xf]
      %v10250 = vld [vmem:[%s10246 + $0xc] sm:$0xf]
      %v10255 = vunpack.c.l.b16 %v10247
      %v10256 = vunpack.c.l.b16 %v10248
      %v10257 = vunpack.c.l.b16 %v10249
      %v10258 = vunpack.c.l.b16 %v10250
      %v10259 = vpack.c.b16 %v10256, %v10255
      %v10260 = vpack.c.b16 %v10258, %v10257
      %v10262 = vsel %vm7219, %v10259, 0
      %v10265 = vsel %vm7219, %v10260, 0
      %10267 = vmatpush.bf16.msra.mxu0 0
      %10268 = vmatpush.bf16.msra.mxu0 0
      %10269 = vmatpush.bf16.msra.mxu0 0
      %10270 = vmatpush.bf16.msra.mxu0 0
      %10271 = vmatpush.bf16.msra.mxu0 0
      %10272 = vmatpush.bf16.msra.mxu0 0
      %10273 = vmatpush.bf16.msra.mxu0 %v10244
      %10274 = vmatpush.bf16.msra.mxu0 %v10242
      %10275 = vmatmul.bf16.gmra.mxu0 %v10262
      %v10276 = vpop.f32.mrf.mxu0
      %v10277 = vadd.f32 0.0, %v10276
      %v10278 = vpop.f32.mrf.mxu0
      %v10279 = vadd.f32 0.0, %v10278
      %10280 = vmatmul.bf16.gmra.mxu0 %v10265
      %v10281 = vpop.f32.mrf.mxu0
      %v10282 = vadd.f32 0.0, %v10281
      %v10283 = vpop.f32.mrf.mxu0
      %v10284 = vadd.f32 0.0, %v10283
      %10285 = vdwg.mxu0
      %10286 = vmatpush.bf16.msra.mxu0 0
      %10287 = vmatpush.bf16.msra.mxu0 0
      %10288 = vmatpush.bf16.msra.mxu0 0
      %10289 = vmatpush.bf16.msra.mxu0 0
      %10290 = vmatpush.bf16.msra.mxu0 0
      %10291 = vmatpush.bf16.msra.mxu0 0
      %10292 = vmatpush.bf16.msra.mxu0 %v10245
      %10293 = vmatpush.bf16.msra.mxu0 %v10243
      %10294 = vmatmul.bf16.gmra.mxu0 %v10262
      %v10295 = vpop.f32.mrf.mxu0
      %v10296 = vadd.f32 0.0, %v10295
      %v10297 = vpop.f32.mrf.mxu0
      %v10298 = vadd.f32 0.0, %v10297
      %10299 = vmatmul.bf16.gmra.mxu0 %v10265
      %v10300 = vpop.f32.mrf.mxu0
      %v10301 = vadd.f32 0.0, %v10300
      %v10302 = vpop.f32.mrf.mxu0
      %v10303 = vadd.f32 0.0, %v10302
      %10304 = vdwg.mxu0
      %v10305 = vadd.f32 %v10158, %v10277
      %v10306 = vadd.f32 %v10159, %v10296
      %v10307 = vadd.f32 %v10160, %v10279
      %v10308 = vadd.f32 %v10161, %v10298
      %v10309 = vadd.f32 %v10162, %v10282
      %v10310 = vadd.f32 %v10163, %v10301
      %v10311 = vadd.f32 %v10164, %v10284
      %v10312 = vadd.f32 %v10165, %v10303
      %10313 = vmatpush.bf16.msra.mxu0 %v8141
      %10314 = vmatpush.bf16.msra.mxu0 %v8139
      %10315 = vmatpush.bf16.msra.mxu0 %v8137
      %10316 = vmatpush.bf16.msra.mxu0 %v8135
      %10317 = vmatpush.bf16.msra.mxu0 %v8133
      %10318 = vmatpush.bf16.msra.mxu0 %v8131
      %10319 = vmatpush.bf16.msra.mxu0 %v8129
      %10320 = vmatpush.bf16.msra.mxu0 %v8127
      %10321 = vmatmul.bf16.gmra.mxu0 %v9738
      %v10322 = vpop.f32.mrf.mxu0
      %v10323 = vadd.f32 0.0, %v10322
      %v10324 = vpop.f32.mrf.mxu0
      %v10325 = vadd.f32 0.0, %v10324
      %10326 = vmatmul.bf16.gmra.mxu0 %v9740
      %v10327 = vpop.f32.mrf.mxu0
      %v10328 = vadd.f32 0.0, %v10327
      %v10329 = vpop.f32.mrf.mxu0
      %v10330 = vadd.f32 0.0, %v10329
      %10331 = vdwg.mxu0
      %10332 = vmatpush.bf16.msra.mxu0 %v8157
      %10333 = vmatpush.bf16.msra.mxu0 %v8155
      %10334 = vmatpush.bf16.msra.mxu0 %v8153
      %10335 = vmatpush.bf16.msra.mxu0 %v8151
      %10336 = vmatpush.bf16.msra.mxu0 %v8149
      %10337 = vmatpush.bf16.msra.mxu0 %v8147
      %10338 = vmatpush.bf16.msra.mxu0 %v8145
      %10339 = vmatpush.bf16.msra.mxu0 %v8143
      %10340 = vmatmul.bf16.gmra.mxu0 %v9739
      %v10341 = vpop.f32.mrf.mxu0
      %v10342 = vadd.f32 %v10323, %v10341
      %v10343 = vpop.f32.mrf.mxu0
      %v10344 = vadd.f32 %v10325, %v10343
      %10345 = vmatmul.bf16.gmra.mxu0 %v9741
      %v10346 = vpop.f32.mrf.mxu0
      %v10347 = vadd.f32 %v10328, %v10346
      %v10348 = vpop.f32.mrf.mxu0
      %v10349 = vadd.f32 %v10330, %v10348
      %10350 = vdwg.mxu0
      %10351 = vmatpush.bf16.msra.mxu0 %v8142
      %10352 = vmatpush.bf16.msra.mxu0 %v8140
      %10353 = vmatpush.bf16.msra.mxu0 %v8138
      %10354 = vmatpush.bf16.msra.mxu0 %v8136
      %10355 = vmatpush.bf16.msra.mxu0 %v8134
      %10356 = vmatpush.bf16.msra.mxu0 %v8132
      %10357 = vmatpush.bf16.msra.mxu0 %v8130
      %10358 = vmatpush.bf16.msra.mxu0 %v8128
      %10359 = vmatmul.bf16.gmra.mxu0 %v9738
      %v10360 = vpop.f32.mrf.mxu0
      %v10361 = vadd.f32 0.0, %v10360
      %v10362 = vpop.f32.mrf.mxu0
      %v10363 = vadd.f32 0.0, %v10362
      %10364 = vmatmul.bf16.gmra.mxu0 %v9740
      %v10365 = vpop.f32.mrf.mxu0
      %v10366 = vadd.f32 0.0, %v10365
      %v10367 = vpop.f32.mrf.mxu0
      %v10368 = vadd.f32 0.0, %v10367
      %10369 = vdwg.mxu0
      %10370 = vmatpush.bf16.msra.mxu0 %v8158
      %10371 = vmatpush.bf16.msra.mxu0 %v8156
      %10372 = vmatpush.bf16.msra.mxu0 %v8154
      %10373 = vmatpush.bf16.msra.mxu0 %v8152
      %10374 = vmatpush.bf16.msra.mxu0 %v8150
      %10375 = vmatpush.bf16.msra.mxu0 %v8148
      %10376 = vmatpush.bf16.msra.mxu0 %v8146
      %10377 = vmatpush.bf16.msra.mxu0 %v8144
      %10378 = vmatmul.bf16.gmra.mxu0 %v9739
      %v10379 = vpop.f32.mrf.mxu0
      %v10380 = vadd.f32 %v10361, %v10379
      %v10381 = vpop.f32.mrf.mxu0
      %v10382 = vadd.f32 %v10363, %v10381
      %10383 = vmatmul.bf16.gmra.mxu0 %v9741
      %v10384 = vpop.f32.mrf.mxu0
      %v10385 = vadd.f32 %v10366, %v10384
      %v10386 = vpop.f32.mrf.mxu0
      %v10387 = vadd.f32 %v10368, %v10386
      %10388 = vdwg.mxu0
      %v10389 = vpack.c.bf16 %v10344, %v10342
      %v10390 = vpack.c.bf16 %v10382, %v10380
      %v10391 = vpack.c.bf16 %v10349, %v10347
      %v10392 = vpack.c.bf16 %v10387, %v10385
      %s10393 = scalar_lea.vmem %s25, 64
      %v10394 = vld [vmem:[%s10393] sm:$0xf]
      %v10395 = vld [vmem:[%s10393 + $0x4] sm:$0xf]
      %v10396 = vld [vmem:[%s10393 + $0x8] sm:$0xf]
      %v10397 = vld [vmem:[%s10393 + $0xc] sm:$0xf]
      %v10402 = vunpack.c.l.b16 %v10394
      %v10403 = vunpack.c.l.b16 %v10395
      %v10404 = vunpack.c.l.b16 %v10396
      %v10405 = vunpack.c.l.b16 %v10397
      %v10406 = vpack.c.b16 %v10403, %v10402
      %v10407 = vpack.c.b16 %v10405, %v10404
      %v10409 = vsel %vm7219, %v10406, 0
      %v10412 = vsel %vm7219, %v10407, 0
      %10414 = vmatpush.bf16.msra.mxu0 0
      %10415 = vmatpush.bf16.msra.mxu0 0
      %10416 = vmatpush.bf16.msra.mxu0 0
      %10417 = vmatpush.bf16.msra.mxu0 0
      %10418 = vmatpush.bf16.msra.mxu0 0
      %10419 = vmatpush.bf16.msra.mxu0 0
      %10420 = vmatpush.bf16.msra.mxu0 %v10391
      %10421 = vmatpush.bf16.msra.mxu0 %v10389
      %10422 = vmatmul.bf16.gmra.mxu0 %v10409
      %v10423 = vpop.f32.mrf.mxu0
      %v10424 = vadd.f32 0.0, %v10423
      %v10425 = vpop.f32.mrf.mxu0
      %v10426 = vadd.f32 0.0, %v10425
      %10427 = vmatmul.bf16.gmra.mxu0 %v10412
      %v10428 = vpop.f32.mrf.mxu0
      %v10429 = vadd.f32 0.0, %v10428
      %v10430 = vpop.f32.mrf.mxu0
      %v10431 = vadd.f32 0.0, %v10430
      %10432 = vdwg.mxu0
      %10433 = vmatpush.bf16.msra.mxu0 0
      %10434 = vmatpush.bf16.msra.mxu0 0
      %10435 = vmatpush.bf16.msra.mxu0 0
      %10436 = vmatpush.bf16.msra.mxu0 0
      %10437 = vmatpush.bf16.msra.mxu0 0
      %10438 = vmatpush.bf16.msra.mxu0 0
      %10439 = vmatpush.bf16.msra.mxu0 %v10392
      %10440 = vmatpush.bf16.msra.mxu0 %v10390
      %10441 = vmatmul.bf16.gmra.mxu0 %v10409
      %v10442 = vpop.f32.mrf.mxu0
      %v10443 = vadd.f32 0.0, %v10442
      %v10444 = vpop.f32.mrf.mxu0
      %v10445 = vadd.f32 0.0, %v10444
      %10446 = vmatmul.bf16.gmra.mxu0 %v10412
      %v10447 = vpop.f32.mrf.mxu0
      %v10448 = vadd.f32 0.0, %v10447
      %v10449 = vpop.f32.mrf.mxu0
      %v10450 = vadd.f32 0.0, %v10449
      %10451 = vdwg.mxu0
      %v10452 = vadd.f32 %v10305, %v10424
      %v10453 = vadd.f32 %v10306, %v10443
      %v10454 = vadd.f32 %v10307, %v10426
      %v10455 = vadd.f32 %v10308, %v10445
      %v10456 = vadd.f32 %v10309, %v10429
      %v10457 = vadd.f32 %v10310, %v10448
      %v10458 = vadd.f32 %v10311, %v10431
      %v10459 = vadd.f32 %v10312, %v10450
      %10460 = vmatpush.bf16.msra.mxu0 %v8481
      %10461 = vmatpush.bf16.msra.mxu0 %v8479
      %10462 = vmatpush.bf16.msra.mxu0 %v8477
      %10463 = vmatpush.bf16.msra.mxu0 %v8475
      %10464 = vmatpush.bf16.msra.mxu0 %v8473
      %10465 = vmatpush.bf16.msra.mxu0 %v8471
      %10466 = vmatpush.bf16.msra.mxu0 %v8469
      %10467 = vmatpush.bf16.msra.mxu0 %v8467
      %10468 = vmatmul.bf16.gmra.mxu0 %v9738
      %v10469 = vpop.f32.mrf.mxu0
      %v10470 = vadd.f32 0.0, %v10469
      %v10471 = vpop.f32.mrf.mxu0
      %v10472 = vadd.f32 0.0, %v10471
      %10473 = vmatmul.bf16.gmra.mxu0 %v9740
      %v10474 = vpop.f32.mrf.mxu0
      %v10475 = vadd.f32 0.0, %v10474
      %v10476 = vpop.f32.mrf.mxu0
      %v10477 = vadd.f32 0.0, %v10476
      %10478 = vdwg.mxu0
      %10479 = vmatpush.bf16.msra.mxu0 %v8497
      %10480 = vmatpush.bf16.msra.mxu0 %v8495
      %10481 = vmatpush.bf16.msra.mxu0 %v8493
      %10482 = vmatpush.bf16.msra.mxu0 %v8491
      %10483 = vmatpush.bf16.msra.mxu0 %v8489
      %10484 = vmatpush.bf16.msra.mxu0 %v8487
      %10485 = vmatpush.bf16.msra.mxu0 %v8485
      %10486 = vmatpush.bf16.msra.mxu0 %v8483
      %10487 = vmatmul.bf16.gmra.mxu0 %v9739
      %v10488 = vpop.f32.mrf.mxu0
      %v10489 = vadd.f32 %v10470, %v10488
      %v10490 = vpop.f32.mrf.mxu0
      %v10491 = vadd.f32 %v10472, %v10490
      %10492 = vmatmul.bf16.gmra.mxu0 %v9741
      %v10493 = vpop.f32.mrf.mxu0
      %v10494 = vadd.f32 %v10475, %v10493
      %v10495 = vpop.f32.mrf.mxu0
      %v10496 = vadd.f32 %v10477, %v10495
      %10497 = vdwg.mxu0
      %10498 = vmatpush.bf16.msra.mxu0 %v8482
      %10499 = vmatpush.bf16.msra.mxu0 %v8480
      %10500 = vmatpush.bf16.msra.mxu0 %v8478
      %10501 = vmatpush.bf16.msra.mxu0 %v8476
      %10502 = vmatpush.bf16.msra.mxu0 %v8474
      %10503 = vmatpush.bf16.msra.mxu0 %v8472
      %10504 = vmatpush.bf16.msra.mxu0 %v8470
      %10505 = vmatpush.bf16.msra.mxu0 %v8468
      %10506 = vmatmul.bf16.gmra.mxu0 %v9738
      %v10507 = vpop.f32.mrf.mxu0
      %v10508 = vadd.f32 0.0, %v10507
      %v10509 = vpop.f32.mrf.mxu0
      %v10510 = vadd.f32 0.0, %v10509
      %10511 = vmatmul.bf16.gmra.mxu0 %v9740
      %v10512 = vpop.f32.mrf.mxu0
      %v10513 = vadd.f32 0.0, %v10512
      %v10514 = vpop.f32.mrf.mxu0
      %v10515 = vadd.f32 0.0, %v10514
      %10516 = vdwg.mxu0
      %10517 = vmatpush.bf16.msra.mxu0 %v8498
      %10518 = vmatpush.bf16.msra.mxu0 %v8496
      %10519 = vmatpush.bf16.msra.mxu0 %v8494
      %10520 = vmatpush.bf16.msra.mxu0 %v8492
      %10521 = vmatpush.bf16.msra.mxu0 %v8490
      %10522 = vmatpush.bf16.msra.mxu0 %v8488
      %10523 = vmatpush.bf16.msra.mxu0 %v8486
      %10524 = vmatpush.bf16.msra.mxu0 %v8484
      %10525 = vmatmul.bf16.gmra.mxu0 %v9739
      %v10526 = vpop.f32.mrf.mxu0
      %v10527 = vadd.f32 %v10508, %v10526
      %v10528 = vpop.f32.mrf.mxu0
      %v10529 = vadd.f32 %v10510, %v10528
      %10530 = vmatmul.bf16.gmra.mxu0 %v9741
      %v10531 = vpop.f32.mrf.mxu0
      %v10532 = vadd.f32 %v10513, %v10531
      %v10533 = vpop.f32.mrf.mxu0
      %v10534 = vadd.f32 %v10515, %v10533
      %10535 = vdwg.mxu0
      %v10536 = vpack.c.bf16 %v10491, %v10489
      %v10537 = vpack.c.bf16 %v10529, %v10527
      %v10538 = vpack.c.bf16 %v10496, %v10494
      %v10539 = vpack.c.bf16 %v10534, %v10532
      %s10540 = scalar_lea.vmem %s25, 80
      %v10541 = vld [vmem:[%s10540] sm:$0xf]
      %v10542 = vld [vmem:[%s10540 + $0x4] sm:$0xf]
      %v10543 = vld [vmem:[%s10540 + $0x8] sm:$0xf]
      %v10544 = vld [vmem:[%s10540 + $0xc] sm:$0xf]
      %v10549 = vunpack.c.l.b16 %v10541
      %v10550 = vunpack.c.l.b16 %v10542
      %v10551 = vunpack.c.l.b16 %v10543
      %v10552 = vunpack.c.l.b16 %v10544
      %v10553 = vpack.c.b16 %v10550, %v10549
      %v10554 = vpack.c.b16 %v10552, %v10551
      %v10556 = vsel %vm7219, %v10553, 0
      %v10559 = vsel %vm7219, %v10554, 0
      %10561 = vmatpush.bf16.msra.mxu0 0
      %10562 = vmatpush.bf16.msra.mxu0 0
      %10563 = vmatpush.bf16.msra.mxu0 0
      %10564 = vmatpush.bf16.msra.mxu0 0
      %10565 = vmatpush.bf16.msra.mxu0 0
      %10566 = vmatpush.bf16.msra.mxu0 0
      %10567 = vmatpush.bf16.msra.mxu0 %v10538
      %10568 = vmatpush.bf16.msra.mxu0 %v10536
      %10569 = vmatmul.bf16.gmra.mxu0 %v10556
      %v10570 = vpop.f32.mrf.mxu0
      %v10571 = vadd.f32 0.0, %v10570
      %v10572 = vpop.f32.mrf.mxu0
      %v10573 = vadd.f32 0.0, %v10572
      %10574 = vmatmul.bf16.gmra.mxu0 %v10559
      %v10575 = vpop.f32.mrf.mxu0
      %v10576 = vadd.f32 0.0, %v10575
      %v10577 = vpop.f32.mrf.mxu0
      %v10578 = vadd.f32 0.0, %v10577
      %10579 = vdwg.mxu0
      %10580 = vmatpush.bf16.msra.mxu0 0
      %10581 = vmatpush.bf16.msra.mxu0 0
      %10582 = vmatpush.bf16.msra.mxu0 0
      %10583 = vmatpush.bf16.msra.mxu0 0
      %10584 = vmatpush.bf16.msra.mxu0 0
      %10585 = vmatpush.bf16.msra.mxu0 0
      %10586 = vmatpush.bf16.msra.mxu0 %v10539
      %10587 = vmatpush.bf16.msra.mxu0 %v10537
      %10588 = vmatmul.bf16.gmra.mxu0 %v10556
      %v10589 = vpop.f32.mrf.mxu0
      %v10590 = vadd.f32 0.0, %v10589
      %v10591 = vpop.f32.mrf.mxu0
      %v10592 = vadd.f32 0.0, %v10591
      %10593 = vmatmul.bf16.gmra.mxu0 %v10559
      %v10594 = vpop.f32.mrf.mxu0
      %v10595 = vadd.f32 0.0, %v10594
      %v10596 = vpop.f32.mrf.mxu0
      %v10597 = vadd.f32 0.0, %v10596
      %10598 = vdwg.mxu0
      %v10599 = vadd.f32 %v10452, %v10571
      %v10600 = vadd.f32 %v10453, %v10590
      %v10601 = vadd.f32 %v10454, %v10573
      %v10602 = vadd.f32 %v10455, %v10592
      %v10603 = vadd.f32 %v10456, %v10576
      %v10604 = vadd.f32 %v10457, %v10595
      %v10605 = vadd.f32 %v10458, %v10578
      %v10606 = vadd.f32 %v10459, %v10597
      %10607 = vmatpush.bf16.msra.mxu0 %v8821
      %10608 = vmatpush.bf16.msra.mxu0 %v8819
      %10609 = vmatpush.bf16.msra.mxu0 %v8817
      %10610 = vmatpush.bf16.msra.mxu0 %v8815
      %10611 = vmatpush.bf16.msra.mxu0 %v8813
      %10612 = vmatpush.bf16.msra.mxu0 %v8811
      %10613 = vmatpush.bf16.msra.mxu0 %v8809
      %10614 = vmatpush.bf16.msra.mxu0 %v8807
      %10615 = vmatmul.bf16.gmra.mxu0 %v9738
      %v10616 = vpop.f32.mrf.mxu0
      %v10617 = vadd.f32 0.0, %v10616
      %v10618 = vpop.f32.mrf.mxu0
      %v10619 = vadd.f32 0.0, %v10618
      %10620 = vmatmul.bf16.gmra.mxu0 %v9740
      %v10621 = vpop.f32.mrf.mxu0
      %v10622 = vadd.f32 0.0, %v10621
      %v10623 = vpop.f32.mrf.mxu0
      %v10624 = vadd.f32 0.0, %v10623
      %10625 = vdwg.mxu0
      %10626 = vmatpush.bf16.msra.mxu0 %v8837
      %10627 = vmatpush.bf16.msra.mxu0 %v8835
      %10628 = vmatpush.bf16.msra.mxu0 %v8833
      %10629 = vmatpush.bf16.msra.mxu0 %v8831
      %10630 = vmatpush.bf16.msra.mxu0 %v8829
      %10631 = vmatpush.bf16.msra.mxu0 %v8827
      %10632 = vmatpush.bf16.msra.mxu0 %v8825
      %10633 = vmatpush.bf16.msra.mxu0 %v8823
      %10634 = vmatmul.bf16.gmra.mxu0 %v9739
      %v10635 = vpop.f32.mrf.mxu0
      %v10636 = vadd.f32 %v10617, %v10635
      %v10637 = vpop.f32.mrf.mxu0
      %v10638 = vadd.f32 %v10619, %v10637
      %10639 = vmatmul.bf16.gmra.mxu0 %v9741
      %v10640 = vpop.f32.mrf.mxu0
      %v10641 = vadd.f32 %v10622, %v10640
      %v10642 = vpop.f32.mrf.mxu0
      %v10643 = vadd.f32 %v10624, %v10642
      %10644 = vdwg.mxu0
      %10645 = vmatpush.bf16.msra.mxu0 %v8822
      %10646 = vmatpush.bf16.msra.mxu0 %v8820
      %10647 = vmatpush.bf16.msra.mxu0 %v8818
      %10648 = vmatpush.bf16.msra.mxu0 %v8816
      %10649 = vmatpush.bf16.msra.mxu0 %v8814
      %10650 = vmatpush.bf16.msra.mxu0 %v8812
      %10651 = vmatpush.bf16.msra.mxu0 %v8810
      %10652 = vmatpush.bf16.msra.mxu0 %v8808
      %10653 = vmatmul.bf16.gmra.mxu0 %v9738
      %v10654 = vpop.f32.mrf.mxu0
      %v10655 = vadd.f32 0.0, %v10654
      %v10656 = vpop.f32.mrf.mxu0
      %v10657 = vadd.f32 0.0, %v10656
      %10658 = vmatmul.bf16.gmra.mxu0 %v9740
      %v10659 = vpop.f32.mrf.mxu0
      %v10660 = vadd.f32 0.0, %v10659
      %v10661 = vpop.f32.mrf.mxu0
      %v10662 = vadd.f32 0.0, %v10661
      %10663 = vdwg.mxu0
      %10664 = vmatpush.bf16.msra.mxu0 %v8838
      %10665 = vmatpush.bf16.msra.mxu0 %v8836
      %10666 = vmatpush.bf16.msra.mxu0 %v8834
      %10667 = vmatpush.bf16.msra.mxu0 %v8832
      %10668 = vmatpush.bf16.msra.mxu0 %v8830
      %10669 = vmatpush.bf16.msra.mxu0 %v8828
      %10670 = vmatpush.bf16.msra.mxu0 %v8826
      %10671 = vmatpush.bf16.msra.mxu0 %v8824
      %10672 = vmatmul.bf16.gmra.mxu0 %v9739
      %v10673 = vpop.f32.mrf.mxu0
      %v10674 = vadd.f32 %v10655, %v10673
      %v10675 = vpop.f32.mrf.mxu0
      %v10676 = vadd.f32 %v10657, %v10675
      %10677 = vmatmul.bf16.gmra.mxu0 %v9741
      %v10678 = vpop.f32.mrf.mxu0
      %v10679 = vadd.f32 %v10660, %v10678
      %v10680 = vpop.f32.mrf.mxu0
      %v10681 = vadd.f32 %v10662, %v10680
      %10682 = vdwg.mxu0
      %v10683 = vpack.c.bf16 %v10638, %v10636
      %v10684 = vpack.c.bf16 %v10676, %v10674
      %v10685 = vpack.c.bf16 %v10643, %v10641
      %v10686 = vpack.c.bf16 %v10681, %v10679
      %s10687 = scalar_lea.vmem %s25, 96
      %v10688 = vld [vmem:[%s10687] sm:$0xf]
      %v10689 = vld [vmem:[%s10687 + $0x4] sm:$0xf]
      %v10690 = vld [vmem:[%s10687 + $0x8] sm:$0xf]
      %v10691 = vld [vmem:[%s10687 + $0xc] sm:$0xf]
      %v10696 = vunpack.c.l.b16 %v10688
      %v10697 = vunpack.c.l.b16 %v10689
      %v10698 = vunpack.c.l.b16 %v10690
      %v10699 = vunpack.c.l.b16 %v10691
      %v10700 = vpack.c.b16 %v10697, %v10696
      %v10701 = vpack.c.b16 %v10699, %v10698
      %v10703 = vsel %vm7219, %v10700, 0
      %v10706 = vsel %vm7219, %v10701, 0
      %10708 = vmatpush.bf16.msra.mxu0 0
      %10709 = vmatpush.bf16.msra.mxu0 0
      %10710 = vmatpush.bf16.msra.mxu0 0
      %10711 = vmatpush.bf16.msra.mxu0 0
      %10712 = vmatpush.bf16.msra.mxu0 0
      %10713 = vmatpush.bf16.msra.mxu0 0
      %10714 = vmatpush.bf16.msra.mxu0 %v10685
      %10715 = vmatpush.bf16.msra.mxu0 %v10683
      %10716 = vmatmul.bf16.gmra.mxu0 %v10703
      %v10717 = vpop.f32.mrf.mxu0
      %v10718 = vadd.f32 0.0, %v10717
      %v10719 = vpop.f32.mrf.mxu0
      %v10720 = vadd.f32 0.0, %v10719
      %10721 = vmatmul.bf16.gmra.mxu0 %v10706
      %v10722 = vpop.f32.mrf.mxu0
      %v10723 = vadd.f32 0.0, %v10722
      %v10724 = vpop.f32.mrf.mxu0
      %v10725 = vadd.f32 0.0, %v10724
      %10726 = vdwg.mxu0
      %10727 = vmatpush.bf16.msra.mxu0 0
      %10728 = vmatpush.bf16.msra.mxu0 0
      %10729 = vmatpush.bf16.msra.mxu0 0
      %10730 = vmatpush.bf16.msra.mxu0 0
      %10731 = vmatpush.bf16.msra.mxu0 0
      %10732 = vmatpush.bf16.msra.mxu0 0
      %10733 = vmatpush.bf16.msra.mxu0 %v10686
      %10734 = vmatpush.bf16.msra.mxu0 %v10684
      %10735 = vmatmul.bf16.gmra.mxu0 %v10703
      %v10736 = vpop.f32.mrf.mxu0
      %v10737 = vadd.f32 0.0, %v10736
      %v10738 = vpop.f32.mrf.mxu0
      %v10739 = vadd.f32 0.0, %v10738
      %10740 = vmatmul.bf16.gmra.mxu0 %v10706
      %v10741 = vpop.f32.mrf.mxu0
      %v10742 = vadd.f32 0.0, %v10741
      %v10743 = vpop.f32.mrf.mxu0
      %v10744 = vadd.f32 0.0, %v10743
      %10745 = vdwg.mxu0
      %v10746 = vadd.f32 %v10599, %v10718
      %v10747 = vadd.f32 %v10600, %v10737
      %v10748 = vadd.f32 %v10601, %v10720
      %v10749 = vadd.f32 %v10602, %v10739
      %v10750 = vadd.f32 %v10603, %v10723
      %v10751 = vadd.f32 %v10604, %v10742
      %v10752 = vadd.f32 %v10605, %v10725
      %v10753 = vadd.f32 %v10606, %v10744
      %10754 = vmatpush.bf16.msra.mxu0 %v9161
      %10755 = vmatpush.bf16.msra.mxu0 %v9159
      %10756 = vmatpush.bf16.msra.mxu0 %v9157
      %10757 = vmatpush.bf16.msra.mxu0 %v9155
      %10758 = vmatpush.bf16.msra.mxu0 %v9153
      %10759 = vmatpush.bf16.msra.mxu0 %v9151
      %10760 = vmatpush.bf16.msra.mxu0 %v9149
      %10761 = vmatpush.bf16.msra.mxu0 %v9147
      %10762 = vmatmul.bf16.gmra.mxu0 %v9738
      %v10763 = vpop.f32.mrf.mxu0
      %v10764 = vadd.f32 0.0, %v10763
      %v10765 = vpop.f32.mrf.mxu0
      %v10766 = vadd.f32 0.0, %v10765
      %10767 = vmatmul.bf16.gmra.mxu0 %v9740
      %v10768 = vpop.f32.mrf.mxu0
      %v10769 = vadd.f32 0.0, %v10768
      %v10770 = vpop.f32.mrf.mxu0
      %v10771 = vadd.f32 0.0, %v10770
      %10772 = vdwg.mxu0
      %10773 = vmatpush.bf16.msra.mxu0 %v9177
      %10774 = vmatpush.bf16.msra.mxu0 %v9175
      %10775 = vmatpush.bf16.msra.mxu0 %v9173
      %10776 = vmatpush.bf16.msra.mxu0 %v9171
      %10777 = vmatpush.bf16.msra.mxu0 %v9169
      %10778 = vmatpush.bf16.msra.mxu0 %v9167
      %10779 = vmatpush.bf16.msra.mxu0 %v9165
      %10780 = vmatpush.bf16.msra.mxu0 %v9163
      %10781 = vmatmul.bf16.gmra.mxu0 %v9739
      %v10782 = vpop.f32.mrf.mxu0
      %v10783 = vadd.f32 %v10764, %v10782
      %v10784 = vpop.f32.mrf.mxu0
      %v10785 = vadd.f32 %v10766, %v10784
      %10786 = vmatmul.bf16.gmra.mxu0 %v9741
      %v10787 = vpop.f32.mrf.mxu0
      %v10788 = vadd.f32 %v10769, %v10787
      %v10789 = vpop.f32.mrf.mxu0
      %v10790 = vadd.f32 %v10771, %v10789
      %10791 = vdwg.mxu0
      %10792 = vmatpush.bf16.msra.mxu0 %v9162
      %10793 = vmatpush.bf16.msra.mxu0 %v9160
      %10794 = vmatpush.bf16.msra.mxu0 %v9158
      %10795 = vmatpush.bf16.msra.mxu0 %v9156
      %10796 = vmatpush.bf16.msra.mxu0 %v9154
      %10797 = vmatpush.bf16.msra.mxu0 %v9152
      %10798 = vmatpush.bf16.msra.mxu0 %v9150
      %10799 = vmatpush.bf16.msra.mxu0 %v9148
      %10800 = vmatmul.bf16.gmra.mxu0 %v9738
      %v10801 = vpop.f32.mrf.mxu0
      %v10802 = vadd.f32 0.0, %v10801
      %v10803 = vpop.f32.mrf.mxu0
      %v10804 = vadd.f32 0.0, %v10803
      %10805 = vmatmul.bf16.gmra.mxu0 %v9740
      %v10806 = vpop.f32.mrf.mxu0
      %v10807 = vadd.f32 0.0, %v10806
      %v10808 = vpop.f32.mrf.mxu0
      %v10809 = vadd.f32 0.0, %v10808
      %10810 = vdwg.mxu0
      %10811 = vmatpush.bf16.msra.mxu0 %v9178
      %10812 = vmatpush.bf16.msra.mxu0 %v9176
      %10813 = vmatpush.bf16.msra.mxu0 %v9174
      %10814 = vmatpush.bf16.msra.mxu0 %v9172
      %10815 = vmatpush.bf16.msra.mxu0 %v9170
      %10816 = vmatpush.bf16.msra.mxu0 %v9168
      %10817 = vmatpush.bf16.msra.mxu0 %v9166
      %10818 = vmatpush.bf16.msra.mxu0 %v9164
      %10819 = vmatmul.bf16.gmra.mxu0 %v9739
      %v10820 = vpop.f32.mrf.mxu0
      %v10821 = vadd.f32 %v10802, %v10820
      %v10822 = vpop.f32.mrf.mxu0
      %v10823 = vadd.f32 %v10804, %v10822
      %10824 = vmatmul.bf16.gmra.mxu0 %v9741
      %v10825 = vpop.f32.mrf.mxu0
      %v10826 = vadd.f32 %v10807, %v10825
      %v10827 = vpop.f32.mrf.mxu0
      %v10828 = vadd.f32 %v10809, %v10827
      %10829 = vdwg.mxu0
      %v10830 = vpack.c.bf16 %v10785, %v10783
      %v10831 = vpack.c.bf16 %v10823, %v10821
      %v10832 = vpack.c.bf16 %v10790, %v10788
      %v10833 = vpack.c.bf16 %v10828, %v10826
      %s10834 = scalar_lea.vmem %s25, 112
      %v10835 = vld [vmem:[%s10834] sm:$0xf]
      %v10836 = vld [vmem:[%s10834 + $0x4] sm:$0xf]
      %v10837 = vld [vmem:[%s10834 + $0x8] sm:$0xf]
      %v10838 = vld [vmem:[%s10834 + $0xc] sm:$0xf]
      %v10843 = vunpack.c.l.b16 %v10835
      %v10844 = vunpack.c.l.b16 %v10836
      %v10845 = vunpack.c.l.b16 %v10837
      %v10846 = vunpack.c.l.b16 %v10838
      %v10847 = vpack.c.b16 %v10844, %v10843
      %v10848 = vpack.c.b16 %v10846, %v10845
      %v10850 = vsel %vm7219, %v10847, 0
      %v10853 = vsel %vm7219, %v10848, 0
      %10855 = vmatpush.bf16.msra.mxu0 0
      %10856 = vmatpush.bf16.msra.mxu0 0
      %10857 = vmatpush.bf16.msra.mxu0 0
      %10858 = vmatpush.bf16.msra.mxu0 0
      %10859 = vmatpush.bf16.msra.mxu0 0
      %10860 = vmatpush.bf16.msra.mxu0 0
      %10861 = vmatpush.bf16.msra.mxu0 %v10832
      %10862 = vmatpush.bf16.msra.mxu0 %v10830
      %10863 = vmatmul.bf16.gmra.mxu0 %v10850
      %v10864 = vpop.f32.mrf.mxu0
      %v10865 = vadd.f32 0.0, %v10864
      %v10866 = vpop.f32.mrf.mxu0
      %v10867 = vadd.f32 0.0, %v10866
      %10868 = vmatmul.bf16.gmra.mxu0 %v10853
      %v10869 = vpop.f32.mrf.mxu0
      %v10870 = vadd.f32 0.0, %v10869
      %v10871 = vpop.f32.mrf.mxu0
      %v10872 = vadd.f32 0.0, %v10871
      %10873 = vdwg.mxu0
      %10874 = vmatpush.bf16.msra.mxu0 0
      %10875 = vmatpush.bf16.msra.mxu0 0
      %10876 = vmatpush.bf16.msra.mxu0 0
      %10877 = vmatpush.bf16.msra.mxu0 0
      %10878 = vmatpush.bf16.msra.mxu0 0
      %10879 = vmatpush.bf16.msra.mxu0 0
      %10880 = vmatpush.bf16.msra.mxu0 %v10833
      %10881 = vmatpush.bf16.msra.mxu0 %v10831
      %10882 = vmatmul.bf16.gmra.mxu0 %v10850
      %v10883 = vpop.f32.mrf.mxu0
      %v10884 = vadd.f32 0.0, %v10883
      %v10885 = vpop.f32.mrf.mxu0
      %v10886 = vadd.f32 0.0, %v10885
      %10887 = vmatmul.bf16.gmra.mxu0 %v10853
      %v10888 = vpop.f32.mrf.mxu0
      %v10889 = vadd.f32 0.0, %v10888
      %v10890 = vpop.f32.mrf.mxu0
      %v10891 = vadd.f32 0.0, %v10890
      %10892 = vdwg.mxu0
      %v10893 = vadd.f32 %v10746, %v10865
      %v10894 = vadd.f32 %v10747, %v10884
      %v10895 = vadd.f32 %v10748, %v10867
      %v10896 = vadd.f32 %v10749, %v10886
      %v10897 = vadd.f32 %v10750, %v10870
      %v10898 = vadd.f32 %v10751, %v10889
      %v10899 = vadd.f32 %v10752, %v10872
      %v10900 = vadd.f32 %v10753, %v10891
      %10901 = vmatpush.bf16.msra.mxu0 %v9501
      %10902 = vmatpush.bf16.msra.mxu0 %v9499
      %10903 = vmatpush.bf16.msra.mxu0 %v9497
      %10904 = vmatpush.bf16.msra.mxu0 %v9495
      %10905 = vmatpush.bf16.msra.mxu0 %v9493
      %10906 = vmatpush.bf16.msra.mxu0 %v9491
      %10907 = vmatpush.bf16.msra.mxu0 %v9489
      %10908 = vmatpush.bf16.msra.mxu0 %v9487
      %10909 = vmatmul.bf16.gmra.mxu0 %v9738
      %v10910 = vpop.f32.mrf.mxu0
      %v10911 = vadd.f32 0.0, %v10910
      %v10912 = vpop.f32.mrf.mxu0
      %v10913 = vadd.f32 0.0, %v10912
      %10914 = vmatmul.bf16.gmra.mxu0 %v9740
      %v10915 = vpop.f32.mrf.mxu0
      %v10916 = vadd.f32 0.0, %v10915
      %v10917 = vpop.f32.mrf.mxu0
      %v10918 = vadd.f32 0.0, %v10917
      %10919 = vdwg.mxu0
      %10920 = vmatpush.bf16.msra.mxu0 %v9517
      %10921 = vmatpush.bf16.msra.mxu0 %v9515
      %10922 = vmatpush.bf16.msra.mxu0 %v9513
      %10923 = vmatpush.bf16.msra.mxu0 %v9511
      %10924 = vmatpush.bf16.msra.mxu0 %v9509
      %10925 = vmatpush.bf16.msra.mxu0 %v9507
      %10926 = vmatpush.bf16.msra.mxu0 %v9505
      %10927 = vmatpush.bf16.msra.mxu0 %v9503
      %10928 = vmatmul.bf16.gmra.mxu0 %v9739
      %v10929 = vpop.f32.mrf.mxu0
      %v10930 = vadd.f32 %v10911, %v10929
      %v10931 = vpop.f32.mrf.mxu0
      %v10932 = vadd.f32 %v10913, %v10931
      %10933 = vmatmul.bf16.gmra.mxu0 %v9741
      %v10934 = vpop.f32.mrf.mxu0
      %v10935 = vadd.f32 %v10916, %v10934
      %v10936 = vpop.f32.mrf.mxu0
      %v10937 = vadd.f32 %v10918, %v10936
      %10938 = vdwg.mxu0
      %10939 = vmatpush.bf16.msra.mxu0 %v9502
      %10940 = vmatpush.bf16.msra.mxu0 %v9500
      %10941 = vmatpush.bf16.msra.mxu0 %v9498
      %10942 = vmatpush.bf16.msra.mxu0 %v9496
      %10943 = vmatpush.bf16.msra.mxu0 %v9494
      %10944 = vmatpush.bf16.msra.mxu0 %v9492
      %10945 = vmatpush.bf16.msra.mxu0 %v9490
      %10946 = vmatpush.bf16.msra.mxu0 %v9488
      %10947 = vmatmul.bf16.gmra.mxu0 %v9738
      %v10948 = vpop.f32.mrf.mxu0
      %v10949 = vadd.f32 0.0, %v10948
      %v10950 = vpop.f32.mrf.mxu0
      %v10951 = vadd.f32 0.0, %v10950
      %10952 = vmatmul.bf16.gmra.mxu0 %v9740
      %v10953 = vpop.f32.mrf.mxu0
      %v10954 = vadd.f32 0.0, %v10953
      %v10955 = vpop.f32.mrf.mxu0
      %v10956 = vadd.f32 0.0, %v10955
      %10957 = vdwg.mxu0
      %10958 = vmatpush.bf16.msra.mxu0 %v9518
      %10959 = vmatpush.bf16.msra.mxu0 %v9516
      %10960 = vmatpush.bf16.msra.mxu0 %v9514
      %10961 = vmatpush.bf16.msra.mxu0 %v9512
      %10962 = vmatpush.bf16.msra.mxu0 %v9510
      %10963 = vmatpush.bf16.msra.mxu0 %v9508
      %10964 = vmatpush.bf16.msra.mxu0 %v9506
      %10965 = vmatpush.bf16.msra.mxu0 %v9504
      %10966 = vmatmul.bf16.gmra.mxu0 %v9739
      %v10967 = vpop.f32.mrf.mxu0
      %v10968 = vadd.f32 %v10949, %v10967
      %v10969 = vpop.f32.mrf.mxu0
      %v10970 = vadd.f32 %v10951, %v10969
      %10971 = vmatmul.bf16.gmra.mxu0 %v9741
      %v10972 = vpop.f32.mrf.mxu0
      %v10973 = vadd.f32 %v10954, %v10972
      %v10974 = vpop.f32.mrf.mxu0
      %v10975 = vadd.f32 %v10956, %v10974
      %10976 = vdwg.mxu0
      %v10977 = vpack.c.bf16 %v10932, %v10930
      %v10978 = vpack.c.bf16 %v10970, %v10968
      %v10979 = vpack.c.bf16 %v10937, %v10935
      %v10980 = vpack.c.bf16 %v10975, %v10973
      %s10981 = scalar_lea.vmem %s25, 128
      %v10982 = vld [vmem:[%s10981] sm:$0xf]
      %v10983 = vld [vmem:[%s10981 + $0x4] sm:$0xf]
      %v10984 = vld [vmem:[%s10981 + $0x8] sm:$0xf]
      %v10985 = vld [vmem:[%s10981 + $0xc] sm:$0xf]
      %v10990 = vunpack.c.l.b16 %v10982
      %v10991 = vunpack.c.l.b16 %v10983
      %v10992 = vunpack.c.l.b16 %v10984
      %v10993 = vunpack.c.l.b16 %v10985
      %v10994 = vpack.c.b16 %v10991, %v10990
      %v10995 = vpack.c.b16 %v10993, %v10992
      %v10997 = vsel %vm7219, %v10994, 0
      %v11000 = vsel %vm7219, %v10995, 0
      %11002 = vmatpush.bf16.msra.mxu0 0
      %11003 = vmatpush.bf16.msra.mxu0 0
      %11004 = vmatpush.bf16.msra.mxu0 0
      %11005 = vmatpush.bf16.msra.mxu0 0
      %11006 = vmatpush.bf16.msra.mxu0 0
      %11007 = vmatpush.bf16.msra.mxu0 0
      %11008 = vmatpush.bf16.msra.mxu0 %v10979
      %11009 = vmatpush.bf16.msra.mxu0 %v10977
      %11010 = vmatmul.bf16.gmra.mxu0 %v10997
      %v11011 = vpop.f32.mrf.mxu0
      %v11012 = vadd.f32 0.0, %v11011
      %v11013 = vpop.f32.mrf.mxu0
      %v11014 = vadd.f32 0.0, %v11013
      %11015 = vmatmul.bf16.gmra.mxu0 %v11000
      %v11016 = vpop.f32.mrf.mxu0
      %v11017 = vadd.f32 0.0, %v11016
      %v11018 = vpop.f32.mrf.mxu0
      %v11019 = vadd.f32 0.0, %v11018
      %11020 = vdwg.mxu0
      %11021 = vmatpush.bf16.msra.mxu0 0
      %11022 = vmatpush.bf16.msra.mxu0 0
      %11023 = vmatpush.bf16.msra.mxu0 0
      %11024 = vmatpush.bf16.msra.mxu0 0
      %11025 = vmatpush.bf16.msra.mxu0 0
      %11026 = vmatpush.bf16.msra.mxu0 0
      %11027 = vmatpush.bf16.msra.mxu0 %v10980
      %11028 = vmatpush.bf16.msra.mxu0 %v10978
      %11029 = vmatmul.bf16.gmra.mxu0 %v10997
      %v11030 = vpop.f32.mrf.mxu0
      %v11031 = vadd.f32 0.0, %v11030
      %v11032 = vpop.f32.mrf.mxu0
      %v11033 = vadd.f32 0.0, %v11032
      %11034 = vmatmul.bf16.gmra.mxu0 %v11000
      %v11035 = vpop.f32.mrf.mxu0
      %v11036 = vadd.f32 0.0, %v11035
      %v11037 = vpop.f32.mrf.mxu0
      %v11038 = vadd.f32 0.0, %v11037
      %11039 = vdwg.mxu0
      %v11040 = vadd.f32 %v10893, %v11012
      %v11041 = vadd.f32 %v10894, %v11031
      %v11042 = vadd.f32 %v10895, %v11014
      %v11043 = vadd.f32 %v10896, %v11033
      %v11044 = vadd.f32 %v10897, %v11017
      %v11045 = vadd.f32 %v10898, %v11036
      %v11046 = vadd.f32 %v10899, %v11019
      %v11047 = vadd.f32 %v10900, %v11038
      %v11048 = vld [vmem:[%s26] sm:$0xff]
      %v11049 = vld [vmem:[%s26 + $0x8] sm:$0xff]
      %v11050 = vld [vmem:[%s26 + $0x10] sm:$0xff]
      %v11051 = vld [vmem:[%s26 + $0x18] sm:$0xff]
      %11053 = vset.pattern.permute.xlu0 0
      %11054 = vperm.xlu0 %11053, %v11048
      %v11055 = vpop.permute.xlu0 %11054
      %11058 = vset.pattern.permute.xlu0 0
      %11059 = vperm.xlu0 %11058, %v11049
      %v11060 = vpop.permute.xlu0 %11059
      %11063 = vset.pattern.permute.xlu0 0
      %11064 = vperm.xlu0 %11063, %v11050
      %v11065 = vpop.permute.xlu0 %11064
      %11068 = vset.pattern.permute.xlu0 0
      %11069 = vperm.xlu0 %11068, %v11051
      %v11070 = vpop.permute.xlu0 %11069
      %v11072 = vadd.f32 %v11040, %v11055
      %v11073 = vadd.f32 %v11041, %v11055
      %v11074 = vadd.f32 %v11042, %v11060
      %v11075 = vadd.f32 %v11043, %v11060
      %v11076 = vadd.f32 %v11044, %v11065
      %v11077 = vadd.f32 %v11045, %v11065
      %v11078 = vadd.f32 %v11046, %v11070
      %v11079 = vadd.f32 %v11047, %v11070
      %v11080 = vmax.f32 %v11072, 0.0
      %v11081 = vmax.f32 %v11073, 0.0
      %v11082 = vmax.f32 %v11074, 0.0
      %v11083 = vmax.f32 %v11075, 0.0
      %v11084 = vmax.f32 %v11076, 0.0
      %v11085 = vmax.f32 %v11077, 0.0
      %v11086 = vmax.f32 %v11078, 0.0
      %v11087 = vmax.f32 %v11079, 0.0
      %11088 = vst [vmem:[%s878] sm:$0xff] %v11080
      %11089 = vst [vmem:[%s878 + $0x8] sm:$0xff] %v11081
      %11090 = vst [vmem:[%s878 + $0x10] sm:$0xff] %v11082
      %11091 = vst [vmem:[%s878 + $0x18] sm:$0xff] %v11083
      %11092 = vst [vmem:[%s878 + $0x20] sm:$0xff] %v11084
      %11093 = vst [vmem:[%s878 + $0x28] sm:$0xff] %v11085
      %11094 = vst [vmem:[%s878 + $0x30] sm:$0xff] %v11086
      %11095 = vst [vmem:[%s878 + $0x38] sm:$0xff] %v11087
      %p11096 = scmp.lt.s32.totalorder %s38, 1
      %s11097 = scalar_select %p11096, %s38, 1
      %s11098 = smul.addr %s11097, 8
      %s11099 = smul.addr %s11098, 8
      %s11100 = scalar_lea.vmem %s27, %s11099
      // Predicated region
      $region129: #{_lambda_.1} parent=127 // pred_check
        %p11101 = pneg %p643
      $region130: #{_lambda_.1} parent=127 // pred_check_branch
        %11103 = sbr.rel (%p11101) target = $region132
      $region131: #{_lambda_.1} parent=127 // pred_region
        _
      $region132: #{_lambda_.1} parent=127 // pred_fallthru
        _
    $region128: #{_lambda_.1} parent=5 // pred_fallthru
      _
    %p11104 = scmp.le.s32.totalorder 2, %s33
    // Predicated region
    $region133: #{_lambda_.1} parent=5 // pred_check
      %p11105 = pneg %p11104
    $region134: #{_lambda_.1} parent=5 // pred_check_branch
      %11107 = sbr.rel (%p11105) target = $region136
    $region135: #{_lambda_.1} parent=5 // pred_region
      %s11108 = ssub.s32 %s33, 2
      // Predicated region
      $region137: #{_lambda_.1} parent=135 // pred_check
        %p11109 = pneg %p649
      $region138: #{_lambda_.1} parent=135 // pred_check_branch
        %11111 = sbr.rel (%p11109) target = $region140
      $region139: #{_lambda_.1} parent=135 // pred_region
        %p11112 = scmp.lt.s32.totalorder %s39, 1
        %s11113 = scalar_select %p11112, %s39, 1
        %s11114 = smul.addr %s11113, 8
        %s11115 = smul.addr %s11114, 8
        %s11116 = scalar_lea.vmem %s27, %s11115
      $region140: #{_lambda_.1} parent=135 // pred_fallthru
        _
    $region136: #{_lambda_.1} parent=5 // pred_fallthru
      _
  $region6: #{_lambda_.1} parent=0 // loop_footer
    %s37 = sadd.s32 1, %s33
  $region7: #{_lambda_.1} parent=0 // loop_footer_branch
    %32 = sbr.rel target = $region3
  $region8: #{_lambda_.1} parent=0 // loop_exit
    _

</llo_original>
